<compile_context>
chip_gen: v7x
topology: tpu7x:2x2x1
jax: 0.10.0
libtpu: 0.0.40
codegen_flags: <defaults>
</compile_context>

<pallas_src>
import jax
import jax.numpy as jnp
from jax.experimental import pallas as pl
from jax.experimental.pallas import tpu as pltpu

# ----------------------------- problem sizes --------------------------------
B, C_IN, H, W = 2, 4, 16, 16
FEAT = 512          # backbone output dim (= projection head input_dim)
HID = 1024          # projection head hidden_dim
OUT = 1024          # projection head output_dim
BN_EPS = 1e-5


# ------------------------------- kernel -------------------------------------
def vicreg_kernel(x_ref, pool_ref, wc_ref, w1_ref, w2_ref, b2_ref, g_ref,
                  beta_ref, o_ref):
    # ---- backbone: 1x1 conv (bf16 matmul, f32 acc) + ReLU -------------------
    a = jnp.dot(x_ref[...], wc_ref[...], preferred_element_type=jnp.float32)
    a = jnp.maximum(a, 0.0).astype(jnp.bfloat16)              # (B*HW, FEAT) bf16

    # ---- global average pool as a pooling matmul on the MXU ----------------
    # pool_ref is a constant (B, B*HW) bf16 matrix with 1/HW per row-block.
    feat = jnp.dot(pool_ref[...], a,
                   preferred_element_type=jnp.float32)        # (B, FEAT) f32

    # ---- projection head layer 1: Linear(512,1024, bias=False) -------------
    h = jnp.dot(feat.astype(jnp.bfloat16), w1_ref[...],
                preferred_element_type=jnp.float32)           # (B, HID) f32

    # ---- BatchNorm1d(1024), training mode (biased batch stats, all f32) ----
    mu = jnp.mean(h, axis=0, keepdims=True)                   # (1, HID)
    var = jnp.mean((h - mu) * (h - mu), axis=0, keepdims=True)
    hn = (h - mu) * jax.lax.rsqrt(var + BN_EPS)
    hn = hn * g_ref[...] + beta_ref[...]                      # gamma/beta (1, HID)
    hr = jnp.maximum(hn, 0.0)                                 # ReLU, f32

    # ---- projection head layer 2: Linear(1024, 1024) + bias ----------------
    z = jnp.dot(hr.astype(jnp.bfloat16), w2_ref[...],
                preferred_element_type=jnp.float32) + b2_ref[...]
    o_ref[...] = z.astype(o_ref.dtype)


# ------------------------------- wrapper -------------------------------------
def prepare_params(params, batch, hw):
    """One-time prep: cache bf16 weight casts + constant pooling matrix."""
    wc, w1, w2, b2, gamma, beta = params
    pool = (jnp.repeat(jnp.eye(batch, dtype=jnp.float32), hw, axis=1)
            * (1.0 / hw)).astype(jnp.bfloat16)                # (B, B*HW)
    return (pool,
            wc.astype(jnp.bfloat16), w1.astype(jnp.bfloat16),
            w2.astype(jnp.bfloat16), b2, gamma, beta)


def vicreg_forward(x_nchw, prepared):
    pool, wc_bf, w1_bf, w2_bf, b2, gamma, beta = prepared
    b, c, h, w = x_nchw.shape
    hw = h * w
    # NCHW -> NHWC -> (B*H*W, C); activations cast to bf16 (tiny, per-call).
    x_bf = jnp.transpose(x_nchw, (0, 2, 3, 1)).reshape(b * hw, c).astype(
        jnp.bfloat16)

    # Single invocation (no grid): whole working set (< 6 MiB incl. the 0.5 MiB
    # bf16 backbone activation) is VMEM-resident on every TPU generation, so
    # there is nothing worth pipelining and no prologue recompute.
    return pl.pallas_call(
        vicreg_kernel,
        out_shape=jax.ShapeDtypeStruct((b, OUT), jnp.float32),
        cost_estimate=pl.CostEstimate(
            flops=9_500_000,            # 2.1M conv + 1.0M pool + 2.1M L1 + 4.2M L2
            transcendentals=1024,       # rsqrt over HID
            bytes_accessed=3_400_000),  # ~3.2 MiB weights + activations/out
    )(x_bf, pool, wc_bf, w1_bf, w2_bf, b2, gamma, beta)


# ------------------------- deterministic parameters --------------------------
def init_params(key):
    k1, k2, k3, k4 = jax.random.split(key, 4)

    def linear_init(k, fan_in, shape):
        bound = 1.0 / jnp.sqrt(fan_in)
        return jax.random.uniform(k, shape, jnp.float32, -bound, bound)

    wc = linear_init(k1, C_IN, (C_IN, FEAT))        # 1x1 conv weight (transposed)
    w1 = linear_init(k2, FEAT, (FEAT, HID))         # Linear1, bias=False
    w2 = linear_init(k3, HID, (HID, OUT))           # Linear2 weight
    b2 = linear_init(k4, HID, (1, OUT))             # Linear2 bias
    gamma = jnp.ones((1, HID), jnp.float32)         # BatchNorm1d weight
    beta = jnp.zeros((1, HID), jnp.float32)         # BatchNorm1d bias
    return wc, w1, w2, b2, gamma, beta


# --------------------------- pure-JAX reference ------------------------------
# Mirrors the kernel's bf16 matmul operands / f32 accumulation (incl. the
# pooling matmul) so the check is tight; full-f32 module semantics differ only
# by bf16 weight rounding (~1e-2 rel).
def vicreg_reference(x_nchw, params):
    wc, w1, w2, b2, gamma, beta = params
    b, c, h, w = x_nchw.shape
    hw = h * w
    x_flat = jnp.transpose(x_nchw, (0, 2, 3, 1)).reshape(b * hw, c)
    a = jnp.maximum(
        jnp.dot(x_flat.astype(jnp.bfloat16), wc.astype(jnp.bfloat16),
                preferred_element_type=jnp.float32), 0.0).astype(jnp.bfloat16)
    pool = (jnp.repeat(jnp.eye(b, dtype=jnp.float32), hw, axis=1)
            * (1.0 / hw)).astype(jnp.bfloat16)
    feat = jnp.dot(pool, a, preferred_element_type=jnp.float32)
    hpre = jnp.dot(feat.astype(jnp.bfloat16), w1.astype(jnp.bfloat16),
                   preferred_element_type=jnp.float32)
    mu = jnp.mean(hpre, axis=0, keepdims=True)
    var = jnp.mean((hpre - mu) ** 2, axis=0, keepdims=True)
    hn = (hpre - mu) * jax.lax.rsqrt(var + BN_EPS) * gamma + beta
    hr = jnp.maximum(hn, 0.0)
    return jnp.dot(hr.astype(jnp.bfloat16), w2.astype(jnp.bfloat16),
                   preferred_element_type=jnp.float32) + b2


# --------------------------------- main --------------------------------------
if __name__ == "__main__":
    key = jax.random.PRNGKey(0)
    kx, kp = jax.random.split(key)
    x = jax.random.normal(kx, (B, C_IN, H, W), jnp.float32)
    params = init_params(kp)
    prepared = prepare_params(params, B, H * W)     # one-time bf16 cast + pool mat

    z = vicreg_forward(x, prepared)
    jax.block_until_ready(z)

    z_ref = vicreg_reference(x, params)
    assert z.shape == (B, OUT)
    assert jnp.allclose(z, z_ref, atol=1e-2, rtol=1e-2), "mismatch vs reference"

    print("KERNEL_OK")
</pallas_src>

<mosaic_0001>
module attributes {stable_mosaic.version = 11 : i64} {
  func.func @vicreg_kernel(%arg0: memref<512x4xbf16, #tpu.memory_space<vmem>>, %arg1: memref<2x512xbf16, #tpu.memory_space<vmem>>, %arg2: memref<4x512xbf16, #tpu.memory_space<vmem>>, %arg3: memref<512x1024xbf16, #tpu.memory_space<vmem>>, %arg4: memref<1024x1024xbf16, #tpu.memory_space<vmem>>, %arg5: memref<1x1024xf32, #tpu.memory_space<vmem>>, %arg6: memref<1x1024xf32, #tpu.memory_space<vmem>>, %arg7: memref<1x1024xf32, #tpu.memory_space<vmem>>, %arg8: memref<2x1024xf32, #tpu.memory_space<vmem>>) attributes {dimension_semantics = [], scalar_prefetch = 0 : i64, scratch_operands = 0 : i64, tpu.core_type = #tpu.core_type<tc>} {
    %c0 = arith.constant 0 : index
    %c0_0 = arith.constant 0 : index
    %0 = vector.load %arg0[%c0, %c0_0] : memref<512x4xbf16, #tpu.memory_space<vmem>>, vector<512x4xbf16>
    %c0_1 = arith.constant 0 : index
    %c0_2 = arith.constant 0 : index
    %1 = vector.load %arg2[%c0_1, %c0_2] : memref<4x512xbf16, #tpu.memory_space<vmem>>, vector<4x512xbf16>
    %cst = arith.constant dense<0.000000e+00> : vector<512x512xf32>
    %2 = tpu.matmul %0, %1, %cst {dimension_numbers = #tpu.dot_dimension_numbers<[1], [0], [0], [1], [0, 0, 1, 1], [], []>} : vector<512x4xbf16>, vector<4x512xbf16>, vector<512x512xf32> -> vector<512x512xf32>
    %cst_3 = arith.constant 0.000000e+00 : f32
    %3 = vector.broadcast %cst_3 : f32 to vector<512x512xf32>
    %4 = arith.maximumf %2, %3 : vector<512x512xf32>
    %5 = arith.truncf %4 : vector<512x512xf32> to vector<512x512xbf16>
    %c0_4 = arith.constant 0 : index
    %c0_5 = arith.constant 0 : index
    %6 = vector.load %arg1[%c0_4, %c0_5] : memref<2x512xbf16, #tpu.memory_space<vmem>>, vector<2x512xbf16>
    %cst_6 = arith.constant dense<0.000000e+00> : vector<2x512xf32>
    %7 = tpu.matmul %6, %5, %cst_6 {dimension_numbers = #tpu.dot_dimension_numbers<[1], [0], [0], [1], [0, 0, 1, 1], [], []>} : vector<2x512xbf16>, vector<512x512xbf16>, vector<2x512xf32> -> vector<2x512xf32>
    %8 = arith.truncf %7 : vector<2x512xf32> to vector<2x512xbf16>
    %c0_7 = arith.constant 0 : index
    %c0_8 = arith.constant 0 : index
    %9 = vector.load %arg3[%c0_7, %c0_8] : memref<512x1024xbf16, #tpu.memory_space<vmem>>, vector<512x1024xbf16>
    %cst_9 = arith.constant dense<0.000000e+00> : vector<2x1024xf32>
    %10 = tpu.matmul %8, %9, %cst_9 {dimension_numbers = #tpu.dot_dimension_numbers<[1], [0], [0], [1], [0, 0, 1, 1], [], []>} : vector<2x512xbf16>, vector<512x1024xbf16>, vector<2x1024xf32> -> vector<2x1024xf32>
    %cst_10 = arith.constant dense<0.000000e+00> : vector<1024xf32>
    %11 = vector.multi_reduction <add>, %10, %cst_10 [0] : vector<2x1024xf32> to vector<1024xf32>
    %12 = vector.shape_cast %11 : vector<1024xf32> to vector<1x1024xf32>
    %cst_11 = arith.constant 2.000000e+00 : f32
    %13 = vector.broadcast %cst_11 : f32 to vector<1x1024xf32>
    %14 = arith.divf %12, %13 : vector<1x1024xf32>
    %15 = vector.broadcast %14 : vector<1x1024xf32> to vector<2x1024xf32>
    %16 = arith.subf %10, %15 : vector<2x1024xf32>
    %17 = vector.broadcast %14 : vector<1x1024xf32> to vector<2x1024xf32>
    %18 = arith.subf %10, %17 : vector<2x1024xf32>
    %19 = arith.mulf %16, %18 : vector<2x1024xf32>
    %cst_12 = arith.constant dense<0.000000e+00> : vector<1024xf32>
    %20 = vector.multi_reduction <add>, %19, %cst_12 [0] : vector<2x1024xf32> to vector<1024xf32>
    %21 = vector.shape_cast %20 : vector<1024xf32> to vector<1x1024xf32>
    %cst_13 = arith.constant 2.000000e+00 : f32
    %22 = vector.broadcast %cst_13 : f32 to vector<1x1024xf32>
    %23 = arith.divf %21, %22 : vector<1x1024xf32>
    %24 = vector.broadcast %14 : vector<1x1024xf32> to vector<2x1024xf32>
    %25 = arith.subf %10, %24 : vector<2x1024xf32>
    %cst_14 = arith.constant 9.99999974E-6 : f32
    %26 = vector.broadcast %cst_14 : f32 to vector<1x1024xf32>
    %27 = arith.addf %23, %26 : vector<1x1024xf32>
    %28 = math.rsqrt %27 : vector<1x1024xf32>
    %29 = vector.broadcast %28 : vector<1x1024xf32> to vector<2x1024xf32>
    %30 = arith.mulf %25, %29 : vector<2x1024xf32>
    %c0_15 = arith.constant 0 : index
    %c0_16 = arith.constant 0 : index
    %31 = vector.load %arg6[%c0_15, %c0_16] : memref<1x1024xf32, #tpu.memory_space<vmem>>, vector<1x1024xf32>
    %32 = vector.broadcast %31 : vector<1x1024xf32> to vector<2x1024xf32>
    %33 = arith.mulf %30, %32 : vector<2x1024xf32>
    %c0_17 = arith.constant 0 : index
    %c0_18 = arith.constant 0 : index
    %34 = vector.load %arg7[%c0_17, %c0_18] : memref<1x1024xf32, #tpu.memory_space<vmem>>, vector<1x1024xf32>
    %35 = vector.broadcast %34 : vector<1x1024xf32> to vector<2x1024xf32>
    %36 = arith.addf %33, %35 : vector<2x1024xf32>
    %cst_19 = arith.constant 0.000000e+00 : f32
    %37 = vector.broadcast %cst_19 : f32 to vector<2x1024xf32>
    %38 = arith.maximumf %36, %37 : vector<2x1024xf32>
    %39 = arith.truncf %38 : vector<2x1024xf32> to vector<2x1024xbf16>
    %c0_20 = arith.constant 0 : index
    %c0_21 = arith.constant 0 : index
    %40 = vector.load %arg4[%c0_20, %c0_21] : memref<1024x1024xbf16, #tpu.memory_space<vmem>>, vector<1024x1024xbf16>
    %cst_22 = arith.constant dense<0.000000e+00> : vector<2x1024xf32>
    %41 = tpu.matmul %39, %40, %cst_22 {dimension_numbers = #tpu.dot_dimension_numbers<[1], [0], [0], [1], [0, 0, 1, 1], [], []>} : vector<2x1024xbf16>, vector<1024x1024xbf16>, vector<2x1024xf32> -> vector<2x1024xf32>
    %c0_23 = arith.constant 0 : index
    %c0_24 = arith.constant 0 : index
    %42 = vector.load %arg5[%c0_23, %c0_24] : memref<1x1024xf32, #tpu.memory_space<vmem>>, vector<1x1024xf32>
    %43 = vector.broadcast %42 : vector<1x1024xf32> to vector<2x1024xf32>
    %44 = arith.addf %41, %43 : vector<2x1024xf32>
    %c0_25 = arith.constant 0 : index
    %c0_26 = arith.constant 0 : index
    %45 = vector.load %arg8[%c0_25, %c0_26] : memref<2x1024xf32, #tpu.memory_space<vmem>>, vector<2x1024xf32>
    tpu.vector_store %arg8[%c0_25, %c0_26], %44 {strides = array<i32>} : memref<2x1024xf32, #tpu.memory_space<vmem>>, vector<2x1024xf32>,
    return
  }
}

</mosaic_0001>

<llo_original>
// kernel: tpu_custom_call.1
$region0: #{tpu_custom_call.1}
  #allocation0 [shape = 'u32[]', space=smem, size = 0x4, offset = 0x4, fixed_abs, tag = 'smem constant byte address 0x4 - core index']
  #allocation1 [shape = 'u32[144,128]{1,0:T(1,128)}', space=vmem, size = 0x12000, scoped, tag = 'internal scratch']
  %s0 = inlined_call_operand.vmem [shape: bf16[512,4], index: 0, kind: input, shape index: {}]
  %s1 = inlined_call_operand.hbm [shape: bf16[2,512], index: 1, kind: input, shape index: {}]
  %s2 = inlined_call_operand.hbm [shape: bf16[4,512], index: 2, kind: input, shape index: {}]
  %s3 = inlined_call_operand.hbm [shape: bf16[512,1024], index: 3, kind: input, shape index: {}]
  %s4 = inlined_call_operand.hbm [shape: bf16[1024,1024], index: 4, kind: input, shape index: {}]
  %s5 = inlined_call_operand.hbm [shape: f32[1,1024], index: 5, kind: input, shape index: {}]
  %s6 = inlined_call_operand.hbm [shape: f32[1,1024], index: 6, kind: input, shape index: {}]
  %s7 = inlined_call_operand.hbm [shape: f32[1,1024], index: 7, kind: input, shape index: {}]
  %s8 = inlined_call_operand.hbm [shape: f32[2,1024], index: 8, kind: output, shape index: {}]
  %s9 = sld [smem:[#allocation0]]
  $region70: #{tpu_custom_call.1} parent=0
    _
  %s11 = ssub.s32 1, %s9
  %s12 = scalar_select 0, %s11, %s9
  $region1: #{tpu_custom_call.1} parent=0
    #allocation2 [shape = 'u8[2048]{0}', space=vmem, size = 0x800, scoped, tag = 'input window, operand 1, single buffered']
    #allocation3 [shape = 's32[1]{0}', space=sflag, size = 0x4, scoped, tag = 'scoped memory for tpu_custom_call.1']
    #allocation4 [shape = 's32[1]{0}', space=sflag, size = 0x4, scoped, tag = 'scoped memory for tpu_custom_call.1']
    #allocation5 [shape = 'u8[4096]{0}', space=vmem, size = 0x1000, scoped, tag = 'input window, operand 2, single buffered']
    #allocation6 [shape = 's32[1]{0}', space=sflag, size = 0x4, scoped, tag = 'scoped memory for tpu_custom_call.1']
    #allocation7 [shape = 'u8[1048576]{0}', space=vmem, size = 0x100000, scoped, tag = 'input window, operand 3, single buffered']
    #allocation8 [shape = 'u8[2097152]{0}', space=vmem, size = 0x200000, scoped, tag = 'input window, operand 4, single buffered']
    #allocation9 [shape = 's32[1]{0}', space=sflag, size = 0x4, scoped, tag = 'scoped memory for tpu_custom_call.1']
    #allocation10 [shape = 'u8[4096]{0}', space=vmem, size = 0x1000, scoped, tag = 'input window, operand 5, single buffered']
    #allocation11 [shape = 'u8[4096]{0}', space=vmem, size = 0x1000, scoped, tag = 'input window, operand 6, single buffered']
    #allocation12 [shape = 's32[1]{0}', space=sflag, size = 0x4, scoped, tag = 'scoped memory for tpu_custom_call.1']
    #allocation13 [shape = 'u8[4096]{0}', space=vmem, size = 0x1000, scoped, tag = 'input window, operand 7, single buffered']
    #allocation14 [shape = 'u8[8192]{0}', space=vmem, size = 0x2000, scoped, tag = 'output window, operand 0, single buffered']
    %13 = vsyncpa [#allocation3], 0
    %14 = vsyncpa [#allocation6], 0
    %15 = vsyncpa [#allocation9], 0
    %16 = vsyncpa [#allocation12], 0
    %17 = vsyncpa [#allocation4], 0
    // Predicated region
    $region2: #{tpu_custom_call.1} parent=1 // pred_check
      _
    $region3: #{tpu_custom_call.1} parent=1 // pred_check_branch
      %19 = sbr.rel (0) target = $region5
    $region4: #{tpu_custom_call.1} parent=1 // pred_region
      _
    $region5: #{tpu_custom_call.1} parent=1 // pred_fallthru
      _
    // Predicated region
    $region6: #{tpu_custom_call.1} parent=1 // pred_check
      _
    $region7: #{tpu_custom_call.1} parent=1 // pred_check_branch
      %21 = sbr.rel (0) target = $region9
    $region8: #{tpu_custom_call.1} parent=1 // pred_region
      %s23 = ssub.s32 64, 64
      %24 = vsyncadd [#allocation3], %s23
      %s26 = sshll.u32 [#allocation2], 4
      %s27 = int_to_ptr.vmem [resolvable:$true] %s26
      %29 = dma.hbm_to_vmem [thread:$0]  %s1, 64, %s27, [#allocation3]
    $region9: #{tpu_custom_call.1} parent=1 // pred_fallthru
      _
    // Predicated region
    $region10: #{tpu_custom_call.1} parent=1 // pred_check
      _
    $region11: #{tpu_custom_call.1} parent=1 // pred_check_branch
      %31 = sbr.rel (0) target = $region13
    $region12: #{tpu_custom_call.1} parent=1 // pred_region
      %s33 = ssub.s32 128, 128
      %34 = vsyncadd [#allocation6], %s33
      %s36 = sshll.u32 [#allocation5], 4
      %s37 = int_to_ptr.vmem [resolvable:$true] %s36
      %39 = dma.hbm_to_vmem [thread:$0]  %s2, 128, %s37, [#allocation6]
    $region13: #{tpu_custom_call.1} parent=1 // pred_fallthru
      _
    // Predicated region
    $region14: #{tpu_custom_call.1} parent=1 // pred_check
      _
    $region15: #{tpu_custom_call.1} parent=1 // pred_check_branch
      %41 = sbr.rel (0) target = $region17
    $region16: #{tpu_custom_call.1} parent=1 // pred_region
      %s43 = ssub.s32 32768, 32768
      %44 = vsyncadd [#allocation6], %s43
      %s45 = sshll.u32 [#allocation7], 4
      %s46 = int_to_ptr.vmem [resolvable:$true] %s45
      %51 = dma.hbm_to_vmem [thread:$0]  %s3, 32768, %s46, [#allocation6], 512, 512, 32
    $region17: #{tpu_custom_call.1} parent=1 // pred_fallthru
      _
    // Predicated region
    $region18: #{tpu_custom_call.1} parent=1 // pred_check
      _
    $region19: #{tpu_custom_call.1} parent=1 // pred_check_branch
      %53 = sbr.rel (0) target = $region21
    $region20: #{tpu_custom_call.1} parent=1 // pred_region
      %s55 = ssub.s32 65536, 65536
      %56 = vsyncadd [#allocation9], %s55
      %s57 = sshll.u32 [#allocation8], 4
      %s58 = int_to_ptr.vmem [resolvable:$true] %s57
      %63 = dma.hbm_to_vmem [thread:$0]  %s4, 65536, %s58, [#allocation9], 512, 512, 32
    $region21: #{tpu_custom_call.1} parent=1 // pred_fallthru
      _
    // Predicated region
    $region22: #{tpu_custom_call.1} parent=1 // pred_check
      _
    $region23: #{tpu_custom_call.1} parent=1 // pred_check_branch
      %65 = sbr.rel (0) target = $region25
    $region24: #{tpu_custom_call.1} parent=1 // pred_region
      %s67 = ssub.s32 128, 128
      %68 = vsyncadd [#allocation9], %s67
      %s70 = sshll.u32 [#allocation10], 4
      %s71 = int_to_ptr.vmem [resolvable:$true] %s70
      %73 = dma.hbm_to_vmem [thread:$0]  %s5, 128, %s71, [#allocation9]
    $region25: #{tpu_custom_call.1} parent=1 // pred_fallthru
      _
    // Predicated region
    $region26: #{tpu_custom_call.1} parent=1 // pred_check
      _
    $region27: #{tpu_custom_call.1} parent=1 // pred_check_branch
      %75 = sbr.rel (0) target = $region29
    $region28: #{tpu_custom_call.1} parent=1 // pred_region
      %s77 = ssub.s32 128, 128
      %78 = vsyncadd [#allocation12], %s77
      %s80 = sshll.u32 [#allocation11], 4
      %s81 = int_to_ptr.vmem [resolvable:$true] %s80
      %83 = dma.hbm_to_vmem [thread:$0]  %s6, 128, %s81, [#allocation12]
    $region29: #{tpu_custom_call.1} parent=1 // pred_fallthru
      _
    // Predicated region
    $region30: #{tpu_custom_call.1} parent=1 // pred_check
      _
    $region31: #{tpu_custom_call.1} parent=1 // pred_check_branch
      %85 = sbr.rel (0) target = $region33
    $region32: #{tpu_custom_call.1} parent=1 // pred_region
      %s87 = ssub.s32 128, 128
      %88 = vsyncadd [#allocation12], %s87
      %s90 = sshll.u32 [#allocation13], 4
      %s91 = int_to_ptr.vmem [resolvable:$true] %s90
      %93 = dma.hbm_to_vmem [thread:$0]  %s7, 128, %s91, [#allocation12]
    $region33: #{tpu_custom_call.1} parent=1 // pred_fallthru
      _
    // Predicated region
    $region34: #{tpu_custom_call.1} parent=1 // pred_check
      _
    $region35: #{tpu_custom_call.1} parent=1 // pred_check_branch
      %95 = sbr.rel (0) target = $region37
    $region36: #{tpu_custom_call.1} parent=1 // pred_region
      %96 = dma.done [#allocation3], 64
    $region37: #{tpu_custom_call.1} parent=1 // pred_fallthru
      _
    // Predicated region
    $region38: #{tpu_custom_call.1} parent=1 // pred_check
      _
    $region39: #{tpu_custom_call.1} parent=1 // pred_check_branch
      %98 = sbr.rel (0) target = $region41
    $region40: #{tpu_custom_call.1} parent=1 // pred_region
      %99 = dma.done [#allocation6], 128
    $region41: #{tpu_custom_call.1} parent=1 // pred_fallthru
      _
    // Predicated region
    $region42: #{tpu_custom_call.1} parent=1 // pred_check
      _
    $region43: #{tpu_custom_call.1} parent=1 // pred_check_branch
      %101 = sbr.rel (0) target = $region45
    $region44: #{tpu_custom_call.1} parent=1 // pred_region
      %102 = dma.done [#allocation6], 32768
    $region45: #{tpu_custom_call.1} parent=1 // pred_fallthru
      _
    // Predicated region
    $region46: #{tpu_custom_call.1} parent=1 // pred_check
      _
    $region47: #{tpu_custom_call.1} parent=1 // pred_check_branch
      %104 = sbr.rel (0) target = $region49
    $region48: #{tpu_custom_call.1} parent=1 // pred_region
      %105 = dma.done [#allocation9], 65536
    $region49: #{tpu_custom_call.1} parent=1 // pred_fallthru
      _
    // Predicated region
    $region50: #{tpu_custom_call.1} parent=1 // pred_check
      _
    $region51: #{tpu_custom_call.1} parent=1 // pred_check_branch
      %107 = sbr.rel (0) target = $region53
    $region52: #{tpu_custom_call.1} parent=1 // pred_region
      %108 = dma.done [#allocation9], 128
    $region53: #{tpu_custom_call.1} parent=1 // pred_fallthru
      _
    // Predicated region
    $region54: #{tpu_custom_call.1} parent=1 // pred_check
      _
    $region55: #{tpu_custom_call.1} parent=1 // pred_check_branch
      %110 = sbr.rel (0) target = $region57
    $region56: #{tpu_custom_call.1} parent=1 // pred_region
      %111 = dma.done [#allocation12], 128
    $region57: #{tpu_custom_call.1} parent=1 // pred_fallthru
      _
    // Predicated region
    $region58: #{tpu_custom_call.1} parent=1 // pred_check
      _
    $region59: #{tpu_custom_call.1} parent=1 // pred_check_branch
      %113 = sbr.rel (0) target = $region61
    $region60: #{tpu_custom_call.1} parent=1 // pred_region
      %114 = dma.done [#allocation12], 128
    $region61: #{tpu_custom_call.1} parent=1 // pred_fallthru
      _
    %v116 = vld [vmem:[%s0] sm:$0xf]
    %v117 = vld [vmem:[%s0 + $0x4] sm:$0xf]
    %v118 = vld [vmem:[%s0 + $0x8] sm:$0xf]
    %v119 = vld [vmem:[%s0 + $0xc] sm:$0xf]
    %v120 = vld [vmem:[%s0 + $0x10] sm:$0xf]
    %v121 = vld [vmem:[%s0 + $0x14] sm:$0xf]
    %v122 = vld [vmem:[%s0 + $0x18] sm:$0xf]
    %v123 = vld [vmem:[%s0 + $0x1c] sm:$0xf]
    %v124 = vld [vmem:[%s0 + $0x20] sm:$0xf]
    %v125 = vld [vmem:[%s0 + $0x24] sm:$0xf]
    %v126 = vld [vmem:[%s0 + $0x28] sm:$0xf]
    %v127 = vld [vmem:[%s0 + $0x2c] sm:$0xf]
    %v128 = vld [vmem:[%s0 + $0x30] sm:$0xf]
    %v129 = vld [vmem:[%s0 + $0x34] sm:$0xf]
    %v130 = vld [vmem:[%s0 + $0x38] sm:$0xf]
    %v131 = vld [vmem:[%s0 + $0x3c] sm:$0xf]
    %v132 = vld [vmem:[%s0 + $0x40] sm:$0xf]
    %v133 = vld [vmem:[%s0 + $0x44] sm:$0xf]
    %v134 = vld [vmem:[%s0 + $0x48] sm:$0xf]
    %v135 = vld [vmem:[%s0 + $0x4c] sm:$0xf]
    %v136 = vld [vmem:[%s0 + $0x50] sm:$0xf]
    %v137 = vld [vmem:[%s0 + $0x54] sm:$0xf]
    %v138 = vld [vmem:[%s0 + $0x58] sm:$0xf]
    %v139 = vld [vmem:[%s0 + $0x5c] sm:$0xf]
    %v140 = vld [vmem:[%s0 + $0x60] sm:$0xf]
    %v141 = vld [vmem:[%s0 + $0x64] sm:$0xf]
    %v142 = vld [vmem:[%s0 + $0x68] sm:$0xf]
    %v143 = vld [vmem:[%s0 + $0x6c] sm:$0xf]
    %v144 = vld [vmem:[%s0 + $0x70] sm:$0xf]
    %v145 = vld [vmem:[%s0 + $0x74] sm:$0xf]
    %v146 = vld [vmem:[%s0 + $0x78] sm:$0xf]
    %v147 = vld [vmem:[%s0 + $0x7c] sm:$0xf]
    %v148 = vld [vmem:[%s0 + $0x80] sm:$0xf]
    %v149 = vld [vmem:[%s0 + $0x84] sm:$0xf]
    %v150 = vld [vmem:[%s0 + $0x88] sm:$0xf]
    %v151 = vld [vmem:[%s0 + $0x8c] sm:$0xf]
    %v152 = vld [vmem:[%s0 + $0x90] sm:$0xf]
    %v153 = vld [vmem:[%s0 + $0x94] sm:$0xf]
    %v154 = vld [vmem:[%s0 + $0x98] sm:$0xf]
    %v155 = vld [vmem:[%s0 + $0x9c] sm:$0xf]
    %v156 = vld [vmem:[%s0 + $0xa0] sm:$0xf]
    %v157 = vld [vmem:[%s0 + $0xa4] sm:$0xf]
    %v158 = vld [vmem:[%s0 + $0xa8] sm:$0xf]
    %v159 = vld [vmem:[%s0 + $0xac] sm:$0xf]
    %v160 = vld [vmem:[%s0 + $0xb0] sm:$0xf]
    %v161 = vld [vmem:[%s0 + $0xb4] sm:$0xf]
    %v162 = vld [vmem:[%s0 + $0xb8] sm:$0xf]
    %v163 = vld [vmem:[%s0 + $0xbc] sm:$0xf]
    %v164 = vld [vmem:[%s0 + $0xc0] sm:$0xf]
    %v165 = vld [vmem:[%s0 + $0xc4] sm:$0xf]
    %v166 = vld [vmem:[%s0 + $0xc8] sm:$0xf]
    %v167 = vld [vmem:[%s0 + $0xcc] sm:$0xf]
    %v168 = vld [vmem:[%s0 + $0xd0] sm:$0xf]
    %v169 = vld [vmem:[%s0 + $0xd4] sm:$0xf]
    %v170 = vld [vmem:[%s0 + $0xd8] sm:$0xf]
    %v171 = vld [vmem:[%s0 + $0xdc] sm:$0xf]
    %v172 = vld [vmem:[%s0 + $0xe0] sm:$0xf]
    %v173 = vld [vmem:[%s0 + $0xe4] sm:$0xf]
    %v174 = vld [vmem:[%s0 + $0xe8] sm:$0xf]
    %v175 = vld [vmem:[%s0 + $0xec] sm:$0xf]
    %v176 = vld [vmem:[%s0 + $0xf0] sm:$0xf]
    %v177 = vld [vmem:[%s0 + $0xf4] sm:$0xf]
    %v178 = vld [vmem:[%s0 + $0xf8] sm:$0xf]
    %v179 = vld [vmem:[%s0 + $0xfc] sm:$0xf]
    %v180 = vld [vmem:[#allocation5] sm:$0xff]
    %v245 = vunpack.c.l.b16 %v116
    %v246 = vunpack.c.l.b16 %v117
    %v247 = vunpack.c.l.b16 %v118
    %v248 = vunpack.c.l.b16 %v119
    %v249 = vunpack.c.l.b16 %v120
    %v250 = vunpack.c.l.b16 %v121
    %v251 = vunpack.c.l.b16 %v122
    %v252 = vunpack.c.l.b16 %v123
    %v253 = vunpack.c.l.b16 %v124
    %v254 = vunpack.c.l.b16 %v125
    %v255 = vunpack.c.l.b16 %v126
    %v256 = vunpack.c.l.b16 %v127
    %v257 = vunpack.c.l.b16 %v128
    %v258 = vunpack.c.l.b16 %v129
    %v259 = vunpack.c.l.b16 %v130
    %v260 = vunpack.c.l.b16 %v131
    %v261 = vunpack.c.l.b16 %v132
    %v262 = vunpack.c.l.b16 %v133
    %v263 = vunpack.c.l.b16 %v134
    %v264 = vunpack.c.l.b16 %v135
    %v265 = vunpack.c.l.b16 %v136
    %v266 = vunpack.c.l.b16 %v137
    %v267 = vunpack.c.l.b16 %v138
    %v268 = vunpack.c.l.b16 %v139
    %v269 = vunpack.c.l.b16 %v140
    %v270 = vunpack.c.l.b16 %v141
    %v271 = vunpack.c.l.b16 %v142
    %v272 = vunpack.c.l.b16 %v143
    %v273 = vunpack.c.l.b16 %v144
    %v274 = vunpack.c.l.b16 %v145
    %v275 = vunpack.c.l.b16 %v146
    %v276 = vunpack.c.l.b16 %v147
    %v277 = vunpack.c.l.b16 %v148
    %v278 = vunpack.c.l.b16 %v149
    %v279 = vunpack.c.l.b16 %v150
    %v280 = vunpack.c.l.b16 %v151
    %v281 = vunpack.c.l.b16 %v152
    %v282 = vunpack.c.l.b16 %v153
    %v283 = vunpack.c.l.b16 %v154
    %v284 = vunpack.c.l.b16 %v155
    %v285 = vunpack.c.l.b16 %v156
    %v286 = vunpack.c.l.b16 %v157
    %v287 = vunpack.c.l.b16 %v158
    %v288 = vunpack.c.l.b16 %v159
    %v289 = vunpack.c.l.b16 %v160
    %v290 = vunpack.c.l.b16 %v161
    %v291 = vunpack.c.l.b16 %v162
    %v292 = vunpack.c.l.b16 %v163
    %v293 = vunpack.c.l.b16 %v164
    %v294 = vunpack.c.l.b16 %v165
    %v295 = vunpack.c.l.b16 %v166
    %v296 = vunpack.c.l.b16 %v167
    %v297 = vunpack.c.l.b16 %v168
    %v298 = vunpack.c.l.b16 %v169
    %v299 = vunpack.c.l.b16 %v170
    %v300 = vunpack.c.l.b16 %v171
    %v301 = vunpack.c.l.b16 %v172
    %v302 = vunpack.c.l.b16 %v173
    %v303 = vunpack.c.l.b16 %v174
    %v304 = vunpack.c.l.b16 %v175
    %v305 = vunpack.c.l.b16 %v176
    %v306 = vunpack.c.l.b16 %v177
    %v307 = vunpack.c.l.b16 %v178
    %v308 = vunpack.c.l.b16 %v179
    %v309 = vpack.c.b16 %v246, %v245
    %v310 = vpack.c.b16 %v248, %v247
    %v311 = vpack.c.b16 %v250, %v249
    %v312 = vpack.c.b16 %v252, %v251
    %v313 = vpack.c.b16 %v254, %v253
    %v314 = vpack.c.b16 %v256, %v255
    %v315 = vpack.c.b16 %v258, %v257
    %v316 = vpack.c.b16 %v260, %v259
    %v317 = vpack.c.b16 %v262, %v261
    %v318 = vpack.c.b16 %v264, %v263
    %v319 = vpack.c.b16 %v266, %v265
    %v320 = vpack.c.b16 %v268, %v267
    %v321 = vpack.c.b16 %v270, %v269
    %v322 = vpack.c.b16 %v272, %v271
    %v323 = vpack.c.b16 %v274, %v273
    %v324 = vpack.c.b16 %v276, %v275
    %v325 = vpack.c.b16 %v278, %v277
    %v326 = vpack.c.b16 %v280, %v279
    %v327 = vpack.c.b16 %v282, %v281
    %v328 = vpack.c.b16 %v284, %v283
    %v329 = vpack.c.b16 %v286, %v285
    %v330 = vpack.c.b16 %v288, %v287
    %v331 = vpack.c.b16 %v290, %v289
    %v332 = vpack.c.b16 %v292, %v291
    %v333 = vpack.c.b16 %v294, %v293
    %v334 = vpack.c.b16 %v296, %v295
    %v335 = vpack.c.b16 %v298, %v297
    %v336 = vpack.c.b16 %v300, %v299
    %v337 = vpack.c.b16 %v302, %v301
    %v338 = vpack.c.b16 %v304, %v303
    %v339 = vpack.c.b16 %v306, %v305
    %v340 = vpack.c.b16 %v308, %v307
    %v342 = vcombine.high %v180, %v180
    %v344 = vunpack.c.l.s4 1983009808
    %v345 = vunpack.c.0.s8 %v344
    %v346 = vlaneseq
    %v347 = vshrl.u32 %v346, 7
    %v348 = vsub.s32 %v345, %v347
    %v349 = vrot.slane %v180, %v348
    %v351 = vunpack.c.l.s4 1983009808
    %v352 = vunpack.c.0.s8 %v351
    %v353 = vlaneseq
    %v354 = vshrl.u32 %v353, 7
    %v355 = vsub.s32 %v352, %v354
    %v356 = vrot.slane %v342, %v355
    %v357 = vcombine.high %v349, %v349
    %v358 = vcombine.high %v356, %v356
    %vm359 = vcmask 31744
    %v361 = vsel %vm359, %v309, 0
    %v364 = vsel %vm359, %v310, 0
    %v367 = vsel %vm359, %v311, 0
    %v370 = vsel %vm359, %v312, 0
    %v373 = vsel %vm359, %v313, 0
    %v376 = vsel %vm359, %v314, 0
    %v379 = vsel %vm359, %v315, 0
    %v382 = vsel %vm359, %v316, 0
    %v385 = vsel %vm359, %v317, 0
    %v388 = vsel %vm359, %v318, 0
    %v391 = vsel %vm359, %v319, 0
    %v394 = vsel %vm359, %v320, 0
    %v397 = vsel %vm359, %v321, 0
    %v400 = vsel %vm359, %v322, 0
    %v403 = vsel %vm359, %v323, 0
    %v406 = vsel %vm359, %v324, 0
    %v409 = vsel %vm359, %v325, 0
    %v412 = vsel %vm359, %v326, 0
    %v415 = vsel %vm359, %v327, 0
    %v418 = vsel %vm359, %v328, 0
    %v421 = vsel %vm359, %v329, 0
    %v424 = vsel %vm359, %v330, 0
    %v427 = vsel %vm359, %v331, 0
    %v430 = vsel %vm359, %v332, 0
    %v433 = vsel %vm359, %v333, 0
    %v436 = vsel %vm359, %v334, 0
    %v439 = vsel %vm359, %v335, 0
    %v442 = vsel %vm359, %v336, 0
    %v445 = vsel %vm359, %v337, 0
    %v448 = vsel %vm359, %v338, 0
    %v451 = vsel %vm359, %v339, 0
    %v454 = vsel %vm359, %v340, 0
    %vm456 = vcmask 1041408
    %v458 = vsel %vm456, %v349, 0
    %v461 = vsel %vm456, %v357, 0
    %v464 = vsel %vm456, %v356, 0
    %v467 = vsel %vm456, %v358, 0
    %469 = vmatprep.subr.bf16.mxu0 %v461
    %470 = vmatpush1.bf16.msra.mxu0 %v458
    %471 = vmatprep.subr.bf16.mxu0 0
    %472 = vmatpush1.bf16.msra.mxu0 0
    %473 = vmatprep.subr.bf16.mxu0 0
    %474 = vmatpush1.bf16.msra.mxu0 0
    %475 = vmatprep.subr.bf16.mxu0 0
    %476 = vmatpush1.bf16.msra.mxu0 0
    %477 = vmatprep.subr.bf16.mxu0 0
    %478 = vmatpush1.bf16.msra.mxu0 0
    %479 = vmatprep.subr.bf16.mxu0 0
    %480 = vmatpush1.bf16.msra.mxu0 0
    %481 = vmatprep.subr.bf16.mxu0 0
    %482 = vmatpush1.bf16.msra.mxu0 0
    %483 = vmatprep.subr.bf16.mxu0 0
    %484 = vmatpush1.bf16.msra.mxu0 0
    %485 = vmatprep.subr.bf16.mxu0 0
    %486 = vmatpush1.bf16.msra.mxu0 0
    %487 = vmatprep.subr.bf16.mxu0 0
    %488 = vmatpush1.bf16.msra.mxu0 0
    %489 = vmatprep.subr.bf16.mxu0 0
    %490 = vmatpush1.bf16.msra.mxu0 0
    %491 = vmatprep.subr.bf16.mxu0 0
    %492 = vmatpush1.bf16.msra.mxu0 0
    %493 = vmatprep.subr.bf16.mxu0 0
    %494 = vmatpush1.bf16.msra.mxu0 0
    %495 = vmatprep.subr.bf16.mxu0 0
    %496 = vmatpush1.bf16.msra.mxu0 0
    %497 = vmatprep.subr.bf16.mxu0 0
    %498 = vmatpush1.bf16.msra.mxu0 0
    %499 = vmatprep.subr.bf16.mxu0 0
    %500 = vmatpush1.bf16.msra.mxu0 0
    %501 = vmatprep.mubr.bf16.mxu0 0
    %502 = vmatmul.mubr.bf16.gmra.mrb[0].mxu0 %v361
    %v503 = vpop.f32.mrb[0].mxu0
    %v504 = vadd.f32 0.0, %v503
    %v505 = vpop.f32.mrb[0].mxu0
    %v506 = vadd.f32 0.0, %v505
    %v507 = vpop.f32.mrb[0].mxu0
    %v508 = vadd.f32 0.0, %v507
    %v509 = vpop.f32.mrb[0].mxu0
    %v510 = vadd.f32 0.0, %v509
    %511 = vmatprep.mubr.bf16.mxu0 0
    %512 = vmatmul.mubr.bf16.gmra.mrb[0].mxu0 %v364
    %v513 = vpop.f32.mrb[0].mxu0
    %v514 = vadd.f32 0.0, %v513
    %v515 = vpop.f32.mrb[0].mxu0
    %v516 = vadd.f32 0.0, %v515
    %v517 = vpop.f32.mrb[0].mxu0
    %v518 = vadd.f32 0.0, %v517
    %v519 = vpop.f32.mrb[0].mxu0
    %v520 = vadd.f32 0.0, %v519
    %521 = vmatprep.mubr.bf16.mxu0 0
    %522 = vmatmul.mubr.bf16.gmra.mrb[0].mxu0 %v367
    %v523 = vpop.f32.mrb[0].mxu0
    %v524 = vadd.f32 0.0, %v523
    %v525 = vpop.f32.mrb[0].mxu0
    %v526 = vadd.f32 0.0, %v525
    %v527 = vpop.f32.mrb[0].mxu0
    %v528 = vadd.f32 0.0, %v527
    %v529 = vpop.f32.mrb[0].mxu0
    %v530 = vadd.f32 0.0, %v529
    %531 = vmatprep.mubr.bf16.mxu0 0
    %532 = vmatmul.mubr.bf16.gmra.mrb[0].mxu0 %v370
    %v533 = vpop.f32.mrb[0].mxu0
    %v534 = vadd.f32 0.0, %v533
    %v535 = vpop.f32.mrb[0].mxu0
    %v536 = vadd.f32 0.0, %v535
    %v537 = vpop.f32.mrb[0].mxu0
    %v538 = vadd.f32 0.0, %v537
    %v539 = vpop.f32.mrb[0].mxu0
    %v540 = vadd.f32 0.0, %v539
    %541 = vmatprep.mubr.bf16.mxu0 0
    %542 = vmatmul.mubr.bf16.gmra.mrb[0].mxu0 %v373
    %v543 = vpop.f32.mrb[0].mxu0
    %v544 = vadd.f32 0.0, %v543
    %v545 = vpop.f32.mrb[0].mxu0
    %v546 = vadd.f32 0.0, %v545
    %v547 = vpop.f32.mrb[0].mxu0
    %v548 = vadd.f32 0.0, %v547
    %v549 = vpop.f32.mrb[0].mxu0
    %v550 = vadd.f32 0.0, %v549
    %551 = vmatprep.mubr.bf16.mxu0 0
    %552 = vmatmul.mubr.bf16.gmra.mrb[0].mxu0 %v376
    %v553 = vpop.f32.mrb[0].mxu0
    %v554 = vadd.f32 0.0, %v553
    %v555 = vpop.f32.mrb[0].mxu0
    %v556 = vadd.f32 0.0, %v555
    %v557 = vpop.f32.mrb[0].mxu0
    %v558 = vadd.f32 0.0, %v557
    %v559 = vpop.f32.mrb[0].mxu0
    %v560 = vadd.f32 0.0, %v559
    %561 = vmatprep.mubr.bf16.mxu0 0
    %562 = vmatmul.mubr.bf16.gmra.mrb[0].mxu0 %v379
    %v563 = vpop.f32.mrb[0].mxu0
    %v564 = vadd.f32 0.0, %v563
    %v565 = vpop.f32.mrb[0].mxu0
    %v566 = vadd.f32 0.0, %v565
    %v567 = vpop.f32.mrb[0].mxu0
    %v568 = vadd.f32 0.0, %v567
    %v569 = vpop.f32.mrb[0].mxu0
    %v570 = vadd.f32 0.0, %v569
    %571 = vmatprep.mubr.bf16.mxu0 0
    %572 = vmatmul.mubr.bf16.gmra.mrb[0].mxu0 %v382
    %v573 = vpop.f32.mrb[0].mxu0
    %v574 = vadd.f32 0.0, %v573
    %v575 = vpop.f32.mrb[0].mxu0
    %v576 = vadd.f32 0.0, %v575
    %v577 = vpop.f32.mrb[0].mxu0
    %v578 = vadd.f32 0.0, %v577
    %v579 = vpop.f32.mrb[0].mxu0
    %v580 = vadd.f32 0.0, %v579
    %581 = vmatprep.mubr.bf16.mxu0 0
    %582 = vmatmul.mubr.bf16.gmra.mrb[0].mxu0 %v385
    %v583 = vpop.f32.mrb[0].mxu0
    %v584 = vadd.f32 0.0, %v583
    %v585 = vpop.f32.mrb[0].mxu0
    %v586 = vadd.f32 0.0, %v585
    %v587 = vpop.f32.mrb[0].mxu0
    %v588 = vadd.f32 0.0, %v587
    %v589 = vpop.f32.mrb[0].mxu0
    %v590 = vadd.f32 0.0, %v589
    %591 = vmatprep.mubr.bf16.mxu0 0
    %592 = vmatmul.mubr.bf16.gmra.mrb[0].mxu0 %v388
    %v593 = vpop.f32.mrb[0].mxu0
    %v594 = vadd.f32 0.0, %v593
    %v595 = vpop.f32.mrb[0].mxu0
    %v596 = vadd.f32 0.0, %v595
    %v597 = vpop.f32.mrb[0].mxu0
    %v598 = vadd.f32 0.0, %v597
    %v599 = vpop.f32.mrb[0].mxu0
    %v600 = vadd.f32 0.0, %v599
    %601 = vmatprep.mubr.bf16.mxu0 0
    %602 = vmatmul.mubr.bf16.gmra.mrb[0].mxu0 %v391
    %v603 = vpop.f32.mrb[0].mxu0
    %v604 = vadd.f32 0.0, %v603
    %v605 = vpop.f32.mrb[0].mxu0
    %v606 = vadd.f32 0.0, %v605
    %v607 = vpop.f32.mrb[0].mxu0
    %v608 = vadd.f32 0.0, %v607
    %v609 = vpop.f32.mrb[0].mxu0
    %v610 = vadd.f32 0.0, %v609
    %611 = vmatprep.mubr.bf16.mxu0 0
    %612 = vmatmul.mubr.bf16.gmra.mrb[0].mxu0 %v394
    %v613 = vpop.f32.mrb[0].mxu0
    %v614 = vadd.f32 0.0, %v613
    %v615 = vpop.f32.mrb[0].mxu0
    %v616 = vadd.f32 0.0, %v615
    %v617 = vpop.f32.mrb[0].mxu0
    %v618 = vadd.f32 0.0, %v617
    %v619 = vpop.f32.mrb[0].mxu0
    %v620 = vadd.f32 0.0, %v619
    %621 = vmatprep.mubr.bf16.mxu0 0
    %622 = vmatmul.mubr.bf16.gmra.mrb[0].mxu0 %v397
    %v623 = vpop.f32.mrb[0].mxu0
    %v624 = vadd.f32 0.0, %v623
    %v625 = vpop.f32.mrb[0].mxu0
    %v626 = vadd.f32 0.0, %v625
    %v627 = vpop.f32.mrb[0].mxu0
    %v628 = vadd.f32 0.0, %v627
    %v629 = vpop.f32.mrb[0].mxu0
    %v630 = vadd.f32 0.0, %v629
    %631 = vmatprep.mubr.bf16.mxu0 0
    %632 = vmatmul.mubr.bf16.gmra.mrb[0].mxu0 %v400
    %v633 = vpop.f32.mrb[0].mxu0
    %v634 = vadd.f32 0.0, %v633
    %v635 = vpop.f32.mrb[0].mxu0
    %v636 = vadd.f32 0.0, %v635
    %v637 = vpop.f32.mrb[0].mxu0
    %v638 = vadd.f32 0.0, %v637
    %v639 = vpop.f32.mrb[0].mxu0
    %v640 = vadd.f32 0.0, %v639
    %641 = vmatprep.mubr.bf16.mxu0 0
    %642 = vmatmul.mubr.bf16.gmra.mrb[0].mxu0 %v403
    %v643 = vpop.f32.mrb[0].mxu0
    %v644 = vadd.f32 0.0, %v643
    %v645 = vpop.f32.mrb[0].mxu0
    %v646 = vadd.f32 0.0, %v645
    %v647 = vpop.f32.mrb[0].mxu0
    %v648 = vadd.f32 0.0, %v647
    %v649 = vpop.f32.mrb[0].mxu0
    %v650 = vadd.f32 0.0, %v649
    %651 = vmatprep.mubr.bf16.mxu0 0
    %652 = vmatmul.mubr.bf16.gmra.mrb[0].mxu0 %v406
    %v653 = vpop.f32.mrb[0].mxu0
    %v654 = vadd.f32 0.0, %v653
    %v655 = vpop.f32.mrb[0].mxu0
    %v656 = vadd.f32 0.0, %v655
    %v657 = vpop.f32.mrb[0].mxu0
    %v658 = vadd.f32 0.0, %v657
    %v659 = vpop.f32.mrb[0].mxu0
    %v660 = vadd.f32 0.0, %v659
    %661 = vmatprep.mubr.bf16.mxu0 0
    %662 = vmatmul.mubr.bf16.gmra.mrb[0].mxu0 %v409
    %v663 = vpop.f32.mrb[0].mxu0
    %v664 = vadd.f32 0.0, %v663
    %v665 = vpop.f32.mrb[0].mxu0
    %v666 = vadd.f32 0.0, %v665
    %v667 = vpop.f32.mrb[0].mxu0
    %v668 = vadd.f32 0.0, %v667
    %v669 = vpop.f32.mrb[0].mxu0
    %v670 = vadd.f32 0.0, %v669
    %671 = vmatprep.mubr.bf16.mxu0 0
    %672 = vmatmul.mubr.bf16.gmra.mrb[0].mxu0 %v412
    %v673 = vpop.f32.mrb[0].mxu0
    %v674 = vadd.f32 0.0, %v673
    %v675 = vpop.f32.mrb[0].mxu0
    %v676 = vadd.f32 0.0, %v675
    %v677 = vpop.f32.mrb[0].mxu0
    %v678 = vadd.f32 0.0, %v677
    %v679 = vpop.f32.mrb[0].mxu0
    %v680 = vadd.f32 0.0, %v679
    %681 = vmatprep.mubr.bf16.mxu0 0
    %682 = vmatmul.mubr.bf16.gmra.mrb[0].mxu0 %v415
    %v683 = vpop.f32.mrb[0].mxu0
    %v684 = vadd.f32 0.0, %v683
    %v685 = vpop.f32.mrb[0].mxu0
    %v686 = vadd.f32 0.0, %v685
    %v687 = vpop.f32.mrb[0].mxu0
    %v688 = vadd.f32 0.0, %v687
    %v689 = vpop.f32.mrb[0].mxu0
    %v690 = vadd.f32 0.0, %v689
    %691 = vmatprep.mubr.bf16.mxu0 0
    %692 = vmatmul.mubr.bf16.gmra.mrb[0].mxu0 %v418
    %v693 = vpop.f32.mrb[0].mxu0
    %v694 = vadd.f32 0.0, %v693
    %v695 = vpop.f32.mrb[0].mxu0
    %v696 = vadd.f32 0.0, %v695
    %v697 = vpop.f32.mrb[0].mxu0
    %v698 = vadd.f32 0.0, %v697
    %v699 = vpop.f32.mrb[0].mxu0
    %v700 = vadd.f32 0.0, %v699
    %701 = vmatprep.mubr.bf16.mxu0 0
    %702 = vmatmul.mubr.bf16.gmra.mrb[0].mxu0 %v421
    %v703 = vpop.f32.mrb[0].mxu0
    %v704 = vadd.f32 0.0, %v703
    %v705 = vpop.f32.mrb[0].mxu0
    %v706 = vadd.f32 0.0, %v705
    %v707 = vpop.f32.mrb[0].mxu0
    %v708 = vadd.f32 0.0, %v707
    %v709 = vpop.f32.mrb[0].mxu0
    %v710 = vadd.f32 0.0, %v709
    %711 = vmatprep.mubr.bf16.mxu0 0
    %712 = vmatmul.mubr.bf16.gmra.mrb[0].mxu0 %v424
    %v713 = vpop.f32.mrb[0].mxu0
    %v714 = vadd.f32 0.0, %v713
    %v715 = vpop.f32.mrb[0].mxu0
    %v716 = vadd.f32 0.0, %v715
    %v717 = vpop.f32.mrb[0].mxu0
    %v718 = vadd.f32 0.0, %v717
    %v719 = vpop.f32.mrb[0].mxu0
    %v720 = vadd.f32 0.0, %v719
    %721 = vmatprep.mubr.bf16.mxu0 0
    %722 = vmatmul.mubr.bf16.gmra.mrb[0].mxu0 %v427
    %v723 = vpop.f32.mrb[0].mxu0
    %v724 = vadd.f32 0.0, %v723
    %v725 = vpop.f32.mrb[0].mxu0
    %v726 = vadd.f32 0.0, %v725
    %v727 = vpop.f32.mrb[0].mxu0
    %v728 = vadd.f32 0.0, %v727
    %v729 = vpop.f32.mrb[0].mxu0
    %v730 = vadd.f32 0.0, %v729
    %731 = vmatprep.mubr.bf16.mxu0 0
    %732 = vmatmul.mubr.bf16.gmra.mrb[0].mxu0 %v430
    %v733 = vpop.f32.mrb[0].mxu0
    %v734 = vadd.f32 0.0, %v733
    %v735 = vpop.f32.mrb[0].mxu0
    %v736 = vadd.f32 0.0, %v735
    %v737 = vpop.f32.mrb[0].mxu0
    %v738 = vadd.f32 0.0, %v737
    %v739 = vpop.f32.mrb[0].mxu0
    %v740 = vadd.f32 0.0, %v739
    %741 = vmatprep.mubr.bf16.mxu0 0
    %742 = vmatmul.mubr.bf16.gmra.mrb[0].mxu0 %v433
    %v743 = vpop.f32.mrb[0].mxu0
    %v744 = vadd.f32 0.0, %v743
    %v745 = vpop.f32.mrb[0].mxu0
    %v746 = vadd.f32 0.0, %v745
    %v747 = vpop.f32.mrb[0].mxu0
    %v748 = vadd.f32 0.0, %v747
    %v749 = vpop.f32.mrb[0].mxu0
    %v750 = vadd.f32 0.0, %v749
    %751 = vmatprep.mubr.bf16.mxu0 0
    %752 = vmatmul.mubr.bf16.gmra.mrb[0].mxu0 %v436
    %v753 = vpop.f32.mrb[0].mxu0
    %v754 = vadd.f32 0.0, %v753
    %v755 = vpop.f32.mrb[0].mxu0
    %v756 = vadd.f32 0.0, %v755
    %v757 = vpop.f32.mrb[0].mxu0
    %v758 = vadd.f32 0.0, %v757
    %v759 = vpop.f32.mrb[0].mxu0
    %v760 = vadd.f32 0.0, %v759
    %761 = vmatprep.mubr.bf16.mxu0 0
    %762 = vmatmul.mubr.bf16.gmra.mrb[0].mxu0 %v439
    %v763 = vpop.f32.mrb[0].mxu0
    %v764 = vadd.f32 0.0, %v763
    %v765 = vpop.f32.mrb[0].mxu0
    %v766 = vadd.f32 0.0, %v765
    %v767 = vpop.f32.mrb[0].mxu0
    %v768 = vadd.f32 0.0, %v767
    %v769 = vpop.f32.mrb[0].mxu0
    %v770 = vadd.f32 0.0, %v769
    %771 = vmatprep.mubr.bf16.mxu0 0
    %772 = vmatmul.mubr.bf16.gmra.mrb[0].mxu0 %v442
    %v773 = vpop.f32.mrb[0].mxu0
    %v774 = vadd.f32 0.0, %v773
    %v775 = vpop.f32.mrb[0].mxu0
    %v776 = vadd.f32 0.0, %v775
    %v777 = vpop.f32.mrb[0].mxu0
    %v778 = vadd.f32 0.0, %v777
    %v779 = vpop.f32.mrb[0].mxu0
    %v780 = vadd.f32 0.0, %v779
    %781 = vmatprep.mubr.bf16.mxu0 0
    %782 = vmatmul.mubr.bf16.gmra.mrb[0].mxu0 %v445
    %v783 = vpop.f32.mrb[0].mxu0
    %v784 = vadd.f32 0.0, %v783
    %v785 = vpop.f32.mrb[0].mxu0
    %v786 = vadd.f32 0.0, %v785
    %v787 = vpop.f32.mrb[0].mxu0
    %v788 = vadd.f32 0.0, %v787
    %v789 = vpop.f32.mrb[0].mxu0
    %v790 = vadd.f32 0.0, %v789
    %791 = vmatprep.mubr.bf16.mxu0 0
    %792 = vmatmul.mubr.bf16.gmra.mrb[0].mxu0 %v448
    %v793 = vpop.f32.mrb[0].mxu0
    %v794 = vadd.f32 0.0, %v793
    %v795 = vpop.f32.mrb[0].mxu0
    %v796 = vadd.f32 0.0, %v795
    %v797 = vpop.f32.mrb[0].mxu0
    %v798 = vadd.f32 0.0, %v797
    %v799 = vpop.f32.mrb[0].mxu0
    %v800 = vadd.f32 0.0, %v799
    %801 = vmatprep.mubr.bf16.mxu0 0
    %802 = vmatmul.mubr.bf16.gmra.mrb[0].mxu0 %v451
    %v803 = vpop.f32.mrb[0].mxu0
    %v804 = vadd.f32 0.0, %v803
    %v805 = vpop.f32.mrb[0].mxu0
    %v806 = vadd.f32 0.0, %v805
    %v807 = vpop.f32.mrb[0].mxu0
    %v808 = vadd.f32 0.0, %v807
    %v809 = vpop.f32.mrb[0].mxu0
    %v810 = vadd.f32 0.0, %v809
    %811 = vmatprep.mubr.bf16.mxu0 0
    %812 = vmatmul.mubr.bf16.gmra.mrb[0].mxu0 %v454
    %v813 = vpop.f32.mrb[0].mxu0
    %v814 = vadd.f32 0.0, %v813
    %v815 = vpop.f32.mrb[0].mxu0
    %v816 = vadd.f32 0.0, %v815
    %v817 = vpop.f32.mrb[0].mxu0
    %v818 = vadd.f32 0.0, %v817
    %v819 = vpop.f32.mrb[0].mxu0
    %v820 = vadd.f32 0.0, %v819
    %821 = vdwg.mxu0
    %822 = vmatprep.subr.bf16.mxu0 %v467
    %823 = vmatpush1.bf16.msra.mxu0 %v464
    %824 = vmatprep.subr.bf16.mxu0 0
    %825 = vmatpush1.bf16.msra.mxu0 0
    %826 = vmatprep.subr.bf16.mxu0 0
    %827 = vmatpush1.bf16.msra.mxu0 0
    %828 = vmatprep.subr.bf16.mxu0 0
    %829 = vmatpush1.bf16.msra.mxu0 0
    %830 = vmatprep.subr.bf16.mxu0 0
    %831 = vmatpush1.bf16.msra.mxu0 0
    %832 = vmatprep.subr.bf16.mxu0 0
    %833 = vmatpush1.bf16.msra.mxu0 0
    %834 = vmatprep.subr.bf16.mxu0 0
    %835 = vmatpush1.bf16.msra.mxu0 0
    %836 = vmatprep.subr.bf16.mxu0 0
    %837 = vmatpush1.bf16.msra.mxu0 0
    %838 = vmatprep.subr.bf16.mxu0 0
    %839 = vmatpush1.bf16.msra.mxu0 0
    %840 = vmatprep.subr.bf16.mxu0 0
    %841 = vmatpush1.bf16.msra.mxu0 0
    %842 = vmatprep.subr.bf16.mxu0 0
    %843 = vmatpush1.bf16.msra.mxu0 0
    %844 = vmatprep.subr.bf16.mxu0 0
    %845 = vmatpush1.bf16.msra.mxu0 0
    %846 = vmatprep.subr.bf16.mxu0 0
    %847 = vmatpush1.bf16.msra.mxu0 0
    %848 = vmatprep.subr.bf16.mxu0 0
    %849 = vmatpush1.bf16.msra.mxu0 0
    %850 = vmatprep.subr.bf16.mxu0 0
    %851 = vmatpush1.bf16.msra.mxu0 0
    %852 = vmatprep.subr.bf16.mxu0 0
    %853 = vmatpush1.bf16.msra.mxu0 0
    %854 = vmatprep.mubr.bf16.mxu0 0
    %855 = vmatmul.mubr.bf16.gmra.mrb[0].mxu0 %v361
    %v856 = vpop.f32.mrb[0].mxu0
    %v857 = vadd.f32 0.0, %v856
    %v858 = vpop.f32.mrb[0].mxu0
    %v859 = vadd.f32 0.0, %v858
    %v860 = vpop.f32.mrb[0].mxu0
    %v861 = vadd.f32 0.0, %v860
    %v862 = vpop.f32.mrb[0].mxu0
    %v863 = vadd.f32 0.0, %v862
    %864 = vmatprep.mubr.bf16.mxu0 0
    %865 = vmatmul.mubr.bf16.gmra.mrb[0].mxu0 %v364
    %v866 = vpop.f32.mrb[0].mxu0
    %v867 = vadd.f32 0.0, %v866
    %v868 = vpop.f32.mrb[0].mxu0
    %v869 = vadd.f32 0.0, %v868
    %v870 = vpop.f32.mrb[0].mxu0
    %v871 = vadd.f32 0.0, %v870
    %v872 = vpop.f32.mrb[0].mxu0
    %v873 = vadd.f32 0.0, %v872
    %874 = vmatprep.mubr.bf16.mxu0 0
    %875 = vmatmul.mubr.bf16.gmra.mrb[0].mxu0 %v367
    %v876 = vpop.f32.mrb[0].mxu0
    %v877 = vadd.f32 0.0, %v876
    %v878 = vpop.f32.mrb[0].mxu0
    %v879 = vadd.f32 0.0, %v878
    %v880 = vpop.f32.mrb[0].mxu0
    %v881 = vadd.f32 0.0, %v880
    %v882 = vpop.f32.mrb[0].mxu0
    %v883 = vadd.f32 0.0, %v882
    %884 = vmatprep.mubr.bf16.mxu0 0
    %885 = vmatmul.mubr.bf16.gmra.mrb[0].mxu0 %v370
    %v886 = vpop.f32.mrb[0].mxu0
    %v887 = vadd.f32 0.0, %v886
    %v888 = vpop.f32.mrb[0].mxu0
    %v889 = vadd.f32 0.0, %v888
    %v890 = vpop.f32.mrb[0].mxu0
    %v891 = vadd.f32 0.0, %v890
    %v892 = vpop.f32.mrb[0].mxu0
    %v893 = vadd.f32 0.0, %v892
    %894 = vmatprep.mubr.bf16.mxu0 0
    %895 = vmatmul.mubr.bf16.gmra.mrb[0].mxu0 %v373
    %v896 = vpop.f32.mrb[0].mxu0
    %v897 = vadd.f32 0.0, %v896
    %v898 = vpop.f32.mrb[0].mxu0
    %v899 = vadd.f32 0.0, %v898
    %v900 = vpop.f32.mrb[0].mxu0
    %v901 = vadd.f32 0.0, %v900
    %v902 = vpop.f32.mrb[0].mxu0
    %v903 = vadd.f32 0.0, %v902
    %904 = vmatprep.mubr.bf16.mxu0 0
    %905 = vmatmul.mubr.bf16.gmra.mrb[0].mxu0 %v376
    %v906 = vpop.f32.mrb[0].mxu0
    %v907 = vadd.f32 0.0, %v906
    %v908 = vpop.f32.mrb[0].mxu0
    %v909 = vadd.f32 0.0, %v908
    %v910 = vpop.f32.mrb[0].mxu0
    %v911 = vadd.f32 0.0, %v910
    %v912 = vpop.f32.mrb[0].mxu0
    %v913 = vadd.f32 0.0, %v912
    %914 = vmatprep.mubr.bf16.mxu0 0
    %915 = vmatmul.mubr.bf16.gmra.mrb[0].mxu0 %v379
    %v916 = vpop.f32.mrb[0].mxu0
    %v917 = vadd.f32 0.0, %v916
    %v918 = vpop.f32.mrb[0].mxu0
    %v919 = vadd.f32 0.0, %v918
    %v920 = vpop.f32.mrb[0].mxu0
    %v921 = vadd.f32 0.0, %v920
    %v922 = vpop.f32.mrb[0].mxu0
    %v923 = vadd.f32 0.0, %v922
    %924 = vmatprep.mubr.bf16.mxu0 0
    %925 = vmatmul.mubr.bf16.gmra.mrb[0].mxu0 %v382
    %v926 = vpop.f32.mrb[0].mxu0
    %v927 = vadd.f32 0.0, %v926
    %v928 = vpop.f32.mrb[0].mxu0
    %v929 = vadd.f32 0.0, %v928
    %v930 = vpop.f32.mrb[0].mxu0
    %v931 = vadd.f32 0.0, %v930
    %v932 = vpop.f32.mrb[0].mxu0
    %v933 = vadd.f32 0.0, %v932
    %934 = vmatprep.mubr.bf16.mxu0 0
    %935 = vmatmul.mubr.bf16.gmra.mrb[0].mxu0 %v385
    %v936 = vpop.f32.mrb[0].mxu0
    %v937 = vadd.f32 0.0, %v936
    %v938 = vpop.f32.mrb[0].mxu0
    %v939 = vadd.f32 0.0, %v938
    %v940 = vpop.f32.mrb[0].mxu0
    %v941 = vadd.f32 0.0, %v940
    %v942 = vpop.f32.mrb[0].mxu0
    %v943 = vadd.f32 0.0, %v942
    %944 = vmatprep.mubr.bf16.mxu0 0
    %945 = vmatmul.mubr.bf16.gmra.mrb[0].mxu0 %v388
    %v946 = vpop.f32.mrb[0].mxu0
    %v947 = vadd.f32 0.0, %v946
    %v948 = vpop.f32.mrb[0].mxu0
    %v949 = vadd.f32 0.0, %v948
    %v950 = vpop.f32.mrb[0].mxu0
    %v951 = vadd.f32 0.0, %v950
    %v952 = vpop.f32.mrb[0].mxu0
    %v953 = vadd.f32 0.0, %v952
    %954 = vmatprep.mubr.bf16.mxu0 0
    %955 = vmatmul.mubr.bf16.gmra.mrb[0].mxu0 %v391
    %v956 = vpop.f32.mrb[0].mxu0
    %v957 = vadd.f32 0.0, %v956
    %v958 = vpop.f32.mrb[0].mxu0
    %v959 = vadd.f32 0.0, %v958
    %v960 = vpop.f32.mrb[0].mxu0
    %v961 = vadd.f32 0.0, %v960
    %v962 = vpop.f32.mrb[0].mxu0
    %v963 = vadd.f32 0.0, %v962
    %964 = vmatprep.mubr.bf16.mxu0 0
    %965 = vmatmul.mubr.bf16.gmra.mrb[0].mxu0 %v394
    %v966 = vpop.f32.mrb[0].mxu0
    %v967 = vadd.f32 0.0, %v966
    %v968 = vpop.f32.mrb[0].mxu0
    %v969 = vadd.f32 0.0, %v968
    %v970 = vpop.f32.mrb[0].mxu0
    %v971 = vadd.f32 0.0, %v970
    %v972 = vpop.f32.mrb[0].mxu0
    %v973 = vadd.f32 0.0, %v972
    %974 = vmatprep.mubr.bf16.mxu0 0
    %975 = vmatmul.mubr.bf16.gmra.mrb[0].mxu0 %v397
    %v976 = vpop.f32.mrb[0].mxu0
    %v977 = vadd.f32 0.0, %v976
    %v978 = vpop.f32.mrb[0].mxu0
    %v979 = vadd.f32 0.0, %v978
    %v980 = vpop.f32.mrb[0].mxu0
    %v981 = vadd.f32 0.0, %v980
    %v982 = vpop.f32.mrb[0].mxu0
    %v983 = vadd.f32 0.0, %v982
    %984 = vmatprep.mubr.bf16.mxu0 0
    %985 = vmatmul.mubr.bf16.gmra.mrb[0].mxu0 %v400
    %v986 = vpop.f32.mrb[0].mxu0
    %v987 = vadd.f32 0.0, %v986
    %v988 = vpop.f32.mrb[0].mxu0
    %v989 = vadd.f32 0.0, %v988
    %v990 = vpop.f32.mrb[0].mxu0
    %v991 = vadd.f32 0.0, %v990
    %v992 = vpop.f32.mrb[0].mxu0
    %v993 = vadd.f32 0.0, %v992
    %994 = vmatprep.mubr.bf16.mxu0 0
    %995 = vmatmul.mubr.bf16.gmra.mrb[0].mxu0 %v403
    %v996 = vpop.f32.mrb[0].mxu0
    %v997 = vadd.f32 0.0, %v996
    %v998 = vpop.f32.mrb[0].mxu0
    %v999 = vadd.f32 0.0, %v998
    %v1000 = vpop.f32.mrb[0].mxu0
    %v1001 = vadd.f32 0.0, %v1000
    %v1002 = vpop.f32.mrb[0].mxu0
    %v1003 = vadd.f32 0.0, %v1002
    %1004 = vmatprep.mubr.bf16.mxu0 0
    %1005 = vmatmul.mubr.bf16.gmra.mrb[0].mxu0 %v406
    %v1006 = vpop.f32.mrb[0].mxu0
    %v1007 = vadd.f32 0.0, %v1006
    %v1008 = vpop.f32.mrb[0].mxu0
    %v1009 = vadd.f32 0.0, %v1008
    %v1010 = vpop.f32.mrb[0].mxu0
    %v1011 = vadd.f32 0.0, %v1010
    %v1012 = vpop.f32.mrb[0].mxu0
    %v1013 = vadd.f32 0.0, %v1012
    %1014 = vmatprep.mubr.bf16.mxu0 0
    %1015 = vmatmul.mubr.bf16.gmra.mrb[0].mxu0 %v409
    %v1016 = vpop.f32.mrb[0].mxu0
    %v1017 = vadd.f32 0.0, %v1016
    %v1018 = vpop.f32.mrb[0].mxu0
    %v1019 = vadd.f32 0.0, %v1018
    %v1020 = vpop.f32.mrb[0].mxu0
    %v1021 = vadd.f32 0.0, %v1020
    %v1022 = vpop.f32.mrb[0].mxu0
    %v1023 = vadd.f32 0.0, %v1022
    %1024 = vmatprep.mubr.bf16.mxu0 0
    %1025 = vmatmul.mubr.bf16.gmra.mrb[0].mxu0 %v412
    %v1026 = vpop.f32.mrb[0].mxu0
    %v1027 = vadd.f32 0.0, %v1026
    %v1028 = vpop.f32.mrb[0].mxu0
    %v1029 = vadd.f32 0.0, %v1028
    %v1030 = vpop.f32.mrb[0].mxu0
    %v1031 = vadd.f32 0.0, %v1030
    %v1032 = vpop.f32.mrb[0].mxu0
    %v1033 = vadd.f32 0.0, %v1032
    %1034 = vmatprep.mubr.bf16.mxu0 0
    %1035 = vmatmul.mubr.bf16.gmra.mrb[0].mxu0 %v415
    %v1036 = vpop.f32.mrb[0].mxu0
    %v1037 = vadd.f32 0.0, %v1036
    %v1038 = vpop.f32.mrb[0].mxu0
    %v1039 = vadd.f32 0.0, %v1038
    %v1040 = vpop.f32.mrb[0].mxu0
    %v1041 = vadd.f32 0.0, %v1040
    %v1042 = vpop.f32.mrb[0].mxu0
    %v1043 = vadd.f32 0.0, %v1042
    %1044 = vmatprep.mubr.bf16.mxu0 0
    %1045 = vmatmul.mubr.bf16.gmra.mrb[0].mxu0 %v418
    %v1046 = vpop.f32.mrb[0].mxu0
    %v1047 = vadd.f32 0.0, %v1046
    %v1048 = vpop.f32.mrb[0].mxu0
    %v1049 = vadd.f32 0.0, %v1048
    %v1050 = vpop.f32.mrb[0].mxu0
    %v1051 = vadd.f32 0.0, %v1050
    %v1052 = vpop.f32.mrb[0].mxu0
    %v1053 = vadd.f32 0.0, %v1052
    %1054 = vmatprep.mubr.bf16.mxu0 0
    %1055 = vmatmul.mubr.bf16.gmra.mrb[0].mxu0 %v421
    %v1056 = vpop.f32.mrb[0].mxu0
    %v1057 = vadd.f32 0.0, %v1056
    %v1058 = vpop.f32.mrb[0].mxu0
    %v1059 = vadd.f32 0.0, %v1058
    %v1060 = vpop.f32.mrb[0].mxu0
    %v1061 = vadd.f32 0.0, %v1060
    %v1062 = vpop.f32.mrb[0].mxu0
    %v1063 = vadd.f32 0.0, %v1062
    %1064 = vmatprep.mubr.bf16.mxu0 0
    %1065 = vmatmul.mubr.bf16.gmra.mrb[0].mxu0 %v424
    %v1066 = vpop.f32.mrb[0].mxu0
    %v1067 = vadd.f32 0.0, %v1066
    %v1068 = vpop.f32.mrb[0].mxu0
    %v1069 = vadd.f32 0.0, %v1068
    %v1070 = vpop.f32.mrb[0].mxu0
    %v1071 = vadd.f32 0.0, %v1070
    %v1072 = vpop.f32.mrb[0].mxu0
    %v1073 = vadd.f32 0.0, %v1072
    %1074 = vmatprep.mubr.bf16.mxu0 0
    %1075 = vmatmul.mubr.bf16.gmra.mrb[0].mxu0 %v427
    %v1076 = vpop.f32.mrb[0].mxu0
    %v1077 = vadd.f32 0.0, %v1076
    %v1078 = vpop.f32.mrb[0].mxu0
    %v1079 = vadd.f32 0.0, %v1078
    %v1080 = vpop.f32.mrb[0].mxu0
    %v1081 = vadd.f32 0.0, %v1080
    %v1082 = vpop.f32.mrb[0].mxu0
    %v1083 = vadd.f32 0.0, %v1082
    %1084 = vmatprep.mubr.bf16.mxu0 0
    %1085 = vmatmul.mubr.bf16.gmra.mrb[0].mxu0 %v430
    %v1086 = vpop.f32.mrb[0].mxu0
    %v1087 = vadd.f32 0.0, %v1086
    %v1088 = vpop.f32.mrb[0].mxu0
    %v1089 = vadd.f32 0.0, %v1088
    %v1090 = vpop.f32.mrb[0].mxu0
    %v1091 = vadd.f32 0.0, %v1090
    %v1092 = vpop.f32.mrb[0].mxu0
    %v1093 = vadd.f32 0.0, %v1092
    %1094 = vmatprep.mubr.bf16.mxu0 0
    %1095 = vmatmul.mubr.bf16.gmra.mrb[0].mxu0 %v433
    %v1096 = vpop.f32.mrb[0].mxu0
    %v1097 = vadd.f32 0.0, %v1096
    %v1098 = vpop.f32.mrb[0].mxu0
    %v1099 = vadd.f32 0.0, %v1098
    %v1100 = vpop.f32.mrb[0].mxu0
    %v1101 = vadd.f32 0.0, %v1100
    %v1102 = vpop.f32.mrb[0].mxu0
    %v1103 = vadd.f32 0.0, %v1102
    %1104 = vmatprep.mubr.bf16.mxu0 0
    %1105 = vmatmul.mubr.bf16.gmra.mrb[0].mxu0 %v436
    %v1106 = vpop.f32.mrb[0].mxu0
    %v1107 = vadd.f32 0.0, %v1106
    %v1108 = vpop.f32.mrb[0].mxu0
    %v1109 = vadd.f32 0.0, %v1108
    %v1110 = vpop.f32.mrb[0].mxu0
    %v1111 = vadd.f32 0.0, %v1110
    %v1112 = vpop.f32.mrb[0].mxu0
    %v1113 = vadd.f32 0.0, %v1112
    %1114 = vmatprep.mubr.bf16.mxu0 0
    %1115 = vmatmul.mubr.bf16.gmra.mrb[0].mxu0 %v439
    %v1116 = vpop.f32.mrb[0].mxu0
    %v1117 = vadd.f32 0.0, %v1116
    %v1118 = vpop.f32.mrb[0].mxu0
    %v1119 = vadd.f32 0.0, %v1118
    %v1120 = vpop.f32.mrb[0].mxu0
    %v1121 = vadd.f32 0.0, %v1120
    %v1122 = vpop.f32.mrb[0].mxu0
    %v1123 = vadd.f32 0.0, %v1122
    %1124 = vmatprep.mubr.bf16.mxu0 0
    %1125 = vmatmul.mubr.bf16.gmra.mrb[0].mxu0 %v442
    %v1126 = vpop.f32.mrb[0].mxu0
    %v1127 = vadd.f32 0.0, %v1126
    %v1128 = vpop.f32.mrb[0].mxu0
    %v1129 = vadd.f32 0.0, %v1128
    %v1130 = vpop.f32.mrb[0].mxu0
    %v1131 = vadd.f32 0.0, %v1130
    %v1132 = vpop.f32.mrb[0].mxu0
    %v1133 = vadd.f32 0.0, %v1132
    %1134 = vmatprep.mubr.bf16.mxu0 0
    %1135 = vmatmul.mubr.bf16.gmra.mrb[0].mxu0 %v445
    %v1136 = vpop.f32.mrb[0].mxu0
    %v1137 = vadd.f32 0.0, %v1136
    %v1138 = vpop.f32.mrb[0].mxu0
    %v1139 = vadd.f32 0.0, %v1138
    %v1140 = vpop.f32.mrb[0].mxu0
    %v1141 = vadd.f32 0.0, %v1140
    %v1142 = vpop.f32.mrb[0].mxu0
    %v1143 = vadd.f32 0.0, %v1142
    %1144 = vmatprep.mubr.bf16.mxu0 0
    %1145 = vmatmul.mubr.bf16.gmra.mrb[0].mxu0 %v448
    %v1146 = vpop.f32.mrb[0].mxu0
    %v1147 = vadd.f32 0.0, %v1146
    %v1148 = vpop.f32.mrb[0].mxu0
    %v1149 = vadd.f32 0.0, %v1148
    %v1150 = vpop.f32.mrb[0].mxu0
    %v1151 = vadd.f32 0.0, %v1150
    %v1152 = vpop.f32.mrb[0].mxu0
    %v1153 = vadd.f32 0.0, %v1152
    %1154 = vmatprep.mubr.bf16.mxu0 0
    %1155 = vmatmul.mubr.bf16.gmra.mrb[0].mxu0 %v451
    %v1156 = vpop.f32.mrb[0].mxu0
    %v1157 = vadd.f32 0.0, %v1156
    %v1158 = vpop.f32.mrb[0].mxu0
    %v1159 = vadd.f32 0.0, %v1158
    %v1160 = vpop.f32.mrb[0].mxu0
    %v1161 = vadd.f32 0.0, %v1160
    %v1162 = vpop.f32.mrb[0].mxu0
    %v1163 = vadd.f32 0.0, %v1162
    %1164 = vmatprep.mubr.bf16.mxu0 0
    %1165 = vmatmul.mubr.bf16.gmra.mrb[0].mxu0 %v454
    %v1166 = vpop.f32.mrb[0].mxu0
    %v1167 = vadd.f32 0.0, %v1166
    %v1168 = vpop.f32.mrb[0].mxu0
    %v1169 = vadd.f32 0.0, %v1168
    %v1170 = vpop.f32.mrb[0].mxu0
    %v1171 = vadd.f32 0.0, %v1170
    %v1172 = vpop.f32.mrb[0].mxu0
    %v1173 = vadd.f32 0.0, %v1172
    %1174 = vdwg.mxu0
    %v1175 = vmax.f32 %v504, 0.0
    %v1176 = vmax.f32 %v506, 0.0
    %v1177 = vmax.f32 %v857, 0.0
    %v1178 = vmax.f32 %v859, 0.0
    %v1179 = vmax.f32 %v508, 0.0
    %v1180 = vmax.f32 %v510, 0.0
    %v1181 = vmax.f32 %v861, 0.0
    %v1182 = vmax.f32 %v863, 0.0
    %v1183 = vmax.f32 %v514, 0.0
    %v1184 = vmax.f32 %v516, 0.0
    %v1185 = vmax.f32 %v867, 0.0
    %v1186 = vmax.f32 %v869, 0.0
    %v1187 = vmax.f32 %v518, 0.0
    %v1188 = vmax.f32 %v520, 0.0
    %v1189 = vmax.f32 %v871, 0.0
    %v1190 = vmax.f32 %v873, 0.0
    %v1191 = vmax.f32 %v524, 0.0
    %v1192 = vmax.f32 %v526, 0.0
    %v1193 = vmax.f32 %v877, 0.0
    %v1194 = vmax.f32 %v879, 0.0
    %v1195 = vmax.f32 %v528, 0.0
    %v1196 = vmax.f32 %v530, 0.0
    %v1197 = vmax.f32 %v881, 0.0
    %v1198 = vmax.f32 %v883, 0.0
    %v1199 = vmax.f32 %v534, 0.0
    %v1200 = vmax.f32 %v536, 0.0
    %v1201 = vmax.f32 %v887, 0.0
    %v1202 = vmax.f32 %v889, 0.0
    %v1203 = vmax.f32 %v538, 0.0
    %v1204 = vmax.f32 %v540, 0.0
    %v1205 = vmax.f32 %v891, 0.0
    %v1206 = vmax.f32 %v893, 0.0
    %v1207 = vmax.f32 %v544, 0.0
    %v1208 = vmax.f32 %v546, 0.0
    %v1209 = vmax.f32 %v897, 0.0
    %v1210 = vmax.f32 %v899, 0.0
    %v1211 = vmax.f32 %v548, 0.0
    %v1212 = vmax.f32 %v550, 0.0
    %v1213 = vmax.f32 %v901, 0.0
    %v1214 = vmax.f32 %v903, 0.0
    %v1215 = vmax.f32 %v554, 0.0
    %v1216 = vmax.f32 %v556, 0.0
    %v1217 = vmax.f32 %v907, 0.0
    %v1218 = vmax.f32 %v909, 0.0
    %v1219 = vmax.f32 %v558, 0.0
    %v1220 = vmax.f32 %v560, 0.0
    %v1221 = vmax.f32 %v911, 0.0
    %v1222 = vmax.f32 %v913, 0.0
    %v1223 = vmax.f32 %v564, 0.0
    %v1224 = vmax.f32 %v566, 0.0
    %v1225 = vmax.f32 %v917, 0.0
    %v1226 = vmax.f32 %v919, 0.0
    %v1227 = vmax.f32 %v568, 0.0
    %v1228 = vmax.f32 %v570, 0.0
    %v1229 = vmax.f32 %v921, 0.0
    %v1230 = vmax.f32 %v923, 0.0
    %v1231 = vmax.f32 %v574, 0.0
    %v1232 = vmax.f32 %v576, 0.0
    %v1233 = vmax.f32 %v927, 0.0
    %v1234 = vmax.f32 %v929, 0.0
    %v1235 = vmax.f32 %v578, 0.0
    %v1236 = vmax.f32 %v580, 0.0
    %v1237 = vmax.f32 %v931, 0.0
    %v1238 = vmax.f32 %v933, 0.0
    %v1239 = vmax.f32 %v584, 0.0
    %v1240 = vmax.f32 %v586, 0.0
    %v1241 = vmax.f32 %v937, 0.0
    %v1242 = vmax.f32 %v939, 0.0
    %v1243 = vmax.f32 %v588, 0.0
    %v1244 = vmax.f32 %v590, 0.0
    %v1245 = vmax.f32 %v941, 0.0
    %v1246 = vmax.f32 %v943, 0.0
    %v1247 = vmax.f32 %v594, 0.0
    %v1248 = vmax.f32 %v596, 0.0
    %v1249 = vmax.f32 %v947, 0.0
    %v1250 = vmax.f32 %v949, 0.0
    %v1251 = vmax.f32 %v598, 0.0
    %v1252 = vmax.f32 %v600, 0.0
    %v1253 = vmax.f32 %v951, 0.0
    %v1254 = vmax.f32 %v953, 0.0
    %v1255 = vmax.f32 %v604, 0.0
    %v1256 = vmax.f32 %v606, 0.0
    %v1257 = vmax.f32 %v957, 0.0
    %v1258 = vmax.f32 %v959, 0.0
    %v1259 = vmax.f32 %v608, 0.0
    %v1260 = vmax.f32 %v610, 0.0
    %v1261 = vmax.f32 %v961, 0.0
    %v1262 = vmax.f32 %v963, 0.0
    %v1263 = vmax.f32 %v614, 0.0
    %v1264 = vmax.f32 %v616, 0.0
    %v1265 = vmax.f32 %v967, 0.0
    %v1266 = vmax.f32 %v969, 0.0
    %v1267 = vmax.f32 %v618, 0.0
    %v1268 = vmax.f32 %v620, 0.0
    %v1269 = vmax.f32 %v971, 0.0
    %v1270 = vmax.f32 %v973, 0.0
    %v1271 = vmax.f32 %v624, 0.0
    %v1272 = vmax.f32 %v626, 0.0
    %v1273 = vmax.f32 %v977, 0.0
    %v1274 = vmax.f32 %v979, 0.0
    %v1275 = vmax.f32 %v628, 0.0
    %v1276 = vmax.f32 %v630, 0.0
    %v1277 = vmax.f32 %v981, 0.0
    %v1278 = vmax.f32 %v983, 0.0
    %v1279 = vmax.f32 %v634, 0.0
    %v1280 = vmax.f32 %v636, 0.0
    %v1281 = vmax.f32 %v987, 0.0
    %v1282 = vmax.f32 %v989, 0.0
    %v1283 = vmax.f32 %v638, 0.0
    %v1284 = vmax.f32 %v640, 0.0
    %v1285 = vmax.f32 %v991, 0.0
    %v1286 = vmax.f32 %v993, 0.0
    %v1287 = vmax.f32 %v644, 0.0
    %v1288 = vmax.f32 %v646, 0.0
    %v1289 = vmax.f32 %v997, 0.0
    %v1290 = vmax.f32 %v999, 0.0
    %v1291 = vmax.f32 %v648, 0.0
    %v1292 = vmax.f32 %v650, 0.0
    %v1293 = vmax.f32 %v1001, 0.0
    %v1294 = vmax.f32 %v1003, 0.0
    %v1295 = vmax.f32 %v654, 0.0
    %v1296 = vmax.f32 %v656, 0.0
    %v1297 = vmax.f32 %v1007, 0.0
    %v1298 = vmax.f32 %v1009, 0.0
    %v1299 = vmax.f32 %v658, 0.0
    %v1300 = vmax.f32 %v660, 0.0
    %v1301 = vmax.f32 %v1011, 0.0
    %v1302 = vmax.f32 %v1013, 0.0
    %v1303 = vmax.f32 %v664, 0.0
    %v1304 = vmax.f32 %v666, 0.0
    %v1305 = vmax.f32 %v1017, 0.0
    %v1306 = vmax.f32 %v1019, 0.0
    %v1307 = vmax.f32 %v668, 0.0
    %v1308 = vmax.f32 %v670, 0.0
    %v1309 = vmax.f32 %v1021, 0.0
    %v1310 = vmax.f32 %v1023, 0.0
    %v1311 = vmax.f32 %v674, 0.0
    %v1312 = vmax.f32 %v676, 0.0
    %v1313 = vmax.f32 %v1027, 0.0
    %v1314 = vmax.f32 %v1029, 0.0
    %v1315 = vmax.f32 %v678, 0.0
    %v1316 = vmax.f32 %v680, 0.0
    %v1317 = vmax.f32 %v1031, 0.0
    %v1318 = vmax.f32 %v1033, 0.0
    %v1319 = vmax.f32 %v684, 0.0
    %v1320 = vmax.f32 %v686, 0.0
    %v1321 = vmax.f32 %v1037, 0.0
    %v1322 = vmax.f32 %v1039, 0.0
    %v1323 = vmax.f32 %v688, 0.0
    %v1324 = vmax.f32 %v690, 0.0
    %v1325 = vmax.f32 %v1041, 0.0
    %v1326 = vmax.f32 %v1043, 0.0
    %v1327 = vmax.f32 %v694, 0.0
    %v1328 = vmax.f32 %v696, 0.0
    %v1329 = vmax.f32 %v1047, 0.0
    %v1330 = vmax.f32 %v1049, 0.0
    %v1331 = vmax.f32 %v698, 0.0
    %v1332 = vmax.f32 %v700, 0.0
    %v1333 = vmax.f32 %v1051, 0.0
    %v1334 = vmax.f32 %v1053, 0.0
    %v1335 = vmax.f32 %v704, 0.0
    %v1336 = vmax.f32 %v706, 0.0
    %v1337 = vmax.f32 %v1057, 0.0
    %v1338 = vmax.f32 %v1059, 0.0
    %v1339 = vmax.f32 %v708, 0.0
    %v1340 = vmax.f32 %v710, 0.0
    %v1341 = vmax.f32 %v1061, 0.0
    %v1342 = vmax.f32 %v1063, 0.0
    %v1343 = vmax.f32 %v714, 0.0
    %v1344 = vmax.f32 %v716, 0.0
    %v1345 = vmax.f32 %v1067, 0.0
    %v1346 = vmax.f32 %v1069, 0.0
    %v1347 = vmax.f32 %v718, 0.0
    %v1348 = vmax.f32 %v720, 0.0
    %v1349 = vmax.f32 %v1071, 0.0
    %v1350 = vmax.f32 %v1073, 0.0
    %v1351 = vmax.f32 %v724, 0.0
    %v1352 = vmax.f32 %v726, 0.0
    %v1353 = vmax.f32 %v1077, 0.0
    %v1354 = vmax.f32 %v1079, 0.0
    %v1355 = vmax.f32 %v728, 0.0
    %v1356 = vmax.f32 %v730, 0.0
    %v1357 = vmax.f32 %v1081, 0.0
    %v1358 = vmax.f32 %v1083, 0.0
    %v1359 = vmax.f32 %v734, 0.0
    %v1360 = vmax.f32 %v736, 0.0
    %v1361 = vmax.f32 %v1087, 0.0
    %v1362 = vmax.f32 %v1089, 0.0
    %v1363 = vmax.f32 %v738, 0.0
    %v1364 = vmax.f32 %v740, 0.0
    %v1365 = vmax.f32 %v1091, 0.0
    %v1366 = vmax.f32 %v1093, 0.0
    %v1367 = vmax.f32 %v744, 0.0
    %v1368 = vmax.f32 %v746, 0.0
    %v1369 = vmax.f32 %v1097, 0.0
    %v1370 = vmax.f32 %v1099, 0.0
    %v1371 = vmax.f32 %v748, 0.0
    %v1372 = vmax.f32 %v750, 0.0
    %v1373 = vmax.f32 %v1101, 0.0
    %v1374 = vmax.f32 %v1103, 0.0
    %v1375 = vmax.f32 %v754, 0.0
    %v1376 = vmax.f32 %v756, 0.0
    %v1377 = vmax.f32 %v1107, 0.0
    %v1378 = vmax.f32 %v1109, 0.0
    %v1379 = vmax.f32 %v758, 0.0
    %v1380 = vmax.f32 %v760, 0.0
    %v1381 = vmax.f32 %v1111, 0.0
    %v1382 = vmax.f32 %v1113, 0.0
    %v1383 = vmax.f32 %v764, 0.0
    %v1384 = vmax.f32 %v766, 0.0
    %v1385 = vmax.f32 %v1117, 0.0
    %v1386 = vmax.f32 %v1119, 0.0
    %v1387 = vmax.f32 %v768, 0.0
    %v1388 = vmax.f32 %v770, 0.0
    %v1389 = vmax.f32 %v1121, 0.0
    %v1390 = vmax.f32 %v1123, 0.0
    %v1391 = vmax.f32 %v774, 0.0
    %v1392 = vmax.f32 %v776, 0.0
    %v1393 = vmax.f32 %v1127, 0.0
    %v1394 = vmax.f32 %v1129, 0.0
    %v1395 = vmax.f32 %v778, 0.0
    %v1396 = vmax.f32 %v780, 0.0
    %v1397 = vmax.f32 %v1131, 0.0
    %v1398 = vmax.f32 %v1133, 0.0
    %v1399 = vmax.f32 %v784, 0.0
    %v1400 = vmax.f32 %v786, 0.0
    %v1401 = vmax.f32 %v1137, 0.0
    %v1402 = vmax.f32 %v1139, 0.0
    %v1403 = vmax.f32 %v788, 0.0
    %v1404 = vmax.f32 %v790, 0.0
    %v1405 = vmax.f32 %v1141, 0.0
    %v1406 = vmax.f32 %v1143, 0.0
    %v1407 = vmax.f32 %v794, 0.0
    %v1408 = vmax.f32 %v796, 0.0
    %v1409 = vmax.f32 %v1147, 0.0
    %v1410 = vmax.f32 %v1149, 0.0
    %v1411 = vmax.f32 %v798, 0.0
    %v1412 = vmax.f32 %v800, 0.0
    %v1413 = vmax.f32 %v1151, 0.0
    %v1414 = vmax.f32 %v1153, 0.0
    %v1415 = vmax.f32 %v804, 0.0
    %v1416 = vmax.f32 %v806, 0.0
    %v1417 = vmax.f32 %v1157, 0.0
    %v1418 = vmax.f32 %v1159, 0.0
    %v1419 = vmax.f32 %v808, 0.0
    %v1420 = vmax.f32 %v810, 0.0
    %v1421 = vmax.f32 %v1161, 0.0
    %v1422 = vmax.f32 %v1163, 0.0
    %v1423 = vmax.f32 %v814, 0.0
    %v1424 = vmax.f32 %v816, 0.0
    %v1425 = vmax.f32 %v1167, 0.0
    %v1426 = vmax.f32 %v1169, 0.0
    %v1427 = vmax.f32 %v818, 0.0
    %v1428 = vmax.f32 %v820, 0.0
    %v1429 = vmax.f32 %v1171, 0.0
    %v1430 = vmax.f32 %v1173, 0.0
    %v1431 = vpack.c.bf16 %v1179, %v1175
    %v1432 = vpack.c.bf16 %v1180, %v1176
    %v1433 = vpack.c.bf16 %v1181, %v1177
    %v1434 = vpack.c.bf16 %v1182, %v1178
    %v1435 = vpack.c.bf16 %v1187, %v1183
    %v1436 = vpack.c.bf16 %v1188, %v1184
    %v1437 = vpack.c.bf16 %v1189, %v1185
    %v1438 = vpack.c.bf16 %v1190, %v1186
    %v1439 = vpack.c.bf16 %v1195, %v1191
    %v1440 = vpack.c.bf16 %v1196, %v1192
    %v1441 = vpack.c.bf16 %v1197, %v1193
    %v1442 = vpack.c.bf16 %v1198, %v1194
    %v1443 = vpack.c.bf16 %v1203, %v1199
    %v1444 = vpack.c.bf16 %v1204, %v1200
    %v1445 = vpack.c.bf16 %v1205, %v1201
    %v1446 = vpack.c.bf16 %v1206, %v1202
    %v1447 = vpack.c.bf16 %v1211, %v1207
    %v1448 = vpack.c.bf16 %v1212, %v1208
    %v1449 = vpack.c.bf16 %v1213, %v1209
    %v1450 = vpack.c.bf16 %v1214, %v1210
    %v1451 = vpack.c.bf16 %v1219, %v1215
    %v1452 = vpack.c.bf16 %v1220, %v1216
    %v1453 = vpack.c.bf16 %v1221, %v1217
    %v1454 = vpack.c.bf16 %v1222, %v1218
    %v1455 = vpack.c.bf16 %v1227, %v1223
    %v1456 = vpack.c.bf16 %v1228, %v1224
    %v1457 = vpack.c.bf16 %v1229, %v1225
    %v1458 = vpack.c.bf16 %v1230, %v1226
    %v1459 = vpack.c.bf16 %v1235, %v1231
    %v1460 = vpack.c.bf16 %v1236, %v1232
    %v1461 = vpack.c.bf16 %v1237, %v1233
    %v1462 = vpack.c.bf16 %v1238, %v1234
    %v1463 = vpack.c.bf16 %v1243, %v1239
    %v1464 = vpack.c.bf16 %v1244, %v1240
    %v1465 = vpack.c.bf16 %v1245, %v1241
    %v1466 = vpack.c.bf16 %v1246, %v1242
    %v1467 = vpack.c.bf16 %v1251, %v1247
    %v1468 = vpack.c.bf16 %v1252, %v1248
    %v1469 = vpack.c.bf16 %v1253, %v1249
    %v1470 = vpack.c.bf16 %v1254, %v1250
    %v1471 = vpack.c.bf16 %v1259, %v1255
    %v1472 = vpack.c.bf16 %v1260, %v1256
    %v1473 = vpack.c.bf16 %v1261, %v1257
    %v1474 = vpack.c.bf16 %v1262, %v1258
    %v1475 = vpack.c.bf16 %v1267, %v1263
    %v1476 = vpack.c.bf16 %v1268, %v1264
    %v1477 = vpack.c.bf16 %v1269, %v1265
    %v1478 = vpack.c.bf16 %v1270, %v1266
    %v1479 = vpack.c.bf16 %v1275, %v1271
    %v1480 = vpack.c.bf16 %v1276, %v1272
    %v1481 = vpack.c.bf16 %v1277, %v1273
    %v1482 = vpack.c.bf16 %v1278, %v1274
    %v1483 = vpack.c.bf16 %v1283, %v1279
    %v1484 = vpack.c.bf16 %v1284, %v1280
    %v1485 = vpack.c.bf16 %v1285, %v1281
    %v1486 = vpack.c.bf16 %v1286, %v1282
    %v1487 = vpack.c.bf16 %v1291, %v1287
    %v1488 = vpack.c.bf16 %v1292, %v1288
    %v1489 = vpack.c.bf16 %v1293, %v1289
    %v1490 = vpack.c.bf16 %v1294, %v1290
    %v1491 = vpack.c.bf16 %v1299, %v1295
    %v1492 = vpack.c.bf16 %v1300, %v1296
    %v1493 = vpack.c.bf16 %v1301, %v1297
    %v1494 = vpack.c.bf16 %v1302, %v1298
    %v1495 = vpack.c.bf16 %v1307, %v1303
    %v1496 = vpack.c.bf16 %v1308, %v1304
    %v1497 = vpack.c.bf16 %v1309, %v1305
    %v1498 = vpack.c.bf16 %v1310, %v1306
    %v1499 = vpack.c.bf16 %v1315, %v1311
    %v1500 = vpack.c.bf16 %v1316, %v1312
    %v1501 = vpack.c.bf16 %v1317, %v1313
    %v1502 = vpack.c.bf16 %v1318, %v1314
    %v1503 = vpack.c.bf16 %v1323, %v1319
    %v1504 = vpack.c.bf16 %v1324, %v1320
    %v1505 = vpack.c.bf16 %v1325, %v1321
    %v1506 = vpack.c.bf16 %v1326, %v1322
    %v1507 = vpack.c.bf16 %v1331, %v1327
    %v1508 = vpack.c.bf16 %v1332, %v1328
    %v1509 = vpack.c.bf16 %v1333, %v1329
    %v1510 = vpack.c.bf16 %v1334, %v1330
    %v1511 = vpack.c.bf16 %v1339, %v1335
    %v1512 = vpack.c.bf16 %v1340, %v1336
    %v1513 = vpack.c.bf16 %v1341, %v1337
    %v1514 = vpack.c.bf16 %v1342, %v1338
    %v1515 = vpack.c.bf16 %v1347, %v1343
    %v1516 = vpack.c.bf16 %v1348, %v1344
    %v1517 = vpack.c.bf16 %v1349, %v1345
    %v1518 = vpack.c.bf16 %v1350, %v1346
    %v1519 = vpack.c.bf16 %v1355, %v1351
    %v1520 = vpack.c.bf16 %v1356, %v1352
    %v1521 = vpack.c.bf16 %v1357, %v1353
    %v1522 = vpack.c.bf16 %v1358, %v1354
    %v1523 = vpack.c.bf16 %v1363, %v1359
    %v1524 = vpack.c.bf16 %v1364, %v1360
    %v1525 = vpack.c.bf16 %v1365, %v1361
    %v1526 = vpack.c.bf16 %v1366, %v1362
    %v1527 = vpack.c.bf16 %v1371, %v1367
    %v1528 = vpack.c.bf16 %v1372, %v1368
    %v1529 = vpack.c.bf16 %v1373, %v1369
    %v1530 = vpack.c.bf16 %v1374, %v1370
    %v1531 = vpack.c.bf16 %v1379, %v1375
    %v1532 = vpack.c.bf16 %v1380, %v1376
    %v1533 = vpack.c.bf16 %v1381, %v1377
    %v1534 = vpack.c.bf16 %v1382, %v1378
    %v1535 = vpack.c.bf16 %v1387, %v1383
    %v1536 = vpack.c.bf16 %v1388, %v1384
    %v1537 = vpack.c.bf16 %v1389, %v1385
    %v1538 = vpack.c.bf16 %v1390, %v1386
    %v1539 = vpack.c.bf16 %v1395, %v1391
    %v1540 = vpack.c.bf16 %v1396, %v1392
    %v1541 = vpack.c.bf16 %v1397, %v1393
    %v1542 = vpack.c.bf16 %v1398, %v1394
    %v1543 = vpack.c.bf16 %v1403, %v1399
    %v1544 = vpack.c.bf16 %v1404, %v1400
    %v1545 = vpack.c.bf16 %v1405, %v1401
    %v1546 = vpack.c.bf16 %v1406, %v1402
    %v1547 = vpack.c.bf16 %v1411, %v1407
    %v1548 = vpack.c.bf16 %v1412, %v1408
    %v1549 = vpack.c.bf16 %v1413, %v1409
    %v1550 = vpack.c.bf16 %v1414, %v1410
    %v1551 = vpack.c.bf16 %v1419, %v1415
    %v1552 = vpack.c.bf16 %v1420, %v1416
    %v1553 = vpack.c.bf16 %v1421, %v1417
    %v1554 = vpack.c.bf16 %v1422, %v1418
    %v1555 = vpack.c.bf16 %v1427, %v1423
    %v1556 = vpack.c.bf16 %v1428, %v1424
    %v1557 = vpack.c.bf16 %v1429, %v1425
    %v1558 = vpack.c.bf16 %v1430, %v1426
    %v1559 = vld [vmem:[#allocation2] sm:$0xf]
    %v1562 = vunpack.c.l.s4 1966171168
    %v1563 = vunpack.c.0.s8 %v1562
    %v1564 = vlaneseq
    %v1565 = vshrl.u32 %v1564, 7
    %v1566 = vsub.s32 %v1563, %v1565
    %v1567 = vrot.slane %v1559, %v1566
    %v1568 = vcombine.high %v1567, %v1567
    %v1570 = vunpack.c.l.s4 1966171168
    %v1571 = vunpack.c.0.s8 %v1570
    %v1572 = vlaneseq
    %v1573 = vshrl.u32 %v1572, 7
    %v1574 = vsub.s32 %v1571, %v1573
    %v1575 = vrot.slane %v1567, %v1574
    %v1577 = vunpack.c.l.s4 1966171168
    %v1578 = vunpack.c.0.s8 %v1577
    %v1579 = vlaneseq
    %v1580 = vshrl.u32 %v1579, 7
    %v1581 = vsub.s32 %v1578, %v1580
    %v1582 = vrot.slane %v1568, %v1581
    %v1583 = vcombine.high %v1575, %v1575
    %v1584 = vcombine.high %v1582, %v1582
    %1589 = vmatprep.subr.bf16.mxu0 %v1432
    %1590 = vmatpush1.bf16.msra.mxu0 %v1431
    %1591 = vmatprep.subr.bf16.mxu0 %v1436
    %1592 = vmatpush1.bf16.msra.mxu0 %v1435
    %1593 = vmatprep.subr.bf16.mxu0 %v1440
    %1594 = vmatpush1.bf16.msra.mxu0 %v1439
    %1595 = vmatprep.subr.bf16.mxu0 %v1444
    %1596 = vmatpush1.bf16.msra.mxu0 %v1443
    %1597 = vmatprep.subr.bf16.mxu0 %v1448
    %1598 = vmatpush1.bf16.msra.mxu0 %v1447
    %1599 = vmatprep.subr.bf16.mxu0 %v1452
    %1600 = vmatpush1.bf16.msra.mxu0 %v1451
    %1601 = vmatprep.subr.bf16.mxu0 %v1456
    %1602 = vmatpush1.bf16.msra.mxu0 %v1455
    %1603 = vmatprep.subr.bf16.mxu0 %v1460
    %1604 = vmatpush1.bf16.msra.mxu0 %v1459
    %1605 = vmatprep.subr.bf16.mxu0 %v1464
    %1606 = vmatpush1.bf16.msra.mxu0 %v1463
    %1607 = vmatprep.subr.bf16.mxu0 %v1468
    %1608 = vmatpush1.bf16.msra.mxu0 %v1467
    %1609 = vmatprep.subr.bf16.mxu0 %v1472
    %1610 = vmatpush1.bf16.msra.mxu0 %v1471
    %1611 = vmatprep.subr.bf16.mxu0 %v1476
    %1612 = vmatpush1.bf16.msra.mxu0 %v1475
    %1613 = vmatprep.subr.bf16.mxu0 %v1480
    %1614 = vmatpush1.bf16.msra.mxu0 %v1479
    %1615 = vmatprep.subr.bf16.mxu0 %v1484
    %1616 = vmatpush1.bf16.msra.mxu0 %v1483
    %1617 = vmatprep.subr.bf16.mxu0 %v1488
    %1618 = vmatpush1.bf16.msra.mxu0 %v1487
    %1619 = vmatprep.subr.bf16.mxu0 %v1492
    %1620 = vmatpush1.bf16.msra.mxu0 %v1491
    %1621 = vmatprep.mubr.bf16.mxu0 %v1582
    %1622 = vmatmul.mubr.bf16.gmra.mrb[0].mxu0 %v1575
    %v1623 = vpop.f32.mrb[0].mxu0
    %v1624 = vadd.f32 0.0, %v1623
    %v1625 = vpop.f32.mrb[0].mxu0
    %v1626 = vadd.f32 0.0, %v1625
    %v1627 = vpop.f32.mrb[0].mxu0
    %v1628 = vpop.f32.mrb[0].mxu0
    %1629 = vdwg.mxu0
    %1630 = vmatprep.subr.bf16.mxu0 %v1496
    %1631 = vmatpush1.bf16.msra.mxu0 %v1495
    %1632 = vmatprep.subr.bf16.mxu0 %v1500
    %1633 = vmatpush1.bf16.msra.mxu0 %v1499
    %1634 = vmatprep.subr.bf16.mxu0 %v1504
    %1635 = vmatpush1.bf16.msra.mxu0 %v1503
    %1636 = vmatprep.subr.bf16.mxu0 %v1508
    %1637 = vmatpush1.bf16.msra.mxu0 %v1507
    %1638 = vmatprep.subr.bf16.mxu0 %v1512
    %1639 = vmatpush1.bf16.msra.mxu0 %v1511
    %1640 = vmatprep.subr.bf16.mxu0 %v1516
    %1641 = vmatpush1.bf16.msra.mxu0 %v1515
    %1642 = vmatprep.subr.bf16.mxu0 %v1520
    %1643 = vmatpush1.bf16.msra.mxu0 %v1519
    %1644 = vmatprep.subr.bf16.mxu0 %v1524
    %1645 = vmatpush1.bf16.msra.mxu0 %v1523
    %1646 = vmatprep.subr.bf16.mxu0 %v1528
    %1647 = vmatpush1.bf16.msra.mxu0 %v1527
    %1648 = vmatprep.subr.bf16.mxu0 %v1532
    %1649 = vmatpush1.bf16.msra.mxu0 %v1531
    %1650 = vmatprep.subr.bf16.mxu0 %v1536
    %1651 = vmatpush1.bf16.msra.mxu0 %v1535
    %1652 = vmatprep.subr.bf16.mxu0 %v1540
    %1653 = vmatpush1.bf16.msra.mxu0 %v1539
    %1654 = vmatprep.subr.bf16.mxu0 %v1544
    %1655 = vmatpush1.bf16.msra.mxu0 %v1543
    %1656 = vmatprep.subr.bf16.mxu0 %v1548
    %1657 = vmatpush1.bf16.msra.mxu0 %v1547
    %1658 = vmatprep.subr.bf16.mxu0 %v1552
    %1659 = vmatpush1.bf16.msra.mxu0 %v1551
    %1660 = vmatprep.subr.bf16.mxu0 %v1556
    %1661 = vmatpush1.bf16.msra.mxu0 %v1555
    %1662 = vmatprep.mubr.bf16.mxu0 %v1584
    %1663 = vmatmul.mubr.bf16.gmra.mrb[0].mxu0 %v1583
    %v1664 = vpop.f32.mrb[0].mxu0
    %v1665 = vadd.f32 %v1624, %v1664
    %v1666 = vpop.f32.mrb[0].mxu0
    %v1667 = vadd.f32 %v1626, %v1666
    %v1668 = vpop.f32.mrb[0].mxu0
    %v1669 = vpop.f32.mrb[0].mxu0
    %1670 = vdwg.mxu0
    %1671 = vmatprep.subr.bf16.mxu0 %v1434
    %1672 = vmatpush1.bf16.msra.mxu0 %v1433
    %1673 = vmatprep.subr.bf16.mxu0 %v1438
    %1674 = vmatpush1.bf16.msra.mxu0 %v1437
    %1675 = vmatprep.subr.bf16.mxu0 %v1442
    %1676 = vmatpush1.bf16.msra.mxu0 %v1441
    %1677 = vmatprep.subr.bf16.mxu0 %v1446
    %1678 = vmatpush1.bf16.msra.mxu0 %v1445
    %1679 = vmatprep.subr.bf16.mxu0 %v1450
    %1680 = vmatpush1.bf16.msra.mxu0 %v1449
    %1681 = vmatprep.subr.bf16.mxu0 %v1454
    %1682 = vmatpush1.bf16.msra.mxu0 %v1453
    %1683 = vmatprep.subr.bf16.mxu0 %v1458
    %1684 = vmatpush1.bf16.msra.mxu0 %v1457
    %1685 = vmatprep.subr.bf16.mxu0 %v1462
    %1686 = vmatpush1.bf16.msra.mxu0 %v1461
    %1687 = vmatprep.subr.bf16.mxu0 %v1466
    %1688 = vmatpush1.bf16.msra.mxu0 %v1465
    %1689 = vmatprep.subr.bf16.mxu0 %v1470
    %1690 = vmatpush1.bf16.msra.mxu0 %v1469
    %1691 = vmatprep.subr.bf16.mxu0 %v1474
    %1692 = vmatpush1.bf16.msra.mxu0 %v1473
    %1693 = vmatprep.subr.bf16.mxu0 %v1478
    %1694 = vmatpush1.bf16.msra.mxu0 %v1477
    %1695 = vmatprep.subr.bf16.mxu0 %v1482
    %1696 = vmatpush1.bf16.msra.mxu0 %v1481
    %1697 = vmatprep.subr.bf16.mxu0 %v1486
    %1698 = vmatpush1.bf16.msra.mxu0 %v1485
    %1699 = vmatprep.subr.bf16.mxu0 %v1490
    %1700 = vmatpush1.bf16.msra.mxu0 %v1489
    %1701 = vmatprep.subr.bf16.mxu0 %v1494
    %1702 = vmatpush1.bf16.msra.mxu0 %v1493
    %1703 = vmatprep.mubr.bf16.mxu0 %v1582
    %1704 = vmatmul.mubr.bf16.gmra.mrb[0].mxu0 %v1575
    %v1705 = vpop.f32.mrb[0].mxu0
    %v1706 = vadd.f32 0.0, %v1705
    %v1707 = vpop.f32.mrb[0].mxu0
    %v1708 = vadd.f32 0.0, %v1707
    %v1709 = vpop.f32.mrb[0].mxu0
    %v1710 = vpop.f32.mrb[0].mxu0
    %1711 = vdwg.mxu0
    %1712 = vmatprep.subr.bf16.mxu0 %v1498
    %1713 = vmatpush1.bf16.msra.mxu0 %v1497
    %1714 = vmatprep.subr.bf16.mxu0 %v1502
    %1715 = vmatpush1.bf16.msra.mxu0 %v1501
    %1716 = vmatprep.subr.bf16.mxu0 %v1506
    %1717 = vmatpush1.bf16.msra.mxu0 %v1505
    %1718 = vmatprep.subr.bf16.mxu0 %v1510
    %1719 = vmatpush1.bf16.msra.mxu0 %v1509
    %1720 = vmatprep.subr.bf16.mxu0 %v1514
    %1721 = vmatpush1.bf16.msra.mxu0 %v1513
    %1722 = vmatprep.subr.bf16.mxu0 %v1518
    %1723 = vmatpush1.bf16.msra.mxu0 %v1517
    %1724 = vmatprep.subr.bf16.mxu0 %v1522
    %1725 = vmatpush1.bf16.msra.mxu0 %v1521
    %1726 = vmatprep.subr.bf16.mxu0 %v1526
    %1727 = vmatpush1.bf16.msra.mxu0 %v1525
    %1728 = vmatprep.subr.bf16.mxu0 %v1530
    %1729 = vmatpush1.bf16.msra.mxu0 %v1529
    %1730 = vmatprep.subr.bf16.mxu0 %v1534
    %1731 = vmatpush1.bf16.msra.mxu0 %v1533
    %1732 = vmatprep.subr.bf16.mxu0 %v1538
    %1733 = vmatpush1.bf16.msra.mxu0 %v1537
    %1734 = vmatprep.subr.bf16.mxu0 %v1542
    %1735 = vmatpush1.bf16.msra.mxu0 %v1541
    %1736 = vmatprep.subr.bf16.mxu0 %v1546
    %1737 = vmatpush1.bf16.msra.mxu0 %v1545
    %1738 = vmatprep.subr.bf16.mxu0 %v1550
    %1739 = vmatpush1.bf16.msra.mxu0 %v1549
    %1740 = vmatprep.subr.bf16.mxu0 %v1554
    %1741 = vmatpush1.bf16.msra.mxu0 %v1553
    %1742 = vmatprep.subr.bf16.mxu0 %v1558
    %1743 = vmatpush1.bf16.msra.mxu0 %v1557
    %1744 = vmatprep.mubr.bf16.mxu0 %v1584
    %1745 = vmatmul.mubr.bf16.gmra.mrb[0].mxu0 %v1583
    %v1746 = vpop.f32.mrb[0].mxu0
    %v1747 = vadd.f32 %v1706, %v1746
    %v1748 = vpop.f32.mrb[0].mxu0
    %v1749 = vadd.f32 %v1708, %v1748
    %v1750 = vpop.f32.mrb[0].mxu0
    %v1751 = vpop.f32.mrb[0].mxu0
    %1752 = vdwg.mxu0
    %v1753 = vpack.c.bf16 %v1665, %v1665
    %v1754 = vpack.c.bf16 %v1667, %v1667
    %v1755 = vpack.c.bf16 %v1747, %v1747
    %v1756 = vpack.c.bf16 %v1749, %v1749
    %v1757 = vld [vmem:[#allocation7] sm:$0xff]
    %v1758 = vld [vmem:[#allocation7 + $0x8] sm:$0xff]
    %v1759 = vld [vmem:[#allocation7 + $0x10] sm:$0xff]
    %v1760 = vld [vmem:[#allocation7 + $0x18] sm:$0xff]
    %v1761 = vld [vmem:[#allocation7 + $0x20] sm:$0xff]
    %v1762 = vld [vmem:[#allocation7 + $0x28] sm:$0xff]
    %v1763 = vld [vmem:[#allocation7 + $0x30] sm:$0xff]
    %v1764 = vld [vmem:[#allocation7 + $0x38] sm:$0xff]
    %v1765 = vld [vmem:[#allocation7 + $0x40] sm:$0xff]
    %v1766 = vld [vmem:[#allocation7 + $0x48] sm:$0xff]
    %v1767 = vld [vmem:[#allocation7 + $0x50] sm:$0xff]
    %v1768 = vld [vmem:[#allocation7 + $0x58] sm:$0xff]
    %v1769 = vld [vmem:[#allocation7 + $0x60] sm:$0xff]
    %v1770 = vld [vmem:[#allocation7 + $0x68] sm:$0xff]
    %v1771 = vld [vmem:[#allocation7 + $0x70] sm:$0xff]
    %v1772 = vld [vmem:[#allocation7 + $0x78] sm:$0xff]
    %v1773 = vld [vmem:[#allocation7 + $0x80] sm:$0xff]
    %v1774 = vld [vmem:[#allocation7 + $0x88] sm:$0xff]
    %v1775 = vld [vmem:[#allocation7 + $0x90] sm:$0xff]
    %v1776 = vld [vmem:[#allocation7 + $0x98] sm:$0xff]
    %v1777 = vld [vmem:[#allocation7 + $0xa0] sm:$0xff]
    %v1778 = vld [vmem:[#allocation7 + $0xa8] sm:$0xff]
    %v1779 = vld [vmem:[#allocation7 + $0xb0] sm:$0xff]
    %v1780 = vld [vmem:[#allocation7 + $0xb8] sm:$0xff]
    %v1781 = vld [vmem:[#allocation7 + $0xc0] sm:$0xff]
    %v1782 = vld [vmem:[#allocation7 + $0xc8] sm:$0xff]
    %v1783 = vld [vmem:[#allocation7 + $0xd0] sm:$0xff]
    %v1784 = vld [vmem:[#allocation7 + $0xd8] sm:$0xff]
    %v1785 = vld [vmem:[#allocation7 + $0xe0] sm:$0xff]
    %v1786 = vld [vmem:[#allocation7 + $0xe8] sm:$0xff]
    %v1787 = vld [vmem:[#allocation7 + $0xf0] sm:$0xff]
    %v1788 = vld [vmem:[#allocation7 + $0xf8] sm:$0xff]
    %v1789 = vld [vmem:[#allocation7 + $0x100] sm:$0xff]
    %v1790 = vld [vmem:[#allocation7 + $0x108] sm:$0xff]
    %v1791 = vld [vmem:[#allocation7 + $0x110] sm:$0xff]
    %v1792 = vld [vmem:[#allocation7 + $0x118] sm:$0xff]
    %v1793 = vld [vmem:[#allocation7 + $0x120] sm:$0xff]
    %v1794 = vld [vmem:[#allocation7 + $0x128] sm:$0xff]
    %v1795 = vld [vmem:[#allocation7 + $0x130] sm:$0xff]
    %v1796 = vld [vmem:[#allocation7 + $0x138] sm:$0xff]
    %v1797 = vld [vmem:[#allocation7 + $0x140] sm:$0xff]
    %v1798 = vld [vmem:[#allocation7 + $0x148] sm:$0xff]
    %v1799 = vld [vmem:[#allocation7 + $0x150] sm:$0xff]
    %v1800 = vld [vmem:[#allocation7 + $0x158] sm:$0xff]
    %v1801 = vld [vmem:[#allocation7 + $0x160] sm:$0xff]
    %v1802 = vld [vmem:[#allocation7 + $0x168] sm:$0xff]
    %v1803 = vld [vmem:[#allocation7 + $0x170] sm:$0xff]
    %v1804 = vld [vmem:[#allocation7 + $0x178] sm:$0xff]
    %v1805 = vld [vmem:[#allocation7 + $0x180] sm:$0xff]
    %v1806 = vld [vmem:[#allocation7 + $0x188] sm:$0xff]
    %v1807 = vld [vmem:[#allocation7 + $0x190] sm:$0xff]
    %v1808 = vld [vmem:[#allocation7 + $0x198] sm:$0xff]
    %v1809 = vld [vmem:[#allocation7 + $0x1a0] sm:$0xff]
    %v1810 = vld [vmem:[#allocation7 + $0x1a8] sm:$0xff]
    %v1811 = vld [vmem:[#allocation7 + $0x1b0] sm:$0xff]
    %v1812 = vld [vmem:[#allocation7 + $0x1b8] sm:$0xff]
    %v1813 = vld [vmem:[#allocation7 + $0x1c0] sm:$0xff]
    %v1814 = vld [vmem:[#allocation7 + $0x1c8] sm:$0xff]
    %v1815 = vld [vmem:[#allocation7 + $0x1d0] sm:$0xff]
    %v1816 = vld [vmem:[#allocation7 + $0x1d8] sm:$0xff]
    %v1817 = vld [vmem:[#allocation7 + $0x1e0] sm:$0xff]
    %v1818 = vld [vmem:[#allocation7 + $0x1e8] sm:$0xff]
    %v1819 = vld [vmem:[#allocation7 + $0x1f0] sm:$0xff]
    %v1820 = vld [vmem:[#allocation7 + $0x1f8] sm:$0xff]
    %v1821 = vld [vmem:[#allocation7 + $0x200] sm:$0xff]
    %v1822 = vld [vmem:[#allocation7 + $0x208] sm:$0xff]
    %v1823 = vld [vmem:[#allocation7 + $0x210] sm:$0xff]
    %v1824 = vld [vmem:[#allocation7 + $0x218] sm:$0xff]
    %v1825 = vld [vmem:[#allocation7 + $0x220] sm:$0xff]
    %v1826 = vld [vmem:[#allocation7 + $0x228] sm:$0xff]
    %v1827 = vld [vmem:[#allocation7 + $0x230] sm:$0xff]
    %v1828 = vld [vmem:[#allocation7 + $0x238] sm:$0xff]
    %v1829 = vld [vmem:[#allocation7 + $0x240] sm:$0xff]
    %v1830 = vld [vmem:[#allocation7 + $0x248] sm:$0xff]
    %v1831 = vld [vmem:[#allocation7 + $0x250] sm:$0xff]
    %v1832 = vld [vmem:[#allocation7 + $0x258] sm:$0xff]
    %v1833 = vld [vmem:[#allocation7 + $0x260] sm:$0xff]
    %v1834 = vld [vmem:[#allocation7 + $0x268] sm:$0xff]
    %v1835 = vld [vmem:[#allocation7 + $0x270] sm:$0xff]
    %v1836 = vld [vmem:[#allocation7 + $0x278] sm:$0xff]
    %v1837 = vld [vmem:[#allocation7 + $0x280] sm:$0xff]
    %v1838 = vld [vmem:[#allocation7 + $0x288] sm:$0xff]
    %v1839 = vld [vmem:[#allocation7 + $0x290] sm:$0xff]
    %v1840 = vld [vmem:[#allocation7 + $0x298] sm:$0xff]
    %v1841 = vld [vmem:[#allocation7 + $0x2a0] sm:$0xff]
    %v1842 = vld [vmem:[#allocation7 + $0x2a8] sm:$0xff]
    %v1843 = vld [vmem:[#allocation7 + $0x2b0] sm:$0xff]
    %v1844 = vld [vmem:[#allocation7 + $0x2b8] sm:$0xff]
    %v1845 = vld [vmem:[#allocation7 + $0x2c0] sm:$0xff]
    %v1846 = vld [vmem:[#allocation7 + $0x2c8] sm:$0xff]
    %v1847 = vld [vmem:[#allocation7 + $0x2d0] sm:$0xff]
    %v1848 = vld [vmem:[#allocation7 + $0x2d8] sm:$0xff]
    %v1849 = vld [vmem:[#allocation7 + $0x2e0] sm:$0xff]
    %v1850 = vld [vmem:[#allocation7 + $0x2e8] sm:$0xff]
    %v1851 = vld [vmem:[#allocation7 + $0x2f0] sm:$0xff]
    %v1852 = vld [vmem:[#allocation7 + $0x2f8] sm:$0xff]
    %v1853 = vld [vmem:[#allocation7 + $0x300] sm:$0xff]
    %v1854 = vld [vmem:[#allocation7 + $0x308] sm:$0xff]
    %v1855 = vld [vmem:[#allocation7 + $0x310] sm:$0xff]
    %v1856 = vld [vmem:[#allocation7 + $0x318] sm:$0xff]
    %v1857 = vld [vmem:[#allocation7 + $0x320] sm:$0xff]
    %v1858 = vld [vmem:[#allocation7 + $0x328] sm:$0xff]
    %v1859 = vld [vmem:[#allocation7 + $0x330] sm:$0xff]
    %v1860 = vld [vmem:[#allocation7 + $0x338] sm:$0xff]
    %v1861 = vld [vmem:[#allocation7 + $0x340] sm:$0xff]
    %v1862 = vld [vmem:[#allocation7 + $0x348] sm:$0xff]
    %v1863 = vld [vmem:[#allocation7 + $0x350] sm:$0xff]
    %v1864 = vld [vmem:[#allocation7 + $0x358] sm:$0xff]
    %v1865 = vld [vmem:[#allocation7 + $0x360] sm:$0xff]
    %v1866 = vld [vmem:[#allocation7 + $0x368] sm:$0xff]
    %v1867 = vld [vmem:[#allocation7 + $0x370] sm:$0xff]
    %v1868 = vld [vmem:[#allocation7 + $0x378] sm:$0xff]
    %v1869 = vld [vmem:[#allocation7 + $0x380] sm:$0xff]
    %v1870 = vld [vmem:[#allocation7 + $0x388] sm:$0xff]
    %v1871 = vld [vmem:[#allocation7 + $0x390] sm:$0xff]
    %v1872 = vld [vmem:[#allocation7 + $0x398] sm:$0xff]
    %v1873 = vld [vmem:[#allocation7 + $0x3a0] sm:$0xff]
    %v1874 = vld [vmem:[#allocation7 + $0x3a8] sm:$0xff]
    %v1875 = vld [vmem:[#allocation7 + $0x3b0] sm:$0xff]
    %v1876 = vld [vmem:[#allocation7 + $0x3b8] sm:$0xff]
    %v1877 = vld [vmem:[#allocation7 + $0x3c0] sm:$0xff]
    %v1878 = vld [vmem:[#allocation7 + $0x3c8] sm:$0xff]
    %v1879 = vld [vmem:[#allocation7 + $0x3d0] sm:$0xff]
    %v1880 = vld [vmem:[#allocation7 + $0x3d8] sm:$0xff]
    %v1881 = vld [vmem:[#allocation7 + $0x3e0] sm:$0xff]
    %v1882 = vld [vmem:[#allocation7 + $0x3e8] sm:$0xff]
    %v1883 = vld [vmem:[#allocation7 + $0x3f0] sm:$0xff]
    %v1884 = vld [vmem:[#allocation7 + $0x3f8] sm:$0xff]
    %v1885 = vld [vmem:[#allocation7 + $0x400] sm:$0xff]
    %v1886 = vld [vmem:[#allocation7 + $0x408] sm:$0xff]
    %v1887 = vld [vmem:[#allocation7 + $0x410] sm:$0xff]
    %v1888 = vld [vmem:[#allocation7 + $0x418] sm:$0xff]
    %v1889 = vld [vmem:[#allocation7 + $0x420] sm:$0xff]
    %v1890 = vld [vmem:[#allocation7 + $0x428] sm:$0xff]
    %v1891 = vld [vmem:[#allocation7 + $0x430] sm:$0xff]
    %v1892 = vld [vmem:[#allocation7 + $0x438] sm:$0xff]
    %v1893 = vld [vmem:[#allocation7 + $0x440] sm:$0xff]
    %v1894 = vld [vmem:[#allocation7 + $0x448] sm:$0xff]
    %v1895 = vld [vmem:[#allocation7 + $0x450] sm:$0xff]
    %v1896 = vld [vmem:[#allocation7 + $0x458] sm:$0xff]
    %v1897 = vld [vmem:[#allocation7 + $0x460] sm:$0xff]
    %v1898 = vld [vmem:[#allocation7 + $0x468] sm:$0xff]
    %v1899 = vld [vmem:[#allocation7 + $0x470] sm:$0xff]
    %v1900 = vld [vmem:[#allocation7 + $0x478] sm:$0xff]
    %v1901 = vld [vmem:[#allocation7 + $0x480] sm:$0xff]
    %v1902 = vld [vmem:[#allocation7 + $0x488] sm:$0xff]
    %v1903 = vld [vmem:[#allocation7 + $0x490] sm:$0xff]
    %v1904 = vld [vmem:[#allocation7 + $0x498] sm:$0xff]
    %v1905 = vld [vmem:[#allocation7 + $0x4a0] sm:$0xff]
    %v1906 = vld [vmem:[#allocation7 + $0x4a8] sm:$0xff]
    %v1907 = vld [vmem:[#allocation7 + $0x4b0] sm:$0xff]
    %v1908 = vld [vmem:[#allocation7 + $0x4b8] sm:$0xff]
    %v1909 = vld [vmem:[#allocation7 + $0x4c0] sm:$0xff]
    %v1910 = vld [vmem:[#allocation7 + $0x4c8] sm:$0xff]
    %v1911 = vld [vmem:[#allocation7 + $0x4d0] sm:$0xff]
    %v1912 = vld [vmem:[#allocation7 + $0x4d8] sm:$0xff]
    %v1913 = vld [vmem:[#allocation7 + $0x4e0] sm:$0xff]
    %v1914 = vld [vmem:[#allocation7 + $0x4e8] sm:$0xff]
    %v1915 = vld [vmem:[#allocation7 + $0x4f0] sm:$0xff]
    %v1916 = vld [vmem:[#allocation7 + $0x4f8] sm:$0xff]
    %v1917 = vld [vmem:[#allocation7 + $0x500] sm:$0xff]
    %v1918 = vld [vmem:[#allocation7 + $0x508] sm:$0xff]
    %v1919 = vld [vmem:[#allocation7 + $0x510] sm:$0xff]
    %v1920 = vld [vmem:[#allocation7 + $0x518] sm:$0xff]
    %v1921 = vld [vmem:[#allocation7 + $0x520] sm:$0xff]
    %v1922 = vld [vmem:[#allocation7 + $0x528] sm:$0xff]
    %v1923 = vld [vmem:[#allocation7 + $0x530] sm:$0xff]
    %v1924 = vld [vmem:[#allocation7 + $0x538] sm:$0xff]
    %v1925 = vld [vmem:[#allocation7 + $0x540] sm:$0xff]
    %v1926 = vld [vmem:[#allocation7 + $0x548] sm:$0xff]
    %v1927 = vld [vmem:[#allocation7 + $0x550] sm:$0xff]
    %v1928 = vld [vmem:[#allocation7 + $0x558] sm:$0xff]
    %v1929 = vld [vmem:[#allocation7 + $0x560] sm:$0xff]
    %v1930 = vld [vmem:[#allocation7 + $0x568] sm:$0xff]
    %v1931 = vld [vmem:[#allocation7 + $0x570] sm:$0xff]
    %v1932 = vld [vmem:[#allocation7 + $0x578] sm:$0xff]
    %v1933 = vld [vmem:[#allocation7 + $0x580] sm:$0xff]
    %v1934 = vld [vmem:[#allocation7 + $0x588] sm:$0xff]
    %v1935 = vld [vmem:[#allocation7 + $0x590] sm:$0xff]
    %v1936 = vld [vmem:[#allocation7 + $0x598] sm:$0xff]
    %v1937 = vld [vmem:[#allocation7 + $0x5a0] sm:$0xff]
    %v1938 = vld [vmem:[#allocation7 + $0x5a8] sm:$0xff]
    %v1939 = vld [vmem:[#allocation7 + $0x5b0] sm:$0xff]
    %v1940 = vld [vmem:[#allocation7 + $0x5b8] sm:$0xff]
    %v1941 = vld [vmem:[#allocation7 + $0x5c0] sm:$0xff]
    %v1942 = vld [vmem:[#allocation7 + $0x5c8] sm:$0xff]
    %v1943 = vld [vmem:[#allocation7 + $0x5d0] sm:$0xff]
    %v1944 = vld [vmem:[#allocation7 + $0x5d8] sm:$0xff]
    %v1945 = vld [vmem:[#allocation7 + $0x5e0] sm:$0xff]
    %v1946 = vld [vmem:[#allocation7 + $0x5e8] sm:$0xff]
    %v1947 = vld [vmem:[#allocation7 + $0x5f0] sm:$0xff]
    %v1948 = vld [vmem:[#allocation7 + $0x5f8] sm:$0xff]
    %v1949 = vld [vmem:[#allocation7 + $0x600] sm:$0xff]
    %v1950 = vld [vmem:[#allocation7 + $0x608] sm:$0xff]
    %v1951 = vld [vmem:[#allocation7 + $0x610] sm:$0xff]
    %v1952 = vld [vmem:[#allocation7 + $0x618] sm:$0xff]
    %v1953 = vld [vmem:[#allocation7 + $0x620] sm:$0xff]
    %v1954 = vld [vmem:[#allocation7 + $0x628] sm:$0xff]
    %v1955 = vld [vmem:[#allocation7 + $0x630] sm:$0xff]
    %v1956 = vld [vmem:[#allocation7 + $0x638] sm:$0xff]
    %v1957 = vld [vmem:[#allocation7 + $0x640] sm:$0xff]
    %v1958 = vld [vmem:[#allocation7 + $0x648] sm:$0xff]
    %v1959 = vld [vmem:[#allocation7 + $0x650] sm:$0xff]
    %v1960 = vld [vmem:[#allocation7 + $0x658] sm:$0xff]
    %v1961 = vld [vmem:[#allocation7 + $0x660] sm:$0xff]
    %v1962 = vld [vmem:[#allocation7 + $0x668] sm:$0xff]
    %v1963 = vld [vmem:[#allocation7 + $0x670] sm:$0xff]
    %v1964 = vld [vmem:[#allocation7 + $0x678] sm:$0xff]
    %v1965 = vld [vmem:[#allocation7 + $0x680] sm:$0xff]
    %v1966 = vld [vmem:[#allocation7 + $0x688] sm:$0xff]
    %v1967 = vld [vmem:[#allocation7 + $0x690] sm:$0xff]
    %v1968 = vld [vmem:[#allocation7 + $0x698] sm:$0xff]
    %v1969 = vld [vmem:[#allocation7 + $0x6a0] sm:$0xff]
    %v1970 = vld [vmem:[#allocation7 + $0x6a8] sm:$0xff]
    %v1971 = vld [vmem:[#allocation7 + $0x6b0] sm:$0xff]
    %v1972 = vld [vmem:[#allocation7 + $0x6b8] sm:$0xff]
    %v1973 = vld [vmem:[#allocation7 + $0x6c0] sm:$0xff]
    %v1974 = vld [vmem:[#allocation7 + $0x6c8] sm:$0xff]
    %v1975 = vld [vmem:[#allocation7 + $0x6d0] sm:$0xff]
    %v1976 = vld [vmem:[#allocation7 + $0x6d8] sm:$0xff]
    %v1977 = vld [vmem:[#allocation7 + $0x6e0] sm:$0xff]
    %v1978 = vld [vmem:[#allocation7 + $0x6e8] sm:$0xff]
    %v1979 = vld [vmem:[#allocation7 + $0x6f0] sm:$0xff]
    %v1980 = vld [vmem:[#allocation7 + $0x6f8] sm:$0xff]
    %v1981 = vld [vmem:[#allocation7 + $0x700] sm:$0xff]
    %v1982 = vld [vmem:[#allocation7 + $0x708] sm:$0xff]
    %v1983 = vld [vmem:[#allocation7 + $0x710] sm:$0xff]
    %v1984 = vld [vmem:[#allocation7 + $0x718] sm:$0xff]
    %v1985 = vld [vmem:[#allocation7 + $0x720] sm:$0xff]
    %v1986 = vld [vmem:[#allocation7 + $0x728] sm:$0xff]
    %v1987 = vld [vmem:[#allocation7 + $0x730] sm:$0xff]
    %v1988 = vld [vmem:[#allocation7 + $0x738] sm:$0xff]
    %v1989 = vld [vmem:[#allocation7 + $0x740] sm:$0xff]
    %v1990 = vld [vmem:[#allocation7 + $0x748] sm:$0xff]
    %v1991 = vld [vmem:[#allocation7 + $0x750] sm:$0xff]
    %v1992 = vld [vmem:[#allocation7 + $0x758] sm:$0xff]
    %v1993 = vld [vmem:[#allocation7 + $0x760] sm:$0xff]
    %v1994 = vld [vmem:[#allocation7 + $0x768] sm:$0xff]
    %v1995 = vld [vmem:[#allocation7 + $0x770] sm:$0xff]
    %v1996 = vld [vmem:[#allocation7 + $0x778] sm:$0xff]
    %v1997 = vld [vmem:[#allocation7 + $0x780] sm:$0xff]
    %v1998 = vld [vmem:[#allocation7 + $0x788] sm:$0xff]
    %v1999 = vld [vmem:[#allocation7 + $0x790] sm:$0xff]
    %v2000 = vld [vmem:[#allocation7 + $0x798] sm:$0xff]
    %v2001 = vld [vmem:[#allocation7 + $0x7a0] sm:$0xff]
    %v2002 = vld [vmem:[#allocation7 + $0x7a8] sm:$0xff]
    %v2003 = vld [vmem:[#allocation7 + $0x7b0] sm:$0xff]
    %v2004 = vld [vmem:[#allocation7 + $0x7b8] sm:$0xff]
    %v2005 = vld [vmem:[#allocation7 + $0x7c0] sm:$0xff]
    %v2006 = vld [vmem:[#allocation7 + $0x7c8] sm:$0xff]
    %v2007 = vld [vmem:[#allocation7 + $0x7d0] sm:$0xff]
    %v2008 = vld [vmem:[#allocation7 + $0x7d8] sm:$0xff]
    %v2009 = vld [vmem:[#allocation7 + $0x7e0] sm:$0xff]
    %v2010 = vld [vmem:[#allocation7 + $0x7e8] sm:$0xff]
    %v2011 = vld [vmem:[#allocation7 + $0x7f0] sm:$0xff]
    %v2012 = vld [vmem:[#allocation7 + $0x7f8] sm:$0xff]
    %v2269 = vunpack.c.l.b16 %v1757
    %v2270 = vunpack.c.h.b16 %v1757
    %v2271 = vunpack.c.l.b16 %v1758
    %v2272 = vunpack.c.h.b16 %v1758
    %v2273 = vunpack.c.l.b16 %v1759
    %v2274 = vunpack.c.h.b16 %v1759
    %v2275 = vunpack.c.l.b16 %v1760
    %v2276 = vunpack.c.h.b16 %v1760
    %v2277 = vunpack.c.l.b16 %v1761
    %v2278 = vunpack.c.h.b16 %v1761
    %v2279 = vunpack.c.l.b16 %v1762
    %v2280 = vunpack.c.h.b16 %v1762
    %v2281 = vunpack.c.l.b16 %v1763
    %v2282 = vunpack.c.h.b16 %v1763
    %v2283 = vunpack.c.l.b16 %v1764
    %v2284 = vunpack.c.h.b16 %v1764
    %v2285 = vunpack.c.l.b16 %v1765
    %v2286 = vunpack.c.h.b16 %v1765
    %v2287 = vunpack.c.l.b16 %v1766
    %v2288 = vunpack.c.h.b16 %v1766
    %v2289 = vunpack.c.l.b16 %v1767
    %v2290 = vunpack.c.h.b16 %v1767
    %v2291 = vunpack.c.l.b16 %v1768
    %v2292 = vunpack.c.h.b16 %v1768
    %v2293 = vunpack.c.l.b16 %v1769
    %v2294 = vunpack.c.h.b16 %v1769
    %v2295 = vunpack.c.l.b16 %v1770
    %v2296 = vunpack.c.h.b16 %v1770
    %v2297 = vunpack.c.l.b16 %v1771
    %v2298 = vunpack.c.h.b16 %v1771
    %v2299 = vunpack.c.l.b16 %v1772
    %v2300 = vunpack.c.h.b16 %v1772
    %v2301 = vunpack.c.l.b16 %v1773
    %v2302 = vunpack.c.h.b16 %v1773
    %v2303 = vunpack.c.l.b16 %v1774
    %v2304 = vunpack.c.h.b16 %v1774
    %v2305 = vunpack.c.l.b16 %v1775
    %v2306 = vunpack.c.h.b16 %v1775
    %v2307 = vunpack.c.l.b16 %v1776
    %v2308 = vunpack.c.h.b16 %v1776
    %v2309 = vunpack.c.l.b16 %v1777
    %v2310 = vunpack.c.h.b16 %v1777
    %v2311 = vunpack.c.l.b16 %v1778
    %v2312 = vunpack.c.h.b16 %v1778
    %v2313 = vunpack.c.l.b16 %v1779
    %v2314 = vunpack.c.h.b16 %v1779
    %v2315 = vunpack.c.l.b16 %v1780
    %v2316 = vunpack.c.h.b16 %v1780
    %v2317 = vunpack.c.l.b16 %v1781
    %v2318 = vunpack.c.h.b16 %v1781
    %v2319 = vunpack.c.l.b16 %v1782
    %v2320 = vunpack.c.h.b16 %v1782
    %v2321 = vunpack.c.l.b16 %v1783
    %v2322 = vunpack.c.h.b16 %v1783
    %v2323 = vunpack.c.l.b16 %v1784
    %v2324 = vunpack.c.h.b16 %v1784
    %v2325 = vunpack.c.l.b16 %v1785
    %v2326 = vunpack.c.h.b16 %v1785
    %v2327 = vunpack.c.l.b16 %v1786
    %v2328 = vunpack.c.h.b16 %v1786
    %v2329 = vunpack.c.l.b16 %v1787
    %v2330 = vunpack.c.h.b16 %v1787
    %v2331 = vunpack.c.l.b16 %v1788
    %v2332 = vunpack.c.h.b16 %v1788
    %v2333 = vunpack.c.l.b16 %v1789
    %v2334 = vunpack.c.h.b16 %v1789
    %v2335 = vunpack.c.l.b16 %v1790
    %v2336 = vunpack.c.h.b16 %v1790
    %v2337 = vunpack.c.l.b16 %v1791
    %v2338 = vunpack.c.h.b16 %v1791
    %v2339 = vunpack.c.l.b16 %v1792
    %v2340 = vunpack.c.h.b16 %v1792
    %v2341 = vunpack.c.l.b16 %v1793
    %v2342 = vunpack.c.h.b16 %v1793
    %v2343 = vunpack.c.l.b16 %v1794
    %v2344 = vunpack.c.h.b16 %v1794
    %v2345 = vunpack.c.l.b16 %v1795
    %v2346 = vunpack.c.h.b16 %v1795
    %v2347 = vunpack.c.l.b16 %v1796
    %v2348 = vunpack.c.h.b16 %v1796
    %v2349 = vunpack.c.l.b16 %v1797
    %v2350 = vunpack.c.h.b16 %v1797
    %v2351 = vunpack.c.l.b16 %v1798
    %v2352 = vunpack.c.h.b16 %v1798
    %v2353 = vunpack.c.l.b16 %v1799
    %v2354 = vunpack.c.h.b16 %v1799
    %v2355 = vunpack.c.l.b16 %v1800
    %v2356 = vunpack.c.h.b16 %v1800
    %v2357 = vunpack.c.l.b16 %v1801
    %v2358 = vunpack.c.h.b16 %v1801
    %v2359 = vunpack.c.l.b16 %v1802
    %v2360 = vunpack.c.h.b16 %v1802
    %v2361 = vunpack.c.l.b16 %v1803
    %v2362 = vunpack.c.h.b16 %v1803
    %v2363 = vunpack.c.l.b16 %v1804
    %v2364 = vunpack.c.h.b16 %v1804
    %v2365 = vunpack.c.l.b16 %v1805
    %v2366 = vunpack.c.h.b16 %v1805
    %v2367 = vunpack.c.l.b16 %v1806
    %v2368 = vunpack.c.h.b16 %v1806
    %v2369 = vunpack.c.l.b16 %v1807
    %v2370 = vunpack.c.h.b16 %v1807
    %v2371 = vunpack.c.l.b16 %v1808
    %v2372 = vunpack.c.h.b16 %v1808
    %v2373 = vunpack.c.l.b16 %v1809
    %v2374 = vunpack.c.h.b16 %v1809
    %v2375 = vunpack.c.l.b16 %v1810
    %v2376 = vunpack.c.h.b16 %v1810
    %v2377 = vunpack.c.l.b16 %v1811
    %v2378 = vunpack.c.h.b16 %v1811
    %v2379 = vunpack.c.l.b16 %v1812
    %v2380 = vunpack.c.h.b16 %v1812
    %v2381 = vunpack.c.l.b16 %v1813
    %v2382 = vunpack.c.h.b16 %v1813
    %v2383 = vunpack.c.l.b16 %v1814
    %v2384 = vunpack.c.h.b16 %v1814
    %v2385 = vunpack.c.l.b16 %v1815
    %v2386 = vunpack.c.h.b16 %v1815
    %v2387 = vunpack.c.l.b16 %v1816
    %v2388 = vunpack.c.h.b16 %v1816
    %v2389 = vunpack.c.l.b16 %v1817
    %v2390 = vunpack.c.h.b16 %v1817
    %v2391 = vunpack.c.l.b16 %v1818
    %v2392 = vunpack.c.h.b16 %v1818
    %v2393 = vunpack.c.l.b16 %v1819
    %v2394 = vunpack.c.h.b16 %v1819
    %v2395 = vunpack.c.l.b16 %v1820
    %v2396 = vunpack.c.h.b16 %v1820
    %v2397 = vunpack.c.l.b16 %v1821
    %v2398 = vunpack.c.h.b16 %v1821
    %v2399 = vunpack.c.l.b16 %v1822
    %v2400 = vunpack.c.h.b16 %v1822
    %v2401 = vunpack.c.l.b16 %v1823
    %v2402 = vunpack.c.h.b16 %v1823
    %v2403 = vunpack.c.l.b16 %v1824
    %v2404 = vunpack.c.h.b16 %v1824
    %v2405 = vunpack.c.l.b16 %v1825
    %v2406 = vunpack.c.h.b16 %v1825
    %v2407 = vunpack.c.l.b16 %v1826
    %v2408 = vunpack.c.h.b16 %v1826
    %v2409 = vunpack.c.l.b16 %v1827
    %v2410 = vunpack.c.h.b16 %v1827
    %v2411 = vunpack.c.l.b16 %v1828
    %v2412 = vunpack.c.h.b16 %v1828
    %v2413 = vunpack.c.l.b16 %v1829
    %v2414 = vunpack.c.h.b16 %v1829
    %v2415 = vunpack.c.l.b16 %v1830
    %v2416 = vunpack.c.h.b16 %v1830
    %v2417 = vunpack.c.l.b16 %v1831
    %v2418 = vunpack.c.h.b16 %v1831
    %v2419 = vunpack.c.l.b16 %v1832
    %v2420 = vunpack.c.h.b16 %v1832
    %v2421 = vunpack.c.l.b16 %v1833
    %v2422 = vunpack.c.h.b16 %v1833
    %v2423 = vunpack.c.l.b16 %v1834
    %v2424 = vunpack.c.h.b16 %v1834
    %v2425 = vunpack.c.l.b16 %v1835
    %v2426 = vunpack.c.h.b16 %v1835
    %v2427 = vunpack.c.l.b16 %v1836
    %v2428 = vunpack.c.h.b16 %v1836
    %v2429 = vunpack.c.l.b16 %v1837
    %v2430 = vunpack.c.h.b16 %v1837
    %v2431 = vunpack.c.l.b16 %v1838
    %v2432 = vunpack.c.h.b16 %v1838
    %v2433 = vunpack.c.l.b16 %v1839
    %v2434 = vunpack.c.h.b16 %v1839
    %v2435 = vunpack.c.l.b16 %v1840
    %v2436 = vunpack.c.h.b16 %v1840
    %v2437 = vunpack.c.l.b16 %v1841
    %v2438 = vunpack.c.h.b16 %v1841
    %v2439 = vunpack.c.l.b16 %v1842
    %v2440 = vunpack.c.h.b16 %v1842
    %v2441 = vunpack.c.l.b16 %v1843
    %v2442 = vunpack.c.h.b16 %v1843
    %v2443 = vunpack.c.l.b16 %v1844
    %v2444 = vunpack.c.h.b16 %v1844
    %v2445 = vunpack.c.l.b16 %v1845
    %v2446 = vunpack.c.h.b16 %v1845
    %v2447 = vunpack.c.l.b16 %v1846
    %v2448 = vunpack.c.h.b16 %v1846
    %v2449 = vunpack.c.l.b16 %v1847
    %v2450 = vunpack.c.h.b16 %v1847
    %v2451 = vunpack.c.l.b16 %v1848
    %v2452 = vunpack.c.h.b16 %v1848
    %v2453 = vunpack.c.l.b16 %v1849
    %v2454 = vunpack.c.h.b16 %v1849
    %v2455 = vunpack.c.l.b16 %v1850
    %v2456 = vunpack.c.h.b16 %v1850
    %v2457 = vunpack.c.l.b16 %v1851
    %v2458 = vunpack.c.h.b16 %v1851
    %v2459 = vunpack.c.l.b16 %v1852
    %v2460 = vunpack.c.h.b16 %v1852
    %v2461 = vunpack.c.l.b16 %v1853
    %v2462 = vunpack.c.h.b16 %v1853
    %v2463 = vunpack.c.l.b16 %v1854
    %v2464 = vunpack.c.h.b16 %v1854
    %v2465 = vunpack.c.l.b16 %v1855
    %v2466 = vunpack.c.h.b16 %v1855
    %v2467 = vunpack.c.l.b16 %v1856
    %v2468 = vunpack.c.h.b16 %v1856
    %v2469 = vunpack.c.l.b16 %v1857
    %v2470 = vunpack.c.h.b16 %v1857
    %v2471 = vunpack.c.l.b16 %v1858
    %v2472 = vunpack.c.h.b16 %v1858
    %v2473 = vunpack.c.l.b16 %v1859
    %v2474 = vunpack.c.h.b16 %v1859
    %v2475 = vunpack.c.l.b16 %v1860
    %v2476 = vunpack.c.h.b16 %v1860
    %v2477 = vunpack.c.l.b16 %v1861
    %v2478 = vunpack.c.h.b16 %v1861
    %v2479 = vunpack.c.l.b16 %v1862
    %v2480 = vunpack.c.h.b16 %v1862
    %v2481 = vunpack.c.l.b16 %v1863
    %v2482 = vunpack.c.h.b16 %v1863
    %v2483 = vunpack.c.l.b16 %v1864
    %v2484 = vunpack.c.h.b16 %v1864
    %v2485 = vunpack.c.l.b16 %v1865
    %v2486 = vunpack.c.h.b16 %v1865
    %v2487 = vunpack.c.l.b16 %v1866
    %v2488 = vunpack.c.h.b16 %v1866
    %v2489 = vunpack.c.l.b16 %v1867
    %v2490 = vunpack.c.h.b16 %v1867
    %v2491 = vunpack.c.l.b16 %v1868
    %v2492 = vunpack.c.h.b16 %v1868
    %v2493 = vunpack.c.l.b16 %v1869
    %v2494 = vunpack.c.h.b16 %v1869
    %v2495 = vunpack.c.l.b16 %v1870
    %v2496 = vunpack.c.h.b16 %v1870
    %v2497 = vunpack.c.l.b16 %v1871
    %v2498 = vunpack.c.h.b16 %v1871
    %v2499 = vunpack.c.l.b16 %v1872
    %v2500 = vunpack.c.h.b16 %v1872
    %v2501 = vunpack.c.l.b16 %v1873
    %v2502 = vunpack.c.h.b16 %v1873
    %v2503 = vunpack.c.l.b16 %v1874
    %v2504 = vunpack.c.h.b16 %v1874
    %v2505 = vunpack.c.l.b16 %v1875
    %v2506 = vunpack.c.h.b16 %v1875
    %v2507 = vunpack.c.l.b16 %v1876
    %v2508 = vunpack.c.h.b16 %v1876
    %v2509 = vunpack.c.l.b16 %v1877
    %v2510 = vunpack.c.h.b16 %v1877
    %v2511 = vunpack.c.l.b16 %v1878
    %v2512 = vunpack.c.h.b16 %v1878
    %v2513 = vunpack.c.l.b16 %v1879
    %v2514 = vunpack.c.h.b16 %v1879
    %v2515 = vunpack.c.l.b16 %v1880
    %v2516 = vunpack.c.h.b16 %v1880
    %v2517 = vunpack.c.l.b16 %v1881
    %v2518 = vunpack.c.h.b16 %v1881
    %v2519 = vunpack.c.l.b16 %v1882
    %v2520 = vunpack.c.h.b16 %v1882
    %v2521 = vunpack.c.l.b16 %v1883
    %v2522 = vunpack.c.h.b16 %v1883
    %v2523 = vunpack.c.l.b16 %v1884
    %v2524 = vunpack.c.h.b16 %v1884
    %v2525 = vunpack.c.l.b16 %v1885
    %v2526 = vunpack.c.h.b16 %v1885
    %v2527 = vunpack.c.l.b16 %v1886
    %v2528 = vunpack.c.h.b16 %v1886
    %v2529 = vunpack.c.l.b16 %v1887
    %v2530 = vunpack.c.h.b16 %v1887
    %v2531 = vunpack.c.l.b16 %v1888
    %v2532 = vunpack.c.h.b16 %v1888
    %v2533 = vunpack.c.l.b16 %v1889
    %v2534 = vunpack.c.h.b16 %v1889
    %v2535 = vunpack.c.l.b16 %v1890
    %v2536 = vunpack.c.h.b16 %v1890
    %v2537 = vunpack.c.l.b16 %v1891
    %v2538 = vunpack.c.h.b16 %v1891
    %v2539 = vunpack.c.l.b16 %v1892
    %v2540 = vunpack.c.h.b16 %v1892
    %v2541 = vunpack.c.l.b16 %v1893
    %v2542 = vunpack.c.h.b16 %v1893
    %v2543 = vunpack.c.l.b16 %v1894
    %v2544 = vunpack.c.h.b16 %v1894
    %v2545 = vunpack.c.l.b16 %v1895
    %v2546 = vunpack.c.h.b16 %v1895
    %v2547 = vunpack.c.l.b16 %v1896
    %v2548 = vunpack.c.h.b16 %v1896
    %v2549 = vunpack.c.l.b16 %v1897
    %v2550 = vunpack.c.h.b16 %v1897
    %v2551 = vunpack.c.l.b16 %v1898
    %v2552 = vunpack.c.h.b16 %v1898
    %v2553 = vunpack.c.l.b16 %v1899
    %v2554 = vunpack.c.h.b16 %v1899
    %v2555 = vunpack.c.l.b16 %v1900
    %v2556 = vunpack.c.h.b16 %v1900
    %v2557 = vunpack.c.l.b16 %v1901
    %v2558 = vunpack.c.h.b16 %v1901
    %v2559 = vunpack.c.l.b16 %v1902
    %v2560 = vunpack.c.h.b16 %v1902
    %v2561 = vunpack.c.l.b16 %v1903
    %v2562 = vunpack.c.h.b16 %v1903
    %v2563 = vunpack.c.l.b16 %v1904
    %v2564 = vunpack.c.h.b16 %v1904
    %v2565 = vunpack.c.l.b16 %v1905
    %v2566 = vunpack.c.h.b16 %v1905
    %v2567 = vunpack.c.l.b16 %v1906
    %v2568 = vunpack.c.h.b16 %v1906
    %v2569 = vunpack.c.l.b16 %v1907
    %v2570 = vunpack.c.h.b16 %v1907
    %v2571 = vunpack.c.l.b16 %v1908
    %v2572 = vunpack.c.h.b16 %v1908
    %v2573 = vunpack.c.l.b16 %v1909
    %v2574 = vunpack.c.h.b16 %v1909
    %v2575 = vunpack.c.l.b16 %v1910
    %v2576 = vunpack.c.h.b16 %v1910
    %v2577 = vunpack.c.l.b16 %v1911
    %v2578 = vunpack.c.h.b16 %v1911
    %v2579 = vunpack.c.l.b16 %v1912
    %v2580 = vunpack.c.h.b16 %v1912
    %v2581 = vunpack.c.l.b16 %v1913
    %v2582 = vunpack.c.h.b16 %v1913
    %v2583 = vunpack.c.l.b16 %v1914
    %v2584 = vunpack.c.h.b16 %v1914
    %v2585 = vunpack.c.l.b16 %v1915
    %v2586 = vunpack.c.h.b16 %v1915
    %v2587 = vunpack.c.l.b16 %v1916
    %v2588 = vunpack.c.h.b16 %v1916
    %v2589 = vunpack.c.l.b16 %v1917
    %v2590 = vunpack.c.h.b16 %v1917
    %v2591 = vunpack.c.l.b16 %v1918
    %v2592 = vunpack.c.h.b16 %v1918
    %v2593 = vunpack.c.l.b16 %v1919
    %v2594 = vunpack.c.h.b16 %v1919
    %v2595 = vunpack.c.l.b16 %v1920
    %v2596 = vunpack.c.h.b16 %v1920
    %v2597 = vunpack.c.l.b16 %v1921
    %v2598 = vunpack.c.h.b16 %v1921
    %v2599 = vunpack.c.l.b16 %v1922
    %v2600 = vunpack.c.h.b16 %v1922
    %v2601 = vunpack.c.l.b16 %v1923
    %v2602 = vunpack.c.h.b16 %v1923
    %v2603 = vunpack.c.l.b16 %v1924
    %v2604 = vunpack.c.h.b16 %v1924
    %v2605 = vunpack.c.l.b16 %v1925
    %v2606 = vunpack.c.h.b16 %v1925
    %v2607 = vunpack.c.l.b16 %v1926
    %v2608 = vunpack.c.h.b16 %v1926
    %v2609 = vunpack.c.l.b16 %v1927
    %v2610 = vunpack.c.h.b16 %v1927
    %v2611 = vunpack.c.l.b16 %v1928
    %v2612 = vunpack.c.h.b16 %v1928
    %v2613 = vunpack.c.l.b16 %v1929
    %v2614 = vunpack.c.h.b16 %v1929
    %v2615 = vunpack.c.l.b16 %v1930
    %v2616 = vunpack.c.h.b16 %v1930
    %v2617 = vunpack.c.l.b16 %v1931
    %v2618 = vunpack.c.h.b16 %v1931
    %v2619 = vunpack.c.l.b16 %v1932
    %v2620 = vunpack.c.h.b16 %v1932
    %v2621 = vunpack.c.l.b16 %v1933
    %v2622 = vunpack.c.h.b16 %v1933
    %v2623 = vunpack.c.l.b16 %v1934
    %v2624 = vunpack.c.h.b16 %v1934
    %v2625 = vunpack.c.l.b16 %v1935
    %v2626 = vunpack.c.h.b16 %v1935
    %v2627 = vunpack.c.l.b16 %v1936
    %v2628 = vunpack.c.h.b16 %v1936
    %v2629 = vunpack.c.l.b16 %v1937
    %v2630 = vunpack.c.h.b16 %v1937
    %v2631 = vunpack.c.l.b16 %v1938
    %v2632 = vunpack.c.h.b16 %v1938
    %v2633 = vunpack.c.l.b16 %v1939
    %v2634 = vunpack.c.h.b16 %v1939
    %v2635 = vunpack.c.l.b16 %v1940
    %v2636 = vunpack.c.h.b16 %v1940
    %v2637 = vunpack.c.l.b16 %v1941
    %v2638 = vunpack.c.h.b16 %v1941
    %v2639 = vunpack.c.l.b16 %v1942
    %v2640 = vunpack.c.h.b16 %v1942
    %v2641 = vunpack.c.l.b16 %v1943
    %v2642 = vunpack.c.h.b16 %v1943
    %v2643 = vunpack.c.l.b16 %v1944
    %v2644 = vunpack.c.h.b16 %v1944
    %v2645 = vunpack.c.l.b16 %v1945
    %v2646 = vunpack.c.h.b16 %v1945
    %v2647 = vunpack.c.l.b16 %v1946
    %v2648 = vunpack.c.h.b16 %v1946
    %v2649 = vunpack.c.l.b16 %v1947
    %v2650 = vunpack.c.h.b16 %v1947
    %v2651 = vunpack.c.l.b16 %v1948
    %v2652 = vunpack.c.h.b16 %v1948
    %v2653 = vunpack.c.l.b16 %v1949
    %v2654 = vunpack.c.h.b16 %v1949
    %v2655 = vunpack.c.l.b16 %v1950
    %v2656 = vunpack.c.h.b16 %v1950
    %v2657 = vunpack.c.l.b16 %v1951
    %v2658 = vunpack.c.h.b16 %v1951
    %v2659 = vunpack.c.l.b16 %v1952
    %v2660 = vunpack.c.h.b16 %v1952
    %v2661 = vunpack.c.l.b16 %v1953
    %v2662 = vunpack.c.h.b16 %v1953
    %v2663 = vunpack.c.l.b16 %v1954
    %v2664 = vunpack.c.h.b16 %v1954
    %v2665 = vunpack.c.l.b16 %v1955
    %v2666 = vunpack.c.h.b16 %v1955
    %v2667 = vunpack.c.l.b16 %v1956
    %v2668 = vunpack.c.h.b16 %v1956
    %v2669 = vunpack.c.l.b16 %v1957
    %v2670 = vunpack.c.h.b16 %v1957
    %v2671 = vunpack.c.l.b16 %v1958
    %v2672 = vunpack.c.h.b16 %v1958
    %v2673 = vunpack.c.l.b16 %v1959
    %v2674 = vunpack.c.h.b16 %v1959
    %v2675 = vunpack.c.l.b16 %v1960
    %v2676 = vunpack.c.h.b16 %v1960
    %v2677 = vunpack.c.l.b16 %v1961
    %v2678 = vunpack.c.h.b16 %v1961
    %v2679 = vunpack.c.l.b16 %v1962
    %v2680 = vunpack.c.h.b16 %v1962
    %v2681 = vunpack.c.l.b16 %v1963
    %v2682 = vunpack.c.h.b16 %v1963
    %v2683 = vunpack.c.l.b16 %v1964
    %v2684 = vunpack.c.h.b16 %v1964
    %v2685 = vunpack.c.l.b16 %v1965
    %v2686 = vunpack.c.h.b16 %v1965
    %v2687 = vunpack.c.l.b16 %v1966
    %v2688 = vunpack.c.h.b16 %v1966
    %v2689 = vunpack.c.l.b16 %v1967
    %v2690 = vunpack.c.h.b16 %v1967
    %v2691 = vunpack.c.l.b16 %v1968
    %v2692 = vunpack.c.h.b16 %v1968
    %v2693 = vunpack.c.l.b16 %v1969
    %v2694 = vunpack.c.h.b16 %v1969
    %v2695 = vunpack.c.l.b16 %v1970
    %v2696 = vunpack.c.h.b16 %v1970
    %v2697 = vunpack.c.l.b16 %v1971
    %v2698 = vunpack.c.h.b16 %v1971
    %v2699 = vunpack.c.l.b16 %v1972
    %v2700 = vunpack.c.h.b16 %v1972
    %v2701 = vunpack.c.l.b16 %v1973
    %v2702 = vunpack.c.h.b16 %v1973
    %v2703 = vunpack.c.l.b16 %v1974
    %v2704 = vunpack.c.h.b16 %v1974
    %v2705 = vunpack.c.l.b16 %v1975
    %v2706 = vunpack.c.h.b16 %v1975
    %v2707 = vunpack.c.l.b16 %v1976
    %v2708 = vunpack.c.h.b16 %v1976
    %v2709 = vunpack.c.l.b16 %v1977
    %v2710 = vunpack.c.h.b16 %v1977
    %v2711 = vunpack.c.l.b16 %v1978
    %v2712 = vunpack.c.h.b16 %v1978
    %v2713 = vunpack.c.l.b16 %v1979
    %v2714 = vunpack.c.h.b16 %v1979
    %v2715 = vunpack.c.l.b16 %v1980
    %v2716 = vunpack.c.h.b16 %v1980
    %v2717 = vunpack.c.l.b16 %v1981
    %v2718 = vunpack.c.h.b16 %v1981
    %v2719 = vunpack.c.l.b16 %v1982
    %v2720 = vunpack.c.h.b16 %v1982
    %v2721 = vunpack.c.l.b16 %v1983
    %v2722 = vunpack.c.h.b16 %v1983
    %v2723 = vunpack.c.l.b16 %v1984
    %v2724 = vunpack.c.h.b16 %v1984
    %v2725 = vunpack.c.l.b16 %v1985
    %v2726 = vunpack.c.h.b16 %v1985
    %v2727 = vunpack.c.l.b16 %v1986
    %v2728 = vunpack.c.h.b16 %v1986
    %v2729 = vunpack.c.l.b16 %v1987
    %v2730 = vunpack.c.h.b16 %v1987
    %v2731 = vunpack.c.l.b16 %v1988
    %v2732 = vunpack.c.h.b16 %v1988
    %v2733 = vunpack.c.l.b16 %v1989
    %v2734 = vunpack.c.h.b16 %v1989
    %v2735 = vunpack.c.l.b16 %v1990
    %v2736 = vunpack.c.h.b16 %v1990
    %v2737 = vunpack.c.l.b16 %v1991
    %v2738 = vunpack.c.h.b16 %v1991
    %v2739 = vunpack.c.l.b16 %v1992
    %v2740 = vunpack.c.h.b16 %v1992
    %v2741 = vunpack.c.l.b16 %v1993
    %v2742 = vunpack.c.h.b16 %v1993
    %v2743 = vunpack.c.l.b16 %v1994
    %v2744 = vunpack.c.h.b16 %v1994
    %v2745 = vunpack.c.l.b16 %v1995
    %v2746 = vunpack.c.h.b16 %v1995
    %v2747 = vunpack.c.l.b16 %v1996
    %v2748 = vunpack.c.h.b16 %v1996
    %v2749 = vunpack.c.l.b16 %v1997
    %v2750 = vunpack.c.h.b16 %v1997
    %v2751 = vunpack.c.l.b16 %v1998
    %v2752 = vunpack.c.h.b16 %v1998
    %v2753 = vunpack.c.l.b16 %v1999
    %v2754 = vunpack.c.h.b16 %v1999
    %v2755 = vunpack.c.l.b16 %v2000
    %v2756 = vunpack.c.h.b16 %v2000
    %v2757 = vunpack.c.l.b16 %v2001
    %v2758 = vunpack.c.h.b16 %v2001
    %v2759 = vunpack.c.l.b16 %v2002
    %v2760 = vunpack.c.h.b16 %v2002
    %v2761 = vunpack.c.l.b16 %v2003
    %v2762 = vunpack.c.h.b16 %v2003
    %v2763 = vunpack.c.l.b16 %v2004
    %v2764 = vunpack.c.h.b16 %v2004
    %v2765 = vunpack.c.l.b16 %v2005
    %v2766 = vunpack.c.h.b16 %v2005
    %v2767 = vunpack.c.l.b16 %v2006
    %v2768 = vunpack.c.h.b16 %v2006
    %v2769 = vunpack.c.l.b16 %v2007
    %v2770 = vunpack.c.h.b16 %v2007
    %v2771 = vunpack.c.l.b16 %v2008
    %v2772 = vunpack.c.h.b16 %v2008
    %v2773 = vunpack.c.l.b16 %v2009
    %v2774 = vunpack.c.h.b16 %v2009
    %v2775 = vunpack.c.l.b16 %v2010
    %v2776 = vunpack.c.h.b16 %v2010
    %v2777 = vunpack.c.l.b16 %v2011
    %v2778 = vunpack.c.h.b16 %v2011
    %v2779 = vunpack.c.l.b16 %v2012
    %v2780 = vunpack.c.h.b16 %v2012
    %v2781 = vpack.c.b16 %v2277, %v2269
    %v2782 = vpack.c.b16 %v2278, %v2270
    %v2783 = vpack.c.b16 %v2279, %v2271
    %v2784 = vpack.c.b16 %v2280, %v2272
    %v2785 = vpack.c.b16 %v2281, %v2273
    %v2786 = vpack.c.b16 %v2282, %v2274
    %v2787 = vpack.c.b16 %v2283, %v2275
    %v2788 = vpack.c.b16 %v2284, %v2276
    %v2789 = vpack.c.b16 %v2293, %v2285
    %v2790 = vpack.c.b16 %v2294, %v2286
    %v2791 = vpack.c.b16 %v2295, %v2287
    %v2792 = vpack.c.b16 %v2296, %v2288
    %v2793 = vpack.c.b16 %v2297, %v2289
    %v2794 = vpack.c.b16 %v2298, %v2290
    %v2795 = vpack.c.b16 %v2299, %v2291
    %v2796 = vpack.c.b16 %v2300, %v2292
    %v2797 = vpack.c.b16 %v2309, %v2301
    %v2798 = vpack.c.b16 %v2310, %v2302
    %v2799 = vpack.c.b16 %v2311, %v2303
    %v2800 = vpack.c.b16 %v2312, %v2304
    %v2801 = vpack.c.b16 %v2313, %v2305
    %v2802 = vpack.c.b16 %v2314, %v2306
    %v2803 = vpack.c.b16 %v2315, %v2307
    %v2804 = vpack.c.b16 %v2316, %v2308
    %v2805 = vpack.c.b16 %v2325, %v2317
    %v2806 = vpack.c.b16 %v2326, %v2318
    %v2807 = vpack.c.b16 %v2327, %v2319
    %v2808 = vpack.c.b16 %v2328, %v2320
    %v2809 = vpack.c.b16 %v2329, %v2321
    %v2810 = vpack.c.b16 %v2330, %v2322
    %v2811 = vpack.c.b16 %v2331, %v2323
    %v2812 = vpack.c.b16 %v2332, %v2324
    %v2813 = vpack.c.b16 %v2341, %v2333
    %v2814 = vpack.c.b16 %v2342, %v2334
    %v2815 = vpack.c.b16 %v2343, %v2335
    %v2816 = vpack.c.b16 %v2344, %v2336
    %v2817 = vpack.c.b16 %v2345, %v2337
    %v2818 = vpack.c.b16 %v2346, %v2338
    %v2819 = vpack.c.b16 %v2347, %v2339
    %v2820 = vpack.c.b16 %v2348, %v2340
    %v2821 = vpack.c.b16 %v2357, %v2349
    %v2822 = vpack.c.b16 %v2358, %v2350
    %v2823 = vpack.c.b16 %v2359, %v2351
    %v2824 = vpack.c.b16 %v2360, %v2352
    %v2825 = vpack.c.b16 %v2361, %v2353
    %v2826 = vpack.c.b16 %v2362, %v2354
    %v2827 = vpack.c.b16 %v2363, %v2355
    %v2828 = vpack.c.b16 %v2364, %v2356
    %v2829 = vpack.c.b16 %v2373, %v2365
    %v2830 = vpack.c.b16 %v2374, %v2366
    %v2831 = vpack.c.b16 %v2375, %v2367
    %v2832 = vpack.c.b16 %v2376, %v2368
    %v2833 = vpack.c.b16 %v2377, %v2369
    %v2834 = vpack.c.b16 %v2378, %v2370
    %v2835 = vpack.c.b16 %v2379, %v2371
    %v2836 = vpack.c.b16 %v2380, %v2372
    %v2837 = vpack.c.b16 %v2389, %v2381
    %v2838 = vpack.c.b16 %v2390, %v2382
    %v2839 = vpack.c.b16 %v2391, %v2383
    %v2840 = vpack.c.b16 %v2392, %v2384
    %v2841 = vpack.c.b16 %v2393, %v2385
    %v2842 = vpack.c.b16 %v2394, %v2386
    %v2843 = vpack.c.b16 %v2395, %v2387
    %v2844 = vpack.c.b16 %v2396, %v2388
    %v2845 = vpack.c.b16 %v2405, %v2397
    %v2846 = vpack.c.b16 %v2406, %v2398
    %v2847 = vpack.c.b16 %v2407, %v2399
    %v2848 = vpack.c.b16 %v2408, %v2400
    %v2849 = vpack.c.b16 %v2409, %v2401
    %v2850 = vpack.c.b16 %v2410, %v2402
    %v2851 = vpack.c.b16 %v2411, %v2403
    %v2852 = vpack.c.b16 %v2412, %v2404
    %v2853 = vpack.c.b16 %v2421, %v2413
    %v2854 = vpack.c.b16 %v2422, %v2414
    %v2855 = vpack.c.b16 %v2423, %v2415
    %v2856 = vpack.c.b16 %v2424, %v2416
    %v2857 = vpack.c.b16 %v2425, %v2417
    %v2858 = vpack.c.b16 %v2426, %v2418
    %v2859 = vpack.c.b16 %v2427, %v2419
    %v2860 = vpack.c.b16 %v2428, %v2420
    %v2861 = vpack.c.b16 %v2437, %v2429
    %v2862 = vpack.c.b16 %v2438, %v2430
    %v2863 = vpack.c.b16 %v2439, %v2431
    %v2864 = vpack.c.b16 %v2440, %v2432
    %v2865 = vpack.c.b16 %v2441, %v2433
    %v2866 = vpack.c.b16 %v2442, %v2434
    %v2867 = vpack.c.b16 %v2443, %v2435
    %v2868 = vpack.c.b16 %v2444, %v2436
    %v2869 = vpack.c.b16 %v2453, %v2445
    %v2870 = vpack.c.b16 %v2454, %v2446
    %v2871 = vpack.c.b16 %v2455, %v2447
    %v2872 = vpack.c.b16 %v2456, %v2448
    %v2873 = vpack.c.b16 %v2457, %v2449
    %v2874 = vpack.c.b16 %v2458, %v2450
    %v2875 = vpack.c.b16 %v2459, %v2451
    %v2876 = vpack.c.b16 %v2460, %v2452
    %v2877 = vpack.c.b16 %v2469, %v2461
    %v2878 = vpack.c.b16 %v2470, %v2462
    %v2879 = vpack.c.b16 %v2471, %v2463
    %v2880 = vpack.c.b16 %v2472, %v2464
    %v2881 = vpack.c.b16 %v2473, %v2465
    %v2882 = vpack.c.b16 %v2474, %v2466
    %v2883 = vpack.c.b16 %v2475, %v2467
    %v2884 = vpack.c.b16 %v2476, %v2468
    %v2885 = vpack.c.b16 %v2485, %v2477
    %v2886 = vpack.c.b16 %v2486, %v2478
    %v2887 = vpack.c.b16 %v2487, %v2479
    %v2888 = vpack.c.b16 %v2488, %v2480
    %v2889 = vpack.c.b16 %v2489, %v2481
    %v2890 = vpack.c.b16 %v2490, %v2482
    %v2891 = vpack.c.b16 %v2491, %v2483
    %v2892 = vpack.c.b16 %v2492, %v2484
    %v2893 = vpack.c.b16 %v2501, %v2493
    %v2894 = vpack.c.b16 %v2502, %v2494
    %v2895 = vpack.c.b16 %v2503, %v2495
    %v2896 = vpack.c.b16 %v2504, %v2496
    %v2897 = vpack.c.b16 %v2505, %v2497
    %v2898 = vpack.c.b16 %v2506, %v2498
    %v2899 = vpack.c.b16 %v2507, %v2499
    %v2900 = vpack.c.b16 %v2508, %v2500
    %v2901 = vpack.c.b16 %v2517, %v2509
    %v2902 = vpack.c.b16 %v2518, %v2510
    %v2903 = vpack.c.b16 %v2519, %v2511
    %v2904 = vpack.c.b16 %v2520, %v2512
    %v2905 = vpack.c.b16 %v2521, %v2513
    %v2906 = vpack.c.b16 %v2522, %v2514
    %v2907 = vpack.c.b16 %v2523, %v2515
    %v2908 = vpack.c.b16 %v2524, %v2516
    %v2909 = vpack.c.b16 %v2533, %v2525
    %v2910 = vpack.c.b16 %v2534, %v2526
    %v2911 = vpack.c.b16 %v2535, %v2527
    %v2912 = vpack.c.b16 %v2536, %v2528
    %v2913 = vpack.c.b16 %v2537, %v2529
    %v2914 = vpack.c.b16 %v2538, %v2530
    %v2915 = vpack.c.b16 %v2539, %v2531
    %v2916 = vpack.c.b16 %v2540, %v2532
    %v2917 = vpack.c.b16 %v2549, %v2541
    %v2918 = vpack.c.b16 %v2550, %v2542
    %v2919 = vpack.c.b16 %v2551, %v2543
    %v2920 = vpack.c.b16 %v2552, %v2544
    %v2921 = vpack.c.b16 %v2553, %v2545
    %v2922 = vpack.c.b16 %v2554, %v2546
    %v2923 = vpack.c.b16 %v2555, %v2547
    %v2924 = vpack.c.b16 %v2556, %v2548
    %v2925 = vpack.c.b16 %v2565, %v2557
    %v2926 = vpack.c.b16 %v2566, %v2558
    %v2927 = vpack.c.b16 %v2567, %v2559
    %v2928 = vpack.c.b16 %v2568, %v2560
    %v2929 = vpack.c.b16 %v2569, %v2561
    %v2930 = vpack.c.b16 %v2570, %v2562
    %v2931 = vpack.c.b16 %v2571, %v2563
    %v2932 = vpack.c.b16 %v2572, %v2564
    %v2933 = vpack.c.b16 %v2581, %v2573
    %v2934 = vpack.c.b16 %v2582, %v2574
    %v2935 = vpack.c.b16 %v2583, %v2575
    %v2936 = vpack.c.b16 %v2584, %v2576
    %v2937 = vpack.c.b16 %v2585, %v2577
    %v2938 = vpack.c.b16 %v2586, %v2578
    %v2939 = vpack.c.b16 %v2587, %v2579
    %v2940 = vpack.c.b16 %v2588, %v2580
    %v2941 = vpack.c.b16 %v2597, %v2589
    %v2942 = vpack.c.b16 %v2598, %v2590
    %v2943 = vpack.c.b16 %v2599, %v2591
    %v2944 = vpack.c.b16 %v2600, %v2592
    %v2945 = vpack.c.b16 %v2601, %v2593
    %v2946 = vpack.c.b16 %v2602, %v2594
    %v2947 = vpack.c.b16 %v2603, %v2595
    %v2948 = vpack.c.b16 %v2604, %v2596
    %v2949 = vpack.c.b16 %v2613, %v2605
    %v2950 = vpack.c.b16 %v2614, %v2606
    %v2951 = vpack.c.b16 %v2615, %v2607
    %v2952 = vpack.c.b16 %v2616, %v2608
    %v2953 = vpack.c.b16 %v2617, %v2609
    %v2954 = vpack.c.b16 %v2618, %v2610
    %v2955 = vpack.c.b16 %v2619, %v2611
    %v2956 = vpack.c.b16 %v2620, %v2612
    %v2957 = vpack.c.b16 %v2629, %v2621
    %v2958 = vpack.c.b16 %v2630, %v2622
    %v2959 = vpack.c.b16 %v2631, %v2623
    %v2960 = vpack.c.b16 %v2632, %v2624
    %v2961 = vpack.c.b16 %v2633, %v2625
    %v2962 = vpack.c.b16 %v2634, %v2626
    %v2963 = vpack.c.b16 %v2635, %v2627
    %v2964 = vpack.c.b16 %v2636, %v2628
    %v2965 = vpack.c.b16 %v2645, %v2637
    %v2966 = vpack.c.b16 %v2646, %v2638
    %v2967 = vpack.c.b16 %v2647, %v2639
    %v2968 = vpack.c.b16 %v2648, %v2640
    %v2969 = vpack.c.b16 %v2649, %v2641
    %v2970 = vpack.c.b16 %v2650, %v2642
    %v2971 = vpack.c.b16 %v2651, %v2643
    %v2972 = vpack.c.b16 %v2652, %v2644
    %v2973 = vpack.c.b16 %v2661, %v2653
    %v2974 = vpack.c.b16 %v2662, %v2654
    %v2975 = vpack.c.b16 %v2663, %v2655
    %v2976 = vpack.c.b16 %v2664, %v2656
    %v2977 = vpack.c.b16 %v2665, %v2657
    %v2978 = vpack.c.b16 %v2666, %v2658
    %v2979 = vpack.c.b16 %v2667, %v2659
    %v2980 = vpack.c.b16 %v2668, %v2660
    %v2981 = vpack.c.b16 %v2677, %v2669
    %v2982 = vpack.c.b16 %v2678, %v2670
    %v2983 = vpack.c.b16 %v2679, %v2671
    %v2984 = vpack.c.b16 %v2680, %v2672
    %v2985 = vpack.c.b16 %v2681, %v2673
    %v2986 = vpack.c.b16 %v2682, %v2674
    %v2987 = vpack.c.b16 %v2683, %v2675
    %v2988 = vpack.c.b16 %v2684, %v2676
    %v2989 = vpack.c.b16 %v2693, %v2685
    %v2990 = vpack.c.b16 %v2694, %v2686
    %v2991 = vpack.c.b16 %v2695, %v2687
    %v2992 = vpack.c.b16 %v2696, %v2688
    %v2993 = vpack.c.b16 %v2697, %v2689
    %v2994 = vpack.c.b16 %v2698, %v2690
    %v2995 = vpack.c.b16 %v2699, %v2691
    %v2996 = vpack.c.b16 %v2700, %v2692
    %v2997 = vpack.c.b16 %v2709, %v2701
    %v2998 = vpack.c.b16 %v2710, %v2702
    %v2999 = vpack.c.b16 %v2711, %v2703
    %v3000 = vpack.c.b16 %v2712, %v2704
    %v3001 = vpack.c.b16 %v2713, %v2705
    %v3002 = vpack.c.b16 %v2714, %v2706
    %v3003 = vpack.c.b16 %v2715, %v2707
    %v3004 = vpack.c.b16 %v2716, %v2708
    %v3005 = vpack.c.b16 %v2725, %v2717
    %v3006 = vpack.c.b16 %v2726, %v2718
    %v3007 = vpack.c.b16 %v2727, %v2719
    %v3008 = vpack.c.b16 %v2728, %v2720
    %v3009 = vpack.c.b16 %v2729, %v2721
    %v3010 = vpack.c.b16 %v2730, %v2722
    %v3011 = vpack.c.b16 %v2731, %v2723
    %v3012 = vpack.c.b16 %v2732, %v2724
    %v3013 = vpack.c.b16 %v2741, %v2733
    %v3014 = vpack.c.b16 %v2742, %v2734
    %v3015 = vpack.c.b16 %v2743, %v2735
    %v3016 = vpack.c.b16 %v2744, %v2736
    %v3017 = vpack.c.b16 %v2745, %v2737
    %v3018 = vpack.c.b16 %v2746, %v2738
    %v3019 = vpack.c.b16 %v2747, %v2739
    %v3020 = vpack.c.b16 %v2748, %v2740
    %v3021 = vpack.c.b16 %v2757, %v2749
    %v3022 = vpack.c.b16 %v2758, %v2750
    %v3023 = vpack.c.b16 %v2759, %v2751
    %v3024 = vpack.c.b16 %v2760, %v2752
    %v3025 = vpack.c.b16 %v2761, %v2753
    %v3026 = vpack.c.b16 %v2762, %v2754
    %v3027 = vpack.c.b16 %v2763, %v2755
    %v3028 = vpack.c.b16 %v2764, %v2756
    %v3029 = vpack.c.b16 %v2773, %v2765
    %v3030 = vpack.c.b16 %v2774, %v2766
    %v3031 = vpack.c.b16 %v2775, %v2767
    %v3032 = vpack.c.b16 %v2776, %v2768
    %v3033 = vpack.c.b16 %v2777, %v2769
    %v3034 = vpack.c.b16 %v2778, %v2770
    %v3035 = vpack.c.b16 %v2779, %v2771
    %v3036 = vpack.c.b16 %v2780, %v2772
    %3293 = vmatprep.subr.bf16.mxu0 %v2782
    %3294 = vmatpush1.bf16.msra.mxu0 %v2781
    %3295 = vmatprep.subr.bf16.mxu0 %v2790
    %3296 = vmatpush1.bf16.msra.mxu0 %v2789
    %3297 = vmatprep.subr.bf16.mxu0 %v2798
    %3298 = vmatpush1.bf16.msra.mxu0 %v2797
    %3299 = vmatprep.subr.bf16.mxu0 %v2806
    %3300 = vmatpush1.bf16.msra.mxu0 %v2805
    %3301 = vmatprep.subr.bf16.mxu0 %v2814
    %3302 = vmatpush1.bf16.msra.mxu0 %v2813
    %3303 = vmatprep.subr.bf16.mxu0 %v2822
    %3304 = vmatpush1.bf16.msra.mxu0 %v2821
    %3305 = vmatprep.subr.bf16.mxu0 %v2830
    %3306 = vmatpush1.bf16.msra.mxu0 %v2829
    %3307 = vmatprep.subr.bf16.mxu0 %v2838
    %3308 = vmatpush1.bf16.msra.mxu0 %v2837
    %3309 = vmatprep.subr.bf16.mxu0 %v2846
    %3310 = vmatpush1.bf16.msra.mxu0 %v2845
    %3311 = vmatprep.subr.bf16.mxu0 %v2854
    %3312 = vmatpush1.bf16.msra.mxu0 %v2853
    %3313 = vmatprep.subr.bf16.mxu0 %v2862
    %3314 = vmatpush1.bf16.msra.mxu0 %v2861
    %3315 = vmatprep.subr.bf16.mxu0 %v2870
    %3316 = vmatpush1.bf16.msra.mxu0 %v2869
    %3317 = vmatprep.subr.bf16.mxu0 %v2878
    %3318 = vmatpush1.bf16.msra.mxu0 %v2877
    %3319 = vmatprep.subr.bf16.mxu0 %v2886
    %3320 = vmatpush1.bf16.msra.mxu0 %v2885
    %3321 = vmatprep.subr.bf16.mxu0 %v2894
    %3322 = vmatpush1.bf16.msra.mxu0 %v2893
    %3323 = vmatprep.subr.bf16.mxu0 %v2902
    %3324 = vmatpush1.bf16.msra.mxu0 %v2901
    %3325 = vmatprep.mubr.bf16.mxu0 %v1754
    %3326 = vmatmul.mubr.bf16.gmra.mrb[0].mxu0 %v1753
    %v3327 = vpop.f32.mrb[0].mxu0
    %v3328 = vadd.f32 0.0, %v3327
    %v3329 = vpop.f32.mrb[0].mxu0
    %v3330 = vadd.f32 0.0, %v3329
    %v3331 = vpop.f32.mrb[0].mxu0
    %v3332 = vpop.f32.mrb[0].mxu0
    %3333 = vdwg.mxu0
    %3334 = vmatprep.subr.bf16.mxu0 %v2910
    %3335 = vmatpush1.bf16.msra.mxu0 %v2909
    %3336 = vmatprep.subr.bf16.mxu0 %v2918
    %3337 = vmatpush1.bf16.msra.mxu0 %v2917
    %3338 = vmatprep.subr.bf16.mxu0 %v2926
    %3339 = vmatpush1.bf16.msra.mxu0 %v2925
    %3340 = vmatprep.subr.bf16.mxu0 %v2934
    %3341 = vmatpush1.bf16.msra.mxu0 %v2933
    %3342 = vmatprep.subr.bf16.mxu0 %v2942
    %3343 = vmatpush1.bf16.msra.mxu0 %v2941
    %3344 = vmatprep.subr.bf16.mxu0 %v2950
    %3345 = vmatpush1.bf16.msra.mxu0 %v2949
    %3346 = vmatprep.subr.bf16.mxu0 %v2958
    %3347 = vmatpush1.bf16.msra.mxu0 %v2957
    %3348 = vmatprep.subr.bf16.mxu0 %v2966
    %3349 = vmatpush1.bf16.msra.mxu0 %v2965
    %3350 = vmatprep.subr.bf16.mxu0 %v2974
    %3351 = vmatpush1.bf16.msra.mxu0 %v2973
    %3352 = vmatprep.subr.bf16.mxu0 %v2982
    %3353 = vmatpush1.bf16.msra.mxu0 %v2981
    %3354 = vmatprep.subr.bf16.mxu0 %v2990
    %3355 = vmatpush1.bf16.msra.mxu0 %v2989
    %3356 = vmatprep.subr.bf16.mxu0 %v2998
    %3357 = vmatpush1.bf16.msra.mxu0 %v2997
    %3358 = vmatprep.subr.bf16.mxu0 %v3006
    %3359 = vmatpush1.bf16.msra.mxu0 %v3005
    %3360 = vmatprep.subr.bf16.mxu0 %v3014
    %3361 = vmatpush1.bf16.msra.mxu0 %v3013
    %3362 = vmatprep.subr.bf16.mxu0 %v3022
    %3363 = vmatpush1.bf16.msra.mxu0 %v3021
    %3364 = vmatprep.subr.bf16.mxu0 %v3030
    %3365 = vmatpush1.bf16.msra.mxu0 %v3029
    %3366 = vmatprep.mubr.bf16.mxu0 %v1756
    %3367 = vmatmul.mubr.bf16.gmra.mrb[0].mxu0 %v1755
    %v3368 = vpop.f32.mrb[0].mxu0
    %v3369 = vadd.f32 %v3328, %v3368
    %v3370 = vpop.f32.mrb[0].mxu0
    %v3371 = vadd.f32 %v3330, %v3370
    %v3372 = vpop.f32.mrb[0].mxu0
    %v3373 = vpop.f32.mrb[0].mxu0
    %3374 = vdwg.mxu0
    %3375 = vmatprep.subr.bf16.mxu0 %v2784
    %3376 = vmatpush1.bf16.msra.mxu0 %v2783
    %3377 = vmatprep.subr.bf16.mxu0 %v2792
    %3378 = vmatpush1.bf16.msra.mxu0 %v2791
    %3379 = vmatprep.subr.bf16.mxu0 %v2800
    %3380 = vmatpush1.bf16.msra.mxu0 %v2799
    %3381 = vmatprep.subr.bf16.mxu0 %v2808
    %3382 = vmatpush1.bf16.msra.mxu0 %v2807
    %3383 = vmatprep.subr.bf16.mxu0 %v2816
    %3384 = vmatpush1.bf16.msra.mxu0 %v2815
    %3385 = vmatprep.subr.bf16.mxu0 %v2824
    %3386 = vmatpush1.bf16.msra.mxu0 %v2823
    %3387 = vmatprep.subr.bf16.mxu0 %v2832
    %3388 = vmatpush1.bf16.msra.mxu0 %v2831
    %3389 = vmatprep.subr.bf16.mxu0 %v2840
    %3390 = vmatpush1.bf16.msra.mxu0 %v2839
    %3391 = vmatprep.subr.bf16.mxu0 %v2848
    %3392 = vmatpush1.bf16.msra.mxu0 %v2847
    %3393 = vmatprep.subr.bf16.mxu0 %v2856
    %3394 = vmatpush1.bf16.msra.mxu0 %v2855
    %3395 = vmatprep.subr.bf16.mxu0 %v2864
    %3396 = vmatpush1.bf16.msra.mxu0 %v2863
    %3397 = vmatprep.subr.bf16.mxu0 %v2872
    %3398 = vmatpush1.bf16.msra.mxu0 %v2871
    %3399 = vmatprep.subr.bf16.mxu0 %v2880
    %3400 = vmatpush1.bf16.msra.mxu0 %v2879
    %3401 = vmatprep.subr.bf16.mxu0 %v2888
    %3402 = vmatpush1.bf16.msra.mxu0 %v2887
    %3403 = vmatprep.subr.bf16.mxu0 %v2896
    %3404 = vmatpush1.bf16.msra.mxu0 %v2895
    %3405 = vmatprep.subr.bf16.mxu0 %v2904
    %3406 = vmatpush1.bf16.msra.mxu0 %v2903
    %3407 = vmatprep.mubr.bf16.mxu0 %v1754
    %3408 = vmatmul.mubr.bf16.gmra.mrb[0].mxu0 %v1753
    %v3409 = vpop.f32.mrb[0].mxu0
    %v3410 = vadd.f32 0.0, %v3409
    %v3411 = vpop.f32.mrb[0].mxu0
    %v3412 = vadd.f32 0.0, %v3411
    %v3413 = vpop.f32.mrb[0].mxu0
    %v3414 = vpop.f32.mrb[0].mxu0
    %3415 = vdwg.mxu0
    %3416 = vmatprep.subr.bf16.mxu0 %v2912
    %3417 = vmatpush1.bf16.msra.mxu0 %v2911
    %3418 = vmatprep.subr.bf16.mxu0 %v2920
    %3419 = vmatpush1.bf16.msra.mxu0 %v2919
    %3420 = vmatprep.subr.bf16.mxu0 %v2928
    %3421 = vmatpush1.bf16.msra.mxu0 %v2927
    %3422 = vmatprep.subr.bf16.mxu0 %v2936
    %3423 = vmatpush1.bf16.msra.mxu0 %v2935
    %3424 = vmatprep.subr.bf16.mxu0 %v2944
    %3425 = vmatpush1.bf16.msra.mxu0 %v2943
    %3426 = vmatprep.subr.bf16.mxu0 %v2952
    %3427 = vmatpush1.bf16.msra.mxu0 %v2951
    %3428 = vmatprep.subr.bf16.mxu0 %v2960
    %3429 = vmatpush1.bf16.msra.mxu0 %v2959
    %3430 = vmatprep.subr.bf16.mxu0 %v2968
    %3431 = vmatpush1.bf16.msra.mxu0 %v2967
    %3432 = vmatprep.subr.bf16.mxu0 %v2976
    %3433 = vmatpush1.bf16.msra.mxu0 %v2975
    %3434 = vmatprep.subr.bf16.mxu0 %v2984
    %3435 = vmatpush1.bf16.msra.mxu0 %v2983
    %3436 = vmatprep.subr.bf16.mxu0 %v2992
    %3437 = vmatpush1.bf16.msra.mxu0 %v2991
    %3438 = vmatprep.subr.bf16.mxu0 %v3000
    %3439 = vmatpush1.bf16.msra.mxu0 %v2999
    %3440 = vmatprep.subr.bf16.mxu0 %v3008
    %3441 = vmatpush1.bf16.msra.mxu0 %v3007
    %3442 = vmatprep.subr.bf16.mxu0 %v3016
    %3443 = vmatpush1.bf16.msra.mxu0 %v3015
    %3444 = vmatprep.subr.bf16.mxu0 %v3024
    %3445 = vmatpush1.bf16.msra.mxu0 %v3023
    %3446 = vmatprep.subr.bf16.mxu0 %v3032
    %3447 = vmatpush1.bf16.msra.mxu0 %v3031
    %3448 = vmatprep.mubr.bf16.mxu0 %v1756
    %3449 = vmatmul.mubr.bf16.gmra.mrb[0].mxu0 %v1755
    %v3450 = vpop.f32.mrb[0].mxu0
    %v3451 = vadd.f32 %v3410, %v3450
    %v3452 = vpop.f32.mrb[0].mxu0
    %v3453 = vadd.f32 %v3412, %v3452
    %v3454 = vpop.f32.mrb[0].mxu0
    %v3455 = vpop.f32.mrb[0].mxu0
    %3456 = vdwg.mxu0
    %3457 = vmatprep.subr.bf16.mxu0 %v2786
    %3458 = vmatpush1.bf16.msra.mxu0 %v2785
    %3459 = vmatprep.subr.bf16.mxu0 %v2794
    %3460 = vmatpush1.bf16.msra.mxu0 %v2793
    %3461 = vmatprep.subr.bf16.mxu0 %v2802
    %3462 = vmatpush1.bf16.msra.mxu0 %v2801
    %3463 = vmatprep.subr.bf16.mxu0 %v2810
    %3464 = vmatpush1.bf16.msra.mxu0 %v2809
    %3465 = vmatprep.subr.bf16.mxu0 %v2818
    %3466 = vmatpush1.bf16.msra.mxu0 %v2817
    %3467 = vmatprep.subr.bf16.mxu0 %v2826
    %3468 = vmatpush1.bf16.msra.mxu0 %v2825
    %3469 = vmatprep.subr.bf16.mxu0 %v2834
    %3470 = vmatpush1.bf16.msra.mxu0 %v2833
    %3471 = vmatprep.subr.bf16.mxu0 %v2842
    %3472 = vmatpush1.bf16.msra.mxu0 %v2841
    %3473 = vmatprep.subr.bf16.mxu0 %v2850
    %3474 = vmatpush1.bf16.msra.mxu0 %v2849
    %3475 = vmatprep.subr.bf16.mxu0 %v2858
    %3476 = vmatpush1.bf16.msra.mxu0 %v2857
    %3477 = vmatprep.subr.bf16.mxu0 %v2866
    %3478 = vmatpush1.bf16.msra.mxu0 %v2865
    %3479 = vmatprep.subr.bf16.mxu0 %v2874
    %3480 = vmatpush1.bf16.msra.mxu0 %v2873
    %3481 = vmatprep.subr.bf16.mxu0 %v2882
    %3482 = vmatpush1.bf16.msra.mxu0 %v2881
    %3483 = vmatprep.subr.bf16.mxu0 %v2890
    %3484 = vmatpush1.bf16.msra.mxu0 %v2889
    %3485 = vmatprep.subr.bf16.mxu0 %v2898
    %3486 = vmatpush1.bf16.msra.mxu0 %v2897
    %3487 = vmatprep.subr.bf16.mxu0 %v2906
    %3488 = vmatpush1.bf16.msra.mxu0 %v2905
    %3489 = vmatprep.mubr.bf16.mxu0 %v1754
    %3490 = vmatmul.mubr.bf16.gmra.mrb[0].mxu0 %v1753
    %v3491 = vpop.f32.mrb[0].mxu0
    %v3492 = vadd.f32 0.0, %v3491
    %v3493 = vpop.f32.mrb[0].mxu0
    %v3494 = vadd.f32 0.0, %v3493
    %v3495 = vpop.f32.mrb[0].mxu0
    %v3496 = vpop.f32.mrb[0].mxu0
    %3497 = vdwg.mxu0
    %3498 = vmatprep.subr.bf16.mxu0 %v2914
    %3499 = vmatpush1.bf16.msra.mxu0 %v2913
    %3500 = vmatprep.subr.bf16.mxu0 %v2922
    %3501 = vmatpush1.bf16.msra.mxu0 %v2921
    %3502 = vmatprep.subr.bf16.mxu0 %v2930
    %3503 = vmatpush1.bf16.msra.mxu0 %v2929
    %3504 = vmatprep.subr.bf16.mxu0 %v2938
    %3505 = vmatpush1.bf16.msra.mxu0 %v2937
    %3506 = vmatprep.subr.bf16.mxu0 %v2946
    %3507 = vmatpush1.bf16.msra.mxu0 %v2945
    %3508 = vmatprep.subr.bf16.mxu0 %v2954
    %3509 = vmatpush1.bf16.msra.mxu0 %v2953
    %3510 = vmatprep.subr.bf16.mxu0 %v2962
    %3511 = vmatpush1.bf16.msra.mxu0 %v2961
    %3512 = vmatprep.subr.bf16.mxu0 %v2970
    %3513 = vmatpush1.bf16.msra.mxu0 %v2969
    %3514 = vmatprep.subr.bf16.mxu0 %v2978
    %3515 = vmatpush1.bf16.msra.mxu0 %v2977
    %3516 = vmatprep.subr.bf16.mxu0 %v2986
    %3517 = vmatpush1.bf16.msra.mxu0 %v2985
    %3518 = vmatprep.subr.bf16.mxu0 %v2994
    %3519 = vmatpush1.bf16.msra.mxu0 %v2993
    %3520 = vmatprep.subr.bf16.mxu0 %v3002
    %3521 = vmatpush1.bf16.msra.mxu0 %v3001
    %3522 = vmatprep.subr.bf16.mxu0 %v3010
    %3523 = vmatpush1.bf16.msra.mxu0 %v3009
    %3524 = vmatprep.subr.bf16.mxu0 %v3018
    %3525 = vmatpush1.bf16.msra.mxu0 %v3017
    %3526 = vmatprep.subr.bf16.mxu0 %v3026
    %3527 = vmatpush1.bf16.msra.mxu0 %v3025
    %3528 = vmatprep.subr.bf16.mxu0 %v3034
    %3529 = vmatpush1.bf16.msra.mxu0 %v3033
    %3530 = vmatprep.mubr.bf16.mxu0 %v1756
    %3531 = vmatmul.mubr.bf16.gmra.mrb[0].mxu0 %v1755
    %v3532 = vpop.f32.mrb[0].mxu0
    %v3533 = vadd.f32 %v3492, %v3532
    %v3534 = vpop.f32.mrb[0].mxu0
    %v3535 = vadd.f32 %v3494, %v3534
    %v3536 = vpop.f32.mrb[0].mxu0
    %v3537 = vpop.f32.mrb[0].mxu0
    %3538 = vdwg.mxu0
    %3539 = vmatprep.subr.bf16.mxu0 %v2788
    %3540 = vmatpush1.bf16.msra.mxu0 %v2787
    %3541 = vmatprep.subr.bf16.mxu0 %v2796
    %3542 = vmatpush1.bf16.msra.mxu0 %v2795
    %3543 = vmatprep.subr.bf16.mxu0 %v2804
    %3544 = vmatpush1.bf16.msra.mxu0 %v2803
    %3545 = vmatprep.subr.bf16.mxu0 %v2812
    %3546 = vmatpush1.bf16.msra.mxu0 %v2811
    %3547 = vmatprep.subr.bf16.mxu0 %v2820
    %3548 = vmatpush1.bf16.msra.mxu0 %v2819
    %3549 = vmatprep.subr.bf16.mxu0 %v2828
    %3550 = vmatpush1.bf16.msra.mxu0 %v2827
    %3551 = vmatprep.subr.bf16.mxu0 %v2836
    %3552 = vmatpush1.bf16.msra.mxu0 %v2835
    %3553 = vmatprep.subr.bf16.mxu0 %v2844
    %3554 = vmatpush1.bf16.msra.mxu0 %v2843
    %3555 = vmatprep.subr.bf16.mxu0 %v2852
    %3556 = vmatpush1.bf16.msra.mxu0 %v2851
    %3557 = vmatprep.subr.bf16.mxu0 %v2860
    %3558 = vmatpush1.bf16.msra.mxu0 %v2859
    %3559 = vmatprep.subr.bf16.mxu0 %v2868
    %3560 = vmatpush1.bf16.msra.mxu0 %v2867
    %3561 = vmatprep.subr.bf16.mxu0 %v2876
    %3562 = vmatpush1.bf16.msra.mxu0 %v2875
    %3563 = vmatprep.subr.bf16.mxu0 %v2884
    %3564 = vmatpush1.bf16.msra.mxu0 %v2883
    %3565 = vmatprep.subr.bf16.mxu0 %v2892
    %3566 = vmatpush1.bf16.msra.mxu0 %v2891
    %3567 = vmatprep.subr.bf16.mxu0 %v2900
    %3568 = vmatpush1.bf16.msra.mxu0 %v2899
    %3569 = vmatprep.subr.bf16.mxu0 %v2908
    %3570 = vmatpush1.bf16.msra.mxu0 %v2907
    %3571 = vmatprep.mubr.bf16.mxu0 %v1754
    %3572 = vmatmul.mubr.bf16.gmra.mrb[0].mxu0 %v1753
    %v3573 = vpop.f32.mrb[0].mxu0
    %v3574 = vadd.f32 0.0, %v3573
    %v3575 = vpop.f32.mrb[0].mxu0
    %v3576 = vadd.f32 0.0, %v3575
    %v3577 = vpop.f32.mrb[0].mxu0
    %v3578 = vpop.f32.mrb[0].mxu0
    %3579 = vdwg.mxu0
    %3580 = vmatprep.subr.bf16.mxu0 %v2916
    %3581 = vmatpush1.bf16.msra.mxu0 %v2915
    %3582 = vmatprep.subr.bf16.mxu0 %v2924
    %3583 = vmatpush1.bf16.msra.mxu0 %v2923
    %3584 = vmatprep.subr.bf16.mxu0 %v2932
    %3585 = vmatpush1.bf16.msra.mxu0 %v2931
    %3586 = vmatprep.subr.bf16.mxu0 %v2940
    %3587 = vmatpush1.bf16.msra.mxu0 %v2939
    %3588 = vmatprep.subr.bf16.mxu0 %v2948
    %3589 = vmatpush1.bf16.msra.mxu0 %v2947
    %3590 = vmatprep.subr.bf16.mxu0 %v2956
    %3591 = vmatpush1.bf16.msra.mxu0 %v2955
    %3592 = vmatprep.subr.bf16.mxu0 %v2964
    %3593 = vmatpush1.bf16.msra.mxu0 %v2963
    %3594 = vmatprep.subr.bf16.mxu0 %v2972
    %3595 = vmatpush1.bf16.msra.mxu0 %v2971
    %3596 = vmatprep.subr.bf16.mxu0 %v2980
    %3597 = vmatpush1.bf16.msra.mxu0 %v2979
    %3598 = vmatprep.subr.bf16.mxu0 %v2988
    %3599 = vmatpush1.bf16.msra.mxu0 %v2987
    %3600 = vmatprep.subr.bf16.mxu0 %v2996
    %3601 = vmatpush1.bf16.msra.mxu0 %v2995
    %3602 = vmatprep.subr.bf16.mxu0 %v3004
    %3603 = vmatpush1.bf16.msra.mxu0 %v3003
    %3604 = vmatprep.subr.bf16.mxu0 %v3012
    %3605 = vmatpush1.bf16.msra.mxu0 %v3011
    %3606 = vmatprep.subr.bf16.mxu0 %v3020
    %3607 = vmatpush1.bf16.msra.mxu0 %v3019
    %3608 = vmatprep.subr.bf16.mxu0 %v3028
    %3609 = vmatpush1.bf16.msra.mxu0 %v3027
    %3610 = vmatprep.subr.bf16.mxu0 %v3036
    %3611 = vmatpush1.bf16.msra.mxu0 %v3035
    %3612 = vmatprep.mubr.bf16.mxu0 %v1756
    %3613 = vmatmul.mubr.bf16.gmra.mrb[0].mxu0 %v1755
    %v3614 = vpop.f32.mrb[0].mxu0
    %v3615 = vadd.f32 %v3574, %v3614
    %v3616 = vpop.f32.mrb[0].mxu0
    %v3617 = vadd.f32 %v3576, %v3616
    %v3618 = vpop.f32.mrb[0].mxu0
    %v3619 = vpop.f32.mrb[0].mxu0
    %3620 = vdwg.mxu0
    %v3621 = vsel %vm456, %v3369, 0.0
    %v3622 = vrot.slane %v3621, 4
    %v3623 = vadd.f32 %v3621, %v3622
    %v3624 = vrot.slane %v3623, 2
    %v3625 = vadd.f32 %v3623, %v3624
    %v3626 = vrot.slane %v3625, 1
    %v3627 = vadd.f32 %v3625, %v3626
    %v3628 = vsel %vm456, %v3371, 0.0
    %v3629 = vrot.slane %v3628, 4
    %v3630 = vadd.f32 %v3628, %v3629
    %v3631 = vrot.slane %v3630, 2
    %v3632 = vadd.f32 %v3630, %v3631
    %v3633 = vrot.slane %v3632, 1
    %v3634 = vadd.f32 %v3632, %v3633
    %v3635 = vsel %vm456, %v3451, 0.0
    %v3636 = vrot.slane %v3635, 4
    %v3637 = vadd.f32 %v3635, %v3636
    %v3638 = vrot.slane %v3637, 2
    %v3639 = vadd.f32 %v3637, %v3638
    %v3640 = vrot.slane %v3639, 1
    %v3641 = vadd.f32 %v3639, %v3640
    %v3642 = vsel %vm456, %v3453, 0.0
    %v3643 = vrot.slane %v3642, 4
    %v3644 = vadd.f32 %v3642, %v3643
    %v3645 = vrot.slane %v3644, 2
    %v3646 = vadd.f32 %v3644, %v3645
    %v3647 = vrot.slane %v3646, 1
    %v3648 = vadd.f32 %v3646, %v3647
    %v3649 = vsel %vm456, %v3533, 0.0
    %v3650 = vrot.slane %v3649, 4
    %v3651 = vadd.f32 %v3649, %v3650
    %v3652 = vrot.slane %v3651, 2
    %v3653 = vadd.f32 %v3651, %v3652
    %v3654 = vrot.slane %v3653, 1
    %v3655 = vadd.f32 %v3653, %v3654
    %v3656 = vsel %vm456, %v3535, 0.0
    %v3657 = vrot.slane %v3656, 4
    %v3658 = vadd.f32 %v3656, %v3657
    %v3659 = vrot.slane %v3658, 2
    %v3660 = vadd.f32 %v3658, %v3659
    %v3661 = vrot.slane %v3660, 1
    %v3662 = vadd.f32 %v3660, %v3661
    %v3663 = vsel %vm456, %v3615, 0.0
    %v3664 = vrot.slane %v3663, 4
    %v3665 = vadd.f32 %v3663, %v3664
    %v3666 = vrot.slane %v3665, 2
    %v3667 = vadd.f32 %v3665, %v3666
    %v3668 = vrot.slane %v3667, 1
    %v3669 = vadd.f32 %v3667, %v3668
    %v3670 = vsel %vm456, %v3617, 0.0
    %v3671 = vrot.slane %v3670, 4
    %v3672 = vadd.f32 %v3670, %v3671
    %v3673 = vrot.slane %v3672, 2
    %v3674 = vadd.f32 %v3672, %v3673
    %v3675 = vrot.slane %v3674, 1
    %v3676 = vadd.f32 %v3674, %v3675
    %v3677 = vrcp.pop 2.0
    %v3678 = vmul.f32 %v3627, %v3677
    %v3679 = vmul.f32 %v3634, %v3677
    %v3680 = vmul.f32 %v3641, %v3677
    %v3681 = vmul.f32 %v3648, %v3677
    %v3682 = vmul.f32 %v3655, %v3677
    %v3683 = vmul.f32 %v3662, %v3677
    %v3684 = vmul.f32 %v3669, %v3677
    %v3685 = vmul.f32 %v3676, %v3677
    %v3686 = vsub.f32 %v3369, %v3678
    %v3687 = vsub.f32 %v3371, %v3679
    %v3688 = vsub.f32 %v3451, %v3680
    %v3689 = vsub.f32 %v3453, %v3681
    %v3690 = vsub.f32 %v3533, %v3682
    %v3691 = vsub.f32 %v3535, %v3683
    %v3692 = vsub.f32 %v3615, %v3684
    %v3693 = vsub.f32 %v3617, %v3685
    %v3694 = vmul.f32 %v3686, %v3686
    %v3695 = vmul.f32 %v3687, %v3687
    %v3696 = vmul.f32 %v3688, %v3688
    %v3697 = vmul.f32 %v3689, %v3689
    %v3698 = vmul.f32 %v3690, %v3690
    %v3699 = vmul.f32 %v3691, %v3691
    %v3700 = vmul.f32 %v3692, %v3692
    %v3701 = vmul.f32 %v3693, %v3693
    %v3702 = vsel %vm456, %v3694, 0.0
    %v3703 = vrot.slane %v3702, 4
    %v3704 = vadd.f32 %v3702, %v3703
    %v3705 = vrot.slane %v3704, 2
    %v3706 = vadd.f32 %v3704, %v3705
    %v3707 = vrot.slane %v3706, 1
    %v3708 = vadd.f32 %v3706, %v3707
    %v3709 = vsel %vm456, %v3695, 0.0
    %v3710 = vrot.slane %v3709, 4
    %v3711 = vadd.f32 %v3709, %v3710
    %v3712 = vrot.slane %v3711, 2
    %v3713 = vadd.f32 %v3711, %v3712
    %v3714 = vrot.slane %v3713, 1
    %v3715 = vadd.f32 %v3713, %v3714
    %v3716 = vsel %vm456, %v3696, 0.0
    %v3717 = vrot.slane %v3716, 4
    %v3718 = vadd.f32 %v3716, %v3717
    %v3719 = vrot.slane %v3718, 2
    %v3720 = vadd.f32 %v3718, %v3719
    %v3721 = vrot.slane %v3720, 1
    %v3722 = vadd.f32 %v3720, %v3721
    %v3723 = vsel %vm456, %v3697, 0.0
    %v3724 = vrot.slane %v3723, 4
    %v3725 = vadd.f32 %v3723, %v3724
    %v3726 = vrot.slane %v3725, 2
    %v3727 = vadd.f32 %v3725, %v3726
    %v3728 = vrot.slane %v3727, 1
    %v3729 = vadd.f32 %v3727, %v3728
    %v3730 = vsel %vm456, %v3698, 0.0
    %v3731 = vrot.slane %v3730, 4
    %v3732 = vadd.f32 %v3730, %v3731
    %v3733 = vrot.slane %v3732, 2
    %v3734 = vadd.f32 %v3732, %v3733
    %v3735 = vrot.slane %v3734, 1
    %v3736 = vadd.f32 %v3734, %v3735
    %v3737 = vsel %vm456, %v3699, 0.0
    %v3738 = vrot.slane %v3737, 4
    %v3739 = vadd.f32 %v3737, %v3738
    %v3740 = vrot.slane %v3739, 2
    %v3741 = vadd.f32 %v3739, %v3740
    %v3742 = vrot.slane %v3741, 1
    %v3743 = vadd.f32 %v3741, %v3742
    %v3744 = vsel %vm456, %v3700, 0.0
    %v3745 = vrot.slane %v3744, 4
    %v3746 = vadd.f32 %v3744, %v3745
    %v3747 = vrot.slane %v3746, 2
    %v3748 = vadd.f32 %v3746, %v3747
    %v3749 = vrot.slane %v3748, 1
    %v3750 = vadd.f32 %v3748, %v3749
    %v3751 = vsel %vm456, %v3701, 0.0
    %v3752 = vrot.slane %v3751, 4
    %v3753 = vadd.f32 %v3751, %v3752
    %v3754 = vrot.slane %v3753, 2
    %v3755 = vadd.f32 %v3753, %v3754
    %v3756 = vrot.slane %v3755, 1
    %v3757 = vadd.f32 %v3755, %v3756
    %v3758 = vmul.f32 %v3708, %v3677
    %v3759 = vmul.f32 %v3715, %v3677
    %v3760 = vmul.f32 %v3722, %v3677
    %v3761 = vmul.f32 %v3729, %v3677
    %v3762 = vmul.f32 %v3736, %v3677
    %v3763 = vmul.f32 %v3743, %v3677
    %v3764 = vmul.f32 %v3750, %v3677
    %v3765 = vmul.f32 %v3757, %v3677
    %v3766 = vadd.f32 %v3758, 1e-05
    %v3767 = vadd.f32 %v3759, 1e-05
    %v3768 = vadd.f32 %v3760, 1e-05
    %v3769 = vadd.f32 %v3761, 1e-05
    %v3770 = vadd.f32 %v3762, 1e-05
    %v3771 = vadd.f32 %v3763, 1e-05
    %v3772 = vadd.f32 %v3764, 1e-05
    %v3773 = vadd.f32 %v3765, 1e-05
    %v3774 = vrsqrt.pop %v3766
    %v3775 = vrsqrt.pop %v3767
    %v3776 = vrsqrt.pop %v3768
    %v3777 = vrsqrt.pop %v3769
    %v3778 = vrsqrt.pop %v3770
    %v3779 = vrsqrt.pop %v3771
    %v3780 = vrsqrt.pop %v3772
    %v3781 = vrsqrt.pop %v3773
    %v3782 = vmul.f32 %v3686, %v3774
    %v3783 = vmul.f32 %v3687, %v3775
    %v3784 = vmul.f32 %v3688, %v3776
    %v3785 = vmul.f32 %v3689, %v3777
    %v3786 = vmul.f32 %v3690, %v3778
    %v3787 = vmul.f32 %v3691, %v3779
    %v3788 = vmul.f32 %v3692, %v3780
    %v3789 = vmul.f32 %v3693, %v3781
    %v3790 = vld [vmem:[#allocation11] sm:$0xff]
    %v3792 = vlaneseq
    %v3793 = vshrl.u32 %v3792, 7
    %v3794 = vsub.s32 0, %v3793
    %v3795 = vrot.slane %v3790, %v3794
    %v3796 = vlaneseq
    %v3797 = vshrl.u32 %v3796, 7
    %v3798 = vsub.s32 1, %v3797
    %v3799 = vrot.slane %v3790, %v3798
    %v3800 = vlaneseq
    %v3801 = vshrl.u32 %v3800, 7
    %v3802 = vsub.s32 2, %v3801
    %v3803 = vrot.slane %v3790, %v3802
    %v3804 = vlaneseq
    %v3805 = vshrl.u32 %v3804, 7
    %v3806 = vsub.s32 3, %v3805
    %v3807 = vrot.slane %v3790, %v3806
    %v3808 = vlaneseq
    %v3809 = vshrl.u32 %v3808, 7
    %v3810 = vsub.s32 4, %v3809
    %v3811 = vrot.slane %v3790, %v3810
    %v3812 = vlaneseq
    %v3813 = vshrl.u32 %v3812, 7
    %v3814 = vsub.s32 5, %v3813
    %v3815 = vrot.slane %v3790, %v3814
    %v3816 = vlaneseq
    %v3817 = vshrl.u32 %v3816, 7
    %v3818 = vsub.s32 6, %v3817
    %v3819 = vrot.slane %v3790, %v3818
    %v3820 = vlaneseq
    %v3821 = vshrl.u32 %v3820, 7
    %v3822 = vsub.s32 7, %v3821
    %v3823 = vrot.slane %v3790, %v3822
    %v3832 = vmul.f32 %v3782, %v3795
    %v3833 = vmul.f32 %v3783, %v3799
    %v3834 = vmul.f32 %v3784, %v3803
    %v3835 = vmul.f32 %v3785, %v3807
    %v3836 = vmul.f32 %v3786, %v3811
    %v3837 = vmul.f32 %v3787, %v3815
    %v3838 = vmul.f32 %v3788, %v3819
    %v3839 = vmul.f32 %v3789, %v3823
    %v3840 = vld [vmem:[#allocation13] sm:$0xff]
    %v3842 = vlaneseq
    %v3843 = vshrl.u32 %v3842, 7
    %v3844 = vsub.s32 0, %v3843
    %v3845 = vrot.slane %v3840, %v3844
    %v3846 = vlaneseq
    %v3847 = vshrl.u32 %v3846, 7
    %v3848 = vsub.s32 1, %v3847
    %v3849 = vrot.slane %v3840, %v3848
    %v3850 = vlaneseq
    %v3851 = vshrl.u32 %v3850, 7
    %v3852 = vsub.s32 2, %v3851
    %v3853 = vrot.slane %v3840, %v3852
    %v3854 = vlaneseq
    %v3855 = vshrl.u32 %v3854, 7
    %v3856 = vsub.s32 3, %v3855
    %v3857 = vrot.slane %v3840, %v3856
    %v3858 = vlaneseq
    %v3859 = vshrl.u32 %v3858, 7
    %v3860 = vsub.s32 4, %v3859
    %v3861 = vrot.slane %v3840, %v3860
    %v3862 = vlaneseq
    %v3863 = vshrl.u32 %v3862, 7
    %v3864 = vsub.s32 5, %v3863
    %v3865 = vrot.slane %v3840, %v3864
    %v3866 = vlaneseq
    %v3867 = vshrl.u32 %v3866, 7
    %v3868 = vsub.s32 6, %v3867
    %v3869 = vrot.slane %v3840, %v3868
    %v3870 = vlaneseq
    %v3871 = vshrl.u32 %v3870, 7
    %v3872 = vsub.s32 7, %v3871
    %v3873 = vrot.slane %v3840, %v3872
    %v3882 = vadd.f32 %v3832, %v3845
    %v3883 = vadd.f32 %v3833, %v3849
    %v3884 = vadd.f32 %v3834, %v3853
    %v3885 = vadd.f32 %v3835, %v3857
    %v3886 = vadd.f32 %v3836, %v3861
    %v3887 = vadd.f32 %v3837, %v3865
    %v3888 = vadd.f32 %v3838, %v3869
    %v3889 = vadd.f32 %v3839, %v3873
    %v3890 = vmax.f32 %v3882, 0.0
    %v3891 = vmax.f32 %v3883, 0.0
    %v3892 = vmax.f32 %v3884, 0.0
    %v3893 = vmax.f32 %v3885, 0.0
    %v3894 = vmax.f32 %v3886, 0.0
    %v3895 = vmax.f32 %v3887, 0.0
    %v3896 = vmax.f32 %v3888, 0.0
    %v3897 = vmax.f32 %v3889, 0.0
    %v3898 = vpack.c.bf16 %v3890, %v3890
    %v3899 = vpack.c.bf16 %v3891, %v3891
    %v3900 = vpack.c.bf16 %v3892, %v3892
    %v3901 = vpack.c.bf16 %v3893, %v3893
    %v3902 = vpack.c.bf16 %v3894, %v3894
    %v3903 = vpack.c.bf16 %v3895, %v3895
    %v3904 = vpack.c.bf16 %v3896, %v3896
    %v3905 = vpack.c.bf16 %v3897, %v3897
    %v3906 = vld [vmem:[#allocation8] sm:$0xff]
    %v3907 = vld [vmem:[#allocation8 + $0x8] sm:$0xff]
    %v3908 = vld [vmem:[#allocation8 + $0x10] sm:$0xff]
    %v3909 = vld [vmem:[#allocation8 + $0x18] sm:$0xff]
    %v3910 = vld [vmem:[#allocation8 + $0x20] sm:$0xff]
    %v3911 = vld [vmem:[#allocation8 + $0x28] sm:$0xff]
    %v3912 = vld [vmem:[#allocation8 + $0x30] sm:$0xff]
    %v3913 = vld [vmem:[#allocation8 + $0x38] sm:$0xff]
    %v3914 = vld [vmem:[#allocation8 + $0x40] sm:$0xff]
    %v3915 = vld [vmem:[#allocation8 + $0x48] sm:$0xff]
    %v3916 = vld [vmem:[#allocation8 + $0x50] sm:$0xff]
    %v3917 = vld [vmem:[#allocation8 + $0x58] sm:$0xff]
    %v3918 = vld [vmem:[#allocation8 + $0x60] sm:$0xff]
    %v3919 = vld [vmem:[#allocation8 + $0x68] sm:$0xff]
    %v3920 = vld [vmem:[#allocation8 + $0x70] sm:$0xff]
    %v3921 = vld [vmem:[#allocation8 + $0x78] sm:$0xff]
    %v3922 = vld [vmem:[#allocation8 + $0x80] sm:$0xff]
    %v3923 = vld [vmem:[#allocation8 + $0x88] sm:$0xff]
    %v3924 = vld [vmem:[#allocation8 + $0x90] sm:$0xff]
    %v3925 = vld [vmem:[#allocation8 + $0x98] sm:$0xff]
    %v3926 = vld [vmem:[#allocation8 + $0xa0] sm:$0xff]
    %v3927 = vld [vmem:[#allocation8 + $0xa8] sm:$0xff]
    %v3928 = vld [vmem:[#allocation8 + $0xb0] sm:$0xff]
    %v3929 = vld [vmem:[#allocation8 + $0xb8] sm:$0xff]
    %v3930 = vld [vmem:[#allocation8 + $0xc0] sm:$0xff]
    %v3931 = vld [vmem:[#allocation8 + $0xc8] sm:$0xff]
    %v3932 = vld [vmem:[#allocation8 + $0xd0] sm:$0xff]
    %v3933 = vld [vmem:[#allocation8 + $0xd8] sm:$0xff]
    %v3934 = vld [vmem:[#allocation8 + $0xe0] sm:$0xff]
    %v3935 = vld [vmem:[#allocation8 + $0xe8] sm:$0xff]
    %v3936 = vld [vmem:[#allocation8 + $0xf0] sm:$0xff]
    %v3937 = vld [vmem:[#allocation8 + $0xf8] sm:$0xff]
    %v3938 = vld [vmem:[#allocation8 + $0x100] sm:$0xff]
    %v3939 = vld [vmem:[#allocation8 + $0x108] sm:$0xff]
    %v3940 = vld [vmem:[#allocation8 + $0x110] sm:$0xff]
    %v3941 = vld [vmem:[#allocation8 + $0x118] sm:$0xff]
    %v3942 = vld [vmem:[#allocation8 + $0x120] sm:$0xff]
    %v3943 = vld [vmem:[#allocation8 + $0x128] sm:$0xff]
    %v3944 = vld [vmem:[#allocation8 + $0x130] sm:$0xff]
    %v3945 = vld [vmem:[#allocation8 + $0x138] sm:$0xff]
    %v3946 = vld [vmem:[#allocation8 + $0x140] sm:$0xff]
    %v3947 = vld [vmem:[#allocation8 + $0x148] sm:$0xff]
    %v3948 = vld [vmem:[#allocation8 + $0x150] sm:$0xff]
    %v3949 = vld [vmem:[#allocation8 + $0x158] sm:$0xff]
    %v3950 = vld [vmem:[#allocation8 + $0x160] sm:$0xff]
    %v3951 = vld [vmem:[#allocation8 + $0x168] sm:$0xff]
    %v3952 = vld [vmem:[#allocation8 + $0x170] sm:$0xff]
    %v3953 = vld [vmem:[#allocation8 + $0x178] sm:$0xff]
    %v3954 = vld [vmem:[#allocation8 + $0x180] sm:$0xff]
    %v3955 = vld [vmem:[#allocation8 + $0x188] sm:$0xff]
    %v3956 = vld [vmem:[#allocation8 + $0x190] sm:$0xff]
    %v3957 = vld [vmem:[#allocation8 + $0x198] sm:$0xff]
    %v3958 = vld [vmem:[#allocation8 + $0x1a0] sm:$0xff]
    %v3959 = vld [vmem:[#allocation8 + $0x1a8] sm:$0xff]
    %v3960 = vld [vmem:[#allocation8 + $0x1b0] sm:$0xff]
    %v3961 = vld [vmem:[#allocation8 + $0x1b8] sm:$0xff]
    %v3962 = vld [vmem:[#allocation8 + $0x1c0] sm:$0xff]
    %v3963 = vld [vmem:[#allocation8 + $0x1c8] sm:$0xff]
    %v3964 = vld [vmem:[#allocation8 + $0x1d0] sm:$0xff]
    %v3965 = vld [vmem:[#allocation8 + $0x1d8] sm:$0xff]
    %v3966 = vld [vmem:[#allocation8 + $0x1e0] sm:$0xff]
    %v3967 = vld [vmem:[#allocation8 + $0x1e8] sm:$0xff]
    %v3968 = vld [vmem:[#allocation8 + $0x1f0] sm:$0xff]
    %v3969 = vld [vmem:[#allocation8 + $0x1f8] sm:$0xff]
    %v3970 = vld [vmem:[#allocation8 + $0x200] sm:$0xff]
    %v3971 = vld [vmem:[#allocation8 + $0x208] sm:$0xff]
    %v3972 = vld [vmem:[#allocation8 + $0x210] sm:$0xff]
    %v3973 = vld [vmem:[#allocation8 + $0x218] sm:$0xff]
    %v3974 = vld [vmem:[#allocation8 + $0x220] sm:$0xff]
    %v3975 = vld [vmem:[#allocation8 + $0x228] sm:$0xff]
    %v3976 = vld [vmem:[#allocation8 + $0x230] sm:$0xff]
    %v3977 = vld [vmem:[#allocation8 + $0x238] sm:$0xff]
    %v3978 = vld [vmem:[#allocation8 + $0x240] sm:$0xff]
    %v3979 = vld [vmem:[#allocation8 + $0x248] sm:$0xff]
    %v3980 = vld [vmem:[#allocation8 + $0x250] sm:$0xff]
    %v3981 = vld [vmem:[#allocation8 + $0x258] sm:$0xff]
    %v3982 = vld [vmem:[#allocation8 + $0x260] sm:$0xff]
    %v3983 = vld [vmem:[#allocation8 + $0x268] sm:$0xff]
    %v3984 = vld [vmem:[#allocation8 + $0x270] sm:$0xff]
    %v3985 = vld [vmem:[#allocation8 + $0x278] sm:$0xff]
    %v3986 = vld [vmem:[#allocation8 + $0x280] sm:$0xff]
    %v3987 = vld [vmem:[#allocation8 + $0x288] sm:$0xff]
    %v3988 = vld [vmem:[#allocation8 + $0x290] sm:$0xff]
    %v3989 = vld [vmem:[#allocation8 + $0x298] sm:$0xff]
    %v3990 = vld [vmem:[#allocation8 + $0x2a0] sm:$0xff]
    %v3991 = vld [vmem:[#allocation8 + $0x2a8] sm:$0xff]
    %v3992 = vld [vmem:[#allocation8 + $0x2b0] sm:$0xff]
    %v3993 = vld [vmem:[#allocation8 + $0x2b8] sm:$0xff]
    %v3994 = vld [vmem:[#allocation8 + $0x2c0] sm:$0xff]
    %v3995 = vld [vmem:[#allocation8 + $0x2c8] sm:$0xff]
    %v3996 = vld [vmem:[#allocation8 + $0x2d0] sm:$0xff]
    %v3997 = vld [vmem:[#allocation8 + $0x2d8] sm:$0xff]
    %v3998 = vld [vmem:[#allocation8 + $0x2e0] sm:$0xff]
    %v3999 = vld [vmem:[#allocation8 + $0x2e8] sm:$0xff]
    %v4000 = vld [vmem:[#allocation8 + $0x2f0] sm:$0xff]
    %v4001 = vld [vmem:[#allocation8 + $0x2f8] sm:$0xff]
    %v4002 = vld [vmem:[#allocation8 + $0x300] sm:$0xff]
    %v4003 = vld [vmem:[#allocation8 + $0x308] sm:$0xff]
    %v4004 = vld [vmem:[#allocation8 + $0x310] sm:$0xff]
    %v4005 = vld [vmem:[#allocation8 + $0x318] sm:$0xff]
    %v4006 = vld [vmem:[#allocation8 + $0x320] sm:$0xff]
    %v4007 = vld [vmem:[#allocation8 + $0x328] sm:$0xff]
    %v4008 = vld [vmem:[#allocation8 + $0x330] sm:$0xff]
    %v4009 = vld [vmem:[#allocation8 + $0x338] sm:$0xff]
    %v4010 = vld [vmem:[#allocation8 + $0x340] sm:$0xff]
    %v4011 = vld [vmem:[#allocation8 + $0x348] sm:$0xff]
    %v4012 = vld [vmem:[#allocation8 + $0x350] sm:$0xff]
    %v4013 = vld [vmem:[#allocation8 + $0x358] sm:$0xff]
    %v4014 = vld [vmem:[#allocation8 + $0x360] sm:$0xff]
    %v4015 = vld [vmem:[#allocation8 + $0x368] sm:$0xff]
    %v4016 = vld [vmem:[#allocation8 + $0x370] sm:$0xff]
    %v4017 = vld [vmem:[#allocation8 + $0x378] sm:$0xff]
    %v4018 = vld [vmem:[#allocation8 + $0x380] sm:$0xff]
    %v4019 = vld [vmem:[#allocation8 + $0x388] sm:$0xff]
    %v4020 = vld [vmem:[#allocation8 + $0x390] sm:$0xff]
    %v4021 = vld [vmem:[#allocation8 + $0x398] sm:$0xff]
    %v4022 = vld [vmem:[#allocation8 + $0x3a0] sm:$0xff]
    %v4023 = vld [vmem:[#allocation8 + $0x3a8] sm:$0xff]
    %v4024 = vld [vmem:[#allocation8 + $0x3b0] sm:$0xff]
    %v4025 = vld [vmem:[#allocation8 + $0x3b8] sm:$0xff]
    %v4026 = vld [vmem:[#allocation8 + $0x3c0] sm:$0xff]
    %v4027 = vld [vmem:[#allocation8 + $0x3c8] sm:$0xff]
    %v4028 = vld [vmem:[#allocation8 + $0x3d0] sm:$0xff]
    %v4029 = vld [vmem:[#allocation8 + $0x3d8] sm:$0xff]
    %v4030 = vld [vmem:[#allocation8 + $0x3e0] sm:$0xff]
    %v4031 = vld [vmem:[#allocation8 + $0x3e8] sm:$0xff]
    %v4032 = vld [vmem:[#allocation8 + $0x3f0] sm:$0xff]
    %v4033 = vld [vmem:[#allocation8 + $0x3f8] sm:$0xff]
    %v4034 = vld [vmem:[#allocation8 + $0x400] sm:$0xff]
    %v4035 = vld [vmem:[#allocation8 + $0x408] sm:$0xff]
    %v4036 = vld [vmem:[#allocation8 + $0x410] sm:$0xff]
    %v4037 = vld [vmem:[#allocation8 + $0x418] sm:$0xff]
    %v4038 = vld [vmem:[#allocation8 + $0x420] sm:$0xff]
    %v4039 = vld [vmem:[#allocation8 + $0x428] sm:$0xff]
    %v4040 = vld [vmem:[#allocation8 + $0x430] sm:$0xff]
    %v4041 = vld [vmem:[#allocation8 + $0x438] sm:$0xff]
    %v4042 = vld [vmem:[#allocation8 + $0x440] sm:$0xff]
    %v4043 = vld [vmem:[#allocation8 + $0x448] sm:$0xff]
    %v4044 = vld [vmem:[#allocation8 + $0x450] sm:$0xff]
    %v4045 = vld [vmem:[#allocation8 + $0x458] sm:$0xff]
    %v4046 = vld [vmem:[#allocation8 + $0x460] sm:$0xff]
    %v4047 = vld [vmem:[#allocation8 + $0x468] sm:$0xff]
    %v4048 = vld [vmem:[#allocation8 + $0x470] sm:$0xff]
    %v4049 = vld [vmem:[#allocation8 + $0x478] sm:$0xff]
    %v4050 = vld [vmem:[#allocation8 + $0x480] sm:$0xff]
    %v4051 = vld [vmem:[#allocation8 + $0x488] sm:$0xff]
    %v4052 = vld [vmem:[#allocation8 + $0x490] sm:$0xff]
    %v4053 = vld [vmem:[#allocation8 + $0x498] sm:$0xff]
    %v4054 = vld [vmem:[#allocation8 + $0x4a0] sm:$0xff]
    %v4055 = vld [vmem:[#allocation8 + $0x4a8] sm:$0xff]
    %v4056 = vld [vmem:[#allocation8 + $0x4b0] sm:$0xff]
    %v4057 = vld [vmem:[#allocation8 + $0x4b8] sm:$0xff]
    %v4058 = vld [vmem:[#allocation8 + $0x4c0] sm:$0xff]
    %v4059 = vld [vmem:[#allocation8 + $0x4c8] sm:$0xff]
    %v4060 = vld [vmem:[#allocation8 + $0x4d0] sm:$0xff]
    %v4061 = vld [vmem:[#allocation8 + $0x4d8] sm:$0xff]
    %v4062 = vld [vmem:[#allocation8 + $0x4e0] sm:$0xff]
    %v4063 = vld [vmem:[#allocation8 + $0x4e8] sm:$0xff]
    %v4064 = vld [vmem:[#allocation8 + $0x4f0] sm:$0xff]
    %v4065 = vld [vmem:[#allocation8 + $0x4f8] sm:$0xff]
    %v4066 = vld [vmem:[#allocation8 + $0x500] sm:$0xff]
    %v4067 = vld [vmem:[#allocation8 + $0x508] sm:$0xff]
    %v4068 = vld [vmem:[#allocation8 + $0x510] sm:$0xff]
    %v4069 = vld [vmem:[#allocation8 + $0x518] sm:$0xff]
    %v4070 = vld [vmem:[#allocation8 + $0x520] sm:$0xff]
    %v4071 = vld [vmem:[#allocation8 + $0x528] sm:$0xff]
    %v4072 = vld [vmem:[#allocation8 + $0x530] sm:$0xff]
    %v4073 = vld [vmem:[#allocation8 + $0x538] sm:$0xff]
    %v4074 = vld [vmem:[#allocation8 + $0x540] sm:$0xff]
    %v4075 = vld [vmem:[#allocation8 + $0x548] sm:$0xff]
    %v4076 = vld [vmem:[#allocation8 + $0x550] sm:$0xff]
    %v4077 = vld [vmem:[#allocation8 + $0x558] sm:$0xff]
    %v4078 = vld [vmem:[#allocation8 + $0x560] sm:$0xff]
    %v4079 = vld [vmem:[#allocation8 + $0x568] sm:$0xff]
    %v4080 = vld [vmem:[#allocation8 + $0x570] sm:$0xff]
    %v4081 = vld [vmem:[#allocation8 + $0x578] sm:$0xff]
    %v4082 = vld [vmem:[#allocation8 + $0x580] sm:$0xff]
    %v4083 = vld [vmem:[#allocation8 + $0x588] sm:$0xff]
    %v4084 = vld [vmem:[#allocation8 + $0x590] sm:$0xff]
    %v4085 = vld [vmem:[#allocation8 + $0x598] sm:$0xff]
    %v4086 = vld [vmem:[#allocation8 + $0x5a0] sm:$0xff]
    %v4087 = vld [vmem:[#allocation8 + $0x5a8] sm:$0xff]
    %v4088 = vld [vmem:[#allocation8 + $0x5b0] sm:$0xff]
    %v4089 = vld [vmem:[#allocation8 + $0x5b8] sm:$0xff]
    %v4090 = vld [vmem:[#allocation8 + $0x5c0] sm:$0xff]
    %v4091 = vld [vmem:[#allocation8 + $0x5c8] sm:$0xff]
    %v4092 = vld [vmem:[#allocation8 + $0x5d0] sm:$0xff]
    %v4093 = vld [vmem:[#allocation8 + $0x5d8] sm:$0xff]
    %v4094 = vld [vmem:[#allocation8 + $0x5e0] sm:$0xff]
    %v4095 = vld [vmem:[#allocation8 + $0x5e8] sm:$0xff]
    %v4096 = vld [vmem:[#allocation8 + $0x5f0] sm:$0xff]
    %v4097 = vld [vmem:[#allocation8 + $0x5f8] sm:$0xff]
    %v4098 = vld [vmem:[#allocation8 + $0x600] sm:$0xff]
    %v4099 = vld [vmem:[#allocation8 + $0x608] sm:$0xff]
    %v4100 = vld [vmem:[#allocation8 + $0x610] sm:$0xff]
    %v4101 = vld [vmem:[#allocation8 + $0x618] sm:$0xff]
    %v4102 = vld [vmem:[#allocation8 + $0x620] sm:$0xff]
    %v4103 = vld [vmem:[#allocation8 + $0x628] sm:$0xff]
    %v4104 = vld [vmem:[#allocation8 + $0x630] sm:$0xff]
    %v4105 = vld [vmem:[#allocation8 + $0x638] sm:$0xff]
    %v4106 = vld [vmem:[#allocation8 + $0x640] sm:$0xff]
    %v4107 = vld [vmem:[#allocation8 + $0x648] sm:$0xff]
    %v4108 = vld [vmem:[#allocation8 + $0x650] sm:$0xff]
    %v4109 = vld [vmem:[#allocation8 + $0x658] sm:$0xff]
    %v4110 = vld [vmem:[#allocation8 + $0x660] sm:$0xff]
    %v4111 = vld [vmem:[#allocation8 + $0x668] sm:$0xff]
    %v4112 = vld [vmem:[#allocation8 + $0x670] sm:$0xff]
    %v4113 = vld [vmem:[#allocation8 + $0x678] sm:$0xff]
    %v4114 = vld [vmem:[#allocation8 + $0x680] sm:$0xff]
    %v4115 = vld [vmem:[#allocation8 + $0x688] sm:$0xff]
    %v4116 = vld [vmem:[#allocation8 + $0x690] sm:$0xff]
    %v4117 = vld [vmem:[#allocation8 + $0x698] sm:$0xff]
    %v4118 = vld [vmem:[#allocation8 + $0x6a0] sm:$0xff]
    %v4119 = vld [vmem:[#allocation8 + $0x6a8] sm:$0xff]
    %v4120 = vld [vmem:[#allocation8 + $0x6b0] sm:$0xff]
    %v4121 = vld [vmem:[#allocation8 + $0x6b8] sm:$0xff]
    %v4122 = vld [vmem:[#allocation8 + $0x6c0] sm:$0xff]
    %v4123 = vld [vmem:[#allocation8 + $0x6c8] sm:$0xff]
    %v4124 = vld [vmem:[#allocation8 + $0x6d0] sm:$0xff]
    %v4125 = vld [vmem:[#allocation8 + $0x6d8] sm:$0xff]
    %v4126 = vld [vmem:[#allocation8 + $0x6e0] sm:$0xff]
    %v4127 = vld [vmem:[#allocation8 + $0x6e8] sm:$0xff]
    %v4128 = vld [vmem:[#allocation8 + $0x6f0] sm:$0xff]
    %v4129 = vld [vmem:[#allocation8 + $0x6f8] sm:$0xff]
    %v4130 = vld [vmem:[#allocation8 + $0x700] sm:$0xff]
    %v4131 = vld [vmem:[#allocation8 + $0x708] sm:$0xff]
    %v4132 = vld [vmem:[#allocation8 + $0x710] sm:$0xff]
    %v4133 = vld [vmem:[#allocation8 + $0x718] sm:$0xff]
    %v4134 = vld [vmem:[#allocation8 + $0x720] sm:$0xff]
    %v4135 = vld [vmem:[#allocation8 + $0x728] sm:$0xff]
    %v4136 = vld [vmem:[#allocation8 + $0x730] sm:$0xff]
    %v4137 = vld [vmem:[#allocation8 + $0x738] sm:$0xff]
    %v4138 = vld [vmem:[#allocation8 + $0x740] sm:$0xff]
    %v4139 = vld [vmem:[#allocation8 + $0x748] sm:$0xff]
    %v4140 = vld [vmem:[#allocation8 + $0x750] sm:$0xff]
    %v4141 = vld [vmem:[#allocation8 + $0x758] sm:$0xff]
    %v4142 = vld [vmem:[#allocation8 + $0x760] sm:$0xff]
    %v4143 = vld [vmem:[#allocation8 + $0x768] sm:$0xff]
    %v4144 = vld [vmem:[#allocation8 + $0x770] sm:$0xff]
    %v4145 = vld [vmem:[#allocation8 + $0x778] sm:$0xff]
    %v4146 = vld [vmem:[#allocation8 + $0x780] sm:$0xff]
    %v4147 = vld [vmem:[#allocation8 + $0x788] sm:$0xff]
    %v4148 = vld [vmem:[#allocation8 + $0x790] sm:$0xff]
    %v4149 = vld [vmem:[#allocation8 + $0x798] sm:$0xff]
    %v4150 = vld [vmem:[#allocation8 + $0x7a0] sm:$0xff]
    %v4151 = vld [vmem:[#allocation8 + $0x7a8] sm:$0xff]
    %v4152 = vld [vmem:[#allocation8 + $0x7b0] sm:$0xff]
    %v4153 = vld [vmem:[#allocation8 + $0x7b8] sm:$0xff]
    %v4154 = vld [vmem:[#allocation8 + $0x7c0] sm:$0xff]
    %v4155 = vld [vmem:[#allocation8 + $0x7c8] sm:$0xff]
    %v4156 = vld [vmem:[#allocation8 + $0x7d0] sm:$0xff]
    %v4157 = vld [vmem:[#allocation8 + $0x7d8] sm:$0xff]
    %v4158 = vld [vmem:[#allocation8 + $0x7e0] sm:$0xff]
    %v4159 = vld [vmem:[#allocation8 + $0x7e8] sm:$0xff]
    %v4160 = vld [vmem:[#allocation8 + $0x7f0] sm:$0xff]
    %v4161 = vld [vmem:[#allocation8 + $0x7f8] sm:$0xff]
    %v4162 = vld [vmem:[#allocation8 + $0x800] sm:$0xff]
    %v4163 = vld [vmem:[#allocation8 + $0x808] sm:$0xff]
    %v4164 = vld [vmem:[#allocation8 + $0x810] sm:$0xff]
    %v4165 = vld [vmem:[#allocation8 + $0x818] sm:$0xff]
    %v4166 = vld [vmem:[#allocation8 + $0x820] sm:$0xff]
    %v4167 = vld [vmem:[#allocation8 + $0x828] sm:$0xff]
    %v4168 = vld [vmem:[#allocation8 + $0x830] sm:$0xff]
    %v4169 = vld [vmem:[#allocation8 + $0x838] sm:$0xff]
    %v4170 = vld [vmem:[#allocation8 + $0x840] sm:$0xff]
    %v4171 = vld [vmem:[#allocation8 + $0x848] sm:$0xff]
    %v4172 = vld [vmem:[#allocation8 + $0x850] sm:$0xff]
    %v4173 = vld [vmem:[#allocation8 + $0x858] sm:$0xff]
    %v4174 = vld [vmem:[#allocation8 + $0x860] sm:$0xff]
    %v4175 = vld [vmem:[#allocation8 + $0x868] sm:$0xff]
    %v4176 = vld [vmem:[#allocation8 + $0x870] sm:$0xff]
    %v4177 = vld [vmem:[#allocation8 + $0x878] sm:$0xff]
    %v4178 = vld [vmem:[#allocation8 + $0x880] sm:$0xff]
    %v4179 = vld [vmem:[#allocation8 + $0x888] sm:$0xff]
    %v4180 = vld [vmem:[#allocation8 + $0x890] sm:$0xff]
    %v4181 = vld [vmem:[#allocation8 + $0x898] sm:$0xff]
    %v4182 = vld [vmem:[#allocation8 + $0x8a0] sm:$0xff]
    %v4183 = vld [vmem:[#allocation8 + $0x8a8] sm:$0xff]
    %v4184 = vld [vmem:[#allocation8 + $0x8b0] sm:$0xff]
    %v4185 = vld [vmem:[#allocation8 + $0x8b8] sm:$0xff]
    %v4186 = vld [vmem:[#allocation8 + $0x8c0] sm:$0xff]
    %v4187 = vld [vmem:[#allocation8 + $0x8c8] sm:$0xff]
    %v4188 = vld [vmem:[#allocation8 + $0x8d0] sm:$0xff]
    %v4189 = vld [vmem:[#allocation8 + $0x8d8] sm:$0xff]
    %v4190 = vld [vmem:[#allocation8 + $0x8e0] sm:$0xff]
    %v4191 = vld [vmem:[#allocation8 + $0x8e8] sm:$0xff]
    %v4192 = vld [vmem:[#allocation8 + $0x8f0] sm:$0xff]
    %v4193 = vld [vmem:[#allocation8 + $0x8f8] sm:$0xff]
    %v4194 = vld [vmem:[#allocation8 + $0x900] sm:$0xff]
    %v4195 = vld [vmem:[#allocation8 + $0x908] sm:$0xff]
    %v4196 = vld [vmem:[#allocation8 + $0x910] sm:$0xff]
    %v4197 = vld [vmem:[#allocation8 + $0x918] sm:$0xff]
    %v4198 = vld [vmem:[#allocation8 + $0x920] sm:$0xff]
    %v4199 = vld [vmem:[#allocation8 + $0x928] sm:$0xff]
    %v4200 = vld [vmem:[#allocation8 + $0x930] sm:$0xff]
    %v4201 = vld [vmem:[#allocation8 + $0x938] sm:$0xff]
    %v4202 = vld [vmem:[#allocation8 + $0x940] sm:$0xff]
    %v4203 = vld [vmem:[#allocation8 + $0x948] sm:$0xff]
    %v4204 = vld [vmem:[#allocation8 + $0x950] sm:$0xff]
    %v4205 = vld [vmem:[#allocation8 + $0x958] sm:$0xff]
    %v4206 = vld [vmem:[#allocation8 + $0x960] sm:$0xff]
    %v4207 = vld [vmem:[#allocation8 + $0x968] sm:$0xff]
    %v4208 = vld [vmem:[#allocation8 + $0x970] sm:$0xff]
    %v4209 = vld [vmem:[#allocation8 + $0x978] sm:$0xff]
    %v4210 = vld [vmem:[#allocation8 + $0x980] sm:$0xff]
    %v4211 = vld [vmem:[#allocation8 + $0x988] sm:$0xff]
    %v4212 = vld [vmem:[#allocation8 + $0x990] sm:$0xff]
    %v4213 = vld [vmem:[#allocation8 + $0x998] sm:$0xff]
    %v4214 = vld [vmem:[#allocation8 + $0x9a0] sm:$0xff]
    %v4215 = vld [vmem:[#allocation8 + $0x9a8] sm:$0xff]
    %v4216 = vld [vmem:[#allocation8 + $0x9b0] sm:$0xff]
    %v4217 = vld [vmem:[#allocation8 + $0x9b8] sm:$0xff]
    %v4218 = vld [vmem:[#allocation8 + $0x9c0] sm:$0xff]
    %v4219 = vld [vmem:[#allocation8 + $0x9c8] sm:$0xff]
    %v4220 = vld [vmem:[#allocation8 + $0x9d0] sm:$0xff]
    %v4221 = vld [vmem:[#allocation8 + $0x9d8] sm:$0xff]
    %v4222 = vld [vmem:[#allocation8 + $0x9e0] sm:$0xff]
    %v4223 = vld [vmem:[#allocation8 + $0x9e8] sm:$0xff]
    %v4224 = vld [vmem:[#allocation8 + $0x9f0] sm:$0xff]
    %v4225 = vld [vmem:[#allocation8 + $0x9f8] sm:$0xff]
    %v4226 = vld [vmem:[#allocation8 + $0xa00] sm:$0xff]
    %v4227 = vld [vmem:[#allocation8 + $0xa08] sm:$0xff]
    %v4228 = vld [vmem:[#allocation8 + $0xa10] sm:$0xff]
    %v4229 = vld [vmem:[#allocation8 + $0xa18] sm:$0xff]
    %v4230 = vld [vmem:[#allocation8 + $0xa20] sm:$0xff]
    %v4231 = vld [vmem:[#allocation8 + $0xa28] sm:$0xff]
    %v4232 = vld [vmem:[#allocation8 + $0xa30] sm:$0xff]
    %v4233 = vld [vmem:[#allocation8 + $0xa38] sm:$0xff]
    %v4234 = vld [vmem:[#allocation8 + $0xa40] sm:$0xff]
    %v4235 = vld [vmem:[#allocation8 + $0xa48] sm:$0xff]
    %v4236 = vld [vmem:[#allocation8 + $0xa50] sm:$0xff]
    %v4237 = vld [vmem:[#allocation8 + $0xa58] sm:$0xff]
    %v4238 = vld [vmem:[#allocation8 + $0xa60] sm:$0xff]
    %v4239 = vld [vmem:[#allocation8 + $0xa68] sm:$0xff]
    %v4240 = vld [vmem:[#allocation8 + $0xa70] sm:$0xff]
    %v4241 = vld [vmem:[#allocation8 + $0xa78] sm:$0xff]
    %v4242 = vld [vmem:[#allocation8 + $0xa80] sm:$0xff]
    %v4243 = vld [vmem:[#allocation8 + $0xa88] sm:$0xff]
    %v4244 = vld [vmem:[#allocation8 + $0xa90] sm:$0xff]
    %v4245 = vld [vmem:[#allocation8 + $0xa98] sm:$0xff]
    %v4246 = vld [vmem:[#allocation8 + $0xaa0] sm:$0xff]
    %v4247 = vld [vmem:[#allocation8 + $0xaa8] sm:$0xff]
    %v4248 = vld [vmem:[#allocation8 + $0xab0] sm:$0xff]
    %v4249 = vld [vmem:[#allocation8 + $0xab8] sm:$0xff]
    %v4250 = vld [vmem:[#allocation8 + $0xac0] sm:$0xff]
    %v4251 = vld [vmem:[#allocation8 + $0xac8] sm:$0xff]
    %v4252 = vld [vmem:[#allocation8 + $0xad0] sm:$0xff]
    %v4253 = vld [vmem:[#allocation8 + $0xad8] sm:$0xff]
    %v4254 = vld [vmem:[#allocation8 + $0xae0] sm:$0xff]
    %v4255 = vld [vmem:[#allocation8 + $0xae8] sm:$0xff]
    %v4256 = vld [vmem:[#allocation8 + $0xaf0] sm:$0xff]
    %v4257 = vld [vmem:[#allocation8 + $0xaf8] sm:$0xff]
    %v4258 = vld [vmem:[#allocation8 + $0xb00] sm:$0xff]
    %v4259 = vld [vmem:[#allocation8 + $0xb08] sm:$0xff]
    %v4260 = vld [vmem:[#allocation8 + $0xb10] sm:$0xff]
    %v4261 = vld [vmem:[#allocation8 + $0xb18] sm:$0xff]
    %v4262 = vld [vmem:[#allocation8 + $0xb20] sm:$0xff]
    %v4263 = vld [vmem:[#allocation8 + $0xb28] sm:$0xff]
    %v4264 = vld [vmem:[#allocation8 + $0xb30] sm:$0xff]
    %v4265 = vld [vmem:[#allocation8 + $0xb38] sm:$0xff]
    %v4266 = vld [vmem:[#allocation8 + $0xb40] sm:$0xff]
    %v4267 = vld [vmem:[#allocation8 + $0xb48] sm:$0xff]
    %v4268 = vld [vmem:[#allocation8 + $0xb50] sm:$0xff]
    %v4269 = vld [vmem:[#allocation8 + $0xb58] sm:$0xff]
    %v4270 = vld [vmem:[#allocation8 + $0xb60] sm:$0xff]
    %v4271 = vld [vmem:[#allocation8 + $0xb68] sm:$0xff]
    %v4272 = vld [vmem:[#allocation8 + $0xb70] sm:$0xff]
    %v4273 = vld [vmem:[#allocation8 + $0xb78] sm:$0xff]
    %v4274 = vld [vmem:[#allocation8 + $0xb80] sm:$0xff]
    %v4275 = vld [vmem:[#allocation8 + $0xb88] sm:$0xff]
    %v4276 = vld [vmem:[#allocation8 + $0xb90] sm:$0xff]
    %v4277 = vld [vmem:[#allocation8 + $0xb98] sm:$0xff]
    %v4278 = vld [vmem:[#allocation8 + $0xba0] sm:$0xff]
    %v4279 = vld [vmem:[#allocation8 + $0xba8] sm:$0xff]
    %v4280 = vld [vmem:[#allocation8 + $0xbb0] sm:$0xff]
    %v4281 = vld [vmem:[#allocation8 + $0xbb8] sm:$0xff]
    %v4282 = vld [vmem:[#allocation8 + $0xbc0] sm:$0xff]
    %v4283 = vld [vmem:[#allocation8 + $0xbc8] sm:$0xff]
    %v4284 = vld [vmem:[#allocation8 + $0xbd0] sm:$0xff]
    %v4285 = vld [vmem:[#allocation8 + $0xbd8] sm:$0xff]
    %v4286 = vld [vmem:[#allocation8 + $0xbe0] sm:$0xff]
    %v4287 = vld [vmem:[#allocation8 + $0xbe8] sm:$0xff]
    %v4288 = vld [vmem:[#allocation8 + $0xbf0] sm:$0xff]
    %v4289 = vld [vmem:[#allocation8 + $0xbf8] sm:$0xff]
    %v4290 = vld [vmem:[#allocation8 + $0xc00] sm:$0xff]
    %v4291 = vld [vmem:[#allocation8 + $0xc08] sm:$0xff]
    %v4292 = vld [vmem:[#allocation8 + $0xc10] sm:$0xff]
    %v4293 = vld [vmem:[#allocation8 + $0xc18] sm:$0xff]
    %v4294 = vld [vmem:[#allocation8 + $0xc20] sm:$0xff]
    %v4295 = vld [vmem:[#allocation8 + $0xc28] sm:$0xff]
    %v4296 = vld [vmem:[#allocation8 + $0xc30] sm:$0xff]
    %v4297 = vld [vmem:[#allocation8 + $0xc38] sm:$0xff]
    %v4298 = vld [vmem:[#allocation8 + $0xc40] sm:$0xff]
    %v4299 = vld [vmem:[#allocation8 + $0xc48] sm:$0xff]
    %v4300 = vld [vmem:[#allocation8 + $0xc50] sm:$0xff]
    %v4301 = vld [vmem:[#allocation8 + $0xc58] sm:$0xff]
    %v4302 = vld [vmem:[#allocation8 + $0xc60] sm:$0xff]
    %v4303 = vld [vmem:[#allocation8 + $0xc68] sm:$0xff]
    %v4304 = vld [vmem:[#allocation8 + $0xc70] sm:$0xff]
    %v4305 = vld [vmem:[#allocation8 + $0xc78] sm:$0xff]
    %v4306 = vld [vmem:[#allocation8 + $0xc80] sm:$0xff]
    %v4307 = vld [vmem:[#allocation8 + $0xc88] sm:$0xff]
    %v4308 = vld [vmem:[#allocation8 + $0xc90] sm:$0xff]
    %v4309 = vld [vmem:[#allocation8 + $0xc98] sm:$0xff]
    %v4310 = vld [vmem:[#allocation8 + $0xca0] sm:$0xff]
    %v4311 = vld [vmem:[#allocation8 + $0xca8] sm:$0xff]
    %v4312 = vld [vmem:[#allocation8 + $0xcb0] sm:$0xff]
    %v4313 = vld [vmem:[#allocation8 + $0xcb8] sm:$0xff]
    %v4314 = vld [vmem:[#allocation8 + $0xcc0] sm:$0xff]
    %v4315 = vld [vmem:[#allocation8 + $0xcc8] sm:$0xff]
    %v4316 = vld [vmem:[#allocation8 + $0xcd0] sm:$0xff]
    %v4317 = vld [vmem:[#allocation8 + $0xcd8] sm:$0xff]
    %v4318 = vld [vmem:[#allocation8 + $0xce0] sm:$0xff]
    %v4319 = vld [vmem:[#allocation8 + $0xce8] sm:$0xff]
    %v4320 = vld [vmem:[#allocation8 + $0xcf0] sm:$0xff]
    %v4321 = vld [vmem:[#allocation8 + $0xcf8] sm:$0xff]
    %v4322 = vld [vmem:[#allocation8 + $0xd00] sm:$0xff]
    %v4323 = vld [vmem:[#allocation8 + $0xd08] sm:$0xff]
    %v4324 = vld [vmem:[#allocation8 + $0xd10] sm:$0xff]
    %v4325 = vld [vmem:[#allocation8 + $0xd18] sm:$0xff]
    %v4326 = vld [vmem:[#allocation8 + $0xd20] sm:$0xff]
    %v4327 = vld [vmem:[#allocation8 + $0xd28] sm:$0xff]
    %v4328 = vld [vmem:[#allocation8 + $0xd30] sm:$0xff]
    %v4329 = vld [vmem:[#allocation8 + $0xd38] sm:$0xff]
    %v4330 = vld [vmem:[#allocation8 + $0xd40] sm:$0xff]
    %v4331 = vld [vmem:[#allocation8 + $0xd48] sm:$0xff]
    %v4332 = vld [vmem:[#allocation8 + $0xd50] sm:$0xff]
    %v4333 = vld [vmem:[#allocation8 + $0xd58] sm:$0xff]
    %v4334 = vld [vmem:[#allocation8 + $0xd60] sm:$0xff]
    %v4335 = vld [vmem:[#allocation8 + $0xd68] sm:$0xff]
    %v4336 = vld [vmem:[#allocation8 + $0xd70] sm:$0xff]
    %v4337 = vld [vmem:[#allocation8 + $0xd78] sm:$0xff]
    %v4338 = vld [vmem:[#allocation8 + $0xd80] sm:$0xff]
    %v4339 = vld [vmem:[#allocation8 + $0xd88] sm:$0xff]
    %v4340 = vld [vmem:[#allocation8 + $0xd90] sm:$0xff]
    %v4341 = vld [vmem:[#allocation8 + $0xd98] sm:$0xff]
    %v4342 = vld [vmem:[#allocation8 + $0xda0] sm:$0xff]
    %v4343 = vld [vmem:[#allocation8 + $0xda8] sm:$0xff]
    %v4344 = vld [vmem:[#allocation8 + $0xdb0] sm:$0xff]
    %v4345 = vld [vmem:[#allocation8 + $0xdb8] sm:$0xff]
    %v4346 = vld [vmem:[#allocation8 + $0xdc0] sm:$0xff]
    %v4347 = vld [vmem:[#allocation8 + $0xdc8] sm:$0xff]
    %v4348 = vld [vmem:[#allocation8 + $0xdd0] sm:$0xff]
    %v4349 = vld [vmem:[#allocation8 + $0xdd8] sm:$0xff]
    %v4350 = vld [vmem:[#allocation8 + $0xde0] sm:$0xff]
    %v4351 = vld [vmem:[#allocation8 + $0xde8] sm:$0xff]
    %v4352 = vld [vmem:[#allocation8 + $0xdf0] sm:$0xff]
    %v4353 = vld [vmem:[#allocation8 + $0xdf8] sm:$0xff]
    %v4354 = vld [vmem:[#allocation8 + $0xe00] sm:$0xff]
    %v4355 = vld [vmem:[#allocation8 + $0xe08] sm:$0xff]
    %v4356 = vld [vmem:[#allocation8 + $0xe10] sm:$0xff]
    %v4357 = vld [vmem:[#allocation8 + $0xe18] sm:$0xff]
    %v4358 = vld [vmem:[#allocation8 + $0xe20] sm:$0xff]
    %v4359 = vld [vmem:[#allocation8 + $0xe28] sm:$0xff]
    %v4360 = vld [vmem:[#allocation8 + $0xe30] sm:$0xff]
    %v4361 = vld [vmem:[#allocation8 + $0xe38] sm:$0xff]
    %v4362 = vld [vmem:[#allocation8 + $0xe40] sm:$0xff]
    %v4363 = vld [vmem:[#allocation8 + $0xe48] sm:$0xff]
    %v4364 = vld [vmem:[#allocation8 + $0xe50] sm:$0xff]
    %v4365 = vld [vmem:[#allocation8 + $0xe58] sm:$0xff]
    %v4366 = vld [vmem:[#allocation8 + $0xe60] sm:$0xff]
    %v4367 = vld [vmem:[#allocation8 + $0xe68] sm:$0xff]
    %v4368 = vld [vmem:[#allocation8 + $0xe70] sm:$0xff]
    %v4369 = vld [vmem:[#allocation8 + $0xe78] sm:$0xff]
    %v4370 = vld [vmem:[#allocation8 + $0xe80] sm:$0xff]
    %v4371 = vld [vmem:[#allocation8 + $0xe88] sm:$0xff]
    %v4372 = vld [vmem:[#allocation8 + $0xe90] sm:$0xff]
    %v4373 = vld [vmem:[#allocation8 + $0xe98] sm:$0xff]
    %v4374 = vld [vmem:[#allocation8 + $0xea0] sm:$0xff]
    %v4375 = vld [vmem:[#allocation8 + $0xea8] sm:$0xff]
    %v4376 = vld [vmem:[#allocation8 + $0xeb0] sm:$0xff]
    %v4377 = vld [vmem:[#allocation8 + $0xeb8] sm:$0xff]
    %v4378 = vld [vmem:[#allocation8 + $0xec0] sm:$0xff]
    %v4379 = vld [vmem:[#allocation8 + $0xec8] sm:$0xff]
    %v4380 = vld [vmem:[#allocation8 + $0xed0] sm:$0xff]
    %v4381 = vld [vmem:[#allocation8 + $0xed8] sm:$0xff]
    %v4382 = vld [vmem:[#allocation8 + $0xee0] sm:$0xff]
    %v4383 = vld [vmem:[#allocation8 + $0xee8] sm:$0xff]
    %v4384 = vld [vmem:[#allocation8 + $0xef0] sm:$0xff]
    %v4385 = vld [vmem:[#allocation8 + $0xef8] sm:$0xff]
    %v4386 = vld [vmem:[#allocation8 + $0xf00] sm:$0xff]
    %v4387 = vld [vmem:[#allocation8 + $0xf08] sm:$0xff]
    %v4388 = vld [vmem:[#allocation8 + $0xf10] sm:$0xff]
    %v4389 = vld [vmem:[#allocation8 + $0xf18] sm:$0xff]
    %v4390 = vld [vmem:[#allocation8 + $0xf20] sm:$0xff]
    %v4391 = vld [vmem:[#allocation8 + $0xf28] sm:$0xff]
    %v4392 = vld [vmem:[#allocation8 + $0xf30] sm:$0xff]
    %v4393 = vld [vmem:[#allocation8 + $0xf38] sm:$0xff]
    %v4394 = vld [vmem:[#allocation8 + $0xf40] sm:$0xff]
    %v4395 = vld [vmem:[#allocation8 + $0xf48] sm:$0xff]
    %v4396 = vld [vmem:[#allocation8 + $0xf50] sm:$0xff]
    %v4397 = vld [vmem:[#allocation8 + $0xf58] sm:$0xff]
    %v4398 = vld [vmem:[#allocation8 + $0xf60] sm:$0xff]
    %v4399 = vld [vmem:[#allocation8 + $0xf68] sm:$0xff]
    %v4400 = vld [vmem:[#allocation8 + $0xf70] sm:$0xff]
    %v4401 = vld [vmem:[#allocation8 + $0xf78] sm:$0xff]
    %v4402 = vld [vmem:[#allocation8 + $0xf80] sm:$0xff]
    %v4403 = vld [vmem:[#allocation8 + $0xf88] sm:$0xff]
    %v4404 = vld [vmem:[#allocation8 + $0xf90] sm:$0xff]
    %v4405 = vld [vmem:[#allocation8 + $0xf98] sm:$0xff]
    %v4406 = vld [vmem:[#allocation8 + $0xfa0] sm:$0xff]
    %v4407 = vld [vmem:[#allocation8 + $0xfa8] sm:$0xff]
    %v4408 = vld [vmem:[#allocation8 + $0xfb0] sm:$0xff]
    %v4409 = vld [vmem:[#allocation8 + $0xfb8] sm:$0xff]
    %v4410 = vld [vmem:[#allocation8 + $0xfc0] sm:$0xff]
    %v4411 = vld [vmem:[#allocation8 + $0xfc8] sm:$0xff]
    %v4412 = vld [vmem:[#allocation8 + $0xfd0] sm:$0xff]
    %v4413 = vld [vmem:[#allocation8 + $0xfd8] sm:$0xff]
    %v4414 = vld [vmem:[#allocation8 + $0xfe0] sm:$0xff]
    %v4415 = vld [vmem:[#allocation8 + $0xfe8] sm:$0xff]
    %v4416 = vld [vmem:[#allocation8 + $0xff0] sm:$0xff]
    %v4417 = vld [vmem:[#allocation8 + $0xff8] sm:$0xff]
    %v4418 = vld [vmem:[#allocation10] sm:$0xff]
    %v4420 = vlaneseq
    %v4421 = vshrl.u32 %v4420, 7
    %v4422 = vsub.s32 0, %v4421
    %v4423 = vrot.slane %v4418, %v4422
    %v4424 = vlaneseq
    %v4425 = vshrl.u32 %v4424, 7
    %v4426 = vsub.s32 1, %v4425
    %v4427 = vrot.slane %v4418, %v4426
    %v4428 = vlaneseq
    %v4429 = vshrl.u32 %v4428, 7
    %v4430 = vsub.s32 2, %v4429
    %v4431 = vrot.slane %v4418, %v4430
    %v4432 = vlaneseq
    %v4433 = vshrl.u32 %v4432, 7
    %v4434 = vsub.s32 3, %v4433
    %v4435 = vrot.slane %v4418, %v4434
    %v4436 = vlaneseq
    %v4437 = vshrl.u32 %v4436, 7
    %v4438 = vsub.s32 4, %v4437
    %v4439 = vrot.slane %v4418, %v4438
    %v4440 = vlaneseq
    %v4441 = vshrl.u32 %v4440, 7
    %v4442 = vsub.s32 5, %v4441
    %v4443 = vrot.slane %v4418, %v4442
    %v4444 = vlaneseq
    %v4445 = vshrl.u32 %v4444, 7
    %v4446 = vsub.s32 6, %v4445
    %v4447 = vrot.slane %v4418, %v4446
    %v4448 = vlaneseq
    %v4449 = vshrl.u32 %v4448, 7
    %v4450 = vsub.s32 7, %v4449
    %v4451 = vrot.slane %v4418, %v4450
    %v4972 = vunpack.c.l.b16 %v3906
    %v4973 = vunpack.c.h.b16 %v3906
    %v4974 = vunpack.c.l.b16 %v3907
    %v4975 = vunpack.c.h.b16 %v3907
    %v4976 = vunpack.c.l.b16 %v3908
    %v4977 = vunpack.c.h.b16 %v3908
    %v4978 = vunpack.c.l.b16 %v3909
    %v4979 = vunpack.c.h.b16 %v3909
    %v4980 = vunpack.c.l.b16 %v3910
    %v4981 = vunpack.c.h.b16 %v3910
    %v4982 = vunpack.c.l.b16 %v3911
    %v4983 = vunpack.c.h.b16 %v3911
    %v4984 = vunpack.c.l.b16 %v3912
    %v4985 = vunpack.c.h.b16 %v3912
    %v4986 = vunpack.c.l.b16 %v3913
    %v4987 = vunpack.c.h.b16 %v3913
    %v4988 = vunpack.c.l.b16 %v3914
    %v4989 = vunpack.c.h.b16 %v3914
    %v4990 = vunpack.c.l.b16 %v3915
    %v4991 = vunpack.c.h.b16 %v3915
    %v4992 = vunpack.c.l.b16 %v3916
    %v4993 = vunpack.c.h.b16 %v3916
    %v4994 = vunpack.c.l.b16 %v3917
    %v4995 = vunpack.c.h.b16 %v3917
    %v4996 = vunpack.c.l.b16 %v3918
    %v4997 = vunpack.c.h.b16 %v3918
    %v4998 = vunpack.c.l.b16 %v3919
    %v4999 = vunpack.c.h.b16 %v3919
    %v5000 = vunpack.c.l.b16 %v3920
    %v5001 = vunpack.c.h.b16 %v3920
    %v5002 = vunpack.c.l.b16 %v3921
    %v5003 = vunpack.c.h.b16 %v3921
    %v5004 = vunpack.c.l.b16 %v3922
    %v5005 = vunpack.c.h.b16 %v3922
    %v5006 = vunpack.c.l.b16 %v3923
    %v5007 = vunpack.c.h.b16 %v3923
    %v5008 = vunpack.c.l.b16 %v3924
    %v5009 = vunpack.c.h.b16 %v3924
    %v5010 = vunpack.c.l.b16 %v3925
    %v5011 = vunpack.c.h.b16 %v3925
    %v5012 = vunpack.c.l.b16 %v3926
    %v5013 = vunpack.c.h.b16 %v3926
    %v5014 = vunpack.c.l.b16 %v3927
    %v5015 = vunpack.c.h.b16 %v3927
    %v5016 = vunpack.c.l.b16 %v3928
    %v5017 = vunpack.c.h.b16 %v3928
    %v5018 = vunpack.c.l.b16 %v3929
    %v5019 = vunpack.c.h.b16 %v3929
    %v5020 = vunpack.c.l.b16 %v3930
    %v5021 = vunpack.c.h.b16 %v3930
    %v5022 = vunpack.c.l.b16 %v3931
    %v5023 = vunpack.c.h.b16 %v3931
    %v5024 = vunpack.c.l.b16 %v3932
    %v5025 = vunpack.c.h.b16 %v3932
    %v5026 = vunpack.c.l.b16 %v3933
    %v5027 = vunpack.c.h.b16 %v3933
    %v5028 = vunpack.c.l.b16 %v3934
    %v5029 = vunpack.c.h.b16 %v3934
    %v5030 = vunpack.c.l.b16 %v3935
    %v5031 = vunpack.c.h.b16 %v3935
    %v5032 = vunpack.c.l.b16 %v3936
    %v5033 = vunpack.c.h.b16 %v3936
    %v5034 = vunpack.c.l.b16 %v3937
    %v5035 = vunpack.c.h.b16 %v3937
    %v5036 = vunpack.c.l.b16 %v3938
    %v5037 = vunpack.c.h.b16 %v3938
    %v5038 = vunpack.c.l.b16 %v3939
    %v5039 = vunpack.c.h.b16 %v3939
    %v5040 = vunpack.c.l.b16 %v3940
    %v5041 = vunpack.c.h.b16 %v3940
    %v5042 = vunpack.c.l.b16 %v3941
    %v5043 = vunpack.c.h.b16 %v3941
    %v5044 = vunpack.c.l.b16 %v3942
    %v5045 = vunpack.c.h.b16 %v3942
    %v5046 = vunpack.c.l.b16 %v3943
    %v5047 = vunpack.c.h.b16 %v3943
    %v5048 = vunpack.c.l.b16 %v3944
    %v5049 = vunpack.c.h.b16 %v3944
    %v5050 = vunpack.c.l.b16 %v3945
    %v5051 = vunpack.c.h.b16 %v3945
    %v5052 = vunpack.c.l.b16 %v3946
    %v5053 = vunpack.c.h.b16 %v3946
    %v5054 = vunpack.c.l.b16 %v3947
    %v5055 = vunpack.c.h.b16 %v3947
    %v5056 = vunpack.c.l.b16 %v3948
    %v5057 = vunpack.c.h.b16 %v3948
    %v5058 = vunpack.c.l.b16 %v3949
    %v5059 = vunpack.c.h.b16 %v3949
    %v5060 = vunpack.c.l.b16 %v3950
    %v5061 = vunpack.c.h.b16 %v3950
    %v5062 = vunpack.c.l.b16 %v3951
    %v5063 = vunpack.c.h.b16 %v3951
    %v5064 = vunpack.c.l.b16 %v3952
    %v5065 = vunpack.c.h.b16 %v3952
    %v5066 = vunpack.c.l.b16 %v3953
    %v5067 = vunpack.c.h.b16 %v3953
    %v5068 = vunpack.c.l.b16 %v3954
    %v5069 = vunpack.c.h.b16 %v3954
    %v5070 = vunpack.c.l.b16 %v3955
    %v5071 = vunpack.c.h.b16 %v3955
    %v5072 = vunpack.c.l.b16 %v3956
    %v5073 = vunpack.c.h.b16 %v3956
    %v5074 = vunpack.c.l.b16 %v3957
    %v5075 = vunpack.c.h.b16 %v3957
    %v5076 = vunpack.c.l.b16 %v3958
    %v5077 = vunpack.c.h.b16 %v3958
    %v5078 = vunpack.c.l.b16 %v3959
    %v5079 = vunpack.c.h.b16 %v3959
    %v5080 = vunpack.c.l.b16 %v3960
    %v5081 = vunpack.c.h.b16 %v3960
    %v5082 = vunpack.c.l.b16 %v3961
    %v5083 = vunpack.c.h.b16 %v3961
    %v5084 = vunpack.c.l.b16 %v3962
    %v5085 = vunpack.c.h.b16 %v3962
    %v5086 = vunpack.c.l.b16 %v3963
    %v5087 = vunpack.c.h.b16 %v3963
    %v5088 = vunpack.c.l.b16 %v3964
    %v5089 = vunpack.c.h.b16 %v3964
    %v5090 = vunpack.c.l.b16 %v3965
    %v5091 = vunpack.c.h.b16 %v3965
    %v5092 = vunpack.c.l.b16 %v3966
    %v5093 = vunpack.c.h.b16 %v3966
    %v5094 = vunpack.c.l.b16 %v3967
    %v5095 = vunpack.c.h.b16 %v3967
    %v5096 = vunpack.c.l.b16 %v3968
    %v5097 = vunpack.c.h.b16 %v3968
    %v5098 = vunpack.c.l.b16 %v3969
    %v5099 = vunpack.c.h.b16 %v3969
    %v5100 = vunpack.c.l.b16 %v3970
    %v5101 = vunpack.c.h.b16 %v3970
    %v5102 = vunpack.c.l.b16 %v3971
    %v5103 = vunpack.c.h.b16 %v3971
    %v5104 = vunpack.c.l.b16 %v3972
    %v5105 = vunpack.c.h.b16 %v3972
    %v5106 = vunpack.c.l.b16 %v3973
    %v5107 = vunpack.c.h.b16 %v3973
    %v5108 = vunpack.c.l.b16 %v3974
    %v5109 = vunpack.c.h.b16 %v3974
    %v5110 = vunpack.c.l.b16 %v3975
    %v5111 = vunpack.c.h.b16 %v3975
    %v5112 = vunpack.c.l.b16 %v3976
    %v5113 = vunpack.c.h.b16 %v3976
    %v5114 = vunpack.c.l.b16 %v3977
    %v5115 = vunpack.c.h.b16 %v3977
    %v5116 = vunpack.c.l.b16 %v3978
    %v5117 = vunpack.c.h.b16 %v3978
    %v5118 = vunpack.c.l.b16 %v3979
    %v5119 = vunpack.c.h.b16 %v3979
    %v5120 = vunpack.c.l.b16 %v3980
    %v5121 = vunpack.c.h.b16 %v3980
    %v5122 = vunpack.c.l.b16 %v3981
    %v5123 = vunpack.c.h.b16 %v3981
    %v5124 = vunpack.c.l.b16 %v3982
    %v5125 = vunpack.c.h.b16 %v3982
    %v5126 = vunpack.c.l.b16 %v3983
    %v5127 = vunpack.c.h.b16 %v3983
    %v5128 = vunpack.c.l.b16 %v3984
    %v5129 = vunpack.c.h.b16 %v3984
    %v5130 = vunpack.c.l.b16 %v3985
    %v5131 = vunpack.c.h.b16 %v3985
    %v5132 = vunpack.c.l.b16 %v3986
    %v5133 = vunpack.c.h.b16 %v3986
    %v5134 = vunpack.c.l.b16 %v3987
    %v5135 = vunpack.c.h.b16 %v3987
    %v5136 = vunpack.c.l.b16 %v3988
    %v5137 = vunpack.c.h.b16 %v3988
    %v5138 = vunpack.c.l.b16 %v3989
    %v5139 = vunpack.c.h.b16 %v3989
    %v5140 = vunpack.c.l.b16 %v3990
    %v5141 = vunpack.c.h.b16 %v3990
    %v5142 = vunpack.c.l.b16 %v3991
    %v5143 = vunpack.c.h.b16 %v3991
    %v5144 = vunpack.c.l.b16 %v3992
    %v5145 = vunpack.c.h.b16 %v3992
    %v5146 = vunpack.c.l.b16 %v3993
    %v5147 = vunpack.c.h.b16 %v3993
    %v5148 = vunpack.c.l.b16 %v3994
    %v5149 = vunpack.c.h.b16 %v3994
    %v5150 = vunpack.c.l.b16 %v3995
    %v5151 = vunpack.c.h.b16 %v3995
    %v5152 = vunpack.c.l.b16 %v3996
    %v5153 = vunpack.c.h.b16 %v3996
    %v5154 = vunpack.c.l.b16 %v3997
    %v5155 = vunpack.c.h.b16 %v3997
    %v5156 = vunpack.c.l.b16 %v3998
    %v5157 = vunpack.c.h.b16 %v3998
    %v5158 = vunpack.c.l.b16 %v3999
    %v5159 = vunpack.c.h.b16 %v3999
    %v5160 = vunpack.c.l.b16 %v4000
    %v5161 = vunpack.c.h.b16 %v4000
    %v5162 = vunpack.c.l.b16 %v4001
    %v5163 = vunpack.c.h.b16 %v4001
    %v5164 = vunpack.c.l.b16 %v4002
    %v5165 = vunpack.c.h.b16 %v4002
    %v5166 = vunpack.c.l.b16 %v4003
    %v5167 = vunpack.c.h.b16 %v4003
    %v5168 = vunpack.c.l.b16 %v4004
    %v5169 = vunpack.c.h.b16 %v4004
    %v5170 = vunpack.c.l.b16 %v4005
    %v5171 = vunpack.c.h.b16 %v4005
    %v5172 = vunpack.c.l.b16 %v4006
    %v5173 = vunpack.c.h.b16 %v4006
    %v5174 = vunpack.c.l.b16 %v4007
    %v5175 = vunpack.c.h.b16 %v4007
    %v5176 = vunpack.c.l.b16 %v4008
    %v5177 = vunpack.c.h.b16 %v4008
    %v5178 = vunpack.c.l.b16 %v4009
    %v5179 = vunpack.c.h.b16 %v4009
    %v5180 = vunpack.c.l.b16 %v4010
    %v5181 = vunpack.c.h.b16 %v4010
    %v5182 = vunpack.c.l.b16 %v4011
    %v5183 = vunpack.c.h.b16 %v4011
    %v5184 = vunpack.c.l.b16 %v4012
    %v5185 = vunpack.c.h.b16 %v4012
    %v5186 = vunpack.c.l.b16 %v4013
    %v5187 = vunpack.c.h.b16 %v4013
    %v5188 = vunpack.c.l.b16 %v4014
    %v5189 = vunpack.c.h.b16 %v4014
    %v5190 = vunpack.c.l.b16 %v4015
    %v5191 = vunpack.c.h.b16 %v4015
    %v5192 = vunpack.c.l.b16 %v4016
    %v5193 = vunpack.c.h.b16 %v4016
    %v5194 = vunpack.c.l.b16 %v4017
    %v5195 = vunpack.c.h.b16 %v4017
    %v5196 = vunpack.c.l.b16 %v4018
    %v5197 = vunpack.c.h.b16 %v4018
    %v5198 = vunpack.c.l.b16 %v4019
    %v5199 = vunpack.c.h.b16 %v4019
    %v5200 = vunpack.c.l.b16 %v4020
    %v5201 = vunpack.c.h.b16 %v4020
    %v5202 = vunpack.c.l.b16 %v4021
    %v5203 = vunpack.c.h.b16 %v4021
    %v5204 = vunpack.c.l.b16 %v4022
    %v5205 = vunpack.c.h.b16 %v4022
    %v5206 = vunpack.c.l.b16 %v4023
    %v5207 = vunpack.c.h.b16 %v4023
    %v5208 = vunpack.c.l.b16 %v4024
    %v5209 = vunpack.c.h.b16 %v4024
    %v5210 = vunpack.c.l.b16 %v4025
    %v5211 = vunpack.c.h.b16 %v4025
    %v5212 = vunpack.c.l.b16 %v4026
    %v5213 = vunpack.c.h.b16 %v4026
    %v5214 = vunpack.c.l.b16 %v4027
    %v5215 = vunpack.c.h.b16 %v4027
    %v5216 = vunpack.c.l.b16 %v4028
    %v5217 = vunpack.c.h.b16 %v4028
    %v5218 = vunpack.c.l.b16 %v4029
    %v5219 = vunpack.c.h.b16 %v4029
    %v5220 = vunpack.c.l.b16 %v4030
    %v5221 = vunpack.c.h.b16 %v4030
    %v5222 = vunpack.c.l.b16 %v4031
    %v5223 = vunpack.c.h.b16 %v4031
    %v5224 = vunpack.c.l.b16 %v4032
    %v5225 = vunpack.c.h.b16 %v4032
    %v5226 = vunpack.c.l.b16 %v4033
    %v5227 = vunpack.c.h.b16 %v4033
    %v5228 = vunpack.c.l.b16 %v4034
    %v5229 = vunpack.c.h.b16 %v4034
    %v5230 = vunpack.c.l.b16 %v4035
    %v5231 = vunpack.c.h.b16 %v4035
    %v5232 = vunpack.c.l.b16 %v4036
    %v5233 = vunpack.c.h.b16 %v4036
    %v5234 = vunpack.c.l.b16 %v4037
    %v5235 = vunpack.c.h.b16 %v4037
    %v5236 = vunpack.c.l.b16 %v4038
    %v5237 = vunpack.c.h.b16 %v4038
    %v5238 = vunpack.c.l.b16 %v4039
    %v5239 = vunpack.c.h.b16 %v4039
    %v5240 = vunpack.c.l.b16 %v4040
    %v5241 = vunpack.c.h.b16 %v4040
    %v5242 = vunpack.c.l.b16 %v4041
    %v5243 = vunpack.c.h.b16 %v4041
    %v5244 = vunpack.c.l.b16 %v4042
    %v5245 = vunpack.c.h.b16 %v4042
    %v5246 = vunpack.c.l.b16 %v4043
    %v5247 = vunpack.c.h.b16 %v4043
    %v5248 = vunpack.c.l.b16 %v4044
    %v5249 = vunpack.c.h.b16 %v4044
    %v5250 = vunpack.c.l.b16 %v4045
    %v5251 = vunpack.c.h.b16 %v4045
    %v5252 = vunpack.c.l.b16 %v4046
    %v5253 = vunpack.c.h.b16 %v4046
    %v5254 = vunpack.c.l.b16 %v4047
    %v5255 = vunpack.c.h.b16 %v4047
    %v5256 = vunpack.c.l.b16 %v4048
    %v5257 = vunpack.c.h.b16 %v4048
    %v5258 = vunpack.c.l.b16 %v4049
    %v5259 = vunpack.c.h.b16 %v4049
    %v5260 = vunpack.c.l.b16 %v4050
    %v5261 = vunpack.c.h.b16 %v4050
    %v5262 = vunpack.c.l.b16 %v4051
    %v5263 = vunpack.c.h.b16 %v4051
    %v5264 = vunpack.c.l.b16 %v4052
    %v5265 = vunpack.c.h.b16 %v4052
    %v5266 = vunpack.c.l.b16 %v4053
    %v5267 = vunpack.c.h.b16 %v4053
    %v5268 = vunpack.c.l.b16 %v4054
    %v5269 = vunpack.c.h.b16 %v4054
    %v5270 = vunpack.c.l.b16 %v4055
    %v5271 = vunpack.c.h.b16 %v4055
    %v5272 = vunpack.c.l.b16 %v4056
    %v5273 = vunpack.c.h.b16 %v4056
    %v5274 = vunpack.c.l.b16 %v4057
    %v5275 = vunpack.c.h.b16 %v4057
    %v5276 = vunpack.c.l.b16 %v4058
    %v5277 = vunpack.c.h.b16 %v4058
    %v5278 = vunpack.c.l.b16 %v4059
    %v5279 = vunpack.c.h.b16 %v4059
    %v5280 = vunpack.c.l.b16 %v4060
    %v5281 = vunpack.c.h.b16 %v4060
    %v5282 = vunpack.c.l.b16 %v4061
    %v5283 = vunpack.c.h.b16 %v4061
    %v5284 = vunpack.c.l.b16 %v4062
    %v5285 = vunpack.c.h.b16 %v4062
    %v5286 = vunpack.c.l.b16 %v4063
    %v5287 = vunpack.c.h.b16 %v4063
    %v5288 = vunpack.c.l.b16 %v4064
    %v5289 = vunpack.c.h.b16 %v4064
    %v5290 = vunpack.c.l.b16 %v4065
    %v5291 = vunpack.c.h.b16 %v4065
    %v5292 = vunpack.c.l.b16 %v4066
    %v5293 = vunpack.c.h.b16 %v4066
    %v5294 = vunpack.c.l.b16 %v4067
    %v5295 = vunpack.c.h.b16 %v4067
    %v5296 = vunpack.c.l.b16 %v4068
    %v5297 = vunpack.c.h.b16 %v4068
    %v5298 = vunpack.c.l.b16 %v4069
    %v5299 = vunpack.c.h.b16 %v4069
    %v5300 = vunpack.c.l.b16 %v4070
    %v5301 = vunpack.c.h.b16 %v4070
    %v5302 = vunpack.c.l.b16 %v4071
    %v5303 = vunpack.c.h.b16 %v4071
    %v5304 = vunpack.c.l.b16 %v4072
    %v5305 = vunpack.c.h.b16 %v4072
    %v5306 = vunpack.c.l.b16 %v4073
    %v5307 = vunpack.c.h.b16 %v4073
    %v5308 = vunpack.c.l.b16 %v4074
    %v5309 = vunpack.c.h.b16 %v4074
    %v5310 = vunpack.c.l.b16 %v4075
    %v5311 = vunpack.c.h.b16 %v4075
    %v5312 = vunpack.c.l.b16 %v4076
    %v5313 = vunpack.c.h.b16 %v4076
    %v5314 = vunpack.c.l.b16 %v4077
    %v5315 = vunpack.c.h.b16 %v4077
    %v5316 = vunpack.c.l.b16 %v4078
    %v5317 = vunpack.c.h.b16 %v4078
    %v5318 = vunpack.c.l.b16 %v4079
    %v5319 = vunpack.c.h.b16 %v4079
    %v5320 = vunpack.c.l.b16 %v4080
    %v5321 = vunpack.c.h.b16 %v4080
    %v5322 = vunpack.c.l.b16 %v4081
    %v5323 = vunpack.c.h.b16 %v4081
    %v5324 = vunpack.c.l.b16 %v4082
    %v5325 = vunpack.c.h.b16 %v4082
    %v5326 = vunpack.c.l.b16 %v4083
    %v5327 = vunpack.c.h.b16 %v4083
    %v5328 = vunpack.c.l.b16 %v4084
    %v5329 = vunpack.c.h.b16 %v4084
    %v5330 = vunpack.c.l.b16 %v4085
    %v5331 = vunpack.c.h.b16 %v4085
    %v5332 = vunpack.c.l.b16 %v4086
    %v5333 = vunpack.c.h.b16 %v4086
    %v5334 = vunpack.c.l.b16 %v4087
    %v5335 = vunpack.c.h.b16 %v4087
    %v5336 = vunpack.c.l.b16 %v4088
    %v5337 = vunpack.c.h.b16 %v4088
    %v5338 = vunpack.c.l.b16 %v4089
    %v5339 = vunpack.c.h.b16 %v4089
    %v5340 = vunpack.c.l.b16 %v4090
    %v5341 = vunpack.c.h.b16 %v4090
    %v5342 = vunpack.c.l.b16 %v4091
    %v5343 = vunpack.c.h.b16 %v4091
    %v5344 = vunpack.c.l.b16 %v4092
    %v5345 = vunpack.c.h.b16 %v4092
    %v5346 = vunpack.c.l.b16 %v4093
    %v5347 = vunpack.c.h.b16 %v4093
    %v5348 = vunpack.c.l.b16 %v4094
    %v5349 = vunpack.c.h.b16 %v4094
    %v5350 = vunpack.c.l.b16 %v4095
    %v5351 = vunpack.c.h.b16 %v4095
    %v5352 = vunpack.c.l.b16 %v4096
    %v5353 = vunpack.c.h.b16 %v4096
    %v5354 = vunpack.c.l.b16 %v4097
    %v5355 = vunpack.c.h.b16 %v4097
    %v5356 = vunpack.c.l.b16 %v4098
    %v5357 = vunpack.c.h.b16 %v4098
    %v5358 = vunpack.c.l.b16 %v4099
    %v5359 = vunpack.c.h.b16 %v4099
    %v5360 = vunpack.c.l.b16 %v4100
    %v5361 = vunpack.c.h.b16 %v4100
    %v5362 = vunpack.c.l.b16 %v4101
    %v5363 = vunpack.c.h.b16 %v4101
    %v5364 = vunpack.c.l.b16 %v4102
    %v5365 = vunpack.c.h.b16 %v4102
    %v5366 = vunpack.c.l.b16 %v4103
    %v5367 = vunpack.c.h.b16 %v4103
    %v5368 = vunpack.c.l.b16 %v4104
    %v5369 = vunpack.c.h.b16 %v4104
    %v5370 = vunpack.c.l.b16 %v4105
    %v5371 = vunpack.c.h.b16 %v4105
    %v5372 = vunpack.c.l.b16 %v4106
    %v5373 = vunpack.c.h.b16 %v4106
    %v5374 = vunpack.c.l.b16 %v4107
    %v5375 = vunpack.c.h.b16 %v4107
    %v5376 = vunpack.c.l.b16 %v4108
    %v5377 = vunpack.c.h.b16 %v4108
    %v5378 = vunpack.c.l.b16 %v4109
    %v5379 = vunpack.c.h.b16 %v4109
    %v5380 = vunpack.c.l.b16 %v4110
    %v5381 = vunpack.c.h.b16 %v4110
    %v5382 = vunpack.c.l.b16 %v4111
    %v5383 = vunpack.c.h.b16 %v4111
    %v5384 = vunpack.c.l.b16 %v4112
    %v5385 = vunpack.c.h.b16 %v4112
    %v5386 = vunpack.c.l.b16 %v4113
    %v5387 = vunpack.c.h.b16 %v4113
    %v5388 = vunpack.c.l.b16 %v4114
    %v5389 = vunpack.c.h.b16 %v4114
    %v5390 = vunpack.c.l.b16 %v4115
    %v5391 = vunpack.c.h.b16 %v4115
    %v5392 = vunpack.c.l.b16 %v4116
    %v5393 = vunpack.c.h.b16 %v4116
    %v5394 = vunpack.c.l.b16 %v4117
    %v5395 = vunpack.c.h.b16 %v4117
    %v5396 = vunpack.c.l.b16 %v4118
    %v5397 = vunpack.c.h.b16 %v4118
    %v5398 = vunpack.c.l.b16 %v4119
    %v5399 = vunpack.c.h.b16 %v4119
    %v5400 = vunpack.c.l.b16 %v4120
    %v5401 = vunpack.c.h.b16 %v4120
    %v5402 = vunpack.c.l.b16 %v4121
    %v5403 = vunpack.c.h.b16 %v4121
    %v5404 = vunpack.c.l.b16 %v4122
    %v5405 = vunpack.c.h.b16 %v4122
    %v5406 = vunpack.c.l.b16 %v4123
    %v5407 = vunpack.c.h.b16 %v4123
    %v5408 = vunpack.c.l.b16 %v4124
    %v5409 = vunpack.c.h.b16 %v4124
    %v5410 = vunpack.c.l.b16 %v4125
    %v5411 = vunpack.c.h.b16 %v4125
    %v5412 = vunpack.c.l.b16 %v4126
    %v5413 = vunpack.c.h.b16 %v4126
    %v5414 = vunpack.c.l.b16 %v4127
    %v5415 = vunpack.c.h.b16 %v4127
    %v5416 = vunpack.c.l.b16 %v4128
    %v5417 = vunpack.c.h.b16 %v4128
    %v5418 = vunpack.c.l.b16 %v4129
    %v5419 = vunpack.c.h.b16 %v4129
    %v5420 = vunpack.c.l.b16 %v4130
    %v5421 = vunpack.c.h.b16 %v4130
    %v5422 = vunpack.c.l.b16 %v4131
    %v5423 = vunpack.c.h.b16 %v4131
    %v5424 = vunpack.c.l.b16 %v4132
    %v5425 = vunpack.c.h.b16 %v4132
    %v5426 = vunpack.c.l.b16 %v4133
    %v5427 = vunpack.c.h.b16 %v4133
    %v5428 = vunpack.c.l.b16 %v4134
    %v5429 = vunpack.c.h.b16 %v4134
    %v5430 = vunpack.c.l.b16 %v4135
    %v5431 = vunpack.c.h.b16 %v4135
    %v5432 = vunpack.c.l.b16 %v4136
    %v5433 = vunpack.c.h.b16 %v4136
    %v5434 = vunpack.c.l.b16 %v4137
    %v5435 = vunpack.c.h.b16 %v4137
    %v5436 = vunpack.c.l.b16 %v4138
    %v5437 = vunpack.c.h.b16 %v4138
    %v5438 = vunpack.c.l.b16 %v4139
    %v5439 = vunpack.c.h.b16 %v4139
    %v5440 = vunpack.c.l.b16 %v4140
    %v5441 = vunpack.c.h.b16 %v4140
    %v5442 = vunpack.c.l.b16 %v4141
    %v5443 = vunpack.c.h.b16 %v4141
    %v5444 = vunpack.c.l.b16 %v4142
    %v5445 = vunpack.c.h.b16 %v4142
    %v5446 = vunpack.c.l.b16 %v4143
    %v5447 = vunpack.c.h.b16 %v4143
    %v5448 = vunpack.c.l.b16 %v4144
    %v5449 = vunpack.c.h.b16 %v4144
    %v5450 = vunpack.c.l.b16 %v4145
    %v5451 = vunpack.c.h.b16 %v4145
    %v5452 = vunpack.c.l.b16 %v4146
    %v5453 = vunpack.c.h.b16 %v4146
    %v5454 = vunpack.c.l.b16 %v4147
    %v5455 = vunpack.c.h.b16 %v4147
    %v5456 = vunpack.c.l.b16 %v4148
    %v5457 = vunpack.c.h.b16 %v4148
    %v5458 = vunpack.c.l.b16 %v4149
    %v5459 = vunpack.c.h.b16 %v4149
    %v5460 = vunpack.c.l.b16 %v4150
    %v5461 = vunpack.c.h.b16 %v4150
    %v5462 = vunpack.c.l.b16 %v4151
    %v5463 = vunpack.c.h.b16 %v4151
    %v5464 = vunpack.c.l.b16 %v4152
    %v5465 = vunpack.c.h.b16 %v4152
    %v5466 = vunpack.c.l.b16 %v4153
    %v5467 = vunpack.c.h.b16 %v4153
    %v5468 = vunpack.c.l.b16 %v4154
    %v5469 = vunpack.c.h.b16 %v4154
    %v5470 = vunpack.c.l.b16 %v4155
    %v5471 = vunpack.c.h.b16 %v4155
    %v5472 = vunpack.c.l.b16 %v4156
    %v5473 = vunpack.c.h.b16 %v4156
    %v5474 = vunpack.c.l.b16 %v4157
    %v5475 = vunpack.c.h.b16 %v4157
    %v5476 = vunpack.c.l.b16 %v4158
    %v5477 = vunpack.c.h.b16 %v4158
    %v5478 = vunpack.c.l.b16 %v4159
    %v5479 = vunpack.c.h.b16 %v4159
    %v5480 = vunpack.c.l.b16 %v4160
    %v5481 = vunpack.c.h.b16 %v4160
    %v5482 = vunpack.c.l.b16 %v4161
    %v5483 = vunpack.c.h.b16 %v4161
    %v5484 = vunpack.c.l.b16 %v4162
    %v5485 = vunpack.c.h.b16 %v4162
    %v5486 = vunpack.c.l.b16 %v4163
    %v5487 = vunpack.c.h.b16 %v4163
    %v5488 = vunpack.c.l.b16 %v4164
    %v5489 = vunpack.c.h.b16 %v4164
    %v5490 = vunpack.c.l.b16 %v4165
    %v5491 = vunpack.c.h.b16 %v4165
    %v5492 = vunpack.c.l.b16 %v4166
    %v5493 = vunpack.c.h.b16 %v4166
    %v5494 = vunpack.c.l.b16 %v4167
    %v5495 = vunpack.c.h.b16 %v4167
    %v5496 = vunpack.c.l.b16 %v4168
    %v5497 = vunpack.c.h.b16 %v4168
    %v5498 = vunpack.c.l.b16 %v4169
    %v5499 = vunpack.c.h.b16 %v4169
    %v5500 = vunpack.c.l.b16 %v4170
    %v5501 = vunpack.c.h.b16 %v4170
    %v5502 = vunpack.c.l.b16 %v4171
    %v5503 = vunpack.c.h.b16 %v4171
    %v5504 = vunpack.c.l.b16 %v4172
    %v5505 = vunpack.c.h.b16 %v4172
    %v5506 = vunpack.c.l.b16 %v4173
    %v5507 = vunpack.c.h.b16 %v4173
    %v5508 = vunpack.c.l.b16 %v4174
    %v5509 = vunpack.c.h.b16 %v4174
    %v5510 = vunpack.c.l.b16 %v4175
    %v5511 = vunpack.c.h.b16 %v4175
    %v5512 = vunpack.c.l.b16 %v4176
    %v5513 = vunpack.c.h.b16 %v4176
    %v5514 = vunpack.c.l.b16 %v4177
    %v5515 = vunpack.c.h.b16 %v4177
    %v5516 = vunpack.c.l.b16 %v4178
    %v5517 = vunpack.c.h.b16 %v4178
    %v5518 = vunpack.c.l.b16 %v4179
    %v5519 = vunpack.c.h.b16 %v4179
    %v5520 = vunpack.c.l.b16 %v4180
    %v5521 = vunpack.c.h.b16 %v4180
    %v5522 = vunpack.c.l.b16 %v4181
    %v5523 = vunpack.c.h.b16 %v4181
    %v5524 = vunpack.c.l.b16 %v4182
    %v5525 = vunpack.c.h.b16 %v4182
    %v5526 = vunpack.c.l.b16 %v4183
    %v5527 = vunpack.c.h.b16 %v4183
    %v5528 = vunpack.c.l.b16 %v4184
    %v5529 = vunpack.c.h.b16 %v4184
    %v5530 = vunpack.c.l.b16 %v4185
    %v5531 = vunpack.c.h.b16 %v4185
    %v5532 = vunpack.c.l.b16 %v4186
    %v5533 = vunpack.c.h.b16 %v4186
    %v5534 = vunpack.c.l.b16 %v4187
    %v5535 = vunpack.c.h.b16 %v4187
    %v5536 = vunpack.c.l.b16 %v4188
    %v5537 = vunpack.c.h.b16 %v4188
    %v5538 = vunpack.c.l.b16 %v4189
    %v5539 = vunpack.c.h.b16 %v4189
    %v5540 = vunpack.c.l.b16 %v4190
    %v5541 = vunpack.c.h.b16 %v4190
    %v5542 = vunpack.c.l.b16 %v4191
    %v5543 = vunpack.c.h.b16 %v4191
    %v5544 = vunpack.c.l.b16 %v4192
    %v5545 = vunpack.c.h.b16 %v4192
    %v5546 = vunpack.c.l.b16 %v4193
    %v5547 = vunpack.c.h.b16 %v4193
    %v5548 = vunpack.c.l.b16 %v4194
    %v5549 = vunpack.c.h.b16 %v4194
    %v5550 = vunpack.c.l.b16 %v4195
    %v5551 = vunpack.c.h.b16 %v4195
    %v5552 = vunpack.c.l.b16 %v4196
    %v5553 = vunpack.c.h.b16 %v4196
    %v5554 = vunpack.c.l.b16 %v4197
    %v5555 = vunpack.c.h.b16 %v4197
    %v5556 = vunpack.c.l.b16 %v4198
    %v5557 = vunpack.c.h.b16 %v4198
    %v5558 = vunpack.c.l.b16 %v4199
    %v5559 = vunpack.c.h.b16 %v4199
    %v5560 = vunpack.c.l.b16 %v4200
    %v5561 = vunpack.c.h.b16 %v4200
    %v5562 = vunpack.c.l.b16 %v4201
    %v5563 = vunpack.c.h.b16 %v4201
    %v5564 = vunpack.c.l.b16 %v4202
    %v5565 = vunpack.c.h.b16 %v4202
    %v5566 = vunpack.c.l.b16 %v4203
    %v5567 = vunpack.c.h.b16 %v4203
    %v5568 = vunpack.c.l.b16 %v4204
    %v5569 = vunpack.c.h.b16 %v4204
    %v5570 = vunpack.c.l.b16 %v4205
    %v5571 = vunpack.c.h.b16 %v4205
    %v5572 = vunpack.c.l.b16 %v4206
    %v5573 = vunpack.c.h.b16 %v4206
    %v5574 = vunpack.c.l.b16 %v4207
    %v5575 = vunpack.c.h.b16 %v4207
    %v5576 = vunpack.c.l.b16 %v4208
    %v5577 = vunpack.c.h.b16 %v4208
    %v5578 = vunpack.c.l.b16 %v4209
    %v5579 = vunpack.c.h.b16 %v4209
    %v5580 = vunpack.c.l.b16 %v4210
    %v5581 = vunpack.c.h.b16 %v4210
    %v5582 = vunpack.c.l.b16 %v4211
    %v5583 = vunpack.c.h.b16 %v4211
    %v5584 = vunpack.c.l.b16 %v4212
    %v5585 = vunpack.c.h.b16 %v4212
    %v5586 = vunpack.c.l.b16 %v4213
    %v5587 = vunpack.c.h.b16 %v4213
    %v5588 = vunpack.c.l.b16 %v4214
    %v5589 = vunpack.c.h.b16 %v4214
    %v5590 = vunpack.c.l.b16 %v4215
    %v5591 = vunpack.c.h.b16 %v4215
    %v5592 = vunpack.c.l.b16 %v4216
    %v5593 = vunpack.c.h.b16 %v4216
    %v5594 = vunpack.c.l.b16 %v4217
    %v5595 = vunpack.c.h.b16 %v4217
    %v5596 = vunpack.c.l.b16 %v4218
    %v5597 = vunpack.c.h.b16 %v4218
    %v5598 = vunpack.c.l.b16 %v4219
    %v5599 = vunpack.c.h.b16 %v4219
    %v5600 = vunpack.c.l.b16 %v4220
    %v5601 = vunpack.c.h.b16 %v4220
    %v5602 = vunpack.c.l.b16 %v4221
    %v5603 = vunpack.c.h.b16 %v4221
    %v5604 = vunpack.c.l.b16 %v4222
    %v5605 = vunpack.c.h.b16 %v4222
    %v5606 = vunpack.c.l.b16 %v4223
    %v5607 = vunpack.c.h.b16 %v4223
    %v5608 = vunpack.c.l.b16 %v4224
    %v5609 = vunpack.c.h.b16 %v4224
    %v5610 = vunpack.c.l.b16 %v4225
    %v5611 = vunpack.c.h.b16 %v4225
    %v5612 = vunpack.c.l.b16 %v4226
    %v5613 = vunpack.c.h.b16 %v4226
    %v5614 = vunpack.c.l.b16 %v4227
    %v5615 = vunpack.c.h.b16 %v4227
    %v5616 = vunpack.c.l.b16 %v4228
    %v5617 = vunpack.c.h.b16 %v4228
    %v5618 = vunpack.c.l.b16 %v4229
    %v5619 = vunpack.c.h.b16 %v4229
    %v5620 = vunpack.c.l.b16 %v4230
    %v5621 = vunpack.c.h.b16 %v4230
    %v5622 = vunpack.c.l.b16 %v4231
    %v5623 = vunpack.c.h.b16 %v4231
    %v5624 = vunpack.c.l.b16 %v4232
    %v5625 = vunpack.c.h.b16 %v4232
    %v5626 = vunpack.c.l.b16 %v4233
    %v5627 = vunpack.c.h.b16 %v4233
    %v5628 = vunpack.c.l.b16 %v4234
    %v5629 = vunpack.c.h.b16 %v4234
    %v5630 = vunpack.c.l.b16 %v4235
    %v5631 = vunpack.c.h.b16 %v4235
    %v5632 = vunpack.c.l.b16 %v4236
    %v5633 = vunpack.c.h.b16 %v4236
    %v5634 = vunpack.c.l.b16 %v4237
    %v5635 = vunpack.c.h.b16 %v4237
    %v5636 = vunpack.c.l.b16 %v4238
    %v5637 = vunpack.c.h.b16 %v4238
    %v5638 = vunpack.c.l.b16 %v4239
    %v5639 = vunpack.c.h.b16 %v4239
    %v5640 = vunpack.c.l.b16 %v4240
    %v5641 = vunpack.c.h.b16 %v4240
    %v5642 = vunpack.c.l.b16 %v4241
    %v5643 = vunpack.c.h.b16 %v4241
    %v5644 = vunpack.c.l.b16 %v4242
    %v5645 = vunpack.c.h.b16 %v4242
    %v5646 = vunpack.c.l.b16 %v4243
    %v5647 = vunpack.c.h.b16 %v4243
    %v5648 = vunpack.c.l.b16 %v4244
    %v5649 = vunpack.c.h.b16 %v4244
    %v5650 = vunpack.c.l.b16 %v4245
    %v5651 = vunpack.c.h.b16 %v4245
    %v5652 = vunpack.c.l.b16 %v4246
    %v5653 = vunpack.c.h.b16 %v4246
    %v5654 = vunpack.c.l.b16 %v4247
    %v5655 = vunpack.c.h.b16 %v4247
    %v5656 = vunpack.c.l.b16 %v4248
    %v5657 = vunpack.c.h.b16 %v4248
    %v5658 = vunpack.c.l.b16 %v4249
    %v5659 = vunpack.c.h.b16 %v4249
    %v5660 = vunpack.c.l.b16 %v4250
    %v5661 = vunpack.c.h.b16 %v4250
    %v5662 = vunpack.c.l.b16 %v4251
    %v5663 = vunpack.c.h.b16 %v4251
    %v5664 = vunpack.c.l.b16 %v4252
    %v5665 = vunpack.c.h.b16 %v4252
    %v5666 = vunpack.c.l.b16 %v4253
    %v5667 = vunpack.c.h.b16 %v4253
    %v5668 = vunpack.c.l.b16 %v4254
    %v5669 = vunpack.c.h.b16 %v4254
    %v5670 = vunpack.c.l.b16 %v4255
    %v5671 = vunpack.c.h.b16 %v4255
    %v5672 = vunpack.c.l.b16 %v4256
    %v5673 = vunpack.c.h.b16 %v4256
    %v5674 = vunpack.c.l.b16 %v4257
    %v5675 = vunpack.c.h.b16 %v4257
    %v5676 = vunpack.c.l.b16 %v4258
    %v5677 = vunpack.c.h.b16 %v4258
    %v5678 = vunpack.c.l.b16 %v4259
    %v5679 = vunpack.c.h.b16 %v4259
    %v5680 = vunpack.c.l.b16 %v4260
    %v5681 = vunpack.c.h.b16 %v4260
    %v5682 = vunpack.c.l.b16 %v4261
    %v5683 = vunpack.c.h.b16 %v4261
    %v5684 = vunpack.c.l.b16 %v4262
    %v5685 = vunpack.c.h.b16 %v4262
    %v5686 = vunpack.c.l.b16 %v4263
    %v5687 = vunpack.c.h.b16 %v4263
    %v5688 = vunpack.c.l.b16 %v4264
    %v5689 = vunpack.c.h.b16 %v4264
    %v5690 = vunpack.c.l.b16 %v4265
    %v5691 = vunpack.c.h.b16 %v4265
    %v5692 = vunpack.c.l.b16 %v4266
    %v5693 = vunpack.c.h.b16 %v4266
    %v5694 = vunpack.c.l.b16 %v4267
    %v5695 = vunpack.c.h.b16 %v4267
    %v5696 = vunpack.c.l.b16 %v4268
    %v5697 = vunpack.c.h.b16 %v4268
    %v5698 = vunpack.c.l.b16 %v4269
    %v5699 = vunpack.c.h.b16 %v4269
    %v5700 = vunpack.c.l.b16 %v4270
    %v5701 = vunpack.c.h.b16 %v4270
    %v5702 = vunpack.c.l.b16 %v4271
    %v5703 = vunpack.c.h.b16 %v4271
    %v5704 = vunpack.c.l.b16 %v4272
    %v5705 = vunpack.c.h.b16 %v4272
    %v5706 = vunpack.c.l.b16 %v4273
    %v5707 = vunpack.c.h.b16 %v4273
    %v5708 = vunpack.c.l.b16 %v4274
    %v5709 = vunpack.c.h.b16 %v4274
    %v5710 = vunpack.c.l.b16 %v4275
    %v5711 = vunpack.c.h.b16 %v4275
    %v5712 = vunpack.c.l.b16 %v4276
    %v5713 = vunpack.c.h.b16 %v4276
    %v5714 = vunpack.c.l.b16 %v4277
    %v5715 = vunpack.c.h.b16 %v4277
    %v5716 = vunpack.c.l.b16 %v4278
    %v5717 = vunpack.c.h.b16 %v4278
    %v5718 = vunpack.c.l.b16 %v4279
    %v5719 = vunpack.c.h.b16 %v4279
    %v5720 = vunpack.c.l.b16 %v4280
    %v5721 = vunpack.c.h.b16 %v4280
    %v5722 = vunpack.c.l.b16 %v4281
    %v5723 = vunpack.c.h.b16 %v4281
    %v5724 = vunpack.c.l.b16 %v4282
    %v5725 = vunpack.c.h.b16 %v4282
    %v5726 = vunpack.c.l.b16 %v4283
    %v5727 = vunpack.c.h.b16 %v4283
    %v5728 = vunpack.c.l.b16 %v4284
    %v5729 = vunpack.c.h.b16 %v4284
    %v5730 = vunpack.c.l.b16 %v4285
    %v5731 = vunpack.c.h.b16 %v4285
    %v5732 = vunpack.c.l.b16 %v4286
    %v5733 = vunpack.c.h.b16 %v4286
    %v5734 = vunpack.c.l.b16 %v4287
    %v5735 = vunpack.c.h.b16 %v4287
    %v5736 = vunpack.c.l.b16 %v4288
    %v5737 = vunpack.c.h.b16 %v4288
    %v5738 = vunpack.c.l.b16 %v4289
    %v5739 = vunpack.c.h.b16 %v4289
    %v5740 = vunpack.c.l.b16 %v4290
    %v5741 = vunpack.c.h.b16 %v4290
    %v5742 = vunpack.c.l.b16 %v4291
    %v5743 = vunpack.c.h.b16 %v4291
    %v5744 = vunpack.c.l.b16 %v4292
    %v5745 = vunpack.c.h.b16 %v4292
    %v5746 = vunpack.c.l.b16 %v4293
    %v5747 = vunpack.c.h.b16 %v4293
    %v5748 = vunpack.c.l.b16 %v4294
    %v5749 = vunpack.c.h.b16 %v4294
    %v5750 = vunpack.c.l.b16 %v4295
    %v5751 = vunpack.c.h.b16 %v4295
    %v5752 = vunpack.c.l.b16 %v4296
    %v5753 = vunpack.c.h.b16 %v4296
    %v5754 = vunpack.c.l.b16 %v4297
    %v5755 = vunpack.c.h.b16 %v4297
    %v5756 = vunpack.c.l.b16 %v4298
    %v5757 = vunpack.c.h.b16 %v4298
    %v5758 = vunpack.c.l.b16 %v4299
    %v5759 = vunpack.c.h.b16 %v4299
    %v5760 = vunpack.c.l.b16 %v4300
    %v5761 = vunpack.c.h.b16 %v4300
    %v5762 = vunpack.c.l.b16 %v4301
    %v5763 = vunpack.c.h.b16 %v4301
    %v5764 = vunpack.c.l.b16 %v4302
    %v5765 = vunpack.c.h.b16 %v4302
    %v5766 = vunpack.c.l.b16 %v4303
    %v5767 = vunpack.c.h.b16 %v4303
    %v5768 = vunpack.c.l.b16 %v4304
    %v5769 = vunpack.c.h.b16 %v4304
    %v5770 = vunpack.c.l.b16 %v4305
    %v5771 = vunpack.c.h.b16 %v4305
    %v5772 = vunpack.c.l.b16 %v4306
    %v5773 = vunpack.c.h.b16 %v4306
    %v5774 = vunpack.c.l.b16 %v4307
    %v5775 = vunpack.c.h.b16 %v4307
    %v5776 = vunpack.c.l.b16 %v4308
    %v5777 = vunpack.c.h.b16 %v4308
    %v5778 = vunpack.c.l.b16 %v4309
    %v5779 = vunpack.c.h.b16 %v4309
    %v5780 = vunpack.c.l.b16 %v4310
    %v5781 = vunpack.c.h.b16 %v4310
    %v5782 = vunpack.c.l.b16 %v4311
    %v5783 = vunpack.c.h.b16 %v4311
    %v5784 = vunpack.c.l.b16 %v4312
    %v5785 = vunpack.c.h.b16 %v4312
    %v5786 = vunpack.c.l.b16 %v4313
    %v5787 = vunpack.c.h.b16 %v4313
    %v5788 = vunpack.c.l.b16 %v4314
    %v5789 = vunpack.c.h.b16 %v4314
    %v5790 = vunpack.c.l.b16 %v4315
    %v5791 = vunpack.c.h.b16 %v4315
    %v5792 = vunpack.c.l.b16 %v4316
    %v5793 = vunpack.c.h.b16 %v4316
    %v5794 = vunpack.c.l.b16 %v4317
    %v5795 = vunpack.c.h.b16 %v4317
    %v5796 = vunpack.c.l.b16 %v4318
    %v5797 = vunpack.c.h.b16 %v4318
    %v5798 = vunpack.c.l.b16 %v4319
    %v5799 = vunpack.c.h.b16 %v4319
    %v5800 = vunpack.c.l.b16 %v4320
    %v5801 = vunpack.c.h.b16 %v4320
    %v5802 = vunpack.c.l.b16 %v4321
    %v5803 = vunpack.c.h.b16 %v4321
    %v5804 = vunpack.c.l.b16 %v4322
    %v5805 = vunpack.c.h.b16 %v4322
    %v5806 = vunpack.c.l.b16 %v4323
    %v5807 = vunpack.c.h.b16 %v4323
    %v5808 = vunpack.c.l.b16 %v4324
    %v5809 = vunpack.c.h.b16 %v4324
    %v5810 = vunpack.c.l.b16 %v4325
    %v5811 = vunpack.c.h.b16 %v4325
    %v5812 = vunpack.c.l.b16 %v4326
    %v5813 = vunpack.c.h.b16 %v4326
    %v5814 = vunpack.c.l.b16 %v4327
    %v5815 = vunpack.c.h.b16 %v4327
    %v5816 = vunpack.c.l.b16 %v4328
    %v5817 = vunpack.c.h.b16 %v4328
    %v5818 = vunpack.c.l.b16 %v4329
    %v5819 = vunpack.c.h.b16 %v4329
    %v5820 = vunpack.c.l.b16 %v4330
    %v5821 = vunpack.c.h.b16 %v4330
    %v5822 = vunpack.c.l.b16 %v4331
    %v5823 = vunpack.c.h.b16 %v4331
    %v5824 = vunpack.c.l.b16 %v4332
    %v5825 = vunpack.c.h.b16 %v4332
    %v5826 = vunpack.c.l.b16 %v4333
    %v5827 = vunpack.c.h.b16 %v4333
    %v5828 = vunpack.c.l.b16 %v4334
    %v5829 = vunpack.c.h.b16 %v4334
    %v5830 = vunpack.c.l.b16 %v4335
    %v5831 = vunpack.c.h.b16 %v4335
    %v5832 = vunpack.c.l.b16 %v4336
    %v5833 = vunpack.c.h.b16 %v4336
    %v5834 = vunpack.c.l.b16 %v4337
    %v5835 = vunpack.c.h.b16 %v4337
    %v5836 = vunpack.c.l.b16 %v4338
    %v5837 = vunpack.c.h.b16 %v4338
    %v5838 = vunpack.c.l.b16 %v4339
    %v5839 = vunpack.c.h.b16 %v4339
    %v5840 = vunpack.c.l.b16 %v4340
    %v5841 = vunpack.c.h.b16 %v4340
    %v5842 = vunpack.c.l.b16 %v4341
    %v5843 = vunpack.c.h.b16 %v4341
    %v5844 = vunpack.c.l.b16 %v4342
    %v5845 = vunpack.c.h.b16 %v4342
    %v5846 = vunpack.c.l.b16 %v4343
    %v5847 = vunpack.c.h.b16 %v4343
    %v5848 = vunpack.c.l.b16 %v4344
    %v5849 = vunpack.c.h.b16 %v4344
    %v5850 = vunpack.c.l.b16 %v4345
    %v5851 = vunpack.c.h.b16 %v4345
    %v5852 = vunpack.c.l.b16 %v4346
    %v5853 = vunpack.c.h.b16 %v4346
    %v5854 = vunpack.c.l.b16 %v4347
    %v5855 = vunpack.c.h.b16 %v4347
    %v5856 = vunpack.c.l.b16 %v4348
    %v5857 = vunpack.c.h.b16 %v4348
    %v5858 = vunpack.c.l.b16 %v4349
    %v5859 = vunpack.c.h.b16 %v4349
    %v5860 = vunpack.c.l.b16 %v4350
    %v5861 = vunpack.c.h.b16 %v4350
    %v5862 = vunpack.c.l.b16 %v4351
    %v5863 = vunpack.c.h.b16 %v4351
    %v5864 = vunpack.c.l.b16 %v4352
    %v5865 = vunpack.c.h.b16 %v4352
    %v5866 = vunpack.c.l.b16 %v4353
    %v5867 = vunpack.c.h.b16 %v4353
    %v5868 = vunpack.c.l.b16 %v4354
    %v5869 = vunpack.c.h.b16 %v4354
    %v5870 = vunpack.c.l.b16 %v4355
    %v5871 = vunpack.c.h.b16 %v4355
    %v5872 = vunpack.c.l.b16 %v4356
    %v5873 = vunpack.c.h.b16 %v4356
    %v5874 = vunpack.c.l.b16 %v4357
    %v5875 = vunpack.c.h.b16 %v4357
    %v5876 = vunpack.c.l.b16 %v4358
    %v5877 = vunpack.c.h.b16 %v4358
    %v5878 = vunpack.c.l.b16 %v4359
    %v5879 = vunpack.c.h.b16 %v4359
    %v5880 = vunpack.c.l.b16 %v4360
    %v5881 = vunpack.c.h.b16 %v4360
    %v5882 = vunpack.c.l.b16 %v4361
    %v5883 = vunpack.c.h.b16 %v4361
    %v5884 = vunpack.c.l.b16 %v4362
    %v5885 = vunpack.c.h.b16 %v4362
    %v5886 = vunpack.c.l.b16 %v4363
    %v5887 = vunpack.c.h.b16 %v4363
    %v5888 = vunpack.c.l.b16 %v4364
    %v5889 = vunpack.c.h.b16 %v4364
    %v5890 = vunpack.c.l.b16 %v4365
    %v5891 = vunpack.c.h.b16 %v4365
    %v5892 = vunpack.c.l.b16 %v4366
    %v5893 = vunpack.c.h.b16 %v4366
    %v5894 = vunpack.c.l.b16 %v4367
    %v5895 = vunpack.c.h.b16 %v4367
    %v5896 = vunpack.c.l.b16 %v4368
    %v5897 = vunpack.c.h.b16 %v4368
    %v5898 = vunpack.c.l.b16 %v4369
    %v5899 = vunpack.c.h.b16 %v4369
    %v5900 = vunpack.c.l.b16 %v4370
    %v5901 = vunpack.c.h.b16 %v4370
    %v5902 = vunpack.c.l.b16 %v4371
    %v5903 = vunpack.c.h.b16 %v4371
    %v5904 = vunpack.c.l.b16 %v4372
    %v5905 = vunpack.c.h.b16 %v4372
    %v5906 = vunpack.c.l.b16 %v4373
    %v5907 = vunpack.c.h.b16 %v4373
    %v5908 = vunpack.c.l.b16 %v4374
    %v5909 = vunpack.c.h.b16 %v4374
    %v5910 = vunpack.c.l.b16 %v4375
    %v5911 = vunpack.c.h.b16 %v4375
    %v5912 = vunpack.c.l.b16 %v4376
    %v5913 = vunpack.c.h.b16 %v4376
    %v5914 = vunpack.c.l.b16 %v4377
    %v5915 = vunpack.c.h.b16 %v4377
    %v5916 = vunpack.c.l.b16 %v4378
    %v5917 = vunpack.c.h.b16 %v4378
    %v5918 = vunpack.c.l.b16 %v4379
    %v5919 = vunpack.c.h.b16 %v4379
    %v5920 = vunpack.c.l.b16 %v4380
    %v5921 = vunpack.c.h.b16 %v4380
    %v5922 = vunpack.c.l.b16 %v4381
    %v5923 = vunpack.c.h.b16 %v4381
    %v5924 = vunpack.c.l.b16 %v4382
    %v5925 = vunpack.c.h.b16 %v4382
    %v5926 = vunpack.c.l.b16 %v4383
    %v5927 = vunpack.c.h.b16 %v4383
    %v5928 = vunpack.c.l.b16 %v4384
    %v5929 = vunpack.c.h.b16 %v4384
    %v5930 = vunpack.c.l.b16 %v4385
    %v5931 = vunpack.c.h.b16 %v4385
    %v5932 = vunpack.c.l.b16 %v4386
    %v5933 = vunpack.c.h.b16 %v4386
    %v5934 = vunpack.c.l.b16 %v4387
    %v5935 = vunpack.c.h.b16 %v4387
    %v5936 = vunpack.c.l.b16 %v4388
    %v5937 = vunpack.c.h.b16 %v4388
    %v5938 = vunpack.c.l.b16 %v4389
    %v5939 = vunpack.c.h.b16 %v4389
    %v5940 = vunpack.c.l.b16 %v4390
    %v5941 = vunpack.c.h.b16 %v4390
    %v5942 = vunpack.c.l.b16 %v4391
    %v5943 = vunpack.c.h.b16 %v4391
    %v5944 = vunpack.c.l.b16 %v4392
    %v5945 = vunpack.c.h.b16 %v4392
    %v5946 = vunpack.c.l.b16 %v4393
    %v5947 = vunpack.c.h.b16 %v4393
    %v5948 = vunpack.c.l.b16 %v4394
    %v5949 = vunpack.c.h.b16 %v4394
    %v5950 = vunpack.c.l.b16 %v4395
    %v5951 = vunpack.c.h.b16 %v4395
    %v5952 = vunpack.c.l.b16 %v4396
    %v5953 = vunpack.c.h.b16 %v4396
    %v5954 = vunpack.c.l.b16 %v4397
    %v5955 = vunpack.c.h.b16 %v4397
    %v5956 = vunpack.c.l.b16 %v4398
    %v5957 = vunpack.c.h.b16 %v4398
    %v5958 = vunpack.c.l.b16 %v4399
    %v5959 = vunpack.c.h.b16 %v4399
    %v5960 = vunpack.c.l.b16 %v4400
    %v5961 = vunpack.c.h.b16 %v4400
    %v5962 = vunpack.c.l.b16 %v4401
    %v5963 = vunpack.c.h.b16 %v4401
    %v5964 = vunpack.c.l.b16 %v4402
    %v5965 = vunpack.c.h.b16 %v4402
    %v5966 = vunpack.c.l.b16 %v4403
    %v5967 = vunpack.c.h.b16 %v4403
    %v5968 = vunpack.c.l.b16 %v4404
    %v5969 = vunpack.c.h.b16 %v4404
    %v5970 = vunpack.c.l.b16 %v4405
    %v5971 = vunpack.c.h.b16 %v4405
    %v5972 = vunpack.c.l.b16 %v4406
    %v5973 = vunpack.c.h.b16 %v4406
    %v5974 = vunpack.c.l.b16 %v4407
    %v5975 = vunpack.c.h.b16 %v4407
    %v5976 = vunpack.c.l.b16 %v4408
    %v5977 = vunpack.c.h.b16 %v4408
    %v5978 = vunpack.c.l.b16 %v4409
    %v5979 = vunpack.c.h.b16 %v4409
    %v5980 = vunpack.c.l.b16 %v4410
    %v5981 = vunpack.c.h.b16 %v4410
    %v5982 = vunpack.c.l.b16 %v4411
    %v5983 = vunpack.c.h.b16 %v4411
    %v5984 = vunpack.c.l.b16 %v4412
    %v5985 = vunpack.c.h.b16 %v4412
    %v5986 = vunpack.c.l.b16 %v4413
    %v5987 = vunpack.c.h.b16 %v4413
    %v5988 = vunpack.c.l.b16 %v4414
    %v5989 = vunpack.c.h.b16 %v4414
    %v5990 = vunpack.c.l.b16 %v4415
    %v5991 = vunpack.c.h.b16 %v4415
    %v5992 = vunpack.c.l.b16 %v4416
    %v5993 = vunpack.c.h.b16 %v4416
    %v5994 = vunpack.c.l.b16 %v4417
    %v5995 = vunpack.c.h.b16 %v4417
    %v5996 = vpack.c.b16 %v4980, %v4972
    %v5997 = vpack.c.b16 %v4981, %v4973
    %v5998 = vpack.c.b16 %v4982, %v4974
    %v5999 = vpack.c.b16 %v4983, %v4975
    %v6000 = vpack.c.b16 %v4984, %v4976
    %v6001 = vpack.c.b16 %v4985, %v4977
    %v6002 = vpack.c.b16 %v4986, %v4978
    %v6003 = vpack.c.b16 %v4987, %v4979
    %v6004 = vpack.c.b16 %v4996, %v4988
    %v6005 = vpack.c.b16 %v4997, %v4989
    %v6006 = vpack.c.b16 %v4998, %v4990
    %v6007 = vpack.c.b16 %v4999, %v4991
    %v6008 = vpack.c.b16 %v5000, %v4992
    %v6009 = vpack.c.b16 %v5001, %v4993
    %v6010 = vpack.c.b16 %v5002, %v4994
    %v6011 = vpack.c.b16 %v5003, %v4995
    %v6012 = vpack.c.b16 %v5012, %v5004
    %v6013 = vpack.c.b16 %v5013, %v5005
    %v6014 = vpack.c.b16 %v5014, %v5006
    %v6015 = vpack.c.b16 %v5015, %v5007
    %v6016 = vpack.c.b16 %v5016, %v5008
    %v6017 = vpack.c.b16 %v5017, %v5009
    %v6018 = vpack.c.b16 %v5018, %v5010
    %v6019 = vpack.c.b16 %v5019, %v5011
    %v6020 = vpack.c.b16 %v5028, %v5020
    %v6021 = vpack.c.b16 %v5029, %v5021
    %v6022 = vpack.c.b16 %v5030, %v5022
    %v6023 = vpack.c.b16 %v5031, %v5023
    %v6024 = vpack.c.b16 %v5032, %v5024
    %v6025 = vpack.c.b16 %v5033, %v5025
    %v6026 = vpack.c.b16 %v5034, %v5026
    %v6027 = vpack.c.b16 %v5035, %v5027
    %v6028 = vpack.c.b16 %v5044, %v5036
    %v6029 = vpack.c.b16 %v5045, %v5037
    %v6030 = vpack.c.b16 %v5046, %v5038
    %v6031 = vpack.c.b16 %v5047, %v5039
    %v6032 = vpack.c.b16 %v5048, %v5040
    %v6033 = vpack.c.b16 %v5049, %v5041
    %v6034 = vpack.c.b16 %v5050, %v5042
    %v6035 = vpack.c.b16 %v5051, %v5043
    %v6036 = vpack.c.b16 %v5060, %v5052
    %v6037 = vpack.c.b16 %v5061, %v5053
    %v6038 = vpack.c.b16 %v5062, %v5054
    %v6039 = vpack.c.b16 %v5063, %v5055
    %v6040 = vpack.c.b16 %v5064, %v5056
    %v6041 = vpack.c.b16 %v5065, %v5057
    %v6042 = vpack.c.b16 %v5066, %v5058
    %v6043 = vpack.c.b16 %v5067, %v5059
    %v6044 = vpack.c.b16 %v5076, %v5068
    %v6045 = vpack.c.b16 %v5077, %v5069
    %v6046 = vpack.c.b16 %v5078, %v5070
    %v6047 = vpack.c.b16 %v5079, %v5071
    %v6048 = vpack.c.b16 %v5080, %v5072
    %v6049 = vpack.c.b16 %v5081, %v5073
    %v6050 = vpack.c.b16 %v5082, %v5074
    %v6051 = vpack.c.b16 %v5083, %v5075
    %v6052 = vpack.c.b16 %v5092, %v5084
    %v6053 = vpack.c.b16 %v5093, %v5085
    %v6054 = vpack.c.b16 %v5094, %v5086
    %v6055 = vpack.c.b16 %v5095, %v5087
    %v6056 = vpack.c.b16 %v5096, %v5088
    %v6057 = vpack.c.b16 %v5097, %v5089
    %v6058 = vpack.c.b16 %v5098, %v5090
    %v6059 = vpack.c.b16 %v5099, %v5091
    %v6060 = vpack.c.b16 %v5108, %v5100
    %v6061 = vpack.c.b16 %v5109, %v5101
    %v6062 = vpack.c.b16 %v5110, %v5102
    %v6063 = vpack.c.b16 %v5111, %v5103
    %v6064 = vpack.c.b16 %v5112, %v5104
    %v6065 = vpack.c.b16 %v5113, %v5105
    %v6066 = vpack.c.b16 %v5114, %v5106
    %v6067 = vpack.c.b16 %v5115, %v5107
    %v6068 = vpack.c.b16 %v5124, %v5116
    %v6069 = vpack.c.b16 %v5125, %v5117
    %v6070 = vpack.c.b16 %v5126, %v5118
    %v6071 = vpack.c.b16 %v5127, %v5119
    %v6072 = vpack.c.b16 %v5128, %v5120
    %v6073 = vpack.c.b16 %v5129, %v5121
    %v6074 = vpack.c.b16 %v5130, %v5122
    %v6075 = vpack.c.b16 %v5131, %v5123
    %v6076 = vpack.c.b16 %v5140, %v5132
    %v6077 = vpack.c.b16 %v5141, %v5133
    %v6078 = vpack.c.b16 %v5142, %v5134
    %v6079 = vpack.c.b16 %v5143, %v5135
    %v6080 = vpack.c.b16 %v5144, %v5136
    %v6081 = vpack.c.b16 %v5145, %v5137
    %v6082 = vpack.c.b16 %v5146, %v5138
    %v6083 = vpack.c.b16 %v5147, %v5139
    %v6084 = vpack.c.b16 %v5156, %v5148
    %v6085 = vpack.c.b16 %v5157, %v5149
    %v6086 = vpack.c.b16 %v5158, %v5150
    %v6087 = vpack.c.b16 %v5159, %v5151
    %v6088 = vpack.c.b16 %v5160, %v5152
    %v6089 = vpack.c.b16 %v5161, %v5153
    %v6090 = vpack.c.b16 %v5162, %v5154
    %v6091 = vpack.c.b16 %v5163, %v5155
    %v6092 = vpack.c.b16 %v5172, %v5164
    %v6093 = vpack.c.b16 %v5173, %v5165
    %v6094 = vpack.c.b16 %v5174, %v5166
    %v6095 = vpack.c.b16 %v5175, %v5167
    %v6096 = vpack.c.b16 %v5176, %v5168
    %v6097 = vpack.c.b16 %v5177, %v5169
    %v6098 = vpack.c.b16 %v5178, %v5170
    %v6099 = vpack.c.b16 %v5179, %v5171
    %v6100 = vpack.c.b16 %v5188, %v5180
    %v6101 = vpack.c.b16 %v5189, %v5181
    %v6102 = vpack.c.b16 %v5190, %v5182
    %v6103 = vpack.c.b16 %v5191, %v5183
    %v6104 = vpack.c.b16 %v5192, %v5184
    %v6105 = vpack.c.b16 %v5193, %v5185
    %v6106 = vpack.c.b16 %v5194, %v5186
    %v6107 = vpack.c.b16 %v5195, %v5187
    %v6108 = vpack.c.b16 %v5204, %v5196
    %v6109 = vpack.c.b16 %v5205, %v5197
    %v6110 = vpack.c.b16 %v5206, %v5198
    %v6111 = vpack.c.b16 %v5207, %v5199
    %v6112 = vpack.c.b16 %v5208, %v5200
    %v6113 = vpack.c.b16 %v5209, %v5201
    %v6114 = vpack.c.b16 %v5210, %v5202
    %v6115 = vpack.c.b16 %v5211, %v5203
    %v6116 = vpack.c.b16 %v5220, %v5212
    %v6117 = vpack.c.b16 %v5221, %v5213
    %v6118 = vpack.c.b16 %v5222, %v5214
    %v6119 = vpack.c.b16 %v5223, %v5215
    %v6120 = vpack.c.b16 %v5224, %v5216
    %v6121 = vpack.c.b16 %v5225, %v5217
    %v6122 = vpack.c.b16 %v5226, %v5218
    %v6123 = vpack.c.b16 %v5227, %v5219
    %v6124 = vpack.c.b16 %v5236, %v5228
    %v6125 = vpack.c.b16 %v5237, %v5229
    %v6126 = vpack.c.b16 %v5238, %v5230
    %v6127 = vpack.c.b16 %v5239, %v5231
    %v6128 = vpack.c.b16 %v5240, %v5232
    %v6129 = vpack.c.b16 %v5241, %v5233
    %v6130 = vpack.c.b16 %v5242, %v5234
    %v6131 = vpack.c.b16 %v5243, %v5235
    %v6132 = vpack.c.b16 %v5252, %v5244
    %v6133 = vpack.c.b16 %v5253, %v5245
    %v6134 = vpack.c.b16 %v5254, %v5246
    %v6135 = vpack.c.b16 %v5255, %v5247
    %v6136 = vpack.c.b16 %v5256, %v5248
    %v6137 = vpack.c.b16 %v5257, %v5249
    %v6138 = vpack.c.b16 %v5258, %v5250
    %v6139 = vpack.c.b16 %v5259, %v5251
    %v6140 = vpack.c.b16 %v5268, %v5260
    %v6141 = vpack.c.b16 %v5269, %v5261
    %v6142 = vpack.c.b16 %v5270, %v5262
    %v6143 = vpack.c.b16 %v5271, %v5263
    %v6144 = vpack.c.b16 %v5272, %v5264
    %v6145 = vpack.c.b16 %v5273, %v5265
    %v6146 = vpack.c.b16 %v5274, %v5266
    %v6147 = vpack.c.b16 %v5275, %v5267
    %v6148 = vpack.c.b16 %v5284, %v5276
    %v6149 = vpack.c.b16 %v5285, %v5277
    %v6150 = vpack.c.b16 %v5286, %v5278
    %v6151 = vpack.c.b16 %v5287, %v5279
    %v6152 = vpack.c.b16 %v5288, %v5280
    %v6153 = vpack.c.b16 %v5289, %v5281
    %v6154 = vpack.c.b16 %v5290, %v5282
    %v6155 = vpack.c.b16 %v5291, %v5283
    %v6156 = vpack.c.b16 %v5300, %v5292
    %v6157 = vpack.c.b16 %v5301, %v5293
    %v6158 = vpack.c.b16 %v5302, %v5294
    %v6159 = vpack.c.b16 %v5303, %v5295
    %v6160 = vpack.c.b16 %v5304, %v5296
    %v6161 = vpack.c.b16 %v5305, %v5297
    %v6162 = vpack.c.b16 %v5306, %v5298
    %v6163 = vpack.c.b16 %v5307, %v5299
    %v6164 = vpack.c.b16 %v5316, %v5308
    %v6165 = vpack.c.b16 %v5317, %v5309
    %v6166 = vpack.c.b16 %v5318, %v5310
    %v6167 = vpack.c.b16 %v5319, %v5311
    %v6168 = vpack.c.b16 %v5320, %v5312
    %v6169 = vpack.c.b16 %v5321, %v5313
    %v6170 = vpack.c.b16 %v5322, %v5314
    %v6171 = vpack.c.b16 %v5323, %v5315
    %v6172 = vpack.c.b16 %v5332, %v5324
    %v6173 = vpack.c.b16 %v5333, %v5325
    %v6174 = vpack.c.b16 %v5334, %v5326
    %v6175 = vpack.c.b16 %v5335, %v5327
    %v6176 = vpack.c.b16 %v5336, %v5328
    %v6177 = vpack.c.b16 %v5337, %v5329
    %v6178 = vpack.c.b16 %v5338, %v5330
    %v6179 = vpack.c.b16 %v5339, %v5331
    %v6180 = vpack.c.b16 %v5348, %v5340
    %v6181 = vpack.c.b16 %v5349, %v5341
    %v6182 = vpack.c.b16 %v5350, %v5342
    %v6183 = vpack.c.b16 %v5351, %v5343
    %v6184 = vpack.c.b16 %v5352, %v5344
    %v6185 = vpack.c.b16 %v5353, %v5345
    %v6186 = vpack.c.b16 %v5354, %v5346
    %v6187 = vpack.c.b16 %v5355, %v5347
    %v6188 = vpack.c.b16 %v5364, %v5356
    %v6189 = vpack.c.b16 %v5365, %v5357
    %v6190 = vpack.c.b16 %v5366, %v5358
    %v6191 = vpack.c.b16 %v5367, %v5359
    %v6192 = vpack.c.b16 %v5368, %v5360
    %v6193 = vpack.c.b16 %v5369, %v5361
    %v6194 = vpack.c.b16 %v5370, %v5362
    %v6195 = vpack.c.b16 %v5371, %v5363
    %v6196 = vpack.c.b16 %v5380, %v5372
    %v6197 = vpack.c.b16 %v5381, %v5373
    %v6198 = vpack.c.b16 %v5382, %v5374
    %v6199 = vpack.c.b16 %v5383, %v5375
    %v6200 = vpack.c.b16 %v5384, %v5376
    %v6201 = vpack.c.b16 %v5385, %v5377
    %v6202 = vpack.c.b16 %v5386, %v5378
    %v6203 = vpack.c.b16 %v5387, %v5379
    %v6204 = vpack.c.b16 %v5396, %v5388
    %v6205 = vpack.c.b16 %v5397, %v5389
    %v6206 = vpack.c.b16 %v5398, %v5390
    %v6207 = vpack.c.b16 %v5399, %v5391
    %v6208 = vpack.c.b16 %v5400, %v5392
    %v6209 = vpack.c.b16 %v5401, %v5393
    %v6210 = vpack.c.b16 %v5402, %v5394
    %v6211 = vpack.c.b16 %v5403, %v5395
    %v6212 = vpack.c.b16 %v5412, %v5404
    %v6213 = vpack.c.b16 %v5413, %v5405
    %v6214 = vpack.c.b16 %v5414, %v5406
    %v6215 = vpack.c.b16 %v5415, %v5407
    %v6216 = vpack.c.b16 %v5416, %v5408
    %v6217 = vpack.c.b16 %v5417, %v5409
    %v6218 = vpack.c.b16 %v5418, %v5410
    %v6219 = vpack.c.b16 %v5419, %v5411
    %v6220 = vpack.c.b16 %v5428, %v5420
    %v6221 = vpack.c.b16 %v5429, %v5421
    %v6222 = vpack.c.b16 %v5430, %v5422
    %v6223 = vpack.c.b16 %v5431, %v5423
    %v6224 = vpack.c.b16 %v5432, %v5424
    %v6225 = vpack.c.b16 %v5433, %v5425
    %v6226 = vpack.c.b16 %v5434, %v5426
    %v6227 = vpack.c.b16 %v5435, %v5427
    %v6228 = vpack.c.b16 %v5444, %v5436
    %v6229 = vpack.c.b16 %v5445, %v5437
    %v6230 = vpack.c.b16 %v5446, %v5438
    %v6231 = vpack.c.b16 %v5447, %v5439
    %v6232 = vpack.c.b16 %v5448, %v5440
    %v6233 = vpack.c.b16 %v5449, %v5441
    %v6234 = vpack.c.b16 %v5450, %v5442
    %v6235 = vpack.c.b16 %v5451, %v5443
    %v6236 = vpack.c.b16 %v5460, %v5452
    %v6237 = vpack.c.b16 %v5461, %v5453
    %v6238 = vpack.c.b16 %v5462, %v5454
    %v6239 = vpack.c.b16 %v5463, %v5455
    %v6240 = vpack.c.b16 %v5464, %v5456
    %v6241 = vpack.c.b16 %v5465, %v5457
    %v6242 = vpack.c.b16 %v5466, %v5458
    %v6243 = vpack.c.b16 %v5467, %v5459
    %v6244 = vpack.c.b16 %v5476, %v5468
    %v6245 = vpack.c.b16 %v5477, %v5469
    %v6246 = vpack.c.b16 %v5478, %v5470
    %v6247 = vpack.c.b16 %v5479, %v5471
    %v6248 = vpack.c.b16 %v5480, %v5472
    %v6249 = vpack.c.b16 %v5481, %v5473
    %v6250 = vpack.c.b16 %v5482, %v5474
    %v6251 = vpack.c.b16 %v5483, %v5475
    %v6252 = vpack.c.b16 %v5492, %v5484
    %v6253 = vpack.c.b16 %v5493, %v5485
    %v6254 = vpack.c.b16 %v5494, %v5486
    %v6255 = vpack.c.b16 %v5495, %v5487
    %v6256 = vpack.c.b16 %v5496, %v5488
    %v6257 = vpack.c.b16 %v5497, %v5489
    %v6258 = vpack.c.b16 %v5498, %v5490
    %v6259 = vpack.c.b16 %v5499, %v5491
    %v6260 = vpack.c.b16 %v5508, %v5500
    %v6261 = vpack.c.b16 %v5509, %v5501
    %v6262 = vpack.c.b16 %v5510, %v5502
    %v6263 = vpack.c.b16 %v5511, %v5503
    %v6264 = vpack.c.b16 %v5512, %v5504
    %v6265 = vpack.c.b16 %v5513, %v5505
    %v6266 = vpack.c.b16 %v5514, %v5506
    %v6267 = vpack.c.b16 %v5515, %v5507
    %v6268 = vpack.c.b16 %v5524, %v5516
    %v6269 = vpack.c.b16 %v5525, %v5517
    %v6270 = vpack.c.b16 %v5526, %v5518
    %v6271 = vpack.c.b16 %v5527, %v5519
    %v6272 = vpack.c.b16 %v5528, %v5520
    %v6273 = vpack.c.b16 %v5529, %v5521
    %v6274 = vpack.c.b16 %v5530, %v5522
    %v6275 = vpack.c.b16 %v5531, %v5523
    %v6276 = vpack.c.b16 %v5540, %v5532
    %v6277 = vpack.c.b16 %v5541, %v5533
    %v6278 = vpack.c.b16 %v5542, %v5534
    %v6279 = vpack.c.b16 %v5543, %v5535
    %v6280 = vpack.c.b16 %v5544, %v5536
    %v6281 = vpack.c.b16 %v5545, %v5537
    %v6282 = vpack.c.b16 %v5546, %v5538
    %v6283 = vpack.c.b16 %v5547, %v5539
    %v6284 = vpack.c.b16 %v5556, %v5548
    %v6285 = vpack.c.b16 %v5557, %v5549
    %v6286 = vpack.c.b16 %v5558, %v5550
    %v6287 = vpack.c.b16 %v5559, %v5551
    %v6288 = vpack.c.b16 %v5560, %v5552
    %v6289 = vpack.c.b16 %v5561, %v5553
    %v6290 = vpack.c.b16 %v5562, %v5554
    %v6291 = vpack.c.b16 %v5563, %v5555
    %v6292 = vpack.c.b16 %v5572, %v5564
    %v6293 = vpack.c.b16 %v5573, %v5565
    %v6294 = vpack.c.b16 %v5574, %v5566
    %v6295 = vpack.c.b16 %v5575, %v5567
    %v6296 = vpack.c.b16 %v5576, %v5568
    %v6297 = vpack.c.b16 %v5577, %v5569
    %v6298 = vpack.c.b16 %v5578, %v5570
    %v6299 = vpack.c.b16 %v5579, %v5571
    %v6300 = vpack.c.b16 %v5588, %v5580
    %v6301 = vpack.c.b16 %v5589, %v5581
    %v6302 = vpack.c.b16 %v5590, %v5582
    %v6303 = vpack.c.b16 %v5591, %v5583
    %v6304 = vpack.c.b16 %v5592, %v5584
    %v6305 = vpack.c.b16 %v5593, %v5585
    %v6306 = vpack.c.b16 %v5594, %v5586
    %v6307 = vpack.c.b16 %v5595, %v5587
    %v6308 = vpack.c.b16 %v5604, %v5596
    %v6309 = vpack.c.b16 %v5605, %v5597
    %v6310 = vpack.c.b16 %v5606, %v5598
    %v6311 = vpack.c.b16 %v5607, %v5599
    %v6312 = vpack.c.b16 %v5608, %v5600
    %v6313 = vpack.c.b16 %v5609, %v5601
    %v6314 = vpack.c.b16 %v5610, %v5602
    %v6315 = vpack.c.b16 %v5611, %v5603
    %v6316 = vpack.c.b16 %v5620, %v5612
    %v6317 = vpack.c.b16 %v5621, %v5613
    %v6318 = vpack.c.b16 %v5622, %v5614
    %v6319 = vpack.c.b16 %v5623, %v5615
    %v6320 = vpack.c.b16 %v5624, %v5616
    %v6321 = vpack.c.b16 %v5625, %v5617
    %v6322 = vpack.c.b16 %v5626, %v5618
    %v6323 = vpack.c.b16 %v5627, %v5619
    %v6324 = vpack.c.b16 %v5636, %v5628
    %v6325 = vpack.c.b16 %v5637, %v5629
    %v6326 = vpack.c.b16 %v5638, %v5630
    %v6327 = vpack.c.b16 %v5639, %v5631
    %v6328 = vpack.c.b16 %v5640, %v5632
    %v6329 = vpack.c.b16 %v5641, %v5633
    %v6330 = vpack.c.b16 %v5642, %v5634
    %v6331 = vpack.c.b16 %v5643, %v5635
    %v6332 = vpack.c.b16 %v5652, %v5644
    %v6333 = vpack.c.b16 %v5653, %v5645
    %v6334 = vpack.c.b16 %v5654, %v5646
    %v6335 = vpack.c.b16 %v5655, %v5647
    %v6336 = vpack.c.b16 %v5656, %v5648
    %v6337 = vpack.c.b16 %v5657, %v5649
    %v6338 = vpack.c.b16 %v5658, %v5650
    %v6339 = vpack.c.b16 %v5659, %v5651
    %v6340 = vpack.c.b16 %v5668, %v5660
    %v6341 = vpack.c.b16 %v5669, %v5661
    %v6342 = vpack.c.b16 %v5670, %v5662
    %v6343 = vpack.c.b16 %v5671, %v5663
    %v6344 = vpack.c.b16 %v5672, %v5664
    %v6345 = vpack.c.b16 %v5673, %v5665
    %v6346 = vpack.c.b16 %v5674, %v5666
    %v6347 = vpack.c.b16 %v5675, %v5667
    %v6348 = vpack.c.b16 %v5684, %v5676
    %v6349 = vpack.c.b16 %v5685, %v5677
    %v6350 = vpack.c.b16 %v5686, %v5678
    %v6351 = vpack.c.b16 %v5687, %v5679
    %v6352 = vpack.c.b16 %v5688, %v5680
    %v6353 = vpack.c.b16 %v5689, %v5681
    %v6354 = vpack.c.b16 %v5690, %v5682
    %v6355 = vpack.c.b16 %v5691, %v5683
    %v6356 = vpack.c.b16 %v5700, %v5692
    %v6357 = vpack.c.b16 %v5701, %v5693
    %v6358 = vpack.c.b16 %v5702, %v5694
    %v6359 = vpack.c.b16 %v5703, %v5695
    %v6360 = vpack.c.b16 %v5704, %v5696
    %v6361 = vpack.c.b16 %v5705, %v5697
    %v6362 = vpack.c.b16 %v5706, %v5698
    %v6363 = vpack.c.b16 %v5707, %v5699
    %v6364 = vpack.c.b16 %v5716, %v5708
    %v6365 = vpack.c.b16 %v5717, %v5709
    %v6366 = vpack.c.b16 %v5718, %v5710
    %v6367 = vpack.c.b16 %v5719, %v5711
    %v6368 = vpack.c.b16 %v5720, %v5712
    %v6369 = vpack.c.b16 %v5721, %v5713
    %v6370 = vpack.c.b16 %v5722, %v5714
    %v6371 = vpack.c.b16 %v5723, %v5715
    %v6372 = vpack.c.b16 %v5732, %v5724
    %v6373 = vpack.c.b16 %v5733, %v5725
    %v6374 = vpack.c.b16 %v5734, %v5726
    %v6375 = vpack.c.b16 %v5735, %v5727
    %v6376 = vpack.c.b16 %v5736, %v5728
    %v6377 = vpack.c.b16 %v5737, %v5729
    %v6378 = vpack.c.b16 %v5738, %v5730
    %v6379 = vpack.c.b16 %v5739, %v5731
    %v6380 = vpack.c.b16 %v5748, %v5740
    %v6381 = vpack.c.b16 %v5749, %v5741
    %v6382 = vpack.c.b16 %v5750, %v5742
    %v6383 = vpack.c.b16 %v5751, %v5743
    %v6384 = vpack.c.b16 %v5752, %v5744
    %v6385 = vpack.c.b16 %v5753, %v5745
    %v6386 = vpack.c.b16 %v5754, %v5746
    %v6387 = vpack.c.b16 %v5755, %v5747
    %v6388 = vpack.c.b16 %v5764, %v5756
    %v6389 = vpack.c.b16 %v5765, %v5757
    %v6390 = vpack.c.b16 %v5766, %v5758
    %v6391 = vpack.c.b16 %v5767, %v5759
    %v6392 = vpack.c.b16 %v5768, %v5760
    %v6393 = vpack.c.b16 %v5769, %v5761
    %v6394 = vpack.c.b16 %v5770, %v5762
    %v6395 = vpack.c.b16 %v5771, %v5763
    %v6396 = vpack.c.b16 %v5780, %v5772
    %v6397 = vpack.c.b16 %v5781, %v5773
    %v6398 = vpack.c.b16 %v5782, %v5774
    %v6399 = vpack.c.b16 %v5783, %v5775
    %v6400 = vpack.c.b16 %v5784, %v5776
    %v6401 = vpack.c.b16 %v5785, %v5777
    %v6402 = vpack.c.b16 %v5786, %v5778
    %v6403 = vpack.c.b16 %v5787, %v5779
    %v6404 = vpack.c.b16 %v5796, %v5788
    %v6405 = vpack.c.b16 %v5797, %v5789
    %v6406 = vpack.c.b16 %v5798, %v5790
    %v6407 = vpack.c.b16 %v5799, %v5791
    %v6408 = vpack.c.b16 %v5800, %v5792
    %v6409 = vpack.c.b16 %v5801, %v5793
    %v6410 = vpack.c.b16 %v5802, %v5794
    %v6411 = vpack.c.b16 %v5803, %v5795
    %v6412 = vpack.c.b16 %v5812, %v5804
    %v6413 = vpack.c.b16 %v5813, %v5805
    %v6414 = vpack.c.b16 %v5814, %v5806
    %v6415 = vpack.c.b16 %v5815, %v5807
    %v6416 = vpack.c.b16 %v5816, %v5808
    %v6417 = vpack.c.b16 %v5817, %v5809
    %v6418 = vpack.c.b16 %v5818, %v5810
    %v6419 = vpack.c.b16 %v5819, %v5811
    %v6420 = vpack.c.b16 %v5828, %v5820
    %v6421 = vpack.c.b16 %v5829, %v5821
    %v6422 = vpack.c.b16 %v5830, %v5822
    %v6423 = vpack.c.b16 %v5831, %v5823
    %v6424 = vpack.c.b16 %v5832, %v5824
    %v6425 = vpack.c.b16 %v5833, %v5825
    %v6426 = vpack.c.b16 %v5834, %v5826
    %v6427 = vpack.c.b16 %v5835, %v5827
    %v6428 = vpack.c.b16 %v5844, %v5836
    %v6429 = vpack.c.b16 %v5845, %v5837
    %v6430 = vpack.c.b16 %v5846, %v5838
    %v6431 = vpack.c.b16 %v5847, %v5839
    %v6432 = vpack.c.b16 %v5848, %v5840
    %v6433 = vpack.c.b16 %v5849, %v5841
    %v6434 = vpack.c.b16 %v5850, %v5842
    %v6435 = vpack.c.b16 %v5851, %v5843
    %v6436 = vpack.c.b16 %v5860, %v5852
    %v6437 = vpack.c.b16 %v5861, %v5853
    %v6438 = vpack.c.b16 %v5862, %v5854
    %v6439 = vpack.c.b16 %v5863, %v5855
    %v6440 = vpack.c.b16 %v5864, %v5856
    %v6441 = vpack.c.b16 %v5865, %v5857
    %v6442 = vpack.c.b16 %v5866, %v5858
    %v6443 = vpack.c.b16 %v5867, %v5859
    %v6444 = vpack.c.b16 %v5876, %v5868
    %v6445 = vpack.c.b16 %v5877, %v5869
    %v6446 = vpack.c.b16 %v5878, %v5870
    %v6447 = vpack.c.b16 %v5879, %v5871
    %v6448 = vpack.c.b16 %v5880, %v5872
    %v6449 = vpack.c.b16 %v5881, %v5873
    %v6450 = vpack.c.b16 %v5882, %v5874
    %v6451 = vpack.c.b16 %v5883, %v5875
    %v6452 = vpack.c.b16 %v5892, %v5884
    %v6453 = vpack.c.b16 %v5893, %v5885
    %v6454 = vpack.c.b16 %v5894, %v5886
    %v6455 = vpack.c.b16 %v5895, %v5887
    %v6456 = vpack.c.b16 %v5896, %v5888
    %v6457 = vpack.c.b16 %v5897, %v5889
    %v6458 = vpack.c.b16 %v5898, %v5890
    %v6459 = vpack.c.b16 %v5899, %v5891
    %v6460 = vpack.c.b16 %v5908, %v5900
    %v6461 = vpack.c.b16 %v5909, %v5901
    %v6462 = vpack.c.b16 %v5910, %v5902
    %v6463 = vpack.c.b16 %v5911, %v5903
    %v6464 = vpack.c.b16 %v5912, %v5904
    %v6465 = vpack.c.b16 %v5913, %v5905
    %v6466 = vpack.c.b16 %v5914, %v5906
    %v6467 = vpack.c.b16 %v5915, %v5907
    %v6468 = vpack.c.b16 %v5924, %v5916
    %v6469 = vpack.c.b16 %v5925, %v5917
    %v6470 = vpack.c.b16 %v5926, %v5918
    %v6471 = vpack.c.b16 %v5927, %v5919
    %v6472 = vpack.c.b16 %v5928, %v5920
    %v6473 = vpack.c.b16 %v5929, %v5921
    %v6474 = vpack.c.b16 %v5930, %v5922
    %v6475 = vpack.c.b16 %v5931, %v5923
    %v6476 = vpack.c.b16 %v5940, %v5932
    %v6477 = vpack.c.b16 %v5941, %v5933
    %v6478 = vpack.c.b16 %v5942, %v5934
    %v6479 = vpack.c.b16 %v5943, %v5935
    %v6480 = vpack.c.b16 %v5944, %v5936
    %v6481 = vpack.c.b16 %v5945, %v5937
    %v6482 = vpack.c.b16 %v5946, %v5938
    %v6483 = vpack.c.b16 %v5947, %v5939
    %v6484 = vpack.c.b16 %v5956, %v5948
    %v6485 = vpack.c.b16 %v5957, %v5949
    %v6486 = vpack.c.b16 %v5958, %v5950
    %v6487 = vpack.c.b16 %v5959, %v5951
    %v6488 = vpack.c.b16 %v5960, %v5952
    %v6489 = vpack.c.b16 %v5961, %v5953
    %v6490 = vpack.c.b16 %v5962, %v5954
    %v6491 = vpack.c.b16 %v5963, %v5955
    %v6492 = vpack.c.b16 %v5972, %v5964
    %v6493 = vpack.c.b16 %v5973, %v5965
    %v6494 = vpack.c.b16 %v5974, %v5966
    %v6495 = vpack.c.b16 %v5975, %v5967
    %v6496 = vpack.c.b16 %v5976, %v5968
    %v6497 = vpack.c.b16 %v5977, %v5969
    %v6498 = vpack.c.b16 %v5978, %v5970
    %v6499 = vpack.c.b16 %v5979, %v5971
    %v6500 = vpack.c.b16 %v5988, %v5980
    %v6501 = vpack.c.b16 %v5989, %v5981
    %v6502 = vpack.c.b16 %v5990, %v5982
    %v6503 = vpack.c.b16 %v5991, %v5983
    %v6504 = vpack.c.b16 %v5992, %v5984
    %v6505 = vpack.c.b16 %v5993, %v5985
    %v6506 = vpack.c.b16 %v5994, %v5986
    %v6507 = vpack.c.b16 %v5995, %v5987
    %7020 = vmatprep.subr.bf16.mxu0 %v5997
    %7021 = vmatpush1.bf16.msra.mxu0 %v5996
    %7022 = vmatprep.subr.bf16.mxu0 %v6005
    %7023 = vmatpush1.bf16.msra.mxu0 %v6004
    %7024 = vmatprep.subr.bf16.mxu0 %v6013
    %7025 = vmatpush1.bf16.msra.mxu0 %v6012
    %7026 = vmatprep.subr.bf16.mxu0 %v6021
    %7027 = vmatpush1.bf16.msra.mxu0 %v6020
    %7028 = vmatprep.subr.bf16.mxu0 %v6029
    %7029 = vmatpush1.bf16.msra.mxu0 %v6028
    %7030 = vmatprep.subr.bf16.mxu0 %v6037
    %7031 = vmatpush1.bf16.msra.mxu0 %v6036
    %7032 = vmatprep.subr.bf16.mxu0 %v6045
    %7033 = vmatpush1.bf16.msra.mxu0 %v6044
    %7034 = vmatprep.subr.bf16.mxu0 %v6053
    %7035 = vmatpush1.bf16.msra.mxu0 %v6052
    %7036 = vmatprep.subr.bf16.mxu0 %v6061
    %7037 = vmatpush1.bf16.msra.mxu0 %v6060
    %7038 = vmatprep.subr.bf16.mxu0 %v6069
    %7039 = vmatpush1.bf16.msra.mxu0 %v6068
    %7040 = vmatprep.subr.bf16.mxu0 %v6077
    %7041 = vmatpush1.bf16.msra.mxu0 %v6076
    %7042 = vmatprep.subr.bf16.mxu0 %v6085
    %7043 = vmatpush1.bf16.msra.mxu0 %v6084
    %7044 = vmatprep.subr.bf16.mxu0 %v6093
    %7045 = vmatpush1.bf16.msra.mxu0 %v6092
    %7046 = vmatprep.subr.bf16.mxu0 %v6101
    %7047 = vmatpush1.bf16.msra.mxu0 %v6100
    %7048 = vmatprep.subr.bf16.mxu0 %v6109
    %7049 = vmatpush1.bf16.msra.mxu0 %v6108
    %7050 = vmatprep.subr.bf16.mxu0 %v6117
    %7051 = vmatpush1.bf16.msra.mxu0 %v6116
    %7052 = vmatprep.mubr.bf16.mxu0 %v3899
    %7053 = vmatmul.mubr.bf16.gmra.mrb[0].mxu0 %v3898
    %v7054 = vpop.f32.mrb[0].mxu0
    %v7055 = vadd.f32 %v4423, %v7054
    %v7056 = vpop.f32.mrb[0].mxu0
    %v7057 = vadd.f32 %v4427, %v7056
    %v7058 = vpop.f32.mrb[0].mxu0
    %v7059 = vpop.f32.mrb[0].mxu0
    %7060 = vdwg.mxu0
    %7061 = vmatprep.subr.bf16.mxu0 %v6125
    %7062 = vmatpush1.bf16.msra.mxu0 %v6124
    %7063 = vmatprep.subr.bf16.mxu0 %v6133
    %7064 = vmatpush1.bf16.msra.mxu0 %v6132
    %7065 = vmatprep.subr.bf16.mxu0 %v6141
    %7066 = vmatpush1.bf16.msra.mxu0 %v6140
    %7067 = vmatprep.subr.bf16.mxu0 %v6149
    %7068 = vmatpush1.bf16.msra.mxu0 %v6148
    %7069 = vmatprep.subr.bf16.mxu0 %v6157
    %7070 = vmatpush1.bf16.msra.mxu0 %v6156
    %7071 = vmatprep.subr.bf16.mxu0 %v6165
    %7072 = vmatpush1.bf16.msra.mxu0 %v6164
    %7073 = vmatprep.subr.bf16.mxu0 %v6173
    %7074 = vmatpush1.bf16.msra.mxu0 %v6172
    %7075 = vmatprep.subr.bf16.mxu0 %v6181
    %7076 = vmatpush1.bf16.msra.mxu0 %v6180
    %7077 = vmatprep.subr.bf16.mxu0 %v6189
    %7078 = vmatpush1.bf16.msra.mxu0 %v6188
    %7079 = vmatprep.subr.bf16.mxu0 %v6197
    %7080 = vmatpush1.bf16.msra.mxu0 %v6196
    %7081 = vmatprep.subr.bf16.mxu0 %v6205
    %7082 = vmatpush1.bf16.msra.mxu0 %v6204
    %7083 = vmatprep.subr.bf16.mxu0 %v6213
    %7084 = vmatpush1.bf16.msra.mxu0 %v6212
    %7085 = vmatprep.subr.bf16.mxu0 %v6221
    %7086 = vmatpush1.bf16.msra.mxu0 %v6220
    %7087 = vmatprep.subr.bf16.mxu0 %v6229
    %7088 = vmatpush1.bf16.msra.mxu0 %v6228
    %7089 = vmatprep.subr.bf16.mxu0 %v6237
    %7090 = vmatpush1.bf16.msra.mxu0 %v6236
    %7091 = vmatprep.subr.bf16.mxu0 %v6245
    %7092 = vmatpush1.bf16.msra.mxu0 %v6244
    %7093 = vmatprep.mubr.bf16.mxu0 %v3901
    %7094 = vmatmul.mubr.bf16.gmra.mrb[0].mxu0 %v3900
    %v7095 = vpop.f32.mrb[0].mxu0
    %v7096 = vadd.f32 %v7055, %v7095
    %v7097 = vpop.f32.mrb[0].mxu0
    %v7098 = vadd.f32 %v7057, %v7097
    %v7099 = vpop.f32.mrb[0].mxu0
    %v7100 = vpop.f32.mrb[0].mxu0
    %7101 = vdwg.mxu0
    %7102 = vmatprep.subr.bf16.mxu0 %v6253
    %7103 = vmatpush1.bf16.msra.mxu0 %v6252
    %7104 = vmatprep.subr.bf16.mxu0 %v6261
    %7105 = vmatpush1.bf16.msra.mxu0 %v6260
    %7106 = vmatprep.subr.bf16.mxu0 %v6269
    %7107 = vmatpush1.bf16.msra.mxu0 %v6268
    %7108 = vmatprep.subr.bf16.mxu0 %v6277
    %7109 = vmatpush1.bf16.msra.mxu0 %v6276
    %7110 = vmatprep.subr.bf16.mxu0 %v6285
    %7111 = vmatpush1.bf16.msra.mxu0 %v6284
    %7112 = vmatprep.subr.bf16.mxu0 %v6293
    %7113 = vmatpush1.bf16.msra.mxu0 %v6292
    %7114 = vmatprep.subr.bf16.mxu0 %v6301
    %7115 = vmatpush1.bf16.msra.mxu0 %v6300
    %7116 = vmatprep.subr.bf16.mxu0 %v6309
    %7117 = vmatpush1.bf16.msra.mxu0 %v6308
    %7118 = vmatprep.subr.bf16.mxu0 %v6317
    %7119 = vmatpush1.bf16.msra.mxu0 %v6316
    %7120 = vmatprep.subr.bf16.mxu0 %v6325
    %7121 = vmatpush1.bf16.msra.mxu0 %v6324
    %7122 = vmatprep.subr.bf16.mxu0 %v6333
    %7123 = vmatpush1.bf16.msra.mxu0 %v6332
    %7124 = vmatprep.subr.bf16.mxu0 %v6341
    %7125 = vmatpush1.bf16.msra.mxu0 %v6340
    %7126 = vmatprep.subr.bf16.mxu0 %v6349
    %7127 = vmatpush1.bf16.msra.mxu0 %v6348
    %7128 = vmatprep.subr.bf16.mxu0 %v6357
    %7129 = vmatpush1.bf16.msra.mxu0 %v6356
    %7130 = vmatprep.subr.bf16.mxu0 %v6365
    %7131 = vmatpush1.bf16.msra.mxu0 %v6364
    %7132 = vmatprep.subr.bf16.mxu0 %v6373
    %7133 = vmatpush1.bf16.msra.mxu0 %v6372
    %7134 = vmatprep.mubr.bf16.mxu0 %v3903
    %7135 = vmatmul.mubr.bf16.gmra.mrb[0].mxu0 %v3902
    %v7136 = vpop.f32.mrb[0].mxu0
    %v7137 = vadd.f32 %v7096, %v7136
    %v7138 = vpop.f32.mrb[0].mxu0
    %v7139 = vadd.f32 %v7098, %v7138
    %v7140 = vpop.f32.mrb[0].mxu0
    %v7141 = vpop.f32.mrb[0].mxu0
    %7142 = vdwg.mxu0
    %7143 = vmatprep.subr.bf16.mxu0 %v6381
    %7144 = vmatpush1.bf16.msra.mxu0 %v6380
    %7145 = vmatprep.subr.bf16.mxu0 %v6389
    %7146 = vmatpush1.bf16.msra.mxu0 %v6388
    %7147 = vmatprep.subr.bf16.mxu0 %v6397
    %7148 = vmatpush1.bf16.msra.mxu0 %v6396
    %7149 = vmatprep.subr.bf16.mxu0 %v6405
    %7150 = vmatpush1.bf16.msra.mxu0 %v6404
    %7151 = vmatprep.subr.bf16.mxu0 %v6413
    %7152 = vmatpush1.bf16.msra.mxu0 %v6412
    %7153 = vmatprep.subr.bf16.mxu0 %v6421
    %7154 = vmatpush1.bf16.msra.mxu0 %v6420
    %7155 = vmatprep.subr.bf16.mxu0 %v6429
    %7156 = vmatpush1.bf16.msra.mxu0 %v6428
    %7157 = vmatprep.subr.bf16.mxu0 %v6437
    %7158 = vmatpush1.bf16.msra.mxu0 %v6436
    %7159 = vmatprep.subr.bf16.mxu0 %v6445
    %7160 = vmatpush1.bf16.msra.mxu0 %v6444
    %7161 = vmatprep.subr.bf16.mxu0 %v6453
    %7162 = vmatpush1.bf16.msra.mxu0 %v6452
    %7163 = vmatprep.subr.bf16.mxu0 %v6461
    %7164 = vmatpush1.bf16.msra.mxu0 %v6460
    %7165 = vmatprep.subr.bf16.mxu0 %v6469
    %7166 = vmatpush1.bf16.msra.mxu0 %v6468
    %7167 = vmatprep.subr.bf16.mxu0 %v6477
    %7168 = vmatpush1.bf16.msra.mxu0 %v6476
    %7169 = vmatprep.subr.bf16.mxu0 %v6485
    %7170 = vmatpush1.bf16.msra.mxu0 %v6484
    %7171 = vmatprep.subr.bf16.mxu0 %v6493
    %7172 = vmatpush1.bf16.msra.mxu0 %v6492
    %7173 = vmatprep.subr.bf16.mxu0 %v6501
    %7174 = vmatpush1.bf16.msra.mxu0 %v6500
    %7175 = vmatprep.mubr.bf16.mxu0 %v3905
    %7176 = vmatmul.mubr.bf16.gmra.mrb[0].mxu0 %v3904
    %v7177 = vpop.f32.mrb[0].mxu0
    %v7178 = vadd.f32 %v7137, %v7177
    %v7179 = vpop.f32.mrb[0].mxu0
    %v7180 = vadd.f32 %v7139, %v7179
    %v7181 = vpop.f32.mrb[0].mxu0
    %v7182 = vpop.f32.mrb[0].mxu0
    %7183 = vdwg.mxu0
    %7184 = vmatprep.subr.bf16.mxu0 %v5999
    %7185 = vmatpush1.bf16.msra.mxu0 %v5998
    %7186 = vmatprep.subr.bf16.mxu0 %v6007
    %7187 = vmatpush1.bf16.msra.mxu0 %v6006
    %7188 = vmatprep.subr.bf16.mxu0 %v6015
    %7189 = vmatpush1.bf16.msra.mxu0 %v6014
    %7190 = vmatprep.subr.bf16.mxu0 %v6023
    %7191 = vmatpush1.bf16.msra.mxu0 %v6022
    %7192 = vmatprep.subr.bf16.mxu0 %v6031
    %7193 = vmatpush1.bf16.msra.mxu0 %v6030
    %7194 = vmatprep.subr.bf16.mxu0 %v6039
    %7195 = vmatpush1.bf16.msra.mxu0 %v6038
    %7196 = vmatprep.subr.bf16.mxu0 %v6047
    %7197 = vmatpush1.bf16.msra.mxu0 %v6046
    %7198 = vmatprep.subr.bf16.mxu0 %v6055
    %7199 = vmatpush1.bf16.msra.mxu0 %v6054
    %7200 = vmatprep.subr.bf16.mxu0 %v6063
    %7201 = vmatpush1.bf16.msra.mxu0 %v6062
    %7202 = vmatprep.subr.bf16.mxu0 %v6071
    %7203 = vmatpush1.bf16.msra.mxu0 %v6070
    %7204 = vmatprep.subr.bf16.mxu0 %v6079
    %7205 = vmatpush1.bf16.msra.mxu0 %v6078
    %7206 = vmatprep.subr.bf16.mxu0 %v6087
    %7207 = vmatpush1.bf16.msra.mxu0 %v6086
    %7208 = vmatprep.subr.bf16.mxu0 %v6095
    %7209 = vmatpush1.bf16.msra.mxu0 %v6094
    %7210 = vmatprep.subr.bf16.mxu0 %v6103
    %7211 = vmatpush1.bf16.msra.mxu0 %v6102
    %7212 = vmatprep.subr.bf16.mxu0 %v6111
    %7213 = vmatpush1.bf16.msra.mxu0 %v6110
    %7214 = vmatprep.subr.bf16.mxu0 %v6119
    %7215 = vmatpush1.bf16.msra.mxu0 %v6118
    %7216 = vmatprep.mubr.bf16.mxu0 %v3899
    %7217 = vmatmul.mubr.bf16.gmra.mrb[0].mxu0 %v3898
    %v7218 = vpop.f32.mrb[0].mxu0
    %v7219 = vadd.f32 %v4431, %v7218
    %v7220 = vpop.f32.mrb[0].mxu0
    %v7221 = vadd.f32 %v4435, %v7220
    %v7222 = vpop.f32.mrb[0].mxu0
    %v7223 = vpop.f32.mrb[0].mxu0
    %7224 = vdwg.mxu0
    %7225 = vmatprep.subr.bf16.mxu0 %v6127
    %7226 = vmatpush1.bf16.msra.mxu0 %v6126
    %7227 = vmatprep.subr.bf16.mxu0 %v6135
    %7228 = vmatpush1.bf16.msra.mxu0 %v6134
    %7229 = vmatprep.subr.bf16.mxu0 %v6143
    %7230 = vmatpush1.bf16.msra.mxu0 %v6142
    %7231 = vmatprep.subr.bf16.mxu0 %v6151
    %7232 = vmatpush1.bf16.msra.mxu0 %v6150
    %7233 = vmatprep.subr.bf16.mxu0 %v6159
    %7234 = vmatpush1.bf16.msra.mxu0 %v6158
    %7235 = vmatprep.subr.bf16.mxu0 %v6167
    %7236 = vmatpush1.bf16.msra.mxu0 %v6166
    %7237 = vmatprep.subr.bf16.mxu0 %v6175
    %7238 = vmatpush1.bf16.msra.mxu0 %v6174
    %7239 = vmatprep.subr.bf16.mxu0 %v6183
    %7240 = vmatpush1.bf16.msra.mxu0 %v6182
    %7241 = vmatprep.subr.bf16.mxu0 %v6191
    %7242 = vmatpush1.bf16.msra.mxu0 %v6190
    %7243 = vmatprep.subr.bf16.mxu0 %v6199
    %7244 = vmatpush1.bf16.msra.mxu0 %v6198
    %7245 = vmatprep.subr.bf16.mxu0 %v6207
    %7246 = vmatpush1.bf16.msra.mxu0 %v6206
    %7247 = vmatprep.subr.bf16.mxu0 %v6215
    %7248 = vmatpush1.bf16.msra.mxu0 %v6214
    %7249 = vmatprep.subr.bf16.mxu0 %v6223
    %7250 = vmatpush1.bf16.msra.mxu0 %v6222
    %7251 = vmatprep.subr.bf16.mxu0 %v6231
    %7252 = vmatpush1.bf16.msra.mxu0 %v6230
    %7253 = vmatprep.subr.bf16.mxu0 %v6239
    %7254 = vmatpush1.bf16.msra.mxu0 %v6238
    %7255 = vmatprep.subr.bf16.mxu0 %v6247
    %7256 = vmatpush1.bf16.msra.mxu0 %v6246
    %7257 = vmatprep.mubr.bf16.mxu0 %v3901
    %7258 = vmatmul.mubr.bf16.gmra.mrb[0].mxu0 %v3900
    %v7259 = vpop.f32.mrb[0].mxu0
    %v7260 = vadd.f32 %v7219, %v7259
    %v7261 = vpop.f32.mrb[0].mxu0
    %v7262 = vadd.f32 %v7221, %v7261
    %v7263 = vpop.f32.mrb[0].mxu0
    %v7264 = vpop.f32.mrb[0].mxu0
    %7265 = vdwg.mxu0
    %7266 = vmatprep.subr.bf16.mxu0 %v6255
    %7267 = vmatpush1.bf16.msra.mxu0 %v6254
    %7268 = vmatprep.subr.bf16.mxu0 %v6263
    %7269 = vmatpush1.bf16.msra.mxu0 %v6262
    %7270 = vmatprep.subr.bf16.mxu0 %v6271
    %7271 = vmatpush1.bf16.msra.mxu0 %v6270
    %7272 = vmatprep.subr.bf16.mxu0 %v6279
    %7273 = vmatpush1.bf16.msra.mxu0 %v6278
    %7274 = vmatprep.subr.bf16.mxu0 %v6287
    %7275 = vmatpush1.bf16.msra.mxu0 %v6286
    %7276 = vmatprep.subr.bf16.mxu0 %v6295
    %7277 = vmatpush1.bf16.msra.mxu0 %v6294
    %7278 = vmatprep.subr.bf16.mxu0 %v6303
    %7279 = vmatpush1.bf16.msra.mxu0 %v6302
    %7280 = vmatprep.subr.bf16.mxu0 %v6311
    %7281 = vmatpush1.bf16.msra.mxu0 %v6310
    %7282 = vmatprep.subr.bf16.mxu0 %v6319
    %7283 = vmatpush1.bf16.msra.mxu0 %v6318
    %7284 = vmatprep.subr.bf16.mxu0 %v6327
    %7285 = vmatpush1.bf16.msra.mxu0 %v6326
    %7286 = vmatprep.subr.bf16.mxu0 %v6335
    %7287 = vmatpush1.bf16.msra.mxu0 %v6334
    %7288 = vmatprep.subr.bf16.mxu0 %v6343
    %7289 = vmatpush1.bf16.msra.mxu0 %v6342
    %7290 = vmatprep.subr.bf16.mxu0 %v6351
    %7291 = vmatpush1.bf16.msra.mxu0 %v6350
    %7292 = vmatprep.subr.bf16.mxu0 %v6359
    %7293 = vmatpush1.bf16.msra.mxu0 %v6358
    %7294 = vmatprep.subr.bf16.mxu0 %v6367
    %7295 = vmatpush1.bf16.msra.mxu0 %v6366
    %7296 = vmatprep.subr.bf16.mxu0 %v6375
    %7297 = vmatpush1.bf16.msra.mxu0 %v6374
    %7298 = vmatprep.mubr.bf16.mxu0 %v3903
    %7299 = vmatmul.mubr.bf16.gmra.mrb[0].mxu0 %v3902
    %v7300 = vpop.f32.mrb[0].mxu0
    %v7301 = vadd.f32 %v7260, %v7300
    %v7302 = vpop.f32.mrb[0].mxu0
    %v7303 = vadd.f32 %v7262, %v7302
    %v7304 = vpop.f32.mrb[0].mxu0
    %v7305 = vpop.f32.mrb[0].mxu0
    %7306 = vdwg.mxu0
    %7307 = vmatprep.subr.bf16.mxu0 %v6383
    %7308 = vmatpush1.bf16.msra.mxu0 %v6382
    %7309 = vmatprep.subr.bf16.mxu0 %v6391
    %7310 = vmatpush1.bf16.msra.mxu0 %v6390
    %7311 = vmatprep.subr.bf16.mxu0 %v6399
    %7312 = vmatpush1.bf16.msra.mxu0 %v6398
    %7313 = vmatprep.subr.bf16.mxu0 %v6407
    %7314 = vmatpush1.bf16.msra.mxu0 %v6406
    %7315 = vmatprep.subr.bf16.mxu0 %v6415
    %7316 = vmatpush1.bf16.msra.mxu0 %v6414
    %7317 = vmatprep.subr.bf16.mxu0 %v6423
    %7318 = vmatpush1.bf16.msra.mxu0 %v6422
    %7319 = vmatprep.subr.bf16.mxu0 %v6431
    %7320 = vmatpush1.bf16.msra.mxu0 %v6430
    %7321 = vmatprep.subr.bf16.mxu0 %v6439
    %7322 = vmatpush1.bf16.msra.mxu0 %v6438
    %7323 = vmatprep.subr.bf16.mxu0 %v6447
    %7324 = vmatpush1.bf16.msra.mxu0 %v6446
    %7325 = vmatprep.subr.bf16.mxu0 %v6455
    %7326 = vmatpush1.bf16.msra.mxu0 %v6454
    %7327 = vmatprep.subr.bf16.mxu0 %v6463
    %7328 = vmatpush1.bf16.msra.mxu0 %v6462
    %7329 = vmatprep.subr.bf16.mxu0 %v6471
    %7330 = vmatpush1.bf16.msra.mxu0 %v6470
    %7331 = vmatprep.subr.bf16.mxu0 %v6479
    %7332 = vmatpush1.bf16.msra.mxu0 %v6478
    %7333 = vmatprep.subr.bf16.mxu0 %v6487
    %7334 = vmatpush1.bf16.msra.mxu0 %v6486
    %7335 = vmatprep.subr.bf16.mxu0 %v6495
    %7336 = vmatpush1.bf16.msra.mxu0 %v6494
    %7337 = vmatprep.subr.bf16.mxu0 %v6503
    %7338 = vmatpush1.bf16.msra.mxu0 %v6502
    %7339 = vmatprep.mubr.bf16.mxu0 %v3905
    %7340 = vmatmul.mubr.bf16.gmra.mrb[0].mxu0 %v3904
    %v7341 = vpop.f32.mrb[0].mxu0
    %v7342 = vadd.f32 %v7301, %v7341
    %v7343 = vpop.f32.mrb[0].mxu0
    %v7344 = vadd.f32 %v7303, %v7343
    %v7345 = vpop.f32.mrb[0].mxu0
    %v7346 = vpop.f32.mrb[0].mxu0
    %7347 = vdwg.mxu0
    %7348 = vmatprep.subr.bf16.mxu0 %v6001
    %7349 = vmatpush1.bf16.msra.mxu0 %v6000
    %7350 = vmatprep.subr.bf16.mxu0 %v6009
    %7351 = vmatpush1.bf16.msra.mxu0 %v6008
    %7352 = vmatprep.subr.bf16.mxu0 %v6017
    %7353 = vmatpush1.bf16.msra.mxu0 %v6016
    %7354 = vmatprep.subr.bf16.mxu0 %v6025
    %7355 = vmatpush1.bf16.msra.mxu0 %v6024
    %7356 = vmatprep.subr.bf16.mxu0 %v6033
    %7357 = vmatpush1.bf16.msra.mxu0 %v6032
    %7358 = vmatprep.subr.bf16.mxu0 %v6041
    %7359 = vmatpush1.bf16.msra.mxu0 %v6040
    %7360 = vmatprep.subr.bf16.mxu0 %v6049
    %7361 = vmatpush1.bf16.msra.mxu0 %v6048
    %7362 = vmatprep.subr.bf16.mxu0 %v6057
    %7363 = vmatpush1.bf16.msra.mxu0 %v6056
    %7364 = vmatprep.subr.bf16.mxu0 %v6065
    %7365 = vmatpush1.bf16.msra.mxu0 %v6064
    %7366 = vmatprep.subr.bf16.mxu0 %v6073
    %7367 = vmatpush1.bf16.msra.mxu0 %v6072
    %7368 = vmatprep.subr.bf16.mxu0 %v6081
    %7369 = vmatpush1.bf16.msra.mxu0 %v6080
    %7370 = vmatprep.subr.bf16.mxu0 %v6089
    %7371 = vmatpush1.bf16.msra.mxu0 %v6088
    %7372 = vmatprep.subr.bf16.mxu0 %v6097
    %7373 = vmatpush1.bf16.msra.mxu0 %v6096
    %7374 = vmatprep.subr.bf16.mxu0 %v6105
    %7375 = vmatpush1.bf16.msra.mxu0 %v6104
    %7376 = vmatprep.subr.bf16.mxu0 %v6113
    %7377 = vmatpush1.bf16.msra.mxu0 %v6112
    %7378 = vmatprep.subr.bf16.mxu0 %v6121
    %7379 = vmatpush1.bf16.msra.mxu0 %v6120
    %7380 = vmatprep.mubr.bf16.mxu0 %v3899
    %7381 = vmatmul.mubr.bf16.gmra.mrb[0].mxu0 %v3898
    %v7382 = vpop.f32.mrb[0].mxu0
    %v7383 = vadd.f32 %v4439, %v7382
    %v7384 = vpop.f32.mrb[0].mxu0
    %v7385 = vadd.f32 %v4443, %v7384
    %v7386 = vpop.f32.mrb[0].mxu0
    %v7387 = vpop.f32.mrb[0].mxu0
    %7388 = vdwg.mxu0
    %7389 = vmatprep.subr.bf16.mxu0 %v6129
    %7390 = vmatpush1.bf16.msra.mxu0 %v6128
    %7391 = vmatprep.subr.bf16.mxu0 %v6137
    %7392 = vmatpush1.bf16.msra.mxu0 %v6136
    %7393 = vmatprep.subr.bf16.mxu0 %v6145
    %7394 = vmatpush1.bf16.msra.mxu0 %v6144
    %7395 = vmatprep.subr.bf16.mxu0 %v6153
    %7396 = vmatpush1.bf16.msra.mxu0 %v6152
    %7397 = vmatprep.subr.bf16.mxu0 %v6161
    %7398 = vmatpush1.bf16.msra.mxu0 %v6160
    %7399 = vmatprep.subr.bf16.mxu0 %v6169
    %7400 = vmatpush1.bf16.msra.mxu0 %v6168
    %7401 = vmatprep.subr.bf16.mxu0 %v6177
    %7402 = vmatpush1.bf16.msra.mxu0 %v6176
    %7403 = vmatprep.subr.bf16.mxu0 %v6185
    %7404 = vmatpush1.bf16.msra.mxu0 %v6184
    %7405 = vmatprep.subr.bf16.mxu0 %v6193
    %7406 = vmatpush1.bf16.msra.mxu0 %v6192
    %7407 = vmatprep.subr.bf16.mxu0 %v6201
    %7408 = vmatpush1.bf16.msra.mxu0 %v6200
    %7409 = vmatprep.subr.bf16.mxu0 %v6209
    %7410 = vmatpush1.bf16.msra.mxu0 %v6208
    %7411 = vmatprep.subr.bf16.mxu0 %v6217
    %7412 = vmatpush1.bf16.msra.mxu0 %v6216
    %7413 = vmatprep.subr.bf16.mxu0 %v6225
    %7414 = vmatpush1.bf16.msra.mxu0 %v6224
    %7415 = vmatprep.subr.bf16.mxu0 %v6233
    %7416 = vmatpush1.bf16.msra.mxu0 %v6232
    %7417 = vmatprep.subr.bf16.mxu0 %v6241
    %7418 = vmatpush1.bf16.msra.mxu0 %v6240
    %7419 = vmatprep.subr.bf16.mxu0 %v6249
    %7420 = vmatpush1.bf16.msra.mxu0 %v6248
    %7421 = vmatprep.mubr.bf16.mxu0 %v3901
    %7422 = vmatmul.mubr.bf16.gmra.mrb[0].mxu0 %v3900
    %v7423 = vpop.f32.mrb[0].mxu0
    %v7424 = vadd.f32 %v7383, %v7423
    %v7425 = vpop.f32.mrb[0].mxu0
    %v7426 = vadd.f32 %v7385, %v7425
    %v7427 = vpop.f32.mrb[0].mxu0
    %v7428 = vpop.f32.mrb[0].mxu0
    %7429 = vdwg.mxu0
    %7430 = vmatprep.subr.bf16.mxu0 %v6257
    %7431 = vmatpush1.bf16.msra.mxu0 %v6256
    %7432 = vmatprep.subr.bf16.mxu0 %v6265
    %7433 = vmatpush1.bf16.msra.mxu0 %v6264
    %7434 = vmatprep.subr.bf16.mxu0 %v6273
    %7435 = vmatpush1.bf16.msra.mxu0 %v6272
    %7436 = vmatprep.subr.bf16.mxu0 %v6281
    %7437 = vmatpush1.bf16.msra.mxu0 %v6280
    %7438 = vmatprep.subr.bf16.mxu0 %v6289
    %7439 = vmatpush1.bf16.msra.mxu0 %v6288
    %7440 = vmatprep.subr.bf16.mxu0 %v6297
    %7441 = vmatpush1.bf16.msra.mxu0 %v6296
    %7442 = vmatprep.subr.bf16.mxu0 %v6305
    %7443 = vmatpush1.bf16.msra.mxu0 %v6304
    %7444 = vmatprep.subr.bf16.mxu0 %v6313
    %7445 = vmatpush1.bf16.msra.mxu0 %v6312
    %7446 = vmatprep.subr.bf16.mxu0 %v6321
    %7447 = vmatpush1.bf16.msra.mxu0 %v6320
    %7448 = vmatprep.subr.bf16.mxu0 %v6329
    %7449 = vmatpush1.bf16.msra.mxu0 %v6328
    %7450 = vmatprep.subr.bf16.mxu0 %v6337
    %7451 = vmatpush1.bf16.msra.mxu0 %v6336
    %7452 = vmatprep.subr.bf16.mxu0 %v6345
    %7453 = vmatpush1.bf16.msra.mxu0 %v6344
    %7454 = vmatprep.subr.bf16.mxu0 %v6353
    %7455 = vmatpush1.bf16.msra.mxu0 %v6352
    %7456 = vmatprep.subr.bf16.mxu0 %v6361
    %7457 = vmatpush1.bf16.msra.mxu0 %v6360
    %7458 = vmatprep.subr.bf16.mxu0 %v6369
    %7459 = vmatpush1.bf16.msra.mxu0 %v6368
    %7460 = vmatprep.subr.bf16.mxu0 %v6377
    %7461 = vmatpush1.bf16.msra.mxu0 %v6376
    %7462 = vmatprep.mubr.bf16.mxu0 %v3903
    %7463 = vmatmul.mubr.bf16.gmra.mrb[0].mxu0 %v3902
    %v7464 = vpop.f32.mrb[0].mxu0
    %v7465 = vadd.f32 %v7424, %v7464
    %v7466 = vpop.f32.mrb[0].mxu0
    %v7467 = vadd.f32 %v7426, %v7466
    %v7468 = vpop.f32.mrb[0].mxu0
    %v7469 = vpop.f32.mrb[0].mxu0
    %7470 = vdwg.mxu0
    %7471 = vmatprep.subr.bf16.mxu0 %v6385
    %7472 = vmatpush1.bf16.msra.mxu0 %v6384
    %7473 = vmatprep.subr.bf16.mxu0 %v6393
    %7474 = vmatpush1.bf16.msra.mxu0 %v6392
    %7475 = vmatprep.subr.bf16.mxu0 %v6401
    %7476 = vmatpush1.bf16.msra.mxu0 %v6400
    %7477 = vmatprep.subr.bf16.mxu0 %v6409
    %7478 = vmatpush1.bf16.msra.mxu0 %v6408
    %7479 = vmatprep.subr.bf16.mxu0 %v6417
    %7480 = vmatpush1.bf16.msra.mxu0 %v6416
    %7481 = vmatprep.subr.bf16.mxu0 %v6425
    %7482 = vmatpush1.bf16.msra.mxu0 %v6424
    %7483 = vmatprep.subr.bf16.mxu0 %v6433
    %7484 = vmatpush1.bf16.msra.mxu0 %v6432
    %7485 = vmatprep.subr.bf16.mxu0 %v6441
    %7486 = vmatpush1.bf16.msra.mxu0 %v6440
    %7487 = vmatprep.subr.bf16.mxu0 %v6449
    %7488 = vmatpush1.bf16.msra.mxu0 %v6448
    %7489 = vmatprep.subr.bf16.mxu0 %v6457
    %7490 = vmatpush1.bf16.msra.mxu0 %v6456
    %7491 = vmatprep.subr.bf16.mxu0 %v6465
    %7492 = vmatpush1.bf16.msra.mxu0 %v6464
    %7493 = vmatprep.subr.bf16.mxu0 %v6473
    %7494 = vmatpush1.bf16.msra.mxu0 %v6472
    %7495 = vmatprep.subr.bf16.mxu0 %v6481
    %7496 = vmatpush1.bf16.msra.mxu0 %v6480
    %7497 = vmatprep.subr.bf16.mxu0 %v6489
    %7498 = vmatpush1.bf16.msra.mxu0 %v6488
    %7499 = vmatprep.subr.bf16.mxu0 %v6497
    %7500 = vmatpush1.bf16.msra.mxu0 %v6496
    %7501 = vmatprep.subr.bf16.mxu0 %v6505
    %7502 = vmatpush1.bf16.msra.mxu0 %v6504
    %7503 = vmatprep.mubr.bf16.mxu0 %v3905
    %7504 = vmatmul.mubr.bf16.gmra.mrb[0].mxu0 %v3904
    %v7505 = vpop.f32.mrb[0].mxu0
    %v7506 = vadd.f32 %v7465, %v7505
    %v7507 = vpop.f32.mrb[0].mxu0
    %v7508 = vadd.f32 %v7467, %v7507
    %v7509 = vpop.f32.mrb[0].mxu0
    %v7510 = vpop.f32.mrb[0].mxu0
    %7511 = vdwg.mxu0
    %7512 = vmatprep.subr.bf16.mxu0 %v6003
    %7513 = vmatpush1.bf16.msra.mxu0 %v6002
    %7514 = vmatprep.subr.bf16.mxu0 %v6011
    %7515 = vmatpush1.bf16.msra.mxu0 %v6010
    %7516 = vmatprep.subr.bf16.mxu0 %v6019
    %7517 = vmatpush1.bf16.msra.mxu0 %v6018
    %7518 = vmatprep.subr.bf16.mxu0 %v6027
    %7519 = vmatpush1.bf16.msra.mxu0 %v6026
    %7520 = vmatprep.subr.bf16.mxu0 %v6035
    %7521 = vmatpush1.bf16.msra.mxu0 %v6034
    %7522 = vmatprep.subr.bf16.mxu0 %v6043
    %7523 = vmatpush1.bf16.msra.mxu0 %v6042
    %7524 = vmatprep.subr.bf16.mxu0 %v6051
    %7525 = vmatpush1.bf16.msra.mxu0 %v6050
    %7526 = vmatprep.subr.bf16.mxu0 %v6059
    %7527 = vmatpush1.bf16.msra.mxu0 %v6058
    %7528 = vmatprep.subr.bf16.mxu0 %v6067
    %7529 = vmatpush1.bf16.msra.mxu0 %v6066
    %7530 = vmatprep.subr.bf16.mxu0 %v6075
    %7531 = vmatpush1.bf16.msra.mxu0 %v6074
    %7532 = vmatprep.subr.bf16.mxu0 %v6083
    %7533 = vmatpush1.bf16.msra.mxu0 %v6082
    %7534 = vmatprep.subr.bf16.mxu0 %v6091
    %7535 = vmatpush1.bf16.msra.mxu0 %v6090
    %7536 = vmatprep.subr.bf16.mxu0 %v6099
    %7537 = vmatpush1.bf16.msra.mxu0 %v6098
    %7538 = vmatprep.subr.bf16.mxu0 %v6107
    %7539 = vmatpush1.bf16.msra.mxu0 %v6106
    %7540 = vmatprep.subr.bf16.mxu0 %v6115
    %7541 = vmatpush1.bf16.msra.mxu0 %v6114
    %7542 = vmatprep.subr.bf16.mxu0 %v6123
    %7543 = vmatpush1.bf16.msra.mxu0 %v6122
    %7544 = vmatprep.mubr.bf16.mxu0 %v3899
    %7545 = vmatmul.mubr.bf16.gmra.mrb[0].mxu0 %v3898
    %v7546 = vpop.f32.mrb[0].mxu0
    %v7547 = vadd.f32 %v4447, %v7546
    %v7548 = vpop.f32.mrb[0].mxu0
    %v7549 = vadd.f32 %v4451, %v7548
    %v7550 = vpop.f32.mrb[0].mxu0
    %v7551 = vpop.f32.mrb[0].mxu0
    %7552 = vdwg.mxu0
    %7553 = vmatprep.subr.bf16.mxu0 %v6131
    %7554 = vmatpush1.bf16.msra.mxu0 %v6130
    %7555 = vmatprep.subr.bf16.mxu0 %v6139
    %7556 = vmatpush1.bf16.msra.mxu0 %v6138
    %7557 = vmatprep.subr.bf16.mxu0 %v6147
    %7558 = vmatpush1.bf16.msra.mxu0 %v6146
    %7559 = vmatprep.subr.bf16.mxu0 %v6155
    %7560 = vmatpush1.bf16.msra.mxu0 %v6154
    %7561 = vmatprep.subr.bf16.mxu0 %v6163
    %7562 = vmatpush1.bf16.msra.mxu0 %v6162
    %7563 = vmatprep.subr.bf16.mxu0 %v6171
    %7564 = vmatpush1.bf16.msra.mxu0 %v6170
    %7565 = vmatprep.subr.bf16.mxu0 %v6179
    %7566 = vmatpush1.bf16.msra.mxu0 %v6178
    %7567 = vmatprep.subr.bf16.mxu0 %v6187
    %7568 = vmatpush1.bf16.msra.mxu0 %v6186
    %7569 = vmatprep.subr.bf16.mxu0 %v6195
    %7570 = vmatpush1.bf16.msra.mxu0 %v6194
    %7571 = vmatprep.subr.bf16.mxu0 %v6203
    %7572 = vmatpush1.bf16.msra.mxu0 %v6202
    %7573 = vmatprep.subr.bf16.mxu0 %v6211
    %7574 = vmatpush1.bf16.msra.mxu0 %v6210
    %7575 = vmatprep.subr.bf16.mxu0 %v6219
    %7576 = vmatpush1.bf16.msra.mxu0 %v6218
    %7577 = vmatprep.subr.bf16.mxu0 %v6227
    %7578 = vmatpush1.bf16.msra.mxu0 %v6226
    %7579 = vmatprep.subr.bf16.mxu0 %v6235
    %7580 = vmatpush1.bf16.msra.mxu0 %v6234
    %7581 = vmatprep.subr.bf16.mxu0 %v6243
    %7582 = vmatpush1.bf16.msra.mxu0 %v6242
    %7583 = vmatprep.subr.bf16.mxu0 %v6251
    %7584 = vmatpush1.bf16.msra.mxu0 %v6250
    %7585 = vmatprep.mubr.bf16.mxu0 %v3901
    %7586 = vmatmul.mubr.bf16.gmra.mrb[0].mxu0 %v3900
    %v7587 = vpop.f32.mrb[0].mxu0
    %v7588 = vadd.f32 %v7547, %v7587
    %v7589 = vpop.f32.mrb[0].mxu0
    %v7590 = vadd.f32 %v7549, %v7589
    %v7591 = vpop.f32.mrb[0].mxu0
    %v7592 = vpop.f32.mrb[0].mxu0
    %7593 = vdwg.mxu0
    %7594 = vmatprep.subr.bf16.mxu0 %v6259
    %7595 = vmatpush1.bf16.msra.mxu0 %v6258
    %7596 = vmatprep.subr.bf16.mxu0 %v6267
    %7597 = vmatpush1.bf16.msra.mxu0 %v6266
    %7598 = vmatprep.subr.bf16.mxu0 %v6275
    %7599 = vmatpush1.bf16.msra.mxu0 %v6274
    %7600 = vmatprep.subr.bf16.mxu0 %v6283
    %7601 = vmatpush1.bf16.msra.mxu0 %v6282
    %7602 = vmatprep.subr.bf16.mxu0 %v6291
    %7603 = vmatpush1.bf16.msra.mxu0 %v6290
    %7604 = vmatprep.subr.bf16.mxu0 %v6299
    %7605 = vmatpush1.bf16.msra.mxu0 %v6298
    %7606 = vmatprep.subr.bf16.mxu0 %v6307
    %7607 = vmatpush1.bf16.msra.mxu0 %v6306
    %7608 = vmatprep.subr.bf16.mxu0 %v6315
    %7609 = vmatpush1.bf16.msra.mxu0 %v6314
    %7610 = vmatprep.subr.bf16.mxu0 %v6323
    %7611 = vmatpush1.bf16.msra.mxu0 %v6322
    %7612 = vmatprep.subr.bf16.mxu0 %v6331
    %7613 = vmatpush1.bf16.msra.mxu0 %v6330
    %7614 = vmatprep.subr.bf16.mxu0 %v6339
    %7615 = vmatpush1.bf16.msra.mxu0 %v6338
    %7616 = vmatprep.subr.bf16.mxu0 %v6347
    %7617 = vmatpush1.bf16.msra.mxu0 %v6346
    %7618 = vmatprep.subr.bf16.mxu0 %v6355
    %7619 = vmatpush1.bf16.msra.mxu0 %v6354
    %7620 = vmatprep.subr.bf16.mxu0 %v6363
    %7621 = vmatpush1.bf16.msra.mxu0 %v6362
    %7622 = vmatprep.subr.bf16.mxu0 %v6371
    %7623 = vmatpush1.bf16.msra.mxu0 %v6370
    %7624 = vmatprep.subr.bf16.mxu0 %v6379
    %7625 = vmatpush1.bf16.msra.mxu0 %v6378
    %7626 = vmatprep.mubr.bf16.mxu0 %v3903
    %7627 = vmatmul.mubr.bf16.gmra.mrb[0].mxu0 %v3902
    %v7628 = vpop.f32.mrb[0].mxu0
    %v7629 = vadd.f32 %v7588, %v7628
    %v7630 = vpop.f32.mrb[0].mxu0
    %v7631 = vadd.f32 %v7590, %v7630
    %v7632 = vpop.f32.mrb[0].mxu0
    %v7633 = vpop.f32.mrb[0].mxu0
    %7634 = vdwg.mxu0
    %7635 = vmatprep.subr.bf16.mxu0 %v6387
    %7636 = vmatpush1.bf16.msra.mxu0 %v6386
    %7637 = vmatprep.subr.bf16.mxu0 %v6395
    %7638 = vmatpush1.bf16.msra.mxu0 %v6394
    %7639 = vmatprep.subr.bf16.mxu0 %v6403
    %7640 = vmatpush1.bf16.msra.mxu0 %v6402
    %7641 = vmatprep.subr.bf16.mxu0 %v6411
    %7642 = vmatpush1.bf16.msra.mxu0 %v6410
    %7643 = vmatprep.subr.bf16.mxu0 %v6419
    %7644 = vmatpush1.bf16.msra.mxu0 %v6418
    %7645 = vmatprep.subr.bf16.mxu0 %v6427
    %7646 = vmatpush1.bf16.msra.mxu0 %v6426
    %7647 = vmatprep.subr.bf16.mxu0 %v6435
    %7648 = vmatpush1.bf16.msra.mxu0 %v6434
    %7649 = vmatprep.subr.bf16.mxu0 %v6443
    %7650 = vmatpush1.bf16.msra.mxu0 %v6442
    %7651 = vmatprep.subr.bf16.mxu0 %v6451
    %7652 = vmatpush1.bf16.msra.mxu0 %v6450
    %7653 = vmatprep.subr.bf16.mxu0 %v6459
    %7654 = vmatpush1.bf16.msra.mxu0 %v6458
    %7655 = vmatprep.subr.bf16.mxu0 %v6467
    %7656 = vmatpush1.bf16.msra.mxu0 %v6466
    %7657 = vmatprep.subr.bf16.mxu0 %v6475
    %7658 = vmatpush1.bf16.msra.mxu0 %v6474
    %7659 = vmatprep.subr.bf16.mxu0 %v6483
    %7660 = vmatpush1.bf16.msra.mxu0 %v6482
    %7661 = vmatprep.subr.bf16.mxu0 %v6491
    %7662 = vmatpush1.bf16.msra.mxu0 %v6490
    %7663 = vmatprep.subr.bf16.mxu0 %v6499
    %7664 = vmatpush1.bf16.msra.mxu0 %v6498
    %7665 = vmatprep.subr.bf16.mxu0 %v6507
    %7666 = vmatpush1.bf16.msra.mxu0 %v6506
    %7667 = vmatprep.mubr.bf16.mxu0 %v3905
    %7668 = vmatmul.mubr.bf16.gmra.mrb[0].mxu0 %v3904
    %v7669 = vpop.f32.mrb[0].mxu0
    %v7670 = vadd.f32 %v7629, %v7669
    %v7671 = vpop.f32.mrb[0].mxu0
    %v7672 = vadd.f32 %v7631, %v7671
    %v7673 = vpop.f32.mrb[0].mxu0
    %v7674 = vpop.f32.mrb[0].mxu0
    %7675 = vdwg.mxu0
    %v7684 = vcombine.low %v7178, %v7180
    %v7685 = vcombine.low %v7342, %v7344
    %v7687 = vunpack.c.l.s4 1983009808
    %v7688 = vunpack.c.0.s8 %v7687
    %v7689 = vlaneseq
    %v7690 = vshrl.u32 %v7689, 7
    %v7691 = vsub.s32 %v7688, %v7690
    %v7692 = vrot.slane %v7684, %v7691
    %v7694 = vunpack.c.l.s4 1983009808
    %v7695 = vunpack.c.0.s8 %v7694
    %v7696 = vlaneseq
    %v7697 = vshrl.u32 %v7696, 7
    %v7698 = vsub.s32 %v7695, %v7697
    %v7699 = vrot.slane %v7685, %v7698
    %v7700 = vcombine.low %v7692, %v7699
    %v7701 = vcombine.low %v7506, %v7508
    %v7702 = vcombine.low %v7670, %v7672
    %v7704 = vunpack.c.l.s4 1983009808
    %v7705 = vunpack.c.0.s8 %v7704
    %v7706 = vlaneseq
    %v7707 = vshrl.u32 %v7706, 7
    %v7708 = vsub.s32 %v7705, %v7707
    %v7709 = vrot.slane %v7701, %v7708
    %v7711 = vunpack.c.l.s4 1983009808
    %v7712 = vunpack.c.0.s8 %v7711
    %v7713 = vlaneseq
    %v7714 = vshrl.u32 %v7713, 7
    %v7715 = vsub.s32 %v7712, %v7714
    %v7716 = vrot.slane %v7702, %v7715
    %v7717 = vcombine.low %v7709, %v7716
    %7720 = vst [vmem:[#allocation14] sm:$0xff] %v7700
    %7721 = vst [vmem:[#allocation14 + $0x8] sm:$0xff] %v7717
    // Predicated region
    $region62: #{tpu_custom_call.1} parent=1 // pred_check
      _
    $region63: #{tpu_custom_call.1} parent=1 // pred_check_branch
      %7723 = sbr.rel (0) target = $region65
    $region64: #{tpu_custom_call.1} parent=1 // pred_region
      %s7725 = ssub.s32 256, 256
      %7726 = vsyncadd [#allocation4], %s7725
      %s7728 = sshll.u32 [#allocation14], 4
      %s7729 = int_to_ptr.vmem [resolvable:$true] %s7728
      %7731 = dma.vmem_to_hbm [thread:$0]  %s7729, 256, %s8, [#allocation4]
    $region65: #{tpu_custom_call.1} parent=1 // pred_fallthru
      _
    // Predicated region
    $region66: #{tpu_custom_call.1} parent=1 // pred_check
      _
    $region67: #{tpu_custom_call.1} parent=1 // pred_check_branch
      %7733 = sbr.rel (0) target = $region69
    $region68: #{tpu_custom_call.1} parent=1 // pred_region
      %7734 = dma.done [#allocation4], 256
    $region69: #{tpu_custom_call.1} parent=1 // pred_fallthru
      _
    %7735 = vsyncpa [#allocation3], 1
    %7736 = vsyncpa [#allocation6], 1
    %7737 = vsyncpa [#allocation9], 1
    %7738 = vsyncpa [#allocation12], 1
    %7739 = vsyncpa [#allocation4], 1

</llo_original>
